<compile_context>
chip_gen: v7x
topology: tpu7x:2x2x1
jax: 0.10.0
libtpu: 0.0.40
codegen_flags: <defaults>
</compile_context>

<pallas_src>
import functools
import math

import numpy as np
import jax
import jax.numpy as jnp
from jax.experimental import pallas as pl
from jax.experimental.pallas import tpu as pltpu


# --------------------------------------------------------------------------- activation
def _apply_act(y, act):
    if act == "relu":
        return jnp.maximum(y, 0.0)
    if act == "gelu":
        # TODO(synk): nn.GELU() defaults to the exact erf form; tanh approximation used here.
        c = jnp.float32(0.7978845608028654)
        return 0.5 * y * (1.0 + jnp.tanh(c * (y + 0.044715 * y * y * y)))
    return y


def _compiler_params():
    return pltpu.CompilerParams(dimension_semantics=("parallel",),
                                vmem_limit_bytes=32 * 1024 * 1024)


# --------------------------------------------------------------------------- in-kernel 3x3 conv helpers
def _conv3x3_from_pad(pad_ref, w_ref, Hc, Wc, C, acc=None):
    """3x3 'same' conv over the image held in the zero-bordered VMEM scratch `pad_ref` (Hc+2, Wc+2, C).

    The three kj taps of each ki are merged into a single MXU matmul with K=3*C by lane-concatenating the
    three column-shifted windows.  Extends/returns a running (Hc*Wc, Cout) f32 accumulator (no bias/act).
    """
    xp = pad_ref[...]                                               # (Hc+2, Wc+2, C) bf16
    for ki in range(3):
        rows = xp[ki:ki + Hc]                                       # (Hc, Wc+2, C) row-shifted slab
        win = jnp.concatenate(
            [rows[:, 0:Wc, :], rows[:, 1:Wc + 1, :], rows[:, 2:Wc + 2, :]], axis=-1)   # (Hc, Wc, 3C)
        d = jnp.dot(win.reshape(Hc * Wc, 3 * C), w_ref[ki],
                    preferred_element_type=jnp.float32)
        acc = d if acc is None else acc + d                         # single f32 accumulation chain
    return acc


def _conv3x3_from_img(img, pad_ref, w_ref, Hc, Wc, C, acc=None):
    """Store `img` (Hc, Wc, C) bf16 into the scratch interior (border stays zero) and run the conv."""
    pad_ref[1:Hc + 1, 1:Wc + 1, :] = img
    return _conv3x3_from_pad(pad_ref, w_ref, Hc, Wc, C, acc=acc)


# --------------------------------------------------------------------------- kernel A: upsample + conv_before
def _up_conv_before_kernel(x_ref, uwb_ref, w_ref, b_ref, o_ref, pad_ref,
                           *, H, W, Cin, Cout, act, h_lo, h_hi, h_t):
    """Bilinear 2x upsample (align_corners=True) fused with conv_before (3x3 conv + bias + act)."""
    Ho, Wo = 2 * H, 2 * W
    pad_ref[...] = jnp.zeros(pad_ref.shape, pad_ref.dtype)          # zero 1-px border (and interior) once
    x = x_ref[0]                                                    # (H, W, Cin) bf16
    # W-direction interp: one batched bf16 matmul (batch = the H input rows).
    y1 = jnp.einsum("hvw,hwc->hvc", uwb_ref[...], x,
                    preferred_element_type=jnp.float32)             # (H, Wo, Cin) f32
    # H-direction interp: static per-output-row lerp written straight into the padded conv scratch.
    for oh in range(Ho):
        lo, hi, t = h_lo[oh], h_hi[oh], h_t[oh]
        r = y1[lo] if (hi == lo or t == 0.0) else (1.0 - t) * y1[lo] + t * y1[hi]
        pad_ref[oh + 1, 1:Wo + 1, :] = r.astype(pad_ref.dtype)
    acc = _conv3x3_from_pad(pad_ref, w_ref, Ho, Wo, Cin)
    y = _apply_act(acc + b_ref[...], act)                           # (Ho*Wo, Cout) f32
    o_ref[0] = y.astype(o_ref.dtype)


# --------------------------------------------------------------------------- kernel B: attention + conv_after
def _att_conv_after_kernel(g_ref, s_ref, wg_ref, wx_ref, bgx_ref, wp_ref, bp_ref,
                           w1g_ref, w1s_ref, b1_ref, w2_ref, b2_ref, o_ref, pad_ref,
                           *, Ho, Wo, C, act):
    """Attention gate + conv_after (2 x [3x3 conv + bias + act]) fused per image.  The channel concat
    [gating, attended] is never materialized: split-K accumulation into one f32 accumulator."""
    M = Ho * Wo
    pad_ref[...] = jnp.zeros(pad_ref.shape, pad_ref.dtype)
    g_img = g_ref[0]                                                # (Ho, Wo, C) bf16
    s_img = s_ref[0]
    g = g_img.reshape(M, C)
    s = s_img.reshape(M, C)

    # attention gate: sigmoid(psi(relu(Wg g + Wx s + b))) * skip ; psi is a keepdims lane reduction.
    t = (jnp.dot(g, wg_ref[...], preferred_element_type=jnp.float32)
         + jnp.dot(s, wx_ref[...], preferred_element_type=jnp.float32)
         + bgx_ref[...])
    t = jnp.maximum(t, 0.0)
    alpha = jax.nn.sigmoid(jnp.sum(t * wp_ref[...], axis=-1, keepdims=True) + bp_ref[...])
    att = (s.astype(jnp.float32) * alpha).astype(jnp.bfloat16)      # (M, C)

    # conv_after layer 1 over concat([gating, attended]) via split-K (two weight halves, shared f32 acc).
    acc = _conv3x3_from_img(g_img, pad_ref, w1g_ref, Ho, Wo, C)
    acc = _conv3x3_from_img(att.reshape(Ho, Wo, C), pad_ref, w1s_ref, Ho, Wo, C, acc=acc)
    y1 = _apply_act(acc + b1_ref[...], act).astype(jnp.bfloat16)

    # conv_after layer 2.
    acc2 = _conv3x3_from_img(y1.reshape(Ho, Wo, C), pad_ref, w2_ref, Ho, Wo, C)
    y2 = _apply_act(acc2 + b2_ref[...], act)
    o_ref[0] = y2.astype(o_ref.dtype)


# --------------------------------------------------------------------------- interpolation coefficients
def _interp_coeffs(n_in, n_out):
    """align_corners=True linear-interp source indices / fractions for every output position."""
    scale = 0.0 if n_out <= 1 else (n_in - 1) / (n_out - 1)
    lo, hi, t = [], [], []
    for i in range(n_out):
        s = i * scale
        l = min(int(math.floor(s)), n_in - 1)
        h = min(l + 1, n_in - 1)
        lo.append(l)
        hi.append(h)
        t.append(float(s - l))
    return tuple(lo), tuple(hi), tuple(t)


def _w_interp_matrix(n_in, n_out):
    lo, hi, t = _interp_coeffs(n_in, n_out)
    m = np.zeros((n_out, n_in), np.float32)
    for i in range(n_out):
        m[i, lo[i]] += 1.0 - t[i]
        m[i, hi[i]] += t[i]
    return m


# --------------------------------------------------------------------------- pallas_call wrappers
def upsample_conv_before(x, cb, act):
    """x: (N, H, W, Cin) bf16 NHWC -> gating: (N, 2H*2W, Cout) bf16."""
    N, H, W, Cin = x.shape
    Cout = cb["w"].shape[-1]
    Ho, Wo = 2 * H, 2 * W
    uw = _w_interp_matrix(W, Wo)                                                  # (Wo, W)
    uwb = jnp.asarray(np.ascontiguousarray(np.broadcast_to(uw, (H, Wo, W))), jnp.bfloat16)
    h_lo, h_hi, h_t = _interp_coeffs(H, Ho)
    kern = functools.partial(_up_conv_before_kernel, H=H, W=W, Cin=Cin, Cout=Cout,
                             act=act, h_lo=h_lo, h_hi=h_hi, h_t=h_t)
    return pl.pallas_call(
        kern,
        out_shape=jax.ShapeDtypeStruct((N, Ho * Wo, Cout), jnp.bfloat16),
        grid=(N,),
        in_specs=[
            pl.BlockSpec((1, H, W, Cin), lambda n: (n, 0, 0, 0)),
            pl.BlockSpec((H, Wo, W), lambda n: (0, 0, 0)),
            pl.BlockSpec((3, 3 * Cin, Cout), lambda n: (0, 0, 0)),
            pl.BlockSpec((1, Cout), lambda n: (0, 0)),
        ],
        out_specs=pl.BlockSpec((1, Ho * Wo, Cout), lambda n: (n, 0, 0)),
        scratch_shapes=[pltpu.VMEM((Ho + 2, Wo + 2, Cin), jnp.bfloat16)],
        compiler_params=_compiler_params(),
    )(x, uwb, cb["w"], cb["b"])


def attention_conv_after(gating, skip, att, ca, act):
    """gating/skip: (N, Ho, Wo, C) bf16 NHWC -> output: (N, Ho*Wo, C) f32."""
    N, Ho, Wo, C = gating.shape
    fint = att["wg"].shape[-1]
    kern = functools.partial(_att_conv_after_kernel, Ho=Ho, Wo=Wo, C=C, act=act)
    return pl.pallas_call(
        kern,
        out_shape=jax.ShapeDtypeStruct((N, Ho * Wo, C), jnp.float32),
        grid=(N,),
        in_specs=[
            pl.BlockSpec((1, Ho, Wo, C), lambda n: (n, 0, 0, 0)),   # gating
            pl.BlockSpec((1, Ho, Wo, C), lambda n: (n, 0, 0, 0)),   # skip
            pl.BlockSpec((C, fint), lambda n: (0, 0)),              # W_g
            pl.BlockSpec((C, fint), lambda n: (0, 0)),              # W_x
            pl.BlockSpec((1, fint), lambda n: (0, 0)),              # b_g + b_x (folded)
            pl.BlockSpec((1, fint), lambda n: (0, 0)),              # psi weight
            pl.BlockSpec((1, 1), lambda n: (0, 0)),                 # psi bias
            pl.BlockSpec((3, 3 * C, C), lambda n: (0, 0, 0)),       # conv_after L1, gating half
            pl.BlockSpec((3, 3 * C, C), lambda n: (0, 0, 0)),       # conv_after L1, attended half
            pl.BlockSpec((1, C), lambda n: (0, 0)),                 # b1
            pl.BlockSpec((3, 3 * C, C), lambda n: (0, 0, 0)),       # conv_after L2
            pl.BlockSpec((1, C), lambda n: (0, 0)),                 # b2
        ],
        out_specs=pl.BlockSpec((1, Ho * Wo, C), lambda n: (n, 0, 0)),
        scratch_shapes=[pltpu.VMEM((Ho + 2, Wo + 2, C), jnp.bfloat16)],
        compiler_params=_compiler_params(),
    )(gating, skip, att["wg"], att["wx"], att["b_gx"], att["wp"], att["bp"],
      ca["w1g"], ca["w1s"], ca["b1"], ca["w2"], ca["b2"])


# --------------------------------------------------------------------------- parameters
def init_attention_unet_right_params(key, in_channels, out_channels, stack_num=2):
    assert stack_num == 2, "fused conv_after kernel implements the module default stack_num=2"
    fint = max(out_channels // 2, 1)
    ks = iter(jax.random.split(key, 16))

    def conv_w(k, cin, cout):
        # packed 3x3 weight layout: (ki, kj*Cin + cin, cout).
        # To load real torch weights: w_torch (Cout,Cin,3,3).permute(2,3,1,0).reshape(3, 3*Cin, Cout).
        fan_in = 9 * cin
        w = jax.random.normal(k, (3, 3 * cin, cout), jnp.float32) / math.sqrt(fan_in)
        return w.astype(jnp.bfloat16)

    def vec(k, n, scale=0.01):
        return jax.random.normal(k, (1, n), jnp.float32) * scale

    def dense_w(k, cin, cout):
        return (jax.random.normal(k, (cin, cout), jnp.float32) / math.sqrt(cin)).astype(jnp.bfloat16)

    return {
        "conv_before": {"w": conv_w(next(ks), in_channels, out_channels),
                        "b": vec(next(ks), out_channels)},
        "att": {"wg": dense_w(next(ks), out_channels, fint),
                "wx": dense_w(next(ks), out_channels, fint),
                # W_g and W_x biases only ever appear summed -> folded into one vector.
                "b_gx": vec(next(ks), fint) + vec(next(ks), fint),
                "wp": jax.random.normal(next(ks), (1, fint), jnp.float32) / math.sqrt(fint),
                "bp": jax.random.normal(next(ks), (1, 1), jnp.float32) * 0.01},
        "conv_after": {"w1g": conv_w(next(ks), out_channels, out_channels),
                       "w1s": conv_w(next(ks), out_channels, out_channels),
                       "b1": vec(next(ks), out_channels),
                       "w2": conv_w(next(ks), out_channels, out_channels),
                       "b2": vec(next(ks), out_channels)},
    }


# --------------------------------------------------------------------------- forward
def attention_unet_right_forward(params, x_nchw, skip_nchw, activation="relu"):
    """AttentionUNetRight.forward(x, skip) with module defaults (bilinear up, no BN, ReLU, stack_num=2)."""
    # TODO(synk): the unpool=False (ConvTranspose2d) branch of `self.up` is not implemented here.
    N, Cin, H, W = x_nchw.shape
    Cout = skip_nchw.shape[1]
    Ho, Wo = 2 * H, 2 * W
    x = jnp.transpose(x_nchw, (0, 2, 3, 1)).astype(jnp.bfloat16)        # NCHW -> NHWC, bf16 activations
    skip = jnp.transpose(skip_nchw, (0, 2, 3, 1)).astype(jnp.bfloat16)

    gating = upsample_conv_before(x, params["conv_before"], activation)          # (N, Ho*Wo, Cout) bf16
    gating = gating.reshape(N, Ho, Wo, Cout)                                     # free row-major reshape
    out = attention_conv_after(gating, skip, params["att"], params["conv_after"], activation)
    return jnp.transpose(out.reshape(N, Ho, Wo, Cout), (0, 3, 1, 2))             # back to NCHW, f32


# --------------------------------------------------------------------------- main
if __name__ == "__main__":
    key = jax.random.PRNGKey(0)
    kp, kx, ks = jax.random.split(key, 3)

    # AttentionUNetRight(in_channels=32, out_channels=16, stack_num=2, activation='relu', unpool=True)
    in_ch, out_ch = 32, 16
    N, H, W = 2, 8, 8                 # x: low-res decoder feature; skip: encoder feature at 2x resolution

    params = init_attention_unet_right_params(kp, in_ch, out_ch, stack_num=2)
    x = jax.random.normal(kx, (N, in_ch, H, W), jnp.float32)
    skip = jax.random.normal(ks, (N, out_ch, 2 * H, 2 * W), jnp.float32)

    out = jax.jit(attention_unet_right_forward)(params, x, skip)
    out = jax.block_until_ready(out)
    assert out.shape == (N, out_ch, 2 * H, 2 * W)
    assert bool(jnp.all(jnp.isfinite(out)))
    assert bool(jnp.all(out >= 0.0))  # final ConvBlock layer ends with ReLU
    print("KERNEL_OK")
</pallas_src>

<mosaic_0001>
module attributes {stable_mosaic.version = 11 : i64} {
  func.func @_att_conv_after_kernel(%arg0: i32, %arg1: memref<1x16x16x16xbf16, #tpu.memory_space<vmem>>, %arg2: memref<1x16x16x16xbf16, #tpu.memory_space<vmem>>, %arg3: memref<16x8xbf16, #tpu.memory_space<vmem>>, %arg4: memref<16x8xbf16, #tpu.memory_space<vmem>>, %arg5: memref<1x8xf32, #tpu.memory_space<vmem>>, %arg6: memref<1x8xf32, #tpu.memory_space<vmem>>, %arg7: memref<1x1xf32, #tpu.memory_space<vmem>>, %arg8: memref<3x48x16xbf16, #tpu.memory_space<vmem>>, %arg9: memref<3x48x16xbf16, #tpu.memory_space<vmem>>, %arg10: memref<1x16xf32, #tpu.memory_space<vmem>>, %arg11: memref<3x48x16xbf16, #tpu.memory_space<vmem>>, %arg12: memref<1x16xf32, #tpu.memory_space<vmem>>, %arg13: memref<1x256x16xf32, #tpu.memory_space<vmem>>, %arg14: memref<18x18x16xbf16, #tpu.memory_space<vmem>>) attributes {dimension_semantics = [#tpu.dimension_semantics<parallel>], iteration_bounds = array<i64: 2>, scalar_prefetch = 0 : i64, scratch_operands = 1 : i64, tpu.core_type = #tpu.core_type<tc>, window_params = [{transform_indices = @transform_0, window_bounds = array<i64: 1, 16, 16, 16>}, {transform_indices = @transform_1, window_bounds = array<i64: 1, 16, 16, 16>}, {pipeline_mode = #tpu.pipeline_mode<synchronous>, transform_indices = @transform_2, window_bounds = array<i64: 16, 8>}, {pipeline_mode = #tpu.pipeline_mode<synchronous>, transform_indices = @transform_3, window_bounds = array<i64: 16, 8>}, {pipeline_mode = #tpu.pipeline_mode<synchronous>, transform_indices = @transform_4, window_bounds = array<i64: 1, 8>}, {pipeline_mode = #tpu.pipeline_mode<synchronous>, transform_indices = @transform_5, window_bounds = array<i64: 1, 8>}, {pipeline_mode = #tpu.pipeline_mode<synchronous>, transform_indices = @transform_6, window_bounds = array<i64: 1, 1>}, {pipeline_mode = #tpu.pipeline_mode<synchronous>, transform_indices = @transform_7, window_bounds = array<i64: 3, 48, 16>}, {pipeline_mode = #tpu.pipeline_mode<synchronous>, transform_indices = @transform_8, window_bounds = array<i64: 3, 48, 16>}, {pipeline_mode = #tpu.pipeline_mode<synchronous>, transform_indices = @transform_9, window_bounds = array<i64: 1, 16>}, {pipeline_mode = #tpu.pipeline_mode<synchronous>, transform_indices = @transform_10, window_bounds = array<i64: 3, 48, 16>}, {pipeline_mode = #tpu.pipeline_mode<synchronous>, transform_indices = @transform_11, window_bounds = array<i64: 1, 16>}, {transform_indices = @transform_12, window_bounds = array<i64: 1, 256, 16>}]} {
    %cst = arith.constant 0.000000e+00 : bf16
    %0 = vector.broadcast %cst : bf16 to vector<18x18x16xbf16>
    %c0 = arith.constant 0 : index
    %c0_0 = arith.constant 0 : index
    %c0_1 = arith.constant 0 : index
    %1 = vector.load %arg14[%c0, %c0_0, %c0_1] : memref<18x18x16xbf16, #tpu.memory_space<vmem>>, vector<18x18x16xbf16>
    tpu.vector_store %arg14[%c0, %c0_0, %c0_1], %0 {strides = array<i32>} : memref<18x18x16xbf16, #tpu.memory_space<vmem>>, vector<18x18x16xbf16>,
    %c0_2 = arith.constant 0 : index
    %c0_3 = arith.constant 0 : index
    %c0_4 = arith.constant 0 : index
    %c0_5 = arith.constant 0 : index
    %2 = vector.load %arg1[%c0_2, %c0_3, %c0_4, %c0_5] : memref<1x16x16x16xbf16, #tpu.memory_space<vmem>>, vector<1x16x16x16xbf16>
    %3 = vector.shape_cast %2 : vector<1x16x16x16xbf16> to vector<16x16x16xbf16>
    %c0_6 = arith.constant 0 : index
    %c0_7 = arith.constant 0 : index
    %c0_8 = arith.constant 0 : index
    %c0_9 = arith.constant 0 : index
    %4 = vector.load %arg2[%c0_6, %c0_7, %c0_8, %c0_9] : memref<1x16x16x16xbf16, #tpu.memory_space<vmem>>, vector<1x16x16x16xbf16>
    %5 = vector.shape_cast %4 : vector<1x16x16x16xbf16> to vector<16x16x16xbf16>
    %6 = vector.shape_cast %3 : vector<16x16x16xbf16> to vector<256x16xbf16>
    %7 = vector.shape_cast %5 : vector<16x16x16xbf16> to vector<256x16xbf16>
    %c0_10 = arith.constant 0 : index
    %c0_11 = arith.constant 0 : index
    %8 = vector.load %arg3[%c0_10, %c0_11] : memref<16x8xbf16, #tpu.memory_space<vmem>>, vector<16x8xbf16>
    %cst_12 = arith.constant dense<0.000000e+00> : vector<256x8xf32>
    %9 = tpu.matmul %6, %8, %cst_12 {dimension_numbers = #tpu.dot_dimension_numbers<[1], [0], [0], [1], [0, 0, 1, 1], [], []>} : vector<256x16xbf16>, vector<16x8xbf16>, vector<256x8xf32> -> vector<256x8xf32>
    %c0_13 = arith.constant 0 : index
    %c0_14 = arith.constant 0 : index
    %10 = vector.load %arg4[%c0_13, %c0_14] : memref<16x8xbf16, #tpu.memory_space<vmem>>, vector<16x8xbf16>
    %cst_15 = arith.constant dense<0.000000e+00> : vector<256x8xf32>
    %11 = tpu.matmul %7, %10, %cst_15 {dimension_numbers = #tpu.dot_dimension_numbers<[1], [0], [0], [1], [0, 0, 1, 1], [], []>} : vector<256x16xbf16>, vector<16x8xbf16>, vector<256x8xf32> -> vector<256x8xf32>
    %12 = arith.addf %9, %11 : vector<256x8xf32>
    %c0_16 = arith.constant 0 : index
    %c0_17 = arith.constant 0 : index
    %13 = vector.load %arg5[%c0_16, %c0_17] : memref<1x8xf32, #tpu.memory_space<vmem>>, vector<1x8xf32>
    %14 = vector.broadcast %13 : vector<1x8xf32> to vector<256x8xf32>
    %15 = arith.addf %12, %14 : vector<256x8xf32>
    %cst_18 = arith.constant 0.000000e+00 : f32
    %16 = vector.broadcast %cst_18 : f32 to vector<256x8xf32>
    %17 = arith.maximumf %15, %16 : vector<256x8xf32>
    %c0_19 = arith.constant 0 : index
    %c0_20 = arith.constant 0 : index
    %18 = vector.load %arg6[%c0_19, %c0_20] : memref<1x8xf32, #tpu.memory_space<vmem>>, vector<1x8xf32>
    %19 = vector.broadcast %18 : vector<1x8xf32> to vector<256x8xf32>
    %20 = arith.mulf %17, %19 : vector<256x8xf32>
    %cst_21 = arith.constant dense<0.000000e+00> : vector<256xf32>
    %21 = vector.multi_reduction <add>, %20, %cst_21 [1] : vector<256x8xf32> to vector<256xf32>
    %22 = vector.shape_cast %21 : vector<256xf32> to vector<256x1xf32>
    %c0_22 = arith.constant 0 : index
    %c0_23 = arith.constant 0 : index
    %23 = vector.load %arg7[%c0_22, %c0_23] : memref<1x1xf32, #tpu.memory_space<vmem>>, vector<1x1xf32>
    %24 = vector.broadcast %23 : vector<1x1xf32> to vector<256x1xf32>
    %25 = arith.addf %22, %24 : vector<256x1xf32>
    %26 = arith.negf %25 : vector<256x1xf32>
    %27 = math.exp %26 : vector<256x1xf32>
    %cst_24 = arith.constant 1.000000e+00 : f32
    %28 = vector.broadcast %cst_24 : f32 to vector<256x1xf32>
    %29 = arith.addf %28, %27 : vector<256x1xf32>
    %30 = arith.divf %28, %29 : vector<256x1xf32>
    %31 = arith.extf %7 : vector<256x16xbf16> to vector<256x16xf32>
    %32 = vector.broadcast %30 : vector<256x1xf32> to vector<256x16xf32>
    %33 = arith.mulf %31, %32 : vector<256x16xf32>
    %34 = arith.truncf %33 : vector<256x16xf32> to vector<256x16xbf16>
    %c1 = arith.constant 1 : index
    %c1_25 = arith.constant 1 : index
    %c0_26 = arith.constant 0 : index
    %35 = vector.load %arg14[%c1, %c1_25, %c0_26] : memref<18x18x16xbf16, #tpu.memory_space<vmem>>, vector<16x16x16xbf16>
    tpu.vector_store %arg14[%c1, %c1_25, %c0_26], %3 {strides = array<i32>} : memref<18x18x16xbf16, #tpu.memory_space<vmem>>, vector<16x16x16xbf16>,
    %c0_27 = arith.constant 0 : index
    %c0_28 = arith.constant 0 : index
    %c0_29 = arith.constant 0 : index
    %36 = vector.load %arg14[%c0_27, %c0_28, %c0_29] : memref<18x18x16xbf16, #tpu.memory_space<vmem>>, vector<18x18x16xbf16>
    %37 = vector.extract_strided_slice %36 {offsets = [0, 0, 0], sizes = [16, 18, 16], strides = [1, 1, 1]} : vector<18x18x16xbf16> to vector<16x18x16xbf16>
    %38 = vector.extract_strided_slice %37 {offsets = [0, 0, 0], sizes = [16, 16, 16], strides = [1, 1, 1]} : vector<16x18x16xbf16> to vector<16x16x16xbf16>
    %39 = vector.extract_strided_slice %37 {offsets = [0, 1, 0], sizes = [16, 16, 16], strides = [1, 1, 1]} : vector<16x18x16xbf16> to vector<16x16x16xbf16>
    %40 = vector.extract_strided_slice %37 {offsets = [0, 2, 0], sizes = [16, 16, 16], strides = [1, 1, 1]} : vector<16x18x16xbf16> to vector<16x16x16xbf16>
    %41 = tpu.concatenate %38, %39, %40 in 2 : vector<16x16x16xbf16>, vector<16x16x16xbf16>, vector<16x16x16xbf16> -> vector<16x16x48xbf16>
    %42 = vector.shape_cast %41 : vector<16x16x48xbf16> to vector<256x48xbf16>
    %c0_30 = arith.constant 0 : index
    %c0_31 = arith.constant 0 : index
    %c0_32 = arith.constant 0 : index
    %43 = vector.load %arg8[%c0_30, %c0_31, %c0_32] : memref<3x48x16xbf16, #tpu.memory_space<vmem>>, vector<1x48x16xbf16>
    %44 = vector.shape_cast %43 : vector<1x48x16xbf16> to vector<48x16xbf16>
    %cst_33 = arith.constant dense<0.000000e+00> : vector<256x16xf32>
    %45 = tpu.matmul %42, %44, %cst_33 {dimension_numbers = #tpu.dot_dimension_numbers<[1], [0], [0], [1], [0, 0, 1, 1], [], []>} : vector<256x48xbf16>, vector<48x16xbf16>, vector<256x16xf32> -> vector<256x16xf32>
    %46 = vector.extract_strided_slice %36 {offsets = [1, 0, 0], sizes = [16, 18, 16], strides = [1, 1, 1]} : vector<18x18x16xbf16> to vector<16x18x16xbf16>
    %47 = vector.extract_strided_slice %46 {offsets = [0, 0, 0], sizes = [16, 16, 16], strides = [1, 1, 1]} : vector<16x18x16xbf16> to vector<16x16x16xbf16>
    %48 = vector.extract_strided_slice %46 {offsets = [0, 1, 0], sizes = [16, 16, 16], strides = [1, 1, 1]} : vector<16x18x16xbf16> to vector<16x16x16xbf16>
    %49 = vector.extract_strided_slice %46 {offsets = [0, 2, 0], sizes = [16, 16, 16], strides = [1, 1, 1]} : vector<16x18x16xbf16> to vector<16x16x16xbf16>
    %50 = tpu.concatenate %47, %48, %49 in 2 : vector<16x16x16xbf16>, vector<16x16x16xbf16>, vector<16x16x16xbf16> -> vector<16x16x48xbf16>
    %51 = vector.shape_cast %50 : vector<16x16x48xbf16> to vector<256x48xbf16>
    %c1_34 = arith.constant 1 : index
    %c0_35 = arith.constant 0 : index
    %c0_36 = arith.constant 0 : index
    %52 = vector.load %arg8[%c1_34, %c0_35, %c0_36] : memref<3x48x16xbf16, #tpu.memory_space<vmem>>, vector<1x48x16xbf16>
    %53 = vector.shape_cast %52 : vector<1x48x16xbf16> to vector<48x16xbf16>
    %cst_37 = arith.constant dense<0.000000e+00> : vector<256x16xf32>
    %54 = tpu.matmul %51, %53, %cst_37 {dimension_numbers = #tpu.dot_dimension_numbers<[1], [0], [0], [1], [0, 0, 1, 1], [], []>} : vector<256x48xbf16>, vector<48x16xbf16>, vector<256x16xf32> -> vector<256x16xf32>
    %55 = arith.addf %45, %54 : vector<256x16xf32>
    %56 = vector.extract_strided_slice %36 {offsets = [2, 0, 0], sizes = [16, 18, 16], strides = [1, 1, 1]} : vector<18x18x16xbf16> to vector<16x18x16xbf16>
    %57 = vector.extract_strided_slice %56 {offsets = [0, 0, 0], sizes = [16, 16, 16], strides = [1, 1, 1]} : vector<16x18x16xbf16> to vector<16x16x16xbf16>
    %58 = vector.extract_strided_slice %56 {offsets = [0, 1, 0], sizes = [16, 16, 16], strides = [1, 1, 1]} : vector<16x18x16xbf16> to vector<16x16x16xbf16>
    %59 = vector.extract_strided_slice %56 {offsets = [0, 2, 0], sizes = [16, 16, 16], strides = [1, 1, 1]} : vector<16x18x16xbf16> to vector<16x16x16xbf16>
    %60 = tpu.concatenate %57, %58, %59 in 2 : vector<16x16x16xbf16>, vector<16x16x16xbf16>, vector<16x16x16xbf16> -> vector<16x16x48xbf16>
    %61 = vector.shape_cast %60 : vector<16x16x48xbf16> to vector<256x48xbf16>
    %c2 = arith.constant 2 : index
    %c0_38 = arith.constant 0 : index
    %c0_39 = arith.constant 0 : index
    %62 = vector.load %arg8[%c2, %c0_38, %c0_39] : memref<3x48x16xbf16, #tpu.memory_space<vmem>>, vector<1x48x16xbf16>
    %63 = vector.shape_cast %62 : vector<1x48x16xbf16> to vector<48x16xbf16>
    %cst_40 = arith.constant dense<0.000000e+00> : vector<256x16xf32>
    %64 = tpu.matmul %61, %63, %cst_40 {dimension_numbers = #tpu.dot_dimension_numbers<[1], [0], [0], [1], [0, 0, 1, 1], [], []>} : vector<256x48xbf16>, vector<48x16xbf16>, vector<256x16xf32> -> vector<256x16xf32>
    %65 = arith.addf %55, %64 : vector<256x16xf32>
    %66 = vector.shape_cast %34 : vector<256x16xbf16> to vector<16x16x16xbf16>
    %c1_41 = arith.constant 1 : index
    %c1_42 = arith.constant 1 : index
    %c0_43 = arith.constant 0 : index
    %67 = vector.load %arg14[%c1_41, %c1_42, %c0_43] : memref<18x18x16xbf16, #tpu.memory_space<vmem>>, vector<16x16x16xbf16>
    tpu.vector_store %arg14[%c1_41, %c1_42, %c0_43], %66 {strides = array<i32>} : memref<18x18x16xbf16, #tpu.memory_space<vmem>>, vector<16x16x16xbf16>,
    %c0_44 = arith.constant 0 : index
    %c0_45 = arith.constant 0 : index
    %c0_46 = arith.constant 0 : index
    %68 = vector.load %arg14[%c0_44, %c0_45, %c0_46] : memref<18x18x16xbf16, #tpu.memory_space<vmem>>, vector<18x18x16xbf16>
    %69 = vector.extract_strided_slice %68 {offsets = [0, 0, 0], sizes = [16, 18, 16], strides = [1, 1, 1]} : vector<18x18x16xbf16> to vector<16x18x16xbf16>
    %70 = vector.extract_strided_slice %69 {offsets = [0, 0, 0], sizes = [16, 16, 16], strides = [1, 1, 1]} : vector<16x18x16xbf16> to vector<16x16x16xbf16>
    %71 = vector.extract_strided_slice %69 {offsets = [0, 1, 0], sizes = [16, 16, 16], strides = [1, 1, 1]} : vector<16x18x16xbf16> to vector<16x16x16xbf16>
    %72 = vector.extract_strided_slice %69 {offsets = [0, 2, 0], sizes = [16, 16, 16], strides = [1, 1, 1]} : vector<16x18x16xbf16> to vector<16x16x16xbf16>
    %73 = tpu.concatenate %70, %71, %72 in 2 : vector<16x16x16xbf16>, vector<16x16x16xbf16>, vector<16x16x16xbf16> -> vector<16x16x48xbf16>
    %74 = vector.shape_cast %73 : vector<16x16x48xbf16> to vector<256x48xbf16>
    %c0_47 = arith.constant 0 : index
    %c0_48 = arith.constant 0 : index
    %c0_49 = arith.constant 0 : index
    %75 = vector.load %arg9[%c0_47, %c0_48, %c0_49] : memref<3x48x16xbf16, #tpu.memory_space<vmem>>, vector<1x48x16xbf16>
    %76 = vector.shape_cast %75 : vector<1x48x16xbf16> to vector<48x16xbf16>
    %cst_50 = arith.constant dense<0.000000e+00> : vector<256x16xf32>
    %77 = tpu.matmul %74, %76, %cst_50 {dimension_numbers = #tpu.dot_dimension_numbers<[1], [0], [0], [1], [0, 0, 1, 1], [], []>} : vector<256x48xbf16>, vector<48x16xbf16>, vector<256x16xf32> -> vector<256x16xf32>
    %78 = arith.addf %65, %77 : vector<256x16xf32>
    %79 = vector.extract_strided_slice %68 {offsets = [1, 0, 0], sizes = [16, 18, 16], strides = [1, 1, 1]} : vector<18x18x16xbf16> to vector<16x18x16xbf16>
    %80 = vector.extract_strided_slice %79 {offsets = [0, 0, 0], sizes = [16, 16, 16], strides = [1, 1, 1]} : vector<16x18x16xbf16> to vector<16x16x16xbf16>
    %81 = vector.extract_strided_slice %79 {offsets = [0, 1, 0], sizes = [16, 16, 16], strides = [1, 1, 1]} : vector<16x18x16xbf16> to vector<16x16x16xbf16>
    %82 = vector.extract_strided_slice %79 {offsets = [0, 2, 0], sizes = [16, 16, 16], strides = [1, 1, 1]} : vector<16x18x16xbf16> to vector<16x16x16xbf16>
    %83 = tpu.concatenate %80, %81, %82 in 2 : vector<16x16x16xbf16>, vector<16x16x16xbf16>, vector<16x16x16xbf16> -> vector<16x16x48xbf16>
    %84 = vector.shape_cast %83 : vector<16x16x48xbf16> to vector<256x48xbf16>
    %c1_51 = arith.constant 1 : index
    %c0_52 = arith.constant 0 : index
    %c0_53 = arith.constant 0 : index
    %85 = vector.load %arg9[%c1_51, %c0_52, %c0_53] : memref<3x48x16xbf16, #tpu.memory_space<vmem>>, vector<1x48x16xbf16>
    %86 = vector.shape_cast %85 : vector<1x48x16xbf16> to vector<48x16xbf16>
    %cst_54 = arith.constant dense<0.000000e+00> : vector<256x16xf32>
    %87 = tpu.matmul %84, %86, %cst_54 {dimension_numbers = #tpu.dot_dimension_numbers<[1], [0], [0], [1], [0, 0, 1, 1], [], []>} : vector<256x48xbf16>, vector<48x16xbf16>, vector<256x16xf32> -> vector<256x16xf32>
    %88 = arith.addf %78, %87 : vector<256x16xf32>
    %89 = vector.extract_strided_slice %68 {offsets = [2, 0, 0], sizes = [16, 18, 16], strides = [1, 1, 1]} : vector<18x18x16xbf16> to vector<16x18x16xbf16>
    %90 = vector.extract_strided_slice %89 {offsets = [0, 0, 0], sizes = [16, 16, 16], strides = [1, 1, 1]} : vector<16x18x16xbf16> to vector<16x16x16xbf16>
    %91 = vector.extract_strided_slice %89 {offsets = [0, 1, 0], sizes = [16, 16, 16], strides = [1, 1, 1]} : vector<16x18x16xbf16> to vector<16x16x16xbf16>
    %92 = vector.extract_strided_slice %89 {offsets = [0, 2, 0], sizes = [16, 16, 16], strides = [1, 1, 1]} : vector<16x18x16xbf16> to vector<16x16x16xbf16>
    %93 = tpu.concatenate %90, %91, %92 in 2 : vector<16x16x16xbf16>, vector<16x16x16xbf16>, vector<16x16x16xbf16> -> vector<16x16x48xbf16>
    %94 = vector.shape_cast %93 : vector<16x16x48xbf16> to vector<256x48xbf16>
    %c2_55 = arith.constant 2 : index
    %c0_56 = arith.constant 0 : index
    %c0_57 = arith.constant 0 : index
    %95 = vector.load %arg9[%c2_55, %c0_56, %c0_57] : memref<3x48x16xbf16, #tpu.memory_space<vmem>>, vector<1x48x16xbf16>
    %96 = vector.shape_cast %95 : vector<1x48x16xbf16> to vector<48x16xbf16>
    %cst_58 = arith.constant dense<0.000000e+00> : vector<256x16xf32>
    %97 = tpu.matmul %94, %96, %cst_58 {dimension_numbers = #tpu.dot_dimension_numbers<[1], [0], [0], [1], [0, 0, 1, 1], [], []>} : vector<256x48xbf16>, vector<48x16xbf16>, vector<256x16xf32> -> vector<256x16xf32>
    %98 = arith.addf %88, %97 : vector<256x16xf32>
    %c0_59 = arith.constant 0 : index
    %c0_60 = arith.constant 0 : index
    %99 = vector.load %arg10[%c0_59, %c0_60] : memref<1x16xf32, #tpu.memory_space<vmem>>, vector<1x16xf32>
    %100 = vector.broadcast %99 : vector<1x16xf32> to vector<256x16xf32>
    %101 = arith.addf %98, %100 : vector<256x16xf32>
    %cst_61 = arith.constant 0.000000e+00 : f32
    %102 = vector.broadcast %cst_61 : f32 to vector<256x16xf32>
    %103 = arith.maximumf %101, %102 : vector<256x16xf32>
    %104 = arith.truncf %103 : vector<256x16xf32> to vector<256x16xbf16>
    %105 = vector.shape_cast %104 : vector<256x16xbf16> to vector<16x16x16xbf16>
    %c1_62 = arith.constant 1 : index
    %c1_63 = arith.constant 1 : index
    %c0_64 = arith.constant 0 : index
    %106 = vector.load %arg14[%c1_62, %c1_63, %c0_64] : memref<18x18x16xbf16, #tpu.memory_space<vmem>>, vector<16x16x16xbf16>
    tpu.vector_store %arg14[%c1_62, %c1_63, %c0_64], %105 {strides = array<i32>} : memref<18x18x16xbf16, #tpu.memory_space<vmem>>, vector<16x16x16xbf16>,
    %c0_65 = arith.constant 0 : index
    %c0_66 = arith.constant 0 : index
    %c0_67 = arith.constant 0 : index
    %107 = vector.load %arg14[%c0_65, %c0_66, %c0_67] : memref<18x18x16xbf16, #tpu.memory_space<vmem>>, vector<18x18x16xbf16>
    %108 = vector.extract_strided_slice %107 {offsets = [0, 0, 0], sizes = [16, 18, 16], strides = [1, 1, 1]} : vector<18x18x16xbf16> to vector<16x18x16xbf16>
    %109 = vector.extract_strided_slice %108 {offsets = [0, 0, 0], sizes = [16, 16, 16], strides = [1, 1, 1]} : vector<16x18x16xbf16> to vector<16x16x16xbf16>
    %110 = vector.extract_strided_slice %108 {offsets = [0, 1, 0], sizes = [16, 16, 16], strides = [1, 1, 1]} : vector<16x18x16xbf16> to vector<16x16x16xbf16>
    %111 = vector.extract_strided_slice %108 {offsets = [0, 2, 0], sizes = [16, 16, 16], strides = [1, 1, 1]} : vector<16x18x16xbf16> to vector<16x16x16xbf16>
    %112 = tpu.concatenate %109, %110, %111 in 2 : vector<16x16x16xbf16>, vector<16x16x16xbf16>, vector<16x16x16xbf16> -> vector<16x16x48xbf16>
    %113 = vector.shape_cast %112 : vector<16x16x48xbf16> to vector<256x48xbf16>
    %c0_68 = arith.constant 0 : index
    %c0_69 = arith.constant 0 : index
    %c0_70 = arith.constant 0 : index
    %114 = vector.load %arg11[%c0_68, %c0_69, %c0_70] : memref<3x48x16xbf16, #tpu.memory_space<vmem>>, vector<1x48x16xbf16>
    %115 = vector.shape_cast %114 : vector<1x48x16xbf16> to vector<48x16xbf16>
    %cst_71 = arith.constant dense<0.000000e+00> : vector<256x16xf32>
    %116 = tpu.matmul %113, %115, %cst_71 {dimension_numbers = #tpu.dot_dimension_numbers<[1], [0], [0], [1], [0, 0, 1, 1], [], []>} : vector<256x48xbf16>, vector<48x16xbf16>, vector<256x16xf32> -> vector<256x16xf32>
    %117 = vector.extract_strided_slice %107 {offsets = [1, 0, 0], sizes = [16, 18, 16], strides = [1, 1, 1]} : vector<18x18x16xbf16> to vector<16x18x16xbf16>
    %118 = vector.extract_strided_slice %117 {offsets = [0, 0, 0], sizes = [16, 16, 16], strides = [1, 1, 1]} : vector<16x18x16xbf16> to vector<16x16x16xbf16>
    %119 = vector.extract_strided_slice %117 {offsets = [0, 1, 0], sizes = [16, 16, 16], strides = [1, 1, 1]} : vector<16x18x16xbf16> to vector<16x16x16xbf16>
    %120 = vector.extract_strided_slice %117 {offsets = [0, 2, 0], sizes = [16, 16, 16], strides = [1, 1, 1]} : vector<16x18x16xbf16> to vector<16x16x16xbf16>
    %121 = tpu.concatenate %118, %119, %120 in 2 : vector<16x16x16xbf16>, vector<16x16x16xbf16>, vector<16x16x16xbf16> -> vector<16x16x48xbf16>
    %122 = vector.shape_cast %121 : vector<16x16x48xbf16> to vector<256x48xbf16>
    %c1_72 = arith.constant 1 : index
    %c0_73 = arith.constant 0 : index
    %c0_74 = arith.constant 0 : index
    %123 = vector.load %arg11[%c1_72, %c0_73, %c0_74] : memref<3x48x16xbf16, #tpu.memory_space<vmem>>, vector<1x48x16xbf16>
    %124 = vector.shape_cast %123 : vector<1x48x16xbf16> to vector<48x16xbf16>
    %cst_75 = arith.constant dense<0.000000e+00> : vector<256x16xf32>
    %125 = tpu.matmul %122, %124, %cst_75 {dimension_numbers = #tpu.dot_dimension_numbers<[1], [0], [0], [1], [0, 0, 1, 1], [], []>} : vector<256x48xbf16>, vector<48x16xbf16>, vector<256x16xf32> -> vector<256x16xf32>
    %126 = arith.addf %116, %125 : vector<256x16xf32>
    %127 = vector.extract_strided_slice %107 {offsets = [2, 0, 0], sizes = [16, 18, 16], strides = [1, 1, 1]} : vector<18x18x16xbf16> to vector<16x18x16xbf16>
    %128 = vector.extract_strided_slice %127 {offsets = [0, 0, 0], sizes = [16, 16, 16], strides = [1, 1, 1]} : vector<16x18x16xbf16> to vector<16x16x16xbf16>
    %129 = vector.extract_strided_slice %127 {offsets = [0, 1, 0], sizes = [16, 16, 16], strides = [1, 1, 1]} : vector<16x18x16xbf16> to vector<16x16x16xbf16>
    %130 = vector.extract_strided_slice %127 {offsets = [0, 2, 0], sizes = [16, 16, 16], strides = [1, 1, 1]} : vector<16x18x16xbf16> to vector<16x16x16xbf16>
    %131 = tpu.concatenate %128, %129, %130 in 2 : vector<16x16x16xbf16>, vector<16x16x16xbf16>, vector<16x16x16xbf16> -> vector<16x16x48xbf16>
    %132 = vector.shape_cast %131 : vector<16x16x48xbf16> to vector<256x48xbf16>
    %c2_76 = arith.constant 2 : index
    %c0_77 = arith.constant 0 : index
    %c0_78 = arith.constant 0 : index
    %133 = vector.load %arg11[%c2_76, %c0_77, %c0_78] : memref<3x48x16xbf16, #tpu.memory_space<vmem>>, vector<1x48x16xbf16>
    %134 = vector.shape_cast %133 : vector<1x48x16xbf16> to vector<48x16xbf16>
    %cst_79 = arith.constant dense<0.000000e+00> : vector<256x16xf32>
    %135 = tpu.matmul %132, %134, %cst_79 {dimension_numbers = #tpu.dot_dimension_numbers<[1], [0], [0], [1], [0, 0, 1, 1], [], []>} : vector<256x48xbf16>, vector<48x16xbf16>, vector<256x16xf32> -> vector<256x16xf32>
    %136 = arith.addf %126, %135 : vector<256x16xf32>
    %c0_80 = arith.constant 0 : index
    %c0_81 = arith.constant 0 : index
    %137 = vector.load %arg12[%c0_80, %c0_81] : memref<1x16xf32, #tpu.memory_space<vmem>>, vector<1x16xf32>
    %138 = vector.broadcast %137 : vector<1x16xf32> to vector<256x16xf32>
    %139 = arith.addf %136, %138 : vector<256x16xf32>
    %cst_82 = arith.constant 0.000000e+00 : f32
    %140 = vector.broadcast %cst_82 : f32 to vector<256x16xf32>
    %141 = arith.maximumf %139, %140 : vector<256x16xf32>
    %c0_83 = arith.constant 0 : index
    %c0_84 = arith.constant 0 : index
    %c0_85 = arith.constant 0 : index
    %142 = vector.load %arg13[%c0_83, %c0_84, %c0_85] : memref<1x256x16xf32, #tpu.memory_space<vmem>>, vector<1x256x16xf32>
    %143 = vector.shape_cast %142 : vector<1x256x16xf32> to vector<256x16xf32>
    %144 = vector.shape_cast %141 : vector<256x16xf32> to vector<1x256x16xf32>
    tpu.vector_store %arg13[%c0_83, %c0_84, %c0_85], %144 {strides = array<i32>} : memref<1x256x16xf32, #tpu.memory_space<vmem>>, vector<1x256x16xf32>,
    return
  }
  func.func @transform_0(%arg0: i32) -> (i32, i32, i32, i32) {
    %c0_i32 = arith.constant 0 : i32
    %c0_i32_0 = arith.constant 0 : i32
    %c0_i32_1 = arith.constant 0 : i32
    %c0_i32_2 = arith.constant 0 : i32
    return %arg0, %c0_i32, %c0_i32_0, %c0_i32_1 : i32, i32, i32, i32
  }
  func.func @transform_1(%arg0: i32) -> (i32, i32, i32, i32) {
    %c0_i32 = arith.constant 0 : i32
    %c0_i32_0 = arith.constant 0 : i32
    %c0_i32_1 = arith.constant 0 : i32
    %c0_i32_2 = arith.constant 0 : i32
    return %arg0, %c0_i32, %c0_i32_0, %c0_i32_1 : i32, i32, i32, i32
  }
  func.func @transform_2(%arg0: i32) -> (i32, i32) {
    %c0_i32 = arith.constant 0 : i32
    %c0_i32_0 = arith.constant 0 : i32
    %c0_i32_1 = arith.constant 0 : i32
    return %c0_i32, %c0_i32_0 : i32, i32
  }
  func.func @transform_3(%arg0: i32) -> (i32, i32) {
    %c0_i32 = arith.constant 0 : i32
    %c0_i32_0 = arith.constant 0 : i32
    %c0_i32_1 = arith.constant 0 : i32
    return %c0_i32, %c0_i32_0 : i32, i32
  }
  func.func @transform_4(%arg0: i32) -> (i32, i32) {
    %c0_i32 = arith.constant 0 : i32
    %c0_i32_0 = arith.constant 0 : i32
    %c0_i32_1 = arith.constant 0 : i32
    return %c0_i32, %c0_i32_0 : i32, i32
  }
  func.func @transform_5(%arg0: i32) -> (i32, i32) {
    %c0_i32 = arith.constant 0 : i32
    %c0_i32_0 = arith.constant 0 : i32
    %c0_i32_1 = arith.constant 0 : i32
    return %c0_i32, %c0_i32_0 : i32, i32
  }
  func.func @transform_6(%arg0: i32) -> (i32, i32) {
    %c0_i32 = arith.constant 0 : i32
    %c0_i32_0 = arith.constant 0 : i32
    %c0_i32_1 = arith.constant 0 : i32
    return %c0_i32, %c0_i32_0 : i32, i32
  }
  func.func @transform_7(%arg0: i32) -> (i32, i32, i32) {
    %c0_i32 = arith.constant 0 : i32
    %c0_i32_0 = arith.constant 0 : i32
    %c0_i32_1 = arith.constant 0 : i32
    %c0_i32_2 = arith.constant 0 : i32
    return %c0_i32, %c0_i32_0, %c0_i32_1 : i32, i32, i32
  }
  func.func @transform_8(%arg0: i32) -> (i32, i32, i32) {
    %c0_i32 = arith.constant 0 : i32
    %c0_i32_0 = arith.constant 0 : i32
    %c0_i32_1 = arith.constant 0 : i32
    %c0_i32_2 = arith.constant 0 : i32
    return %c0_i32, %c0_i32_0, %c0_i32_1 : i32, i32, i32
  }
  func.func @transform_9(%arg0: i32) -> (i32, i32) {
    %c0_i32 = arith.constant 0 : i32
    %c0_i32_0 = arith.constant 0 : i32
    %c0_i32_1 = arith.constant 0 : i32
    return %c0_i32, %c0_i32_0 : i32, i32
  }
  func.func @transform_10(%arg0: i32) -> (i32, i32, i32) {
    %c0_i32 = arith.constant 0 : i32
    %c0_i32_0 = arith.constant 0 : i32
    %c0_i32_1 = arith.constant 0 : i32
    %c0_i32_2 = arith.constant 0 : i32
    return %c0_i32, %c0_i32_0, %c0_i32_1 : i32, i32, i32
  }
  func.func @transform_11(%arg0: i32) -> (i32, i32) {
    %c0_i32 = arith.constant 0 : i32
    %c0_i32_0 = arith.constant 0 : i32
    %c0_i32_1 = arith.constant 0 : i32
    return %c0_i32, %c0_i32_0 : i32, i32
  }
  func.func @transform_12(%arg0: i32) -> (i32, i32, i32) {
    %c0_i32 = arith.constant 0 : i32
    %c0_i32_0 = arith.constant 0 : i32
    %c0_i32_1 = arith.constant 0 : i32
    return %arg0, %c0_i32, %c0_i32_0 : i32, i32, i32
  }
}

module attributes {stable_mosaic.version = 11 : i64} {
  func.func @_up_conv_before_kernel(%arg0: i32, %arg1: memref<1x8x8x32xbf16, #tpu.memory_space<vmem>>, %arg2: memref<8x16x8xbf16, #tpu.memory_space<vmem>>, %arg3: memref<3x96x16xbf16, #tpu.memory_space<vmem>>, %arg4: memref<1x16xf32, #tpu.memory_space<vmem>>, %arg5: memref<1x256x16xbf16, #tpu.memory_space<vmem>>, %arg6: memref<18x18x32xbf16, #tpu.memory_space<vmem>>) attributes {dimension_semantics = [#tpu.dimension_semantics<parallel>], iteration_bounds = array<i64: 2>, scalar_prefetch = 0 : i64, scratch_operands = 1 : i64, tpu.core_type = #tpu.core_type<tc>, window_params = [{transform_indices = @transform_0, window_bounds = array<i64: 1, 8, 8, 32>}, {pipeline_mode = #tpu.pipeline_mode<synchronous>, transform_indices = @transform_1, window_bounds = array<i64: 8, 16, 8>}, {pipeline_mode = #tpu.pipeline_mode<synchronous>, transform_indices = @transform_2, window_bounds = array<i64: 3, 96, 16>}, {pipeline_mode = #tpu.pipeline_mode<synchronous>, transform_indices = @transform_3, window_bounds = array<i64: 1, 16>}, {transform_indices = @transform_4, window_bounds = array<i64: 1, 256, 16>}]} {
    %cst = arith.constant 0.000000e+00 : bf16
    %0 = vector.broadcast %cst : bf16 to vector<18x18x32xbf16>
    %c0 = arith.constant 0 : index
    %c0_0 = arith.constant 0 : index
    %c0_1 = arith.constant 0 : index
    %1 = vector.load %arg6[%c0, %c0_0, %c0_1] : memref<18x18x32xbf16, #tpu.memory_space<vmem>>, vector<18x18x32xbf16>
    tpu.vector_store %arg6[%c0, %c0_0, %c0_1], %0 {strides = array<i32>} : memref<18x18x32xbf16, #tpu.memory_space<vmem>>, vector<18x18x32xbf16>,
    %c0_2 = arith.constant 0 : index
    %c0_3 = arith.constant 0 : index
    %c0_4 = arith.constant 0 : index
    %c0_5 = arith.constant 0 : index
    %2 = vector.load %arg1[%c0_2, %c0_3, %c0_4, %c0_5] : memref<1x8x8x32xbf16, #tpu.memory_space<vmem>>, vector<1x8x8x32xbf16>
    %3 = vector.shape_cast %2 : vector<1x8x8x32xbf16> to vector<8x8x32xbf16>
    %c0_6 = arith.constant 0 : index
    %c0_7 = arith.constant 0 : index
    %c0_8 = arith.constant 0 : index
    %4 = vector.load %arg2[%c0_6, %c0_7, %c0_8] : memref<8x16x8xbf16, #tpu.memory_space<vmem>>, vector<8x16x8xbf16>
    "tpu.trace_start"() <{level = 10 : i32, message = "hvw,hwc->hvc"}> : () -> ()
    %cst_9 = arith.constant dense<0.000000e+00> : vector<8x16x32xf32>
    %5 = tpu.matmul %4, %3, %cst_9 {dimension_numbers = #tpu.dot_dimension_numbers<[2], [1], [1], [2], [0, 0, 0, 1, 1, 2], [0], [0]>} : vector<8x16x8xbf16>, vector<8x8x32xbf16>, vector<8x16x32xf32> -> vector<8x16x32xf32>
    "tpu.trace_stop"() : () -> ()
    %6 = vector.extract_strided_slice %5 {offsets = [0, 0, 0], sizes = [1, 16, 32], strides = [1, 1, 1]} : vector<8x16x32xf32> to vector<1x16x32xf32>
    %7 = vector.shape_cast %6 : vector<1x16x32xf32> to vector<16x32xf32>
    %8 = arith.truncf %7 : vector<16x32xf32> to vector<16x32xbf16>
    %c1 = arith.constant 1 : index
    %c1_10 = arith.constant 1 : index
    %c0_11 = arith.constant 0 : index
    %9 = vector.load %arg6[%c1, %c1_10, %c0_11] : memref<18x18x32xbf16, #tpu.memory_space<vmem>>, vector<1x16x32xbf16>
    %10 = vector.shape_cast %9 : vector<1x16x32xbf16> to vector<16x32xbf16>
    %11 = vector.shape_cast %8 : vector<16x32xbf16> to vector<1x16x32xbf16>
    tpu.vector_store %arg6[%c1, %c1_10, %c0_11], %11 {strides = array<i32>} : memref<18x18x32xbf16, #tpu.memory_space<vmem>>, vector<1x16x32xbf16>,
    %12 = vector.extract_strided_slice %5 {offsets = [0, 0, 0], sizes = [1, 16, 32], strides = [1, 1, 1]} : vector<8x16x32xf32> to vector<1x16x32xf32>
    %13 = vector.shape_cast %12 : vector<1x16x32xf32> to vector<16x32xf32>
    %cst_12 = arith.constant 0.533333361 : f32
    %14 = vector.broadcast %cst_12 : f32 to vector<16x32xf32>
    %15 = arith.mulf %14, %13 : vector<16x32xf32>
    %16 = vector.extract_strided_slice %5 {offsets = [1, 0, 0], sizes = [1, 16, 32], strides = [1, 1, 1]} : vector<8x16x32xf32> to vector<1x16x32xf32>
    %17 = vector.shape_cast %16 : vector<1x16x32xf32> to vector<16x32xf32>
    %cst_13 = arith.constant 0.466666669 : f32
    %18 = vector.broadcast %cst_13 : f32 to vector<16x32xf32>
    %19 = arith.mulf %18, %17 : vector<16x32xf32>
    %20 = arith.addf %15, %19 : vector<16x32xf32>
    %21 = arith.truncf %20 : vector<16x32xf32> to vector<16x32xbf16>
    %c2 = arith.constant 2 : index
    %c1_14 = arith.constant 1 : index
    %c0_15 = arith.constant 0 : index
    %22 = vector.load %arg6[%c2, %c1_14, %c0_15] : memref<18x18x32xbf16, #tpu.memory_space<vmem>>, vector<1x16x32xbf16>
    %23 = vector.shape_cast %22 : vector<1x16x32xbf16> to vector<16x32xbf16>
    %24 = vector.shape_cast %21 : vector<16x32xbf16> to vector<1x16x32xbf16>
    tpu.vector_store %arg6[%c2, %c1_14, %c0_15], %24 {strides = array<i32>} : memref<18x18x32xbf16, #tpu.memory_space<vmem>>, vector<1x16x32xbf16>,
    %25 = vector.extract_strided_slice %5 {offsets = [0, 0, 0], sizes = [1, 16, 32], strides = [1, 1, 1]} : vector<8x16x32xf32> to vector<1x16x32xf32>
    %26 = vector.shape_cast %25 : vector<1x16x32xf32> to vector<16x32xf32>
    %cst_16 = arith.constant 0.0666666701 : f32
    %27 = vector.broadcast %cst_16 : f32 to vector<16x32xf32>
    %28 = arith.mulf %27, %26 : vector<16x32xf32>
    %29 = vector.extract_strided_slice %5 {offsets = [1, 0, 0], sizes = [1, 16, 32], strides = [1, 1, 1]} : vector<8x16x32xf32> to vector<1x16x32xf32>
    %30 = vector.shape_cast %29 : vector<1x16x32xf32> to vector<16x32xf32>
    %cst_17 = arith.constant 0.933333337 : f32
    %31 = vector.broadcast %cst_17 : f32 to vector<16x32xf32>
    %32 = arith.mulf %31, %30 : vector<16x32xf32>
    %33 = arith.addf %28, %32 : vector<16x32xf32>
    %34 = arith.truncf %33 : vector<16x32xf32> to vector<16x32xbf16>
    %c3 = arith.constant 3 : index
    %c1_18 = arith.constant 1 : index
    %c0_19 = arith.constant 0 : index
    %35 = vector.load %arg6[%c3, %c1_18, %c0_19] : memref<18x18x32xbf16, #tpu.memory_space<vmem>>, vector<1x16x32xbf16>
    %36 = vector.shape_cast %35 : vector<1x16x32xbf16> to vector<16x32xbf16>
    %37 = vector.shape_cast %34 : vector<16x32xbf16> to vector<1x16x32xbf16>
    tpu.vector_store %arg6[%c3, %c1_18, %c0_19], %37 {strides = array<i32>} : memref<18x18x32xbf16, #tpu.memory_space<vmem>>, vector<1x16x32xbf16>,
    %38 = vector.extract_strided_slice %5 {offsets = [1, 0, 0], sizes = [1, 16, 32], strides = [1, 1, 1]} : vector<8x16x32xf32> to vector<1x16x32xf32>
    %39 = vector.shape_cast %38 : vector<1x16x32xf32> to vector<16x32xf32>
    %cst_20 = arith.constant 6.000000e-01 : f32
    %40 = vector.broadcast %cst_20 : f32 to vector<16x32xf32>
    %41 = arith.mulf %40, %39 : vector<16x32xf32>
    %42 = vector.extract_strided_slice %5 {offsets = [2, 0, 0], sizes = [1, 16, 32], strides = [1, 1, 1]} : vector<8x16x32xf32> to vector<1x16x32xf32>
    %43 = vector.shape_cast %42 : vector<1x16x32xf32> to vector<16x32xf32>
    %cst_21 = arith.constant 4.000000e-01 : f32
    %44 = vector.broadcast %cst_21 : f32 to vector<16x32xf32>
    %45 = arith.mulf %44, %43 : vector<16x32xf32>
    %46 = arith.addf %41, %45 : vector<16x32xf32>
    %47 = arith.truncf %46 : vector<16x32xf32> to vector<16x32xbf16>
    %c4 = arith.constant 4 : index
    %c1_22 = arith.constant 1 : index
    %c0_23 = arith.constant 0 : index
    %48 = vector.load %arg6[%c4, %c1_22, %c0_23] : memref<18x18x32xbf16, #tpu.memory_space<vmem>>, vector<1x16x32xbf16>
    %49 = vector.shape_cast %48 : vector<1x16x32xbf16> to vector<16x32xbf16>
    %50 = vector.shape_cast %47 : vector<16x32xbf16> to vector<1x16x32xbf16>
    tpu.vector_store %arg6[%c4, %c1_22, %c0_23], %50 {strides = array<i32>} : memref<18x18x32xbf16, #tpu.memory_space<vmem>>, vector<1x16x32xbf16>,
    %51 = vector.extract_strided_slice %5 {offsets = [1, 0, 0], sizes = [1, 16, 32], strides = [1, 1, 1]} : vector<8x16x32xf32> to vector<1x16x32xf32>
    %52 = vector.shape_cast %51 : vector<1x16x32xf32> to vector<16x32xf32>
    %cst_24 = arith.constant 0.13333334 : f32
    %53 = vector.broadcast %cst_24 : f32 to vector<16x32xf32>
    %54 = arith.mulf %53, %52 : vector<16x32xf32>
    %55 = vector.extract_strided_slice %5 {offsets = [2, 0, 0], sizes = [1, 16, 32], strides = [1, 1, 1]} : vector<8x16x32xf32> to vector<1x16x32xf32>
    %56 = vector.shape_cast %55 : vector<1x16x32xf32> to vector<16x32xf32>
    %cst_25 = arith.constant 0.866666674 : f32
    %57 = vector.broadcast %cst_25 : f32 to vector<16x32xf32>
    %58 = arith.mulf %57, %56 : vector<16x32xf32>
    %59 = arith.addf %54, %58 : vector<16x32xf32>
    %60 = arith.truncf %59 : vector<16x32xf32> to vector<16x32xbf16>
    %c5 = arith.constant 5 : index
    %c1_26 = arith.constant 1 : index
    %c0_27 = arith.constant 0 : index
    %61 = vector.load %arg6[%c5, %c1_26, %c0_27] : memref<18x18x32xbf16, #tpu.memory_space<vmem>>, vector<1x16x32xbf16>
    %62 = vector.shape_cast %61 : vector<1x16x32xbf16> to vector<16x32xbf16>
    %63 = vector.shape_cast %60 : vector<16x32xbf16> to vector<1x16x32xbf16>
    tpu.vector_store %arg6[%c5, %c1_26, %c0_27], %63 {strides = array<i32>} : memref<18x18x32xbf16, #tpu.memory_space<vmem>>, vector<1x16x32xbf16>,
    %64 = vector.extract_strided_slice %5 {offsets = [2, 0, 0], sizes = [1, 16, 32], strides = [1, 1, 1]} : vector<8x16x32xf32> to vector<1x16x32xf32>
    %65 = vector.shape_cast %64 : vector<1x16x32xf32> to vector<16x32xf32>
    %cst_28 = arith.constant 0.666666686 : f32
    %66 = vector.broadcast %cst_28 : f32 to vector<16x32xf32>
    %67 = arith.mulf %66, %65 : vector<16x32xf32>
    %68 = vector.extract_strided_slice %5 {offsets = [3, 0, 0], sizes = [1, 16, 32], strides = [1, 1, 1]} : vector<8x16x32xf32> to vector<1x16x32xf32>
    %69 = vector.shape_cast %68 : vector<1x16x32xf32> to vector<16x32xf32>
    %cst_29 = arith.constant 0.333333343 : f32
    %70 = vector.broadcast %cst_29 : f32 to vector<16x32xf32>
    %71 = arith.mulf %70, %69 : vector<16x32xf32>
    %72 = arith.addf %67, %71 : vector<16x32xf32>
    %73 = arith.truncf %72 : vector<16x32xf32> to vector<16x32xbf16>
    %c6 = arith.constant 6 : index
    %c1_30 = arith.constant 1 : index
    %c0_31 = arith.constant 0 : index
    %74 = vector.load %arg6[%c6, %c1_30, %c0_31] : memref<18x18x32xbf16, #tpu.memory_space<vmem>>, vector<1x16x32xbf16>
    %75 = vector.shape_cast %74 : vector<1x16x32xbf16> to vector<16x32xbf16>
    %76 = vector.shape_cast %73 : vector<16x32xbf16> to vector<1x16x32xbf16>
    tpu.vector_store %arg6[%c6, %c1_30, %c0_31], %76 {strides = array<i32>} : memref<18x18x32xbf16, #tpu.memory_space<vmem>>, vector<1x16x32xbf16>,
    %77 = vector.extract_strided_slice %5 {offsets = [2, 0, 0], sizes = [1, 16, 32], strides = [1, 1, 1]} : vector<8x16x32xf32> to vector<1x16x32xf32>
    %78 = vector.shape_cast %77 : vector<1x16x32xf32> to vector<16x32xf32>
    %cst_32 = arith.constant 2.000000e-01 : f32
    %79 = vector.broadcast %cst_32 : f32 to vector<16x32xf32>
    %80 = arith.mulf %79, %78 : vector<16x32xf32>
    %81 = vector.extract_strided_slice %5 {offsets = [3, 0, 0], sizes = [1, 16, 32], strides = [1, 1, 1]} : vector<8x16x32xf32> to vector<1x16x32xf32>
    %82 = vector.shape_cast %81 : vector<1x16x32xf32> to vector<16x32xf32>
    %cst_33 = arith.constant 8.000000e-01 : f32
    %83 = vector.broadcast %cst_33 : f32 to vector<16x32xf32>
    %84 = arith.mulf %83, %82 : vector<16x32xf32>
    %85 = arith.addf %80, %84 : vector<16x32xf32>
    %86 = arith.truncf %85 : vector<16x32xf32> to vector<16x32xbf16>
    %c7 = arith.constant 7 : index
    %c1_34 = arith.constant 1 : index
    %c0_35 = arith.constant 0 : index
    %87 = vector.load %arg6[%c7, %c1_34, %c0_35] : memref<18x18x32xbf16, #tpu.memory_space<vmem>>, vector<1x16x32xbf16>
    %88 = vector.shape_cast %87 : vector<1x16x32xbf16> to vector<16x32xbf16>
    %89 = vector.shape_cast %86 : vector<16x32xbf16> to vector<1x16x32xbf16>
    tpu.vector_store %arg6[%c7, %c1_34, %c0_35], %89 {strides = array<i32>} : memref<18x18x32xbf16, #tpu.memory_space<vmem>>, vector<1x16x32xbf16>,
    %90 = vector.extract_strided_slice %5 {offsets = [3, 0, 0], sizes = [1, 16, 32], strides = [1, 1, 1]} : vector<8x16x32xf32> to vector<1x16x32xf32>
    %91 = vector.shape_cast %90 : vector<1x16x32xf32> to vector<16x32xf32>
    %cst_36 = arith.constant 0.733333349 : f32
    %92 = vector.broadcast %cst_36 : f32 to vector<16x32xf32>
    %93 = arith.mulf %92, %91 : vector<16x32xf32>
    %94 = vector.extract_strided_slice %5 {offsets = [4, 0, 0], sizes = [1, 16, 32], strides = [1, 1, 1]} : vector<8x16x32xf32> to vector<1x16x32xf32>
    %95 = vector.shape_cast %94 : vector<1x16x32xf32> to vector<16x32xf32>
    %cst_37 = arith.constant 0.266666681 : f32
    %96 = vector.broadcast %cst_37 : f32 to vector<16x32xf32>
    %97 = arith.mulf %96, %95 : vector<16x32xf32>
    %98 = arith.addf %93, %97 : vector<16x32xf32>
    %99 = arith.truncf %98 : vector<16x32xf32> to vector<16x32xbf16>
    %c8 = arith.constant 8 : index
    %c1_38 = arith.constant 1 : index
    %c0_39 = arith.constant 0 : index
    %100 = vector.load %arg6[%c8, %c1_38, %c0_39] : memref<18x18x32xbf16, #tpu.memory_space<vmem>>, vector<1x16x32xbf16>
    %101 = vector.shape_cast %100 : vector<1x16x32xbf16> to vector<16x32xbf16>
    %102 = vector.shape_cast %99 : vector<16x32xbf16> to vector<1x16x32xbf16>
    tpu.vector_store %arg6[%c8, %c1_38, %c0_39], %102 {strides = array<i32>} : memref<18x18x32xbf16, #tpu.memory_space<vmem>>, vector<1x16x32xbf16>,
    %103 = vector.extract_strided_slice %5 {offsets = [3, 0, 0], sizes = [1, 16, 32], strides = [1, 1, 1]} : vector<8x16x32xf32> to vector<1x16x32xf32>
    %104 = vector.shape_cast %103 : vector<1x16x32xf32> to vector<16x32xf32>
    %cst_40 = arith.constant 0.266666681 : f32
    %105 = vector.broadcast %cst_40 : f32 to vector<16x32xf32>
    %106 = arith.mulf %105, %104 : vector<16x32xf32>
    %107 = vector.extract_strided_slice %5 {offsets = [4, 0, 0], sizes = [1, 16, 32], strides = [1, 1, 1]} : vector<8x16x32xf32> to vector<1x16x32xf32>
    %108 = vector.shape_cast %107 : vector<1x16x32xf32> to vector<16x32xf32>
    %cst_41 = arith.constant 0.733333349 : f32
    %109 = vector.broadcast %cst_41 : f32 to vector<16x32xf32>
    %110 = arith.mulf %109, %108 : vector<16x32xf32>
    %111 = arith.addf %106, %110 : vector<16x32xf32>
    %112 = arith.truncf %111 : vector<16x32xf32> to vector<16x32xbf16>
    %c9 = arith.constant 9 : index
    %c1_42 = arith.constant 1 : index
    %c0_43 = arith.constant 0 : index
    %113 = vector.load %arg6[%c9, %c1_42, %c0_43] : memref<18x18x32xbf16, #tpu.memory_space<vmem>>, vector<1x16x32xbf16>
    %114 = vector.shape_cast %113 : vector<1x16x32xbf16> to vector<16x32xbf16>
    %115 = vector.shape_cast %112 : vector<16x32xbf16> to vector<1x16x32xbf16>
    tpu.vector_store %arg6[%c9, %c1_42, %c0_43], %115 {strides = array<i32>} : memref<18x18x32xbf16, #tpu.memory_space<vmem>>, vector<1x16x32xbf16>,
    %116 = vector.extract_strided_slice %5 {offsets = [4, 0, 0], sizes = [1, 16, 32], strides = [1, 1, 1]} : vector<8x16x32xf32> to vector<1x16x32xf32>
    %117 = vector.shape_cast %116 : vector<1x16x32xf32> to vector<16x32xf32>
    %cst_44 = arith.constant 8.000000e-01 : f32
    %118 = vector.broadcast %cst_44 : f32 to vector<16x32xf32>
    %119 = arith.mulf %118, %117 : vector<16x32xf32>
    %120 = vector.extract_strided_slice %5 {offsets = [5, 0, 0], sizes = [1, 16, 32], strides = [1, 1, 1]} : vector<8x16x32xf32> to vector<1x16x32xf32>
    %121 = vector.shape_cast %120 : vector<1x16x32xf32> to vector<16x32xf32>
    %cst_45 = arith.constant 2.000000e-01 : f32
    %122 = vector.broadcast %cst_45 : f32 to vector<16x32xf32>
    %123 = arith.mulf %122, %121 : vector<16x32xf32>
    %124 = arith.addf %119, %123 : vector<16x32xf32>
    %125 = arith.truncf %124 : vector<16x32xf32> to vector<16x32xbf16>
    %c10 = arith.constant 10 : index
    %c1_46 = arith.constant 1 : index
    %c0_47 = arith.constant 0 : index
    %126 = vector.load %arg6[%c10, %c1_46, %c0_47] : memref<18x18x32xbf16, #tpu.memory_space<vmem>>, vector<1x16x32xbf16>
    %127 = vector.shape_cast %126 : vector<1x16x32xbf16> to vector<16x32xbf16>
    %128 = vector.shape_cast %125 : vector<16x32xbf16> to vector<1x16x32xbf16>
    tpu.vector_store %arg6[%c10, %c1_46, %c0_47], %128 {strides = array<i32>} : memref<18x18x32xbf16, #tpu.memory_space<vmem>>, vector<1x16x32xbf16>,
    %129 = vector.extract_strided_slice %5 {offsets = [4, 0, 0], sizes = [1, 16, 32], strides = [1, 1, 1]} : vector<8x16x32xf32> to vector<1x16x32xf32>
    %130 = vector.shape_cast %129 : vector<1x16x32xf32> to vector<16x32xf32>
    %cst_48 = arith.constant 0.333333343 : f32
    %131 = vector.broadcast %cst_48 : f32 to vector<16x32xf32>
    %132 = arith.mulf %131, %130 : vector<16x32xf32>
    %133 = vector.extract_strided_slice %5 {offsets = [5, 0, 0], sizes = [1, 16, 32], strides = [1, 1, 1]} : vector<8x16x32xf32> to vector<1x16x32xf32>
    %134 = vector.shape_cast %133 : vector<1x16x32xf32> to vector<16x32xf32>
    %cst_49 = arith.constant 0.666666686 : f32
    %135 = vector.broadcast %cst_49 : f32 to vector<16x32xf32>
    %136 = arith.mulf %135, %134 : vector<16x32xf32>
    %137 = arith.addf %132, %136 : vector<16x32xf32>
    %138 = arith.truncf %137 : vector<16x32xf32> to vector<16x32xbf16>
    %c11 = arith.constant 11 : index
    %c1_50 = arith.constant 1 : index
    %c0_51 = arith.constant 0 : index
    %139 = vector.load %arg6[%c11, %c1_50, %c0_51] : memref<18x18x32xbf16, #tpu.memory_space<vmem>>, vector<1x16x32xbf16>
    %140 = vector.shape_cast %139 : vector<1x16x32xbf16> to vector<16x32xbf16>
    %141 = vector.shape_cast %138 : vector<16x32xbf16> to vector<1x16x32xbf16>
    tpu.vector_store %arg6[%c11, %c1_50, %c0_51], %141 {strides = array<i32>} : memref<18x18x32xbf16, #tpu.memory_space<vmem>>, vector<1x16x32xbf16>,
    %142 = vector.extract_strided_slice %5 {offsets = [5, 0, 0], sizes = [1, 16, 32], strides = [1, 1, 1]} : vector<8x16x32xf32> to vector<1x16x32xf32>
    %143 = vector.shape_cast %142 : vector<1x16x32xf32> to vector<16x32xf32>
    %cst_52 = arith.constant 0.866666674 : f32
    %144 = vector.broadcast %cst_52 : f32 to vector<16x32xf32>
    %145 = arith.mulf %144, %143 : vector<16x32xf32>
    %146 = vector.extract_strided_slice %5 {offsets = [6, 0, 0], sizes = [1, 16, 32], strides = [1, 1, 1]} : vector<8x16x32xf32> to vector<1x16x32xf32>
    %147 = vector.shape_cast %146 : vector<1x16x32xf32> to vector<16x32xf32>
    %cst_53 = arith.constant 0.13333334 : f32
    %148 = vector.broadcast %cst_53 : f32 to vector<16x32xf32>
    %149 = arith.mulf %148, %147 : vector<16x32xf32>
    %150 = arith.addf %145, %149 : vector<16x32xf32>
    %151 = arith.truncf %150 : vector<16x32xf32> to vector<16x32xbf16>
    %c12 = arith.constant 12 : index
    %c1_54 = arith.constant 1 : index
    %c0_55 = arith.constant 0 : index
    %152 = vector.load %arg6[%c12, %c1_54, %c0_55] : memref<18x18x32xbf16, #tpu.memory_space<vmem>>, vector<1x16x32xbf16>
    %153 = vector.shape_cast %152 : vector<1x16x32xbf16> to vector<16x32xbf16>
    %154 = vector.shape_cast %151 : vector<16x32xbf16> to vector<1x16x32xbf16>
    tpu.vector_store %arg6[%c12, %c1_54, %c0_55], %154 {strides = array<i32>} : memref<18x18x32xbf16, #tpu.memory_space<vmem>>, vector<1x16x32xbf16>,
    %155 = vector.extract_strided_slice %5 {offsets = [5, 0, 0], sizes = [1, 16, 32], strides = [1, 1, 1]} : vector<8x16x32xf32> to vector<1x16x32xf32>
    %156 = vector.shape_cast %155 : vector<1x16x32xf32> to vector<16x32xf32>
    %cst_56 = arith.constant 4.000000e-01 : f32
    %157 = vector.broadcast %cst_56 : f32 to vector<16x32xf32>
    %158 = arith.mulf %157, %156 : vector<16x32xf32>
    %159 = vector.extract_strided_slice %5 {offsets = [6, 0, 0], sizes = [1, 16, 32], strides = [1, 1, 1]} : vector<8x16x32xf32> to vector<1x16x32xf32>
    %160 = vector.shape_cast %159 : vector<1x16x32xf32> to vector<16x32xf32>
    %cst_57 = arith.constant 6.000000e-01 : f32
    %161 = vector.broadcast %cst_57 : f32 to vector<16x32xf32>
    %162 = arith.mulf %161, %160 : vector<16x32xf32>
    %163 = arith.addf %158, %162 : vector<16x32xf32>
    %164 = arith.truncf %163 : vector<16x32xf32> to vector<16x32xbf16>
    %c13 = arith.constant 13 : index
    %c1_58 = arith.constant 1 : index
    %c0_59 = arith.constant 0 : index
    %165 = vector.load %arg6[%c13, %c1_58, %c0_59] : memref<18x18x32xbf16, #tpu.memory_space<vmem>>, vector<1x16x32xbf16>
    %166 = vector.shape_cast %165 : vector<1x16x32xbf16> to vector<16x32xbf16>
    %167 = vector.shape_cast %164 : vector<16x32xbf16> to vector<1x16x32xbf16>
    tpu.vector_store %arg6[%c13, %c1_58, %c0_59], %167 {strides = array<i32>} : memref<18x18x32xbf16, #tpu.memory_space<vmem>>, vector<1x16x32xbf16>,
    %168 = vector.extract_strided_slice %5 {offsets = [6, 0, 0], sizes = [1, 16, 32], strides = [1, 1, 1]} : vector<8x16x32xf32> to vector<1x16x32xf32>
    %169 = vector.shape_cast %168 : vector<1x16x32xf32> to vector<16x32xf32>
    %cst_60 = arith.constant 0.933333337 : f32
    %170 = vector.broadcast %cst_60 : f32 to vector<16x32xf32>
    %171 = arith.mulf %170, %169 : vector<16x32xf32>
    %172 = vector.extract_strided_slice %5 {offsets = [7, 0, 0], sizes = [1, 16, 32], strides = [1, 1, 1]} : vector<8x16x32xf32> to vector<1x16x32xf32>
    %173 = vector.shape_cast %172 : vector<1x16x32xf32> to vector<16x32xf32>
    %cst_61 = arith.constant 0.0666666701 : f32
    %174 = vector.broadcast %cst_61 : f32 to vector<16x32xf32>
    %175 = arith.mulf %174, %173 : vector<16x32xf32>
    %176 = arith.addf %171, %175 : vector<16x32xf32>
    %177 = arith.truncf %176 : vector<16x32xf32> to vector<16x32xbf16>
    %c14 = arith.constant 14 : index
    %c1_62 = arith.constant 1 : index
    %c0_63 = arith.constant 0 : index
    %178 = vector.load %arg6[%c14, %c1_62, %c0_63] : memref<18x18x32xbf16, #tpu.memory_space<vmem>>, vector<1x16x32xbf16>
    %179 = vector.shape_cast %178 : vector<1x16x32xbf16> to vector<16x32xbf16>
    %180 = vector.shape_cast %177 : vector<16x32xbf16> to vector<1x16x32xbf16>
    tpu.vector_store %arg6[%c14, %c1_62, %c0_63], %180 {strides = array<i32>} : memref<18x18x32xbf16, #tpu.memory_space<vmem>>, vector<1x16x32xbf16>,
    %181 = vector.extract_strided_slice %5 {offsets = [6, 0, 0], sizes = [1, 16, 32], strides = [1, 1, 1]} : vector<8x16x32xf32> to vector<1x16x32xf32>
    %182 = vector.shape_cast %181 : vector<1x16x32xf32> to vector<16x32xf32>
    %cst_64 = arith.constant 0.466666669 : f32
    %183 = vector.broadcast %cst_64 : f32 to vector<16x32xf32>
    %184 = arith.mulf %183, %182 : vector<16x32xf32>
    %185 = vector.extract_strided_slice %5 {offsets = [7, 0, 0], sizes = [1, 16, 32], strides = [1, 1, 1]} : vector<8x16x32xf32> to vector<1x16x32xf32>
    %186 = vector.shape_cast %185 : vector<1x16x32xf32> to vector<16x32xf32>
    %cst_65 = arith.constant 0.533333361 : f32
    %187 = vector.broadcast %cst_65 : f32 to vector<16x32xf32>
    %188 = arith.mulf %187, %186 : vector<16x32xf32>
    %189 = arith.addf %184, %188 : vector<16x32xf32>
    %190 = arith.truncf %189 : vector<16x32xf32> to vector<16x32xbf16>
    %c15 = arith.constant 15 : index
    %c1_66 = arith.constant 1 : index
    %c0_67 = arith.constant 0 : index
    %191 = vector.load %arg6[%c15, %c1_66, %c0_67] : memref<18x18x32xbf16, #tpu.memory_space<vmem>>, vector<1x16x32xbf16>
    %192 = vector.shape_cast %191 : vector<1x16x32xbf16> to vector<16x32xbf16>
    %193 = vector.shape_cast %190 : vector<16x32xbf16> to vector<1x16x32xbf16>
    tpu.vector_store %arg6[%c15, %c1_66, %c0_67], %193 {strides = array<i32>} : memref<18x18x32xbf16, #tpu.memory_space<vmem>>, vector<1x16x32xbf16>,
    %194 = vector.extract_strided_slice %5 {offsets = [7, 0, 0], sizes = [1, 16, 32], strides = [1, 1, 1]} : vector<8x16x32xf32> to vector<1x16x32xf32>
    %195 = vector.shape_cast %194 : vector<1x16x32xf32> to vector<16x32xf32>
    %196 = arith.truncf %195 : vector<16x32xf32> to vector<16x32xbf16>
    %c16 = arith.constant 16 : index
    %c1_68 = arith.constant 1 : index
    %c0_69 = arith.constant 0 : index
    %197 = vector.load %arg6[%c16, %c1_68, %c0_69] : memref<18x18x32xbf16, #tpu.memory_space<vmem>>, vector<1x16x32xbf16>
    %198 = vector.shape_cast %197 : vector<1x16x32xbf16> to vector<16x32xbf16>
    %199 = vector.shape_cast %196 : vector<16x32xbf16> to vector<1x16x32xbf16>
    tpu.vector_store %arg6[%c16, %c1_68, %c0_69], %199 {strides = array<i32>} : memref<18x18x32xbf16, #tpu.memory_space<vmem>>, vector<1x16x32xbf16>,
    %c0_70 = arith.constant 0 : index
    %c0_71 = arith.constant 0 : index
    %c0_72 = arith.constant 0 : index
    %200 = vector.load %arg6[%c0_70, %c0_71, %c0_72] : memref<18x18x32xbf16, #tpu.memory_space<vmem>>, vector<18x18x32xbf16>
    %201 = vector.extract_strided_slice %200 {offsets = [0, 0, 0], sizes = [16, 18, 32], strides = [1, 1, 1]} : vector<18x18x32xbf16> to vector<16x18x32xbf16>
    %202 = vector.extract_strided_slice %201 {offsets = [0, 0, 0], sizes = [16, 16, 32], strides = [1, 1, 1]} : vector<16x18x32xbf16> to vector<16x16x32xbf16>
    %203 = vector.extract_strided_slice %201 {offsets = [0, 1, 0], sizes = [16, 16, 32], strides = [1, 1, 1]} : vector<16x18x32xbf16> to vector<16x16x32xbf16>
    %204 = vector.extract_strided_slice %201 {offsets = [0, 2, 0], sizes = [16, 16, 32], strides = [1, 1, 1]} : vector<16x18x32xbf16> to vector<16x16x32xbf16>
    %205 = tpu.concatenate %202, %203, %204 in 2 : vector<16x16x32xbf16>, vector<16x16x32xbf16>, vector<16x16x32xbf16> -> vector<16x16x96xbf16>
    %206 = vector.shape_cast %205 : vector<16x16x96xbf16> to vector<256x96xbf16>
    %c0_73 = arith.constant 0 : index
    %c0_74 = arith.constant 0 : index
    %c0_75 = arith.constant 0 : index
    %207 = vector.load %arg3[%c0_73, %c0_74, %c0_75] : memref<3x96x16xbf16, #tpu.memory_space<vmem>>, vector<1x96x16xbf16>
    %208 = vector.shape_cast %207 : vector<1x96x16xbf16> to vector<96x16xbf16>
    %cst_76 = arith.constant dense<0.000000e+00> : vector<256x16xf32>
    %209 = tpu.matmul %206, %208, %cst_76 {dimension_numbers = #tpu.dot_dimension_numbers<[1], [0], [0], [1], [0, 0, 1, 1], [], []>} : vector<256x96xbf16>, vector<96x16xbf16>, vector<256x16xf32> -> vector<256x16xf32>
    %210 = vector.extract_strided_slice %200 {offsets = [1, 0, 0], sizes = [16, 18, 32], strides = [1, 1, 1]} : vector<18x18x32xbf16> to vector<16x18x32xbf16>
    %211 = vector.extract_strided_slice %210 {offsets = [0, 0, 0], sizes = [16, 16, 32], strides = [1, 1, 1]} : vector<16x18x32xbf16> to vector<16x16x32xbf16>
    %212 = vector.extract_strided_slice %210 {offsets = [0, 1, 0], sizes = [16, 16, 32], strides = [1, 1, 1]} : vector<16x18x32xbf16> to vector<16x16x32xbf16>
    %213 = vector.extract_strided_slice %210 {offsets = [0, 2, 0], sizes = [16, 16, 32], strides = [1, 1, 1]} : vector<16x18x32xbf16> to vector<16x16x32xbf16>
    %214 = tpu.concatenate %211, %212, %213 in 2 : vector<16x16x32xbf16>, vector<16x16x32xbf16>, vector<16x16x32xbf16> -> vector<16x16x96xbf16>
    %215 = vector.shape_cast %214 : vector<16x16x96xbf16> to vector<256x96xbf16>
    %c1_77 = arith.constant 1 : index
    %c0_78 = arith.constant 0 : index
    %c0_79 = arith.constant 0 : index
    %216 = vector.load %arg3[%c1_77, %c0_78, %c0_79] : memref<3x96x16xbf16, #tpu.memory_space<vmem>>, vector<1x96x16xbf16>
    %217 = vector.shape_cast %216 : vector<1x96x16xbf16> to vector<96x16xbf16>
    %cst_80 = arith.constant dense<0.000000e+00> : vector<256x16xf32>
    %218 = tpu.matmul %215, %217, %cst_80 {dimension_numbers = #tpu.dot_dimension_numbers<[1], [0], [0], [1], [0, 0, 1, 1], [], []>} : vector<256x96xbf16>, vector<96x16xbf16>, vector<256x16xf32> -> vector<256x16xf32>
    %219 = arith.addf %209, %218 : vector<256x16xf32>
    %220 = vector.extract_strided_slice %200 {offsets = [2, 0, 0], sizes = [16, 18, 32], strides = [1, 1, 1]} : vector<18x18x32xbf16> to vector<16x18x32xbf16>
    %221 = vector.extract_strided_slice %220 {offsets = [0, 0, 0], sizes = [16, 16, 32], strides = [1, 1, 1]} : vector<16x18x32xbf16> to vector<16x16x32xbf16>
    %222 = vector.extract_strided_slice %220 {offsets = [0, 1, 0], sizes = [16, 16, 32], strides = [1, 1, 1]} : vector<16x18x32xbf16> to vector<16x16x32xbf16>
    %223 = vector.extract_strided_slice %220 {offsets = [0, 2, 0], sizes = [16, 16, 32], strides = [1, 1, 1]} : vector<16x18x32xbf16> to vector<16x16x32xbf16>
    %224 = tpu.concatenate %221, %222, %223 in 2 : vector<16x16x32xbf16>, vector<16x16x32xbf16>, vector<16x16x32xbf16> -> vector<16x16x96xbf16>
    %225 = vector.shape_cast %224 : vector<16x16x96xbf16> to vector<256x96xbf16>
    %c2_81 = arith.constant 2 : index
    %c0_82 = arith.constant 0 : index
    %c0_83 = arith.constant 0 : index
    %226 = vector.load %arg3[%c2_81, %c0_82, %c0_83] : memref<3x96x16xbf16, #tpu.memory_space<vmem>>, vector<1x96x16xbf16>
    %227 = vector.shape_cast %226 : vector<1x96x16xbf16> to vector<96x16xbf16>
    %cst_84 = arith.constant dense<0.000000e+00> : vector<256x16xf32>
    %228 = tpu.matmul %225, %227, %cst_84 {dimension_numbers = #tpu.dot_dimension_numbers<[1], [0], [0], [1], [0, 0, 1, 1], [], []>} : vector<256x96xbf16>, vector<96x16xbf16>, vector<256x16xf32> -> vector<256x16xf32>
    %229 = arith.addf %219, %228 : vector<256x16xf32>
    %c0_85 = arith.constant 0 : index
    %c0_86 = arith.constant 0 : index
    %230 = vector.load %arg4[%c0_85, %c0_86] : memref<1x16xf32, #tpu.memory_space<vmem>>, vector<1x16xf32>
    %231 = vector.broadcast %230 : vector<1x16xf32> to vector<256x16xf32>
    %232 = arith.addf %229, %231 : vector<256x16xf32>
    %cst_87 = arith.constant 0.000000e+00 : f32
    %233 = vector.broadcast %cst_87 : f32 to vector<256x16xf32>
    %234 = arith.maximumf %232, %233 : vector<256x16xf32>
    %235 = arith.truncf %234 : vector<256x16xf32> to vector<256x16xbf16>
    %c0_88 = arith.constant 0 : index
    %c0_89 = arith.constant 0 : index
    %c0_90 = arith.constant 0 : index
    %236 = vector.load %arg5[%c0_88, %c0_89, %c0_90] : memref<1x256x16xbf16, #tpu.memory_space<vmem>>, vector<1x256x16xbf16>
    %237 = vector.shape_cast %236 : vector<1x256x16xbf16> to vector<256x16xbf16>
    %238 = vector.shape_cast %235 : vector<256x16xbf16> to vector<1x256x16xbf16>
    tpu.vector_store %arg5[%c0_88, %c0_89, %c0_90], %238 {strides = array<i32>} : memref<1x256x16xbf16, #tpu.memory_space<vmem>>, vector<1x256x16xbf16>,
    return
  }
  func.func @transform_0(%arg0: i32) -> (i32, i32, i32, i32) {
    %c0_i32 = arith.constant 0 : i32
    %c0_i32_0 = arith.constant 0 : i32
    %c0_i32_1 = arith.constant 0 : i32
    %c0_i32_2 = arith.constant 0 : i32
    return %arg0, %c0_i32, %c0_i32_0, %c0_i32_1 : i32, i32, i32, i32
  }
  func.func @transform_1(%arg0: i32) -> (i32, i32, i32) {
    %c0_i32 = arith.constant 0 : i32
    %c0_i32_0 = arith.constant 0 : i32
    %c0_i32_1 = arith.constant 0 : i32
    %c0_i32_2 = arith.constant 0 : i32
    return %c0_i32, %c0_i32_0, %c0_i32_1 : i32, i32, i32
  }
  func.func @transform_2(%arg0: i32) -> (i32, i32, i32) {
    %c0_i32 = arith.constant 0 : i32
    %c0_i32_0 = arith.constant 0 : i32
    %c0_i32_1 = arith.constant 0 : i32
    %c0_i32_2 = arith.constant 0 : i32
    return %c0_i32, %c0_i32_0, %c0_i32_1 : i32, i32, i32
  }
  func.func @transform_3(%arg0: i32) -> (i32, i32) {
    %c0_i32 = arith.constant 0 : i32
    %c0_i32_0 = arith.constant 0 : i32
    %c0_i32_1 = arith.constant 0 : i32
    return %c0_i32, %c0_i32_0 : i32, i32
  }
  func.func @transform_4(%arg0: i32) -> (i32, i32, i32) {
    %c0_i32 = arith.constant 0 : i32
    %c0_i32_0 = arith.constant 0 : i32
    %c0_i32_1 = arith.constant 0 : i32
    return %arg0, %c0_i32, %c0_i32_0 : i32, i32, i32
  }
}

</mosaic_0001>

<llo_original>
// kernel: attention_unet_right_forward.2
$region0: #{attention_unet_right_forward.2}
  #allocation0 [shape = 'u32[]', space=smem, size = 0x4, offset = 0x4, fixed_abs, tag = 'smem constant byte address 0x4 - core index']
  #allocation1 [shape = 'u32[144,128]{1,0:T(1,128)}', space=vmem, size = 0x12000, scoped, tag = 'internal scratch']
  #allocation2 [shape = 'bf16[18,18,32]{2,1,0:T(8,128)(2,1)}', space=vmem, size = 0x1b000, scoped, tag = 'scratch operand']
  %s0 = inlined_call_operand.vmem [shape: bf16[2,8,8,32], index: 0, kind: input, shape index: {}]
  %s1 = inlined_call_operand.vmem [shape: bf16[8,16,8], index: 1, kind: input, shape index: {}]
  %s2 = inlined_call_operand.vmem [shape: bf16[3,96,16], index: 2, kind: input, shape index: {}]
  %s3 = inlined_call_operand.vmem [shape: f32[1,16], index: 3, kind: input, shape index: {}]
  %s4 = inlined_call_operand.vmem [shape: bf16[2,256,16], index: 4, kind: output, shape index: {}]
  %s5 = sld [smem:[#allocation0]]
  $region49: #{attention_unet_right_forward.2} parent=0
    _
  %s7 = ssub.s32 1, %s5
  %s8 = scalar_select 0, %s7, %s5
  loop: start=0, step=1, limit=4
  $region2: #{attention_unet_right_forward.2} parent=0 // loop_pre_header
    _
  $region3: #{attention_unet_right_forward.2} parent=0 // loop_header
    %s10 = sphi 0, %s14
    %p11 = scmp.ge.s32.totalorder %s10, 4
    %s20 = sphi 0, %s22
    %s23 = sphi 0, %s20
    %s24 = sphi 0, %s23
    %s40 = sphi 0, %s24
    %s44 = sphi 0, %s44
    %s46 = sphi 0, %s44
    %s47 = sphi 0, %s46
    %s61 = sphi 0, %s47
    %s65 = sphi 0, %s65
    %s67 = sphi 0, %s65
    %s68 = sphi 0, %s67
    %s82 = sphi 0, %s68
    %s86 = sphi 0, %s86
    %s88 = sphi 0, %s86
    %s89 = sphi 0, %s88
    %s103 = sphi 0, %s89
    %s109 = sphi 0, %s111
    %s112 = sphi 0, %s109
    %s113 = sphi 0, %s112
    %s129 = sphi 0, %s113
  $region4: #{attention_unet_right_forward.2} parent=0 // loop_header_branch
    %13 = sbr.rel (%p11) target = $region8
  $region5: #{attention_unet_right_forward.2} parent=0 // loop_body
    %s15 = ssub.s32 %s10, 1
    %s16 = ssub.s32 %s10, 2
    %s17 = sadd.s32 %s10, 1
    %s18 = ssub.s32 %s10, %s17
    %p19 = scmp.eq.s32.totalorder %s18, 0
    %s21 = sadd.s32 %s20, 1
    %s22 = scalar_select %p19, %s20, %s21
    %p25 = pneg %p19
    %p26 = scmp.eq.s32.totalorder %s10, 1
    %p27 = por %p25, %p26
    %p28 = scmp.ne.s32.totalorder %s20, %s23
    %p29 = scmp.eq.s32.totalorder %s10, 0
    %p30 = por %p28, %p29
    %p31 = scmp.ne.s32.totalorder %s20, %s23
    %p32 = scmp.eq.s32.totalorder %s15, 1
    %p33 = por %p31, %p32
    %p34 = scmp.ne.s32.totalorder %s23, %s24
    %p35 = scmp.eq.s32.totalorder %s15, 0
    %p36 = por %p34, %p35
    %p37 = scmp.ne.s32.totalorder %s23, %s24
    %p38 = scmp.eq.s32.totalorder %s16, 1
    %p39 = por %p37, %p38
    %p41 = scmp.ne.s32.totalorder %s24, %s40
    %p42 = scmp.eq.s32.totalorder %s16, 0
    %p43 = por %p41, %p42
    %s45 = sadd.s32 %s44, 1
    %p48 = scmp.eq.s32.totalorder %s10, 1
    %p49 = scmp.ne.s32.totalorder %s44, %s46
    %p50 = scmp.eq.s32.totalorder %s10, 0
    %p51 = por %p49, %p50
    %p52 = scmp.ne.s32.totalorder %s44, %s46
    %p53 = scmp.eq.s32.totalorder %s15, 1
    %p54 = por %p52, %p53
    %p55 = scmp.ne.s32.totalorder %s46, %s47
    %p56 = scmp.eq.s32.totalorder %s15, 0
    %p57 = por %p55, %p56
    %p58 = scmp.ne.s32.totalorder %s46, %s47
    %p59 = scmp.eq.s32.totalorder %s16, 1
    %p60 = por %p58, %p59
    %p62 = scmp.ne.s32.totalorder %s47, %s61
    %p63 = scmp.eq.s32.totalorder %s16, 0
    %p64 = por %p62, %p63
    %s66 = sadd.s32 %s65, 1
    %p69 = scmp.eq.s32.totalorder %s10, 1
    %p70 = scmp.ne.s32.totalorder %s65, %s67
    %p71 = scmp.eq.s32.totalorder %s10, 0
    %p72 = por %p70, %p71
    %p73 = scmp.ne.s32.totalorder %s65, %s67
    %p74 = scmp.eq.s32.totalorder %s15, 1
    %p75 = por %p73, %p74
    %p76 = scmp.ne.s32.totalorder %s67, %s68
    %p77 = scmp.eq.s32.totalorder %s15, 0
    %p78 = por %p76, %p77
    %p79 = scmp.ne.s32.totalorder %s67, %s68
    %p80 = scmp.eq.s32.totalorder %s16, 1
    %p81 = por %p79, %p80
    %p83 = scmp.ne.s32.totalorder %s68, %s82
    %p84 = scmp.eq.s32.totalorder %s16, 0
    %p85 = por %p83, %p84
    %s87 = sadd.s32 %s86, 1
    %p90 = scmp.eq.s32.totalorder %s10, 1
    %p91 = scmp.ne.s32.totalorder %s86, %s88
    %p92 = scmp.eq.s32.totalorder %s10, 0
    %p93 = por %p91, %p92
    %p94 = scmp.ne.s32.totalorder %s86, %s88
    %p95 = scmp.eq.s32.totalorder %s15, 1
    %p96 = por %p94, %p95
    %p97 = scmp.ne.s32.totalorder %s88, %s89
    %p98 = scmp.eq.s32.totalorder %s15, 0
    %p99 = por %p97, %p98
    %p100 = scmp.ne.s32.totalorder %s88, %s89
    %p101 = scmp.eq.s32.totalorder %s16, 1
    %p102 = por %p100, %p101
    %p104 = scmp.ne.s32.totalorder %s89, %s103
    %p105 = scmp.eq.s32.totalorder %s16, 0
    %p106 = por %p104, %p105
    %s107 = ssub.s32 %s10, %s17
    %p108 = scmp.eq.s32.totalorder %s107, 0
    %s110 = sadd.s32 %s109, 1
    %s111 = scalar_select %p108, %s109, %s110
    %p114 = pneg %p108
    %p115 = scmp.eq.s32.totalorder %s10, 1
    %p116 = por %p114, %p115
    %p117 = scmp.ne.s32.totalorder %s109, %s112
    %p118 = scmp.eq.s32.totalorder %s10, 0
    %p119 = por %p117, %p118
    %p120 = scmp.ne.s32.totalorder %s109, %s112
    %p121 = scmp.eq.s32.totalorder %s15, 1
    %p122 = por %p120, %p121
    %p123 = scmp.ne.s32.totalorder %s112, %s113
    %p124 = scmp.eq.s32.totalorder %s15, 0
    %p125 = por %p123, %p124
    %p126 = scmp.ne.s32.totalorder %s112, %s113
    %p127 = scmp.eq.s32.totalorder %s16, 1
    %p128 = por %p126, %p127
    %p130 = scmp.ne.s32.totalorder %s113, %s129
    %p131 = scmp.eq.s32.totalorder %s16, 0
    %p132 = por %p130, %p131
    %p133 = scmp.le.s32.totalorder 1, %s10
    %p134 = scmp.lt.s32.totalorder %s10, 3
    %p135 = pnand %p133, %p134
    %p136 = pneg %p135
    // Predicated region
    $region9: #{attention_unet_right_forward.2} parent=5 // pred_check
      _
    $region10: #{attention_unet_right_forward.2} parent=5 // pred_check_branch
      %138 = sbr.rel (%p135) target = $region12
    $region11: #{attention_unet_right_forward.2} parent=5 // pred_region
      %s139 = ssub.s32 %s10, 1
      // Predicated region
      $region13: #{attention_unet_right_forward.2} parent=11 // pred_check
        %p140 = pneg %p57
      $region14: #{attention_unet_right_forward.2} parent=11 // pred_check_branch
        %142 = sbr.rel (%p140) target = $region16
      $region15: #{attention_unet_right_forward.2} parent=11 // pred_region
        _
      $region16: #{attention_unet_right_forward.2} parent=11 // pred_fallthru
        _
      // Predicated region
      $region17: #{attention_unet_right_forward.2} parent=11 // pred_check
        %p143 = pneg %p78
      $region18: #{attention_unet_right_forward.2} parent=11 // pred_check_branch
        %145 = sbr.rel (%p143) target = $region20
      $region19: #{attention_unet_right_forward.2} parent=11 // pred_region
        _
      $region20: #{attention_unet_right_forward.2} parent=11 // pred_fallthru
        _
      // Predicated region
      $region21: #{attention_unet_right_forward.2} parent=11 // pred_check
        %p146 = pneg %p99
      $region22: #{attention_unet_right_forward.2} parent=11 // pred_check_branch
        %148 = sbr.rel (%p146) target = $region24
      $region23: #{attention_unet_right_forward.2} parent=11 // pred_region
        _
      $region24: #{attention_unet_right_forward.2} parent=11 // pred_fallthru
        _
    $region12: #{attention_unet_right_forward.2} parent=5 // pred_fallthru
      _
    %p149 = scmp.lt.s32.totalorder %s10, 2
    // Predicated region
    $region25: #{attention_unet_right_forward.2} parent=5 // pred_check
      %p150 = pneg %p149
    $region26: #{attention_unet_right_forward.2} parent=5 // pred_check_branch
      %152 = sbr.rel (%p150) target = $region28
    $region27: #{attention_unet_right_forward.2} parent=5 // pred_region
      // Predicated region
      $region29: #{attention_unet_right_forward.2} parent=27 // pred_check
        %p153 = pneg %p30
      $region30: #{attention_unet_right_forward.2} parent=27 // pred_check_branch
        %155 = sbr.rel (%p153) target = $region32
      $region31: #{attention_unet_right_forward.2} parent=27 // pred_region
        %p156 = scmp.lt.s32.totalorder %s10, 1
        %s157 = scalar_select %p156, %s10, 1
        %s158 = smul.addr %s157, 8
        %s159 = smul.addr %s158, 4
        %s160 = scalar_lea.vmem %s0, %s159
      $region32: #{attention_unet_right_forward.2} parent=27 // pred_fallthru
        _
    $region28: #{attention_unet_right_forward.2} parent=5 // pred_fallthru
      _
    %p161 = scmp.le.s32.totalorder 1, %s10
    %p162 = scmp.lt.s32.totalorder %s10, 3
    %p163 = pnand %p161, %p162
    %p164 = pneg %p163
    // Predicated region
    $region33: #{attention_unet_right_forward.2} parent=5 // pred_check
      _
    $region34: #{attention_unet_right_forward.2} parent=5 // pred_check_branch
      %166 = sbr.rel (%p163) target = $region36
    $region35: #{attention_unet_right_forward.2} parent=5 // pred_region
      %s167 = ssub.s32 %s10, 1
      %p168 = scmp.lt.s32.totalorder %s15, 1
      %s169 = scalar_select %p168, %s15, 1
      %s170 = smul.addr %s169, 8
      %s171 = smul.addr %s170, 4
      %s172 = scalar_lea.vmem %s0, %s171
      %p173 = pneg %p36
      %p174 = pneg %p33
      %p175 = pneg %p57
      %p176 = pneg %p54
      %p177 = pneg %p78
      %p178 = pneg %p75
      %p179 = pneg %p99
      %p180 = pneg %p96
      %p181 = pneg %p125
      %p182 = pneg %p122
      %p183 = scmp.lt.s32.totalorder %s15, 1
      %s184 = scalar_select %p183, %s15, 1
      %s185 = smul.addr %s184, 32
      %s186 = smul.addr %s185, 4
      %s187 = scalar_lea.vmem %s4, %s186
      %p188 = scmp.lt.s32.totalorder %s15, 1
      %s189 = scalar_select %p188, %s15, 1
      %s190 = smul.addr %s189, 8
      %s191 = smul.addr %s190, 4
      %s192 = scalar_lea.vmem %s0, %s191
      %p193 = scmp.lt.s32.totalorder %s15, 1
      %s194 = scalar_select %p193, %s15, 1
      %s195 = smul.addr %s194, 32
      %s196 = smul.addr %s195, 4
      %s197 = scalar_lea.vmem %s4, %s196
      %vm199 = vcmask 257024
      %200 = vst.msk [vmem:[#allocation2] sm:$0xf] %vm199, 0
      %201 = vst.msk [vmem:[#allocation2 + $0x4] sm:$0xf] %vm199, 0
      %vm202 = vcmask 253952
      %203 = vst.msk [vmem:[#allocation2 + $0x8] sm:$0x1] %vm202, 0
      %204 = vst.msk [vmem:[#allocation2 + $0xc] sm:$0xf] %vm199, 0
      %205 = vst.msk [vmem:[#allocation2 + $0x10] sm:$0xf] %vm199, 0
      %206 = vst.msk [vmem:[#allocation2 + $0x14] sm:$0x1] %vm202, 0
      %207 = vst.msk [vmem:[#allocation2 + $0x18] sm:$0xf] %vm199, 0
      %208 = vst.msk [vmem:[#allocation2 + $0x1c] sm:$0xf] %vm199, 0
      %209 = vst.msk [vmem:[#allocation2 + $0x20] sm:$0x1] %vm202, 0
      %210 = vst.msk [vmem:[#allocation2 + $0x24] sm:$0xf] %vm199, 0
      %211 = vst.msk [vmem:[#allocation2 + $0x28] sm:$0xf] %vm199, 0
      %212 = vst.msk [vmem:[#allocation2 + $0x2c] sm:$0x1] %vm202, 0
      %213 = vst.msk [vmem:[#allocation2 + $0x30] sm:$0xf] %vm199, 0
      %214 = vst.msk [vmem:[#allocation2 + $0x34] sm:$0xf] %vm199, 0
      %215 = vst.msk [vmem:[#allocation2 + $0x38] sm:$0x1] %vm202, 0
      %216 = vst.msk [vmem:[#allocation2 + $0x3c] sm:$0xf] %vm199, 0
      %217 = vst.msk [vmem:[#allocation2 + $0x40] sm:$0xf] %vm199, 0
      %218 = vst.msk [vmem:[#allocation2 + $0x44] sm:$0x1] %vm202, 0
      %219 = vst.msk [vmem:[#allocation2 + $0x48] sm:$0xf] %vm199, 0
      %220 = vst.msk [vmem:[#allocation2 + $0x4c] sm:$0xf] %vm199, 0
      %221 = vst.msk [vmem:[#allocation2 + $0x50] sm:$0x1] %vm202, 0
      %222 = vst.msk [vmem:[#allocation2 + $0x54] sm:$0xf] %vm199, 0
      %223 = vst.msk [vmem:[#allocation2 + $0x58] sm:$0xf] %vm199, 0
      %224 = vst.msk [vmem:[#allocation2 + $0x5c] sm:$0x1] %vm202, 0
      %225 = vst.msk [vmem:[#allocation2 + $0x60] sm:$0xf] %vm199, 0
      %226 = vst.msk [vmem:[#allocation2 + $0x64] sm:$0xf] %vm199, 0
      %227 = vst.msk [vmem:[#allocation2 + $0x68] sm:$0x1] %vm202, 0
      %228 = vst.msk [vmem:[#allocation2 + $0x6c] sm:$0xf] %vm199, 0
      %229 = vst.msk [vmem:[#allocation2 + $0x70] sm:$0xf] %vm199, 0
      %230 = vst.msk [vmem:[#allocation2 + $0x74] sm:$0x1] %vm202, 0
      %231 = vst.msk [vmem:[#allocation2 + $0x78] sm:$0xf] %vm199, 0
      %232 = vst.msk [vmem:[#allocation2 + $0x7c] sm:$0xf] %vm199, 0
      %233 = vst.msk [vmem:[#allocation2 + $0x80] sm:$0x1] %vm202, 0
      %234 = vst.msk [vmem:[#allocation2 + $0x84] sm:$0xf] %vm199, 0
      %235 = vst.msk [vmem:[#allocation2 + $0x88] sm:$0xf] %vm199, 0
      %236 = vst.msk [vmem:[#allocation2 + $0x8c] sm:$0x1] %vm202, 0
      %237 = vst.msk [vmem:[#allocation2 + $0x90] sm:$0xf] %vm199, 0
      %238 = vst.msk [vmem:[#allocation2 + $0x94] sm:$0xf] %vm199, 0
      %239 = vst.msk [vmem:[#allocation2 + $0x98] sm:$0x1] %vm202, 0
      %240 = vst.msk [vmem:[#allocation2 + $0x9c] sm:$0xf] %vm199, 0
      %241 = vst.msk [vmem:[#allocation2 + $0xa0] sm:$0xf] %vm199, 0
      %242 = vst.msk [vmem:[#allocation2 + $0xa4] sm:$0x1] %vm202, 0
      %243 = vst.msk [vmem:[#allocation2 + $0xa8] sm:$0xf] %vm199, 0
      %244 = vst.msk [vmem:[#allocation2 + $0xac] sm:$0xf] %vm199, 0
      %245 = vst.msk [vmem:[#allocation2 + $0xb0] sm:$0x1] %vm202, 0
      %246 = vst.msk [vmem:[#allocation2 + $0xb4] sm:$0xf] %vm199, 0
      %247 = vst.msk [vmem:[#allocation2 + $0xb8] sm:$0xf] %vm199, 0
      %248 = vst.msk [vmem:[#allocation2 + $0xbc] sm:$0x1] %vm202, 0
      %249 = vst.msk [vmem:[#allocation2 + $0xc0] sm:$0xf] %vm199, 0
      %250 = vst.msk [vmem:[#allocation2 + $0xc4] sm:$0xf] %vm199, 0
      %251 = vst.msk [vmem:[#allocation2 + $0xc8] sm:$0x1] %vm202, 0
      %252 = vst.msk [vmem:[#allocation2 + $0xcc] sm:$0xf] %vm199, 0
      %253 = vst.msk [vmem:[#allocation2 + $0xd0] sm:$0xf] %vm199, 0
      %254 = vst.msk [vmem:[#allocation2 + $0xd4] sm:$0x1] %vm202, 0
      %v255 = vld [vmem:[%s192] sm:$0xf]
      %v256 = vld [vmem:[%s192 + $0x4] sm:$0xf]
      %v257 = vld [vmem:[%s192 + $0x8] sm:$0xf]
      %v258 = vld [vmem:[%s192 + $0xc] sm:$0xf]
      %v259 = vld [vmem:[%s192 + $0x10] sm:$0xf]
      %v260 = vld [vmem:[%s192 + $0x14] sm:$0xf]
      %v261 = vld [vmem:[%s192 + $0x18] sm:$0xf]
      %v262 = vld [vmem:[%s192 + $0x1c] sm:$0xf]
      %v263 = vld [vmem:[%s1] sm:$0xf]
      %v264 = vld [vmem:[%s1 + $0x4] sm:$0xf]
      %v265 = vld [vmem:[%s1 + $0x8] sm:$0xf]
      %v266 = vld [vmem:[%s1 + $0xc] sm:$0xf]
      %v267 = vld [vmem:[%s1 + $0x10] sm:$0xf]
      %v268 = vld [vmem:[%s1 + $0x14] sm:$0xf]
      %v269 = vld [vmem:[%s1 + $0x18] sm:$0xf]
      %v270 = vld [vmem:[%s1 + $0x1c] sm:$0xf]
      %v271 = vld [vmem:[%s1 + $0x20] sm:$0xf]
      %v272 = vld [vmem:[%s1 + $0x24] sm:$0xf]
      %v273 = vld [vmem:[%s1 + $0x28] sm:$0xf]
      %v274 = vld [vmem:[%s1 + $0x2c] sm:$0xf]
      %v275 = vld [vmem:[%s1 + $0x30] sm:$0xf]
      %v276 = vld [vmem:[%s1 + $0x34] sm:$0xf]
      %v277 = vld [vmem:[%s1 + $0x38] sm:$0xf]
      %v278 = vld [vmem:[%s1 + $0x3c] sm:$0xf]
      %v281 = vunpack.c.l.b16 %v263
      %v282 = vunpack.c.l.b16 %v264
      %v283 = vpack.c.b16 %v282, %v281
      %vm284 = vcmask 64512
      %v286 = vsel %vm284, %v283, 0
      %vm288 = vcmask 1043456
      %v290 = vsel %vm288, %v255, 0
      %292 = vmatprep.subr.bf16.mxu0 0
      %293 = vmatpush1.bf16.msra.mxu0 %v290
      %294 = vmatprep.subr.bf16.mxu0 0
      %295 = vmatpush1.bf16.msra.mxu0 0
      %296 = vmatprep.subr.bf16.mxu0 0
      %297 = vmatpush1.bf16.msra.mxu0 0
      %298 = vmatprep.subr.bf16.mxu0 0
      %299 = vmatpush1.bf16.msra.mxu0 0
      %300 = vmatprep.subr.bf16.mxu0 0
      %301 = vmatpush1.bf16.msra.mxu0 0
      %302 = vmatprep.subr.bf16.mxu0 0
      %303 = vmatpush1.bf16.msra.mxu0 0
      %304 = vmatprep.subr.bf16.mxu0 0
      %305 = vmatpush1.bf16.msra.mxu0 0
      %306 = vmatprep.subr.bf16.mxu0 0
      %307 = vmatpush1.bf16.msra.mxu0 0
      %308 = vmatprep.subr.bf16.mxu0 0
      %309 = vmatpush1.bf16.msra.mxu0 0
      %310 = vmatprep.subr.bf16.mxu0 0
      %311 = vmatpush1.bf16.msra.mxu0 0
      %312 = vmatprep.subr.bf16.mxu0 0
      %313 = vmatpush1.bf16.msra.mxu0 0
      %314 = vmatprep.subr.bf16.mxu0 0
      %315 = vmatpush1.bf16.msra.mxu0 0
      %316 = vmatprep.subr.bf16.mxu0 0
      %317 = vmatpush1.bf16.msra.mxu0 0
      %318 = vmatprep.subr.bf16.mxu0 0
      %319 = vmatpush1.bf16.msra.mxu0 0
      %320 = vmatprep.subr.bf16.mxu0 0
      %321 = vmatpush1.bf16.msra.mxu0 0
      %322 = vmatprep.subr.bf16.mxu0 0
      %323 = vmatpush1.bf16.msra.mxu0 0
      %324 = vmatprep.mubr.bf16.mxu0 0
      %325 = vmatmul.mubr.bf16.gmra.mrb[0].mxu0 %v286
      %v326 = vpop.f32.mrb[0].mxu0
      %v327 = vadd.f32 0.0, %v326
      %v328 = vpop.f32.mrb[0].mxu0
      %v329 = vpop.f32.mrb[0].mxu0
      %v330 = vadd.f32 0.0, %v329
      %v331 = vpop.f32.mrb[0].mxu0
      %332 = vdwg.mxu0
      %v335 = vunpack.c.l.b16 %v265
      %v336 = vunpack.c.l.b16 %v266
      %v337 = vpack.c.b16 %v336, %v335
      %v339 = vsel %vm284, %v337, 0
      %v342 = vsel %vm288, %v256, 0
      %344 = vmatprep.subr.bf16.mxu0 0
      %345 = vmatpush1.bf16.msra.mxu0 %v342
      %346 = vmatprep.subr.bf16.mxu0 0
      %347 = vmatpush1.bf16.msra.mxu0 0
      %348 = vmatprep.subr.bf16.mxu0 0
      %349 = vmatpush1.bf16.msra.mxu0 0
      %350 = vmatprep.subr.bf16.mxu0 0
      %351 = vmatpush1.bf16.msra.mxu0 0
      %352 = vmatprep.subr.bf16.mxu0 0
      %353 = vmatpush1.bf16.msra.mxu0 0
      %354 = vmatprep.subr.bf16.mxu0 0
      %355 = vmatpush1.bf16.msra.mxu0 0
      %356 = vmatprep.subr.bf16.mxu0 0
      %357 = vmatpush1.bf16.msra.mxu0 0
      %358 = vmatprep.subr.bf16.mxu0 0
      %359 = vmatpush1.bf16.msra.mxu0 0
      %360 = vmatprep.subr.bf16.mxu0 0
      %361 = vmatpush1.bf16.msra.mxu0 0
      %362 = vmatprep.subr.bf16.mxu0 0
      %363 = vmatpush1.bf16.msra.mxu0 0
      %364 = vmatprep.subr.bf16.mxu0 0
      %365 = vmatpush1.bf16.msra.mxu0 0
      %366 = vmatprep.subr.bf16.mxu0 0
      %367 = vmatpush1.bf16.msra.mxu0 0
      %368 = vmatprep.subr.bf16.mxu0 0
      %369 = vmatpush1.bf16.msra.mxu0 0
      %370 = vmatprep.subr.bf16.mxu0 0
      %371 = vmatpush1.bf16.msra.mxu0 0
      %372 = vmatprep.subr.bf16.mxu0 0
      %373 = vmatpush1.bf16.msra.mxu0 0
      %374 = vmatprep.subr.bf16.mxu0 0
      %375 = vmatpush1.bf16.msra.mxu0 0
      %376 = vmatprep.mubr.bf16.mxu0 0
      %377 = vmatmul.mubr.bf16.gmra.mrb[0].mxu0 %v339
      %v378 = vpop.f32.mrb[0].mxu0
      %v379 = vadd.f32 0.0, %v378
      %v380 = vpop.f32.mrb[0].mxu0
      %v381 = vpop.f32.mrb[0].mxu0
      %v382 = vadd.f32 0.0, %v381
      %v383 = vpop.f32.mrb[0].mxu0
      %384 = vdwg.mxu0
      %v387 = vunpack.c.l.b16 %v267
      %v388 = vunpack.c.l.b16 %v268
      %v389 = vpack.c.b16 %v388, %v387
      %v391 = vsel %vm284, %v389, 0
      %v394 = vsel %vm288, %v257, 0
      %396 = vmatprep.subr.bf16.mxu0 0
      %397 = vmatpush1.bf16.msra.mxu0 %v394
      %398 = vmatprep.subr.bf16.mxu0 0
      %399 = vmatpush1.bf16.msra.mxu0 0
      %400 = vmatprep.subr.bf16.mxu0 0
      %401 = vmatpush1.bf16.msra.mxu0 0
      %402 = vmatprep.subr.bf16.mxu0 0
      %403 = vmatpush1.bf16.msra.mxu0 0
      %404 = vmatprep.subr.bf16.mxu0 0
      %405 = vmatpush1.bf16.msra.mxu0 0
      %406 = vmatprep.subr.bf16.mxu0 0
      %407 = vmatpush1.bf16.msra.mxu0 0
      %408 = vmatprep.subr.bf16.mxu0 0
      %409 = vmatpush1.bf16.msra.mxu0 0
      %410 = vmatprep.subr.bf16.mxu0 0
      %411 = vmatpush1.bf16.msra.mxu0 0
      %412 = vmatprep.subr.bf16.mxu0 0
      %413 = vmatpush1.bf16.msra.mxu0 0
      %414 = vmatprep.subr.bf16.mxu0 0
      %415 = vmatpush1.bf16.msra.mxu0 0
      %416 = vmatprep.subr.bf16.mxu0 0
      %417 = vmatpush1.bf16.msra.mxu0 0
      %418 = vmatprep.subr.bf16.mxu0 0
      %419 = vmatpush1.bf16.msra.mxu0 0
      %420 = vmatprep.subr.bf16.mxu0 0
      %421 = vmatpush1.bf16.msra.mxu0 0
      %422 = vmatprep.subr.bf16.mxu0 0
      %423 = vmatpush1.bf16.msra.mxu0 0
      %424 = vmatprep.subr.bf16.mxu0 0
      %425 = vmatpush1.bf16.msra.mxu0 0
      %426 = vmatprep.subr.bf16.mxu0 0
      %427 = vmatpush1.bf16.msra.mxu0 0
      %428 = vmatprep.mubr.bf16.mxu0 0
      %429 = vmatmul.mubr.bf16.gmra.mrb[0].mxu0 %v391
      %v430 = vpop.f32.mrb[0].mxu0
      %v431 = vadd.f32 0.0, %v430
      %v432 = vpop.f32.mrb[0].mxu0
      %v433 = vpop.f32.mrb[0].mxu0
      %v434 = vadd.f32 0.0, %v433
      %v435 = vpop.f32.mrb[0].mxu0
      %436 = vdwg.mxu0
      %v439 = vunpack.c.l.b16 %v269
      %v440 = vunpack.c.l.b16 %v270
      %v441 = vpack.c.b16 %v440, %v439
      %v443 = vsel %vm284, %v441, 0
      %v446 = vsel %vm288, %v258, 0
      %448 = vmatprep.subr.bf16.mxu0 0
      %449 = vmatpush1.bf16.msra.mxu0 %v446
      %450 = vmatprep.subr.bf16.mxu0 0
      %451 = vmatpush1.bf16.msra.mxu0 0
      %452 = vmatprep.subr.bf16.mxu0 0
      %453 = vmatpush1.bf16.msra.mxu0 0
      %454 = vmatprep.subr.bf16.mxu0 0
      %455 = vmatpush1.bf16.msra.mxu0 0
      %456 = vmatprep.subr.bf16.mxu0 0
      %457 = vmatpush1.bf16.msra.mxu0 0
      %458 = vmatprep.subr.bf16.mxu0 0
      %459 = vmatpush1.bf16.msra.mxu0 0
      %460 = vmatprep.subr.bf16.mxu0 0
      %461 = vmatpush1.bf16.msra.mxu0 0
      %462 = vmatprep.subr.bf16.mxu0 0
      %463 = vmatpush1.bf16.msra.mxu0 0
      %464 = vmatprep.subr.bf16.mxu0 0
      %465 = vmatpush1.bf16.msra.mxu0 0
      %466 = vmatprep.subr.bf16.mxu0 0
      %467 = vmatpush1.bf16.msra.mxu0 0
      %468 = vmatprep.subr.bf16.mxu0 0
      %469 = vmatpush1.bf16.msra.mxu0 0
      %470 = vmatprep.subr.bf16.mxu0 0
      %471 = vmatpush1.bf16.msra.mxu0 0
      %472 = vmatprep.subr.bf16.mxu0 0
      %473 = vmatpush1.bf16.msra.mxu0 0
      %474 = vmatprep.subr.bf16.mxu0 0
      %475 = vmatpush1.bf16.msra.mxu0 0
      %476 = vmatprep.subr.bf16.mxu0 0
      %477 = vmatpush1.bf16.msra.mxu0 0
      %478 = vmatprep.subr.bf16.mxu0 0
      %479 = vmatpush1.bf16.msra.mxu0 0
      %480 = vmatprep.mubr.bf16.mxu0 0
      %481 = vmatmul.mubr.bf16.gmra.mrb[0].mxu0 %v443
      %v482 = vpop.f32.mrb[0].mxu0
      %v483 = vadd.f32 0.0, %v482
      %v484 = vpop.f32.mrb[0].mxu0
      %v485 = vpop.f32.mrb[0].mxu0
      %v486 = vadd.f32 0.0, %v485
      %v487 = vpop.f32.mrb[0].mxu0
      %488 = vdwg.mxu0
      %v491 = vunpack.c.l.b16 %v271
      %v492 = vunpack.c.l.b16 %v272
      %v493 = vpack.c.b16 %v492, %v491
      %v495 = vsel %vm284, %v493, 0
      %v498 = vsel %vm288, %v259, 0
      %500 = vmatprep.subr.bf16.mxu0 0
      %501 = vmatpush1.bf16.msra.mxu0 %v498
      %502 = vmatprep.subr.bf16.mxu0 0
      %503 = vmatpush1.bf16.msra.mxu0 0
      %504 = vmatprep.subr.bf16.mxu0 0
      %505 = vmatpush1.bf16.msra.mxu0 0
      %506 = vmatprep.subr.bf16.mxu0 0
      %507 = vmatpush1.bf16.msra.mxu0 0
      %508 = vmatprep.subr.bf16.mxu0 0
      %509 = vmatpush1.bf16.msra.mxu0 0
      %510 = vmatprep.subr.bf16.mxu0 0
      %511 = vmatpush1.bf16.msra.mxu0 0
      %512 = vmatprep.subr.bf16.mxu0 0
      %513 = vmatpush1.bf16.msra.mxu0 0
      %514 = vmatprep.subr.bf16.mxu0 0
      %515 = vmatpush1.bf16.msra.mxu0 0
      %516 = vmatprep.subr.bf16.mxu0 0
      %517 = vmatpush1.bf16.msra.mxu0 0
      %518 = vmatprep.subr.bf16.mxu0 0
      %519 = vmatpush1.bf16.msra.mxu0 0
      %520 = vmatprep.subr.bf16.mxu0 0
      %521 = vmatpush1.bf16.msra.mxu0 0
      %522 = vmatprep.subr.bf16.mxu0 0
      %523 = vmatpush1.bf16.msra.mxu0 0
      %524 = vmatprep.subr.bf16.mxu0 0
      %525 = vmatpush1.bf16.msra.mxu0 0
      %526 = vmatprep.subr.bf16.mxu0 0
      %527 = vmatpush1.bf16.msra.mxu0 0
      %528 = vmatprep.subr.bf16.mxu0 0
      %529 = vmatpush1.bf16.msra.mxu0 0
      %530 = vmatprep.subr.bf16.mxu0 0
      %531 = vmatpush1.bf16.msra.mxu0 0
      %532 = vmatprep.mubr.bf16.mxu0 0
      %533 = vmatmul.mubr.bf16.gmra.mrb[0].mxu0 %v495
      %v534 = vpop.f32.mrb[0].mxu0
      %v535 = vadd.f32 0.0, %v534
      %v536 = vpop.f32.mrb[0].mxu0
      %v537 = vpop.f32.mrb[0].mxu0
      %v538 = vadd.f32 0.0, %v537
      %v539 = vpop.f32.mrb[0].mxu0
      %540 = vdwg.mxu0
      %v543 = vunpack.c.l.b16 %v273
      %v544 = vunpack.c.l.b16 %v274
      %v545 = vpack.c.b16 %v544, %v543
      %v547 = vsel %vm284, %v545, 0
      %v550 = vsel %vm288, %v260, 0
      %552 = vmatprep.subr.bf16.mxu0 0
      %553 = vmatpush1.bf16.msra.mxu0 %v550
      %554 = vmatprep.subr.bf16.mxu0 0
      %555 = vmatpush1.bf16.msra.mxu0 0
      %556 = vmatprep.subr.bf16.mxu0 0
      %557 = vmatpush1.bf16.msra.mxu0 0
      %558 = vmatprep.subr.bf16.mxu0 0
      %559 = vmatpush1.bf16.msra.mxu0 0
      %560 = vmatprep.subr.bf16.mxu0 0
      %561 = vmatpush1.bf16.msra.mxu0 0
      %562 = vmatprep.subr.bf16.mxu0 0
      %563 = vmatpush1.bf16.msra.mxu0 0
      %564 = vmatprep.subr.bf16.mxu0 0
      %565 = vmatpush1.bf16.msra.mxu0 0
      %566 = vmatprep.subr.bf16.mxu0 0
      %567 = vmatpush1.bf16.msra.mxu0 0
      %568 = vmatprep.subr.bf16.mxu0 0
      %569 = vmatpush1.bf16.msra.mxu0 0
      %570 = vmatprep.subr.bf16.mxu0 0
      %571 = vmatpush1.bf16.msra.mxu0 0
      %572 = vmatprep.subr.bf16.mxu0 0
      %573 = vmatpush1.bf16.msra.mxu0 0
      %574 = vmatprep.subr.bf16.mxu0 0
      %575 = vmatpush1.bf16.msra.mxu0 0
      %576 = vmatprep.subr.bf16.mxu0 0
      %577 = vmatpush1.bf16.msra.mxu0 0
      %578 = vmatprep.subr.bf16.mxu0 0
      %579 = vmatpush1.bf16.msra.mxu0 0
      %580 = vmatprep.subr.bf16.mxu0 0
      %581 = vmatpush1.bf16.msra.mxu0 0
      %582 = vmatprep.subr.bf16.mxu0 0
      %583 = vmatpush1.bf16.msra.mxu0 0
      %584 = vmatprep.mubr.bf16.mxu0 0
      %585 = vmatmul.mubr.bf16.gmra.mrb[0].mxu0 %v547
      %v586 = vpop.f32.mrb[0].mxu0
      %v587 = vadd.f32 0.0, %v586
      %v588 = vpop.f32.mrb[0].mxu0
      %v589 = vpop.f32.mrb[0].mxu0
      %v590 = vadd.f32 0.0, %v589
      %v591 = vpop.f32.mrb[0].mxu0
      %592 = vdwg.mxu0
      %v595 = vunpack.c.l.b16 %v275
      %v596 = vunpack.c.l.b16 %v276
      %v597 = vpack.c.b16 %v596, %v595
      %v599 = vsel %vm284, %v597, 0
      %v602 = vsel %vm288, %v261, 0
      %604 = vmatprep.subr.bf16.mxu0 0
      %605 = vmatpush1.bf16.msra.mxu0 %v602
      %606 = vmatprep.subr.bf16.mxu0 0
      %607 = vmatpush1.bf16.msra.mxu0 0
      %608 = vmatprep.subr.bf16.mxu0 0
      %609 = vmatpush1.bf16.msra.mxu0 0
      %610 = vmatprep.subr.bf16.mxu0 0
      %611 = vmatpush1.bf16.msra.mxu0 0
      %612 = vmatprep.subr.bf16.mxu0 0
      %613 = vmatpush1.bf16.msra.mxu0 0
      %614 = vmatprep.subr.bf16.mxu0 0
      %615 = vmatpush1.bf16.msra.mxu0 0
      %616 = vmatprep.subr.bf16.mxu0 0
      %617 = vmatpush1.bf16.msra.mxu0 0
      %618 = vmatprep.subr.bf16.mxu0 0
      %619 = vmatpush1.bf16.msra.mxu0 0
      %620 = vmatprep.subr.bf16.mxu0 0
      %621 = vmatpush1.bf16.msra.mxu0 0
      %622 = vmatprep.subr.bf16.mxu0 0
      %623 = vmatpush1.bf16.msra.mxu0 0
      %624 = vmatprep.subr.bf16.mxu0 0
      %625 = vmatpush1.bf16.msra.mxu0 0
      %626 = vmatprep.subr.bf16.mxu0 0
      %627 = vmatpush1.bf16.msra.mxu0 0
      %628 = vmatprep.subr.bf16.mxu0 0
      %629 = vmatpush1.bf16.msra.mxu0 0
      %630 = vmatprep.subr.bf16.mxu0 0
      %631 = vmatpush1.bf16.msra.mxu0 0
      %632 = vmatprep.subr.bf16.mxu0 0
      %633 = vmatpush1.bf16.msra.mxu0 0
      %634 = vmatprep.subr.bf16.mxu0 0
      %635 = vmatpush1.bf16.msra.mxu0 0
      %636 = vmatprep.mubr.bf16.mxu0 0
      %637 = vmatmul.mubr.bf16.gmra.mrb[0].mxu0 %v599
      %v638 = vpop.f32.mrb[0].mxu0
      %v639 = vadd.f32 0.0, %v638
      %v640 = vpop.f32.mrb[0].mxu0
      %v641 = vpop.f32.mrb[0].mxu0
      %v642 = vadd.f32 0.0, %v641
      %v643 = vpop.f32.mrb[0].mxu0
      %644 = vdwg.mxu0
      %v647 = vunpack.c.l.b16 %v277
      %v648 = vunpack.c.l.b16 %v278
      %v649 = vpack.c.b16 %v648, %v647
      %v651 = vsel %vm284, %v649, 0
      %v654 = vsel %vm288, %v262, 0
      %656 = vmatprep.subr.bf16.mxu0 0
      %657 = vmatpush1.bf16.msra.mxu0 %v654
      %658 = vmatprep.subr.bf16.mxu0 0
      %659 = vmatpush1.bf16.msra.mxu0 0
      %660 = vmatprep.subr.bf16.mxu0 0
      %661 = vmatpush1.bf16.msra.mxu0 0
      %662 = vmatprep.subr.bf16.mxu0 0
      %663 = vmatpush1.bf16.msra.mxu0 0
      %664 = vmatprep.subr.bf16.mxu0 0
      %665 = vmatpush1.bf16.msra.mxu0 0
      %666 = vmatprep.subr.bf16.mxu0 0
      %667 = vmatpush1.bf16.msra.mxu0 0
      %668 = vmatprep.subr.bf16.mxu0 0
      %669 = vmatpush1.bf16.msra.mxu0 0
      %670 = vmatprep.subr.bf16.mxu0 0
      %671 = vmatpush1.bf16.msra.mxu0 0
      %672 = vmatprep.subr.bf16.mxu0 0
      %673 = vmatpush1.bf16.msra.mxu0 0
      %674 = vmatprep.subr.bf16.mxu0 0
      %675 = vmatpush1.bf16.msra.mxu0 0
      %676 = vmatprep.subr.bf16.mxu0 0
      %677 = vmatpush1.bf16.msra.mxu0 0
      %678 = vmatprep.subr.bf16.mxu0 0
      %679 = vmatpush1.bf16.msra.mxu0 0
      %680 = vmatprep.subr.bf16.mxu0 0
      %681 = vmatpush1.bf16.msra.mxu0 0
      %682 = vmatprep.subr.bf16.mxu0 0
      %683 = vmatpush1.bf16.msra.mxu0 0
      %684 = vmatprep.subr.bf16.mxu0 0
      %685 = vmatpush1.bf16.msra.mxu0 0
      %686 = vmatprep.subr.bf16.mxu0 0
      %687 = vmatpush1.bf16.msra.mxu0 0
      %688 = vmatprep.mubr.bf16.mxu0 0
      %689 = vmatmul.mubr.bf16.gmra.mrb[0].mxu0 %v651
      %v690 = vpop.f32.mrb[0].mxu0
      %v691 = vadd.f32 0.0, %v690
      %v692 = vpop.f32.mrb[0].mxu0
      %v693 = vpop.f32.mrb[0].mxu0
      %v694 = vadd.f32 0.0, %v693
      %v695 = vpop.f32.mrb[0].mxu0
      %696 = vdwg.mxu0
      %v697 = vpack.c.bf16 %v330, %v327
      %v699 = vunpack.c.l.b16 %v697
      %v700 = vunpack.c.h.b16 %v697
      %v701 = vpack.c.b16 %v699, %v699
      %v702 = vpack.c.b16 %v700, %v700
      %vm703 = vsmask.f32 256
      %vm704 = vsmask.f32 4368
      %vm705 = vmor %vm703, %vm704
      %v707 = vshrl.u32 %v701, 16
      %v709 = vrot.slane %v707, 7
      %v710 = vshll.u32 %v701, 16
      %v712 = vor.u32 %v709, %v710
      %v713 = vrot.slane %v709, 4
      %v715 = vshrl.u32 %v702, 16
      %v717 = vrot.slane %v715, 7
      %v718 = vshll.u32 %v702, 16
      %v720 = vor.u32 %v717, %v718
      %v721 = vsel %vm705, %v713, %v720
      %v722 = vrot.slane %v717, 4
      %s726 = scalar_lea.vmem [#allocation2], 12
      %vm727 = vcmask 257024
      %vm728 = vsmask.f32 7938
      %vm729 = vmand %vm727, %vm728
      %v730 = vld [vmem:[%s726] sm:$0xf]
      %v731 = vsel %vm729, %v712, %v730
      %732 = vst [vmem:[%s726] sm:$0xf] %v731
      %733 = vst.msk [vmem:[%s726 + $0x4] sm:$0xf] %vm199, %v721
      %vm734 = vcmask 253952
      %vm735 = vmand %vm734, %vm703
      %v736 = vld [vmem:[%s726 + $0x8] sm:$0x1]
      %v737 = vsel %vm735, %v722, %v736
      %738 = vst [vmem:[%s726 + $0x8] sm:$0x1] %v737
      %v739 = vmul.f32 %v327, 0.53333336
      %v740 = vmul.f32 %v330, 0.53333336
      %v741 = vmul.f32 %v379, 0.46666667
      %v742 = vmul.f32 %v382, 0.46666667
      %v743 = vadd.f32 %v739, %v741
      %v744 = vadd.f32 %v740, %v742
      %v745 = vpack.c.bf16 %v744, %v743
      %v747 = vunpack.c.l.b16 %v745
      %v748 = vunpack.c.h.b16 %v745
      %v749 = vpack.c.b16 %v747, %v747
      %v750 = vpack.c.b16 %v748, %v748
      %v752 = vshrl.u32 %v749, 16
      %v754 = vrot.slane %v752, 7
      %v755 = vshll.u32 %v749, 16
      %v757 = vor.u32 %v754, %v755
      %v758 = vrot.slane %v754, 4
      %v760 = vshrl.u32 %v750, 16
      %v762 = vrot.slane %v760, 7
      %v763 = vshll.u32 %v750, 16
      %v765 = vor.u32 %v762, %v763
      %v766 = vsel %vm705, %v758, %v765
      %v767 = vrot.slane %v762, 4
      %s771 = scalar_lea.vmem [#allocation2], 24
      %v772 = vld [vmem:[%s771] sm:$0xf]
      %v773 = vsel %vm729, %v757, %v772
      %774 = vst [vmem:[%s771] sm:$0xf] %v773
      %775 = vst.msk [vmem:[%s771 + $0x4] sm:$0xf] %vm199, %v766
      %v776 = vld [vmem:[%s771 + $0x8] sm:$0x1]
      %v777 = vsel %vm735, %v767, %v776
      %778 = vst [vmem:[%s771 + $0x8] sm:$0x1] %v777
      %v779 = vmul.f32 %v327, 0.06666667
      %v780 = vmul.f32 %v330, 0.06666667
      %v781 = vmul.f32 %v379, 0.93333334
      %v782 = vmul.f32 %v382, 0.93333334
      %v783 = vadd.f32 %v779, %v781
      %v784 = vadd.f32 %v780, %v782
      %v785 = vpack.c.bf16 %v784, %v783
      %v787 = vunpack.c.l.b16 %v785
      %v788 = vunpack.c.h.b16 %v785
      %v789 = vpack.c.b16 %v787, %v787
      %v790 = vpack.c.b16 %v788, %v788
      %v792 = vshrl.u32 %v789, 16
      %v794 = vrot.slane %v792, 7
      %v795 = vshll.u32 %v789, 16
      %v797 = vor.u32 %v794, %v795
      %v798 = vrot.slane %v794, 4
      %v800 = vshrl.u32 %v790, 16
      %v802 = vrot.slane %v800, 7
      %v803 = vshll.u32 %v790, 16
      %v805 = vor.u32 %v802, %v803
      %v806 = vsel %vm705, %v798, %v805
      %v807 = vrot.slane %v802, 4
      %s811 = scalar_lea.vmem [#allocation2], 36
      %v812 = vld [vmem:[%s811] sm:$0xf]
      %v813 = vsel %vm729, %v797, %v812
      %814 = vst [vmem:[%s811] sm:$0xf] %v813
      %815 = vst.msk [vmem:[%s811 + $0x4] sm:$0xf] %vm199, %v806
      %v816 = vld [vmem:[%s811 + $0x8] sm:$0x1]
      %v817 = vsel %vm735, %v807, %v816
      %818 = vst [vmem:[%s811 + $0x8] sm:$0x1] %v817
      %v819 = vmul.f32 %v379, 0.6
      %v820 = vmul.f32 %v382, 0.6
      %v821 = vmul.f32 %v431, 0.4
      %v822 = vmul.f32 %v434, 0.4
      %v823 = vadd.f32 %v819, %v821
      %v824 = vadd.f32 %v820, %v822
      %v825 = vpack.c.bf16 %v824, %v823
      %v827 = vunpack.c.l.b16 %v825
      %v828 = vunpack.c.h.b16 %v825
      %v829 = vpack.c.b16 %v827, %v827
      %v830 = vpack.c.b16 %v828, %v828
      %v832 = vshrl.u32 %v829, 16
      %v834 = vrot.slane %v832, 7
      %v835 = vshll.u32 %v829, 16
      %v837 = vor.u32 %v834, %v835
      %v838 = vrot.slane %v834, 4
      %v840 = vshrl.u32 %v830, 16
      %v842 = vrot.slane %v840, 7
      %v843 = vshll.u32 %v830, 16
      %v845 = vor.u32 %v842, %v843
      %v846 = vsel %vm705, %v838, %v845
      %v847 = vrot.slane %v842, 4
      %s851 = scalar_lea.vmem [#allocation2], 48
      %v852 = vld [vmem:[%s851] sm:$0xf]
      %v853 = vsel %vm729, %v837, %v852
      %854 = vst [vmem:[%s851] sm:$0xf] %v853
      %855 = vst.msk [vmem:[%s851 + $0x4] sm:$0xf] %vm199, %v846
      %v856 = vld [vmem:[%s851 + $0x8] sm:$0x1]
      %v857 = vsel %vm735, %v847, %v856
      %858 = vst [vmem:[%s851 + $0x8] sm:$0x1] %v857
      %v859 = vmul.f32 %v379, 0.13333334
      %v860 = vmul.f32 %v382, 0.13333334
      %v861 = vmul.f32 %v431, 0.8666667
      %v862 = vmul.f32 %v434, 0.8666667
      %v863 = vadd.f32 %v859, %v861
      %v864 = vadd.f32 %v860, %v862
      %v865 = vpack.c.bf16 %v864, %v863
      %v867 = vunpack.c.l.b16 %v865
      %v868 = vunpack.c.h.b16 %v865
      %v869 = vpack.c.b16 %v867, %v867
      %v870 = vpack.c.b16 %v868, %v868
      %v872 = vshrl.u32 %v869, 16
      %v874 = vrot.slane %v872, 7
      %v875 = vshll.u32 %v869, 16
      %v877 = vor.u32 %v874, %v875
      %v878 = vrot.slane %v874, 4
      %v880 = vshrl.u32 %v870, 16
      %v882 = vrot.slane %v880, 7
      %v883 = vshll.u32 %v870, 16
      %v885 = vor.u32 %v882, %v883
      %v886 = vsel %vm705, %v878, %v885
      %v887 = vrot.slane %v882, 4
      %s891 = scalar_lea.vmem [#allocation2], 60
      %v892 = vld [vmem:[%s891] sm:$0xf]
      %v893 = vsel %vm729, %v877, %v892
      %894 = vst [vmem:[%s891] sm:$0xf] %v893
      %895 = vst.msk [vmem:[%s891 + $0x4] sm:$0xf] %vm199, %v886
      %v896 = vld [vmem:[%s891 + $0x8] sm:$0x1]
      %v897 = vsel %vm735, %v887, %v896
      %898 = vst [vmem:[%s891 + $0x8] sm:$0x1] %v897
      %v899 = vmul.f32 %v431, 0.6666667
      %v900 = vmul.f32 %v434, 0.6666667
      %v901 = vmul.f32 %v483, 0.33333334
      %v902 = vmul.f32 %v486, 0.33333334
      %v903 = vadd.f32 %v899, %v901
      %v904 = vadd.f32 %v900, %v902
      %v905 = vpack.c.bf16 %v904, %v903
      %v907 = vunpack.c.l.b16 %v905
      %v908 = vunpack.c.h.b16 %v905
      %v909 = vpack.c.b16 %v907, %v907
      %v910 = vpack.c.b16 %v908, %v908
      %v912 = vshrl.u32 %v909, 16
      %v914 = vrot.slane %v912, 7
      %v915 = vshll.u32 %v909, 16
      %v917 = vor.u32 %v914, %v915
      %v918 = vrot.slane %v914, 4
      %v920 = vshrl.u32 %v910, 16
      %v922 = vrot.slane %v920, 7
      %v923 = vshll.u32 %v910, 16
      %v925 = vor.u32 %v922, %v923
      %v926 = vsel %vm705, %v918, %v925
      %v927 = vrot.slane %v922, 4
      %s931 = scalar_lea.vmem [#allocation2], 72
      %v932 = vld [vmem:[%s931] sm:$0xf]
      %v933 = vsel %vm729, %v917, %v932
      %934 = vst [vmem:[%s931] sm:$0xf] %v933
      %935 = vst.msk [vmem:[%s931 + $0x4] sm:$0xf] %vm199, %v926
      %v936 = vld [vmem:[%s931 + $0x8] sm:$0x1]
      %v937 = vsel %vm735, %v927, %v936
      %938 = vst [vmem:[%s931 + $0x8] sm:$0x1] %v937
      %v939 = vmul.f32 %v431, 0.2
      %v940 = vmul.f32 %v434, 0.2
      %v941 = vmul.f32 %v483, 0.8
      %v942 = vmul.f32 %v486, 0.8
      %v943 = vadd.f32 %v939, %v941
      %v944 = vadd.f32 %v940, %v942
      %v945 = vpack.c.bf16 %v944, %v943
      %v947 = vunpack.c.l.b16 %v945
      %v948 = vunpack.c.h.b16 %v945
      %v949 = vpack.c.b16 %v947, %v947
      %v950 = vpack.c.b16 %v948, %v948
      %v952 = vshrl.u32 %v949, 16
      %v954 = vrot.slane %v952, 7
      %v955 = vshll.u32 %v949, 16
      %v957 = vor.u32 %v954, %v955
      %v958 = vrot.slane %v954, 4
      %v960 = vshrl.u32 %v950, 16
      %v962 = vrot.slane %v960, 7
      %v963 = vshll.u32 %v950, 16
      %v965 = vor.u32 %v962, %v963
      %v966 = vsel %vm705, %v958, %v965
      %v967 = vrot.slane %v962, 4
      %s971 = scalar_lea.vmem [#allocation2], 84
      %v972 = vld [vmem:[%s971] sm:$0xf]
      %v973 = vsel %vm729, %v957, %v972
      %974 = vst [vmem:[%s971] sm:$0xf] %v973
      %975 = vst.msk [vmem:[%s971 + $0x4] sm:$0xf] %vm199, %v966
      %v976 = vld [vmem:[%s971 + $0x8] sm:$0x1]
      %v977 = vsel %vm735, %v967, %v976
      %978 = vst [vmem:[%s971 + $0x8] sm:$0x1] %v977
      %v979 = vmul.f32 %v483, 0.73333335
      %v980 = vmul.f32 %v486, 0.73333335
      %v981 = vmul.f32 %v535, 0.26666668
      %v982 = vmul.f32 %v538, 0.26666668
      %v983 = vadd.f32 %v979, %v981
      %v984 = vadd.f32 %v980, %v982
      %v985 = vpack.c.bf16 %v984, %v983
      %v987 = vunpack.c.l.b16 %v985
      %v988 = vunpack.c.h.b16 %v985
      %v989 = vpack.c.b16 %v987, %v987
      %v990 = vpack.c.b16 %v988, %v988
      %v992 = vshrl.u32 %v989, 16
      %v994 = vrot.slane %v992, 7
      %v995 = vshll.u32 %v989, 16
      %v997 = vor.u32 %v994, %v995
      %v998 = vrot.slane %v994, 4
      %v1000 = vshrl.u32 %v990, 16
      %v1002 = vrot.slane %v1000, 7
      %v1003 = vshll.u32 %v990, 16
      %v1005 = vor.u32 %v1002, %v1003
      %v1006 = vsel %vm705, %v998, %v1005
      %v1007 = vrot.slane %v1002, 4
      %s1011 = scalar_lea.vmem [#allocation2], 96
      %v1012 = vld [vmem:[%s1011] sm:$0xf]
      %v1013 = vsel %vm729, %v997, %v1012
      %1014 = vst [vmem:[%s1011] sm:$0xf] %v1013
      %1015 = vst.msk [vmem:[%s1011 + $0x4] sm:$0xf] %vm199, %v1006
      %v1016 = vld [vmem:[%s1011 + $0x8] sm:$0x1]
      %v1017 = vsel %vm735, %v1007, %v1016
      %1018 = vst [vmem:[%s1011 + $0x8] sm:$0x1] %v1017
      %v1019 = vmul.f32 %v483, 0.26666668
      %v1020 = vmul.f32 %v486, 0.26666668
      %v1021 = vmul.f32 %v535, 0.73333335
      %v1022 = vmul.f32 %v538, 0.73333335
      %v1023 = vadd.f32 %v1019, %v1021
      %v1024 = vadd.f32 %v1020, %v1022
      %v1025 = vpack.c.bf16 %v1024, %v1023
      %v1027 = vunpack.c.l.b16 %v1025
      %v1028 = vunpack.c.h.b16 %v1025
      %v1029 = vpack.c.b16 %v1027, %v1027
      %v1030 = vpack.c.b16 %v1028, %v1028
      %v1032 = vshrl.u32 %v1029, 16
      %v1034 = vrot.slane %v1032, 7
      %v1035 = vshll.u32 %v1029, 16
      %v1037 = vor.u32 %v1034, %v1035
      %v1038 = vrot.slane %v1034, 4
      %v1040 = vshrl.u32 %v1030, 16
      %v1042 = vrot.slane %v1040, 7
      %v1043 = vshll.u32 %v1030, 16
      %v1045 = vor.u32 %v1042, %v1043
      %v1046 = vsel %vm705, %v1038, %v1045
      %v1047 = vrot.slane %v1042, 4
      %s1051 = scalar_lea.vmem [#allocation2], 108
      %v1052 = vld [vmem:[%s1051] sm:$0xf]
      %v1053 = vsel %vm729, %v1037, %v1052
      %1054 = vst [vmem:[%s1051] sm:$0xf] %v1053
      %1055 = vst.msk [vmem:[%s1051 + $0x4] sm:$0xf] %vm199, %v1046
      %v1056 = vld [vmem:[%s1051 + $0x8] sm:$0x1]
      %v1057 = vsel %vm735, %v1047, %v1056
      %1058 = vst [vmem:[%s1051 + $0x8] sm:$0x1] %v1057
      %v1059 = vmul.f32 %v535, 0.8
      %v1060 = vmul.f32 %v538, 0.8
      %v1061 = vmul.f32 %v587, 0.2
      %v1062 = vmul.f32 %v590, 0.2
      %v1063 = vadd.f32 %v1059, %v1061
      %v1064 = vadd.f32 %v1060, %v1062
      %v1065 = vpack.c.bf16 %v1064, %v1063
      %v1067 = vunpack.c.l.b16 %v1065
      %v1068 = vunpack.c.h.b16 %v1065
      %v1069 = vpack.c.b16 %v1067, %v1067
      %v1070 = vpack.c.b16 %v1068, %v1068
      %v1072 = vshrl.u32 %v1069, 16
      %v1074 = vrot.slane %v1072, 7
      %v1075 = vshll.u32 %v1069, 16
      %v1077 = vor.u32 %v1074, %v1075
      %v1078 = vrot.slane %v1074, 4
      %v1080 = vshrl.u32 %v1070, 16
      %v1082 = vrot.slane %v1080, 7
      %v1083 = vshll.u32 %v1070, 16
      %v1085 = vor.u32 %v1082, %v1083
      %v1086 = vsel %vm705, %v1078, %v1085
      %v1087 = vrot.slane %v1082, 4
      %s1091 = scalar_lea.vmem [#allocation2], 120
      %v1092 = vld [vmem:[%s1091] sm:$0xf]
      %v1093 = vsel %vm729, %v1077, %v1092
      %1094 = vst [vmem:[%s1091] sm:$0xf] %v1093
      %1095 = vst.msk [vmem:[%s1091 + $0x4] sm:$0xf] %vm199, %v1086
      %v1096 = vld [vmem:[%s1091 + $0x8] sm:$0x1]
      %v1097 = vsel %vm735, %v1087, %v1096
      %1098 = vst [vmem:[%s1091 + $0x8] sm:$0x1] %v1097
      %v1099 = vmul.f32 %v535, 0.33333334
      %v1100 = vmul.f32 %v538, 0.33333334
      %v1101 = vmul.f32 %v587, 0.6666667
      %v1102 = vmul.f32 %v590, 0.6666667
      %v1103 = vadd.f32 %v1099, %v1101
      %v1104 = vadd.f32 %v1100, %v1102
      %v1105 = vpack.c.bf16 %v1104, %v1103
      %v1107 = vunpack.c.l.b16 %v1105
      %v1108 = vunpack.c.h.b16 %v1105
      %v1109 = vpack.c.b16 %v1107, %v1107
      %v1110 = vpack.c.b16 %v1108, %v1108
      %v1112 = vshrl.u32 %v1109, 16
      %v1114 = vrot.slane %v1112, 7
      %v1115 = vshll.u32 %v1109, 16
      %v1117 = vor.u32 %v1114, %v1115
      %v1118 = vrot.slane %v1114, 4
      %v1120 = vshrl.u32 %v1110, 16
      %v1122 = vrot.slane %v1120, 7
      %v1123 = vshll.u32 %v1110, 16
      %v1125 = vor.u32 %v1122, %v1123
      %v1126 = vsel %vm705, %v1118, %v1125
      %v1127 = vrot.slane %v1122, 4
      %s1131 = scalar_lea.vmem [#allocation2], 132
      %v1132 = vld [vmem:[%s1131] sm:$0xf]
      %v1133 = vsel %vm729, %v1117, %v1132
      %1134 = vst [vmem:[%s1131] sm:$0xf] %v1133
      %1135 = vst.msk [vmem:[%s1131 + $0x4] sm:$0xf] %vm199, %v1126
      %v1136 = vld [vmem:[%s1131 + $0x8] sm:$0x1]
      %v1137 = vsel %vm735, %v1127, %v1136
      %1138 = vst [vmem:[%s1131 + $0x8] sm:$0x1] %v1137
      %v1139 = vmul.f32 %v587, 0.8666667
      %v1140 = vmul.f32 %v590, 0.8666667
      %v1141 = vmul.f32 %v639, 0.13333334
      %v1142 = vmul.f32 %v642, 0.13333334
      %v1143 = vadd.f32 %v1139, %v1141
      %v1144 = vadd.f32 %v1140, %v1142
      %v1145 = vpack.c.bf16 %v1144, %v1143
      %v1147 = vunpack.c.l.b16 %v1145
      %v1148 = vunpack.c.h.b16 %v1145
      %v1149 = vpack.c.b16 %v1147, %v1147
      %v1150 = vpack.c.b16 %v1148, %v1148
      %v1152 = vshrl.u32 %v1149, 16
      %v1154 = vrot.slane %v1152, 7
      %v1155 = vshll.u32 %v1149, 16
      %v1157 = vor.u32 %v1154, %v1155
      %v1158 = vrot.slane %v1154, 4
      %v1160 = vshrl.u32 %v1150, 16
      %v1162 = vrot.slane %v1160, 7
      %v1163 = vshll.u32 %v1150, 16
      %v1165 = vor.u32 %v1162, %v1163
      %v1166 = vsel %vm705, %v1158, %v1165
      %v1167 = vrot.slane %v1162, 4
      %s1171 = scalar_lea.vmem [#allocation2], 144
      %v1172 = vld [vmem:[%s1171] sm:$0xf]
      %v1173 = vsel %vm729, %v1157, %v1172
      %1174 = vst [vmem:[%s1171] sm:$0xf] %v1173
      %1175 = vst.msk [vmem:[%s1171 + $0x4] sm:$0xf] %vm199, %v1166
      %v1176 = vld [vmem:[%s1171 + $0x8] sm:$0x1]
      %v1177 = vsel %vm735, %v1167, %v1176
      %1178 = vst [vmem:[%s1171 + $0x8] sm:$0x1] %v1177
      %v1179 = vmul.f32 %v587, 0.4
      %v1180 = vmul.f32 %v590, 0.4
      %v1181 = vmul.f32 %v639, 0.6
      %v1182 = vmul.f32 %v642, 0.6
      %v1183 = vadd.f32 %v1179, %v1181
      %v1184 = vadd.f32 %v1180, %v1182
      %v1185 = vpack.c.bf16 %v1184, %v1183
      %v1187 = vunpack.c.l.b16 %v1185
      %v1188 = vunpack.c.h.b16 %v1185
      %v1189 = vpack.c.b16 %v1187, %v1187
      %v1190 = vpack.c.b16 %v1188, %v1188
      %v1192 = vshrl.u32 %v1189, 16
      %v1194 = vrot.slane %v1192, 7
      %v1195 = vshll.u32 %v1189, 16
      %v1197 = vor.u32 %v1194, %v1195
      %v1198 = vrot.slane %v1194, 4
      %v1200 = vshrl.u32 %v1190, 16
      %v1202 = vrot.slane %v1200, 7
      %v1203 = vshll.u32 %v1190, 16
      %v1205 = vor.u32 %v1202, %v1203
      %v1206 = vsel %vm705, %v1198, %v1205
      %v1207 = vrot.slane %v1202, 4
      %s1211 = scalar_lea.vmem [#allocation2], 156
      %v1212 = vld [vmem:[%s1211] sm:$0xf]
      %v1213 = vsel %vm729, %v1197, %v1212
      %1214 = vst [vmem:[%s1211] sm:$0xf] %v1213
      %1215 = vst.msk [vmem:[%s1211 + $0x4] sm:$0xf] %vm199, %v1206
      %v1216 = vld [vmem:[%s1211 + $0x8] sm:$0x1]
      %v1217 = vsel %vm735, %v1207, %v1216
      %1218 = vst [vmem:[%s1211 + $0x8] sm:$0x1] %v1217
      %v1219 = vmul.f32 %v639, 0.93333334
      %v1220 = vmul.f32 %v642, 0.93333334
      %v1221 = vmul.f32 %v691, 0.06666667
      %v1222 = vmul.f32 %v694, 0.06666667
      %v1223 = vadd.f32 %v1219, %v1221
      %v1224 = vadd.f32 %v1220, %v1222
      %v1225 = vpack.c.bf16 %v1224, %v1223
      %v1227 = vunpack.c.l.b16 %v1225
      %v1228 = vunpack.c.h.b16 %v1225
      %v1229 = vpack.c.b16 %v1227, %v1227
      %v1230 = vpack.c.b16 %v1228, %v1228
      %v1232 = vshrl.u32 %v1229, 16
      %v1234 = vrot.slane %v1232, 7
      %v1235 = vshll.u32 %v1229, 16
      %v1237 = vor.u32 %v1234, %v1235
      %v1238 = vrot.slane %v1234, 4
      %v1240 = vshrl.u32 %v1230, 16
      %v1242 = vrot.slane %v1240, 7
      %v1243 = vshll.u32 %v1230, 16
      %v1245 = vor.u32 %v1242, %v1243
      %v1246 = vsel %vm705, %v1238, %v1245
      %v1247 = vrot.slane %v1242, 4
      %s1251 = scalar_lea.vmem [#allocation2], 168
      %v1252 = vld [vmem:[%s1251] sm:$0xf]
      %v1253 = vsel %vm729, %v1237, %v1252
      %1254 = vst [vmem:[%s1251] sm:$0xf] %v1253
      %1255 = vst.msk [vmem:[%s1251 + $0x4] sm:$0xf] %vm199, %v1246
      %v1256 = vld [vmem:[%s1251 + $0x8] sm:$0x1]
      %v1257 = vsel %vm735, %v1247, %v1256
      %1258 = vst [vmem:[%s1251 + $0x8] sm:$0x1] %v1257
      %v1259 = vmul.f32 %v639, 0.46666667
      %v1260 = vmul.f32 %v642, 0.46666667
      %v1261 = vmul.f32 %v691, 0.53333336
      %v1262 = vmul.f32 %v694, 0.53333336
      %v1263 = vadd.f32 %v1259, %v1261
      %v1264 = vadd.f32 %v1260, %v1262
      %v1265 = vpack.c.bf16 %v1264, %v1263
      %v1267 = vunpack.c.l.b16 %v1265
      %v1268 = vunpack.c.h.b16 %v1265
      %v1269 = vpack.c.b16 %v1267, %v1267
      %v1270 = vpack.c.b16 %v1268, %v1268
      %v1272 = vshrl.u32 %v1269, 16
      %v1274 = vrot.slane %v1272, 7
      %v1275 = vshll.u32 %v1269, 16
      %v1277 = vor.u32 %v1274, %v1275
      %v1278 = vrot.slane %v1274, 4
      %v1280 = vshrl.u32 %v1270, 16
      %v1282 = vrot.slane %v1280, 7
      %v1283 = vshll.u32 %v1270, 16
      %v1285 = vor.u32 %v1282, %v1283
      %v1286 = vsel %vm705, %v1278, %v1285
      %v1287 = vrot.slane %v1282, 4
      %s1291 = scalar_lea.vmem [#allocation2], 180
      %v1292 = vld [vmem:[%s1291] sm:$0xf]
      %v1293 = vsel %vm729, %v1277, %v1292
      %1294 = vst [vmem:[%s1291] sm:$0xf] %v1293
      %1295 = vst.msk [vmem:[%s1291 + $0x4] sm:$0xf] %vm199, %v1286
      %v1296 = vld [vmem:[%s1291 + $0x8] sm:$0x1]
      %v1297 = vsel %vm735, %v1287, %v1296
      %1298 = vst [vmem:[%s1291 + $0x8] sm:$0x1] %v1297
      %v1299 = vpack.c.bf16 %v694, %v691
      %v1301 = vunpack.c.l.b16 %v1299
      %v1302 = vunpack.c.h.b16 %v1299
      %v1303 = vpack.c.b16 %v1301, %v1301
      %v1304 = vpack.c.b16 %v1302, %v1302
      %v1306 = vshrl.u32 %v1303, 16
      %v1308 = vrot.slane %v1306, 7
      %v1309 = vshll.u32 %v1303, 16
      %v1311 = vor.u32 %v1308, %v1309
      %v1312 = vrot.slane %v1308, 4
      %v1314 = vshrl.u32 %v1304, 16
      %v1316 = vrot.slane %v1314, 7
      %v1317 = vshll.u32 %v1304, 16
      %v1319 = vor.u32 %v1316, %v1317
      %v1320 = vsel %vm705, %v1312, %v1319
      %v1321 = vrot.slane %v1316, 4
      %s1325 = scalar_lea.vmem [#allocation2], 192
      %v1326 = vld [vmem:[%s1325] sm:$0xf]
      %v1327 = vsel %vm729, %v1311, %v1326
      %1328 = vst [vmem:[%s1325] sm:$0xf] %v1327
      %1329 = vst.msk [vmem:[%s1325 + $0x4] sm:$0xf] %vm199, %v1320
      %v1330 = vld [vmem:[%s1325 + $0x8] sm:$0x1]
      %v1331 = vsel %vm735, %v1321, %v1330
      %1332 = vst [vmem:[%s1325 + $0x8] sm:$0x1] %v1331
      %v1333 = vld [vmem:[#allocation2] sm:$0xf]
      %v1334 = vld [vmem:[#allocation2 + $0x4] sm:$0xf]
      %v1335 = vld [vmem:[#allocation2 + $0x8] sm:$0x1]
      %v1336 = vld [vmem:[#allocation2 + $0xc] sm:$0xf]
      %v1337 = vld [vmem:[#allocation2 + $0x10] sm:$0xf]
      %v1338 = vld [vmem:[#allocation2 + $0x14] sm:$0x1]
      %v1339 = vld [vmem:[#allocation2 + $0x18] sm:$0xf]
      %v1340 = vld [vmem:[#allocation2 + $0x1c] sm:$0xf]
      %v1341 = vld [vmem:[#allocation2 + $0x20] sm:$0x1]
      %v1342 = vld [vmem:[#allocation2 + $0x24] sm:$0xf]
      %v1343 = vld [vmem:[#allocation2 + $0x28] sm:$0xf]
      %v1344 = vld [vmem:[#allocation2 + $0x2c] sm:$0x1]
      %v1345 = vld [vmem:[#allocation2 + $0x30] sm:$0xf]
      %v1346 = vld [vmem:[#allocation2 + $0x34] sm:$0xf]
      %v1347 = vld [vmem:[#allocation2 + $0x38] sm:$0x1]
      %v1348 = vld [vmem:[#allocation2 + $0x3c] sm:$0xf]
      %v1349 = vld [vmem:[#allocation2 + $0x40] sm:$0xf]
      %v1350 = vld [vmem:[#allocation2 + $0x44] sm:$0x1]
      %v1351 = vld [vmem:[#allocation2 + $0x48] sm:$0xf]
      %v1352 = vld [vmem:[#allocation2 + $0x4c] sm:$0xf]
      %v1353 = vld [vmem:[#allocation2 + $0x50] sm:$0x1]
      %v1354 = vld [vmem:[#allocation2 + $0x54] sm:$0xf]
      %v1355 = vld [vmem:[#allocation2 + $0x58] sm:$0xf]
      %v1356 = vld [vmem:[#allocation2 + $0x5c] sm:$0x1]
      %v1357 = vld [vmem:[#allocation2 + $0x60] sm:$0xf]
      %v1358 = vld [vmem:[#allocation2 + $0x64] sm:$0xf]
      %v1359 = vld [vmem:[#allocation2 + $0x68] sm:$0x1]
      %v1360 = vld [vmem:[#allocation2 + $0x6c] sm:$0xf]
      %v1361 = vld [vmem:[#allocation2 + $0x70] sm:$0xf]
      %v1362 = vld [vmem:[#allocation2 + $0x74] sm:$0x1]
      %v1363 = vld [vmem:[#allocation2 + $0x78] sm:$0xf]
      %v1364 = vld [vmem:[#allocation2 + $0x7c] sm:$0xf]
      %v1365 = vld [vmem:[#allocation2 + $0x80] sm:$0x1]
      %v1366 = vld [vmem:[#allocation2 + $0x84] sm:$0xf]
      %v1367 = vld [vmem:[#allocation2 + $0x88] sm:$0xf]
      %v1368 = vld [vmem:[#allocation2 + $0x8c] sm:$0x1]
      %v1369 = vld [vmem:[#allocation2 + $0x90] sm:$0xf]
      %v1370 = vld [vmem:[#allocation2 + $0x94] sm:$0xf]
      %v1371 = vld [vmem:[#allocation2 + $0x98] sm:$0x1]
      %v1372 = vld [vmem:[#allocation2 + $0x9c] sm:$0xf]
      %v1373 = vld [vmem:[#allocation2 + $0xa0] sm:$0xf]
      %v1374 = vld [vmem:[#allocation2 + $0xa4] sm:$0x1]
      %v1375 = vld [vmem:[#allocation2 + $0xa8] sm:$0xf]
      %v1376 = vld [vmem:[#allocation2 + $0xac] sm:$0xf]
      %v1377 = vld [vmem:[#allocation2 + $0xb0] sm:$0x1]
      %v1378 = vld [vmem:[#allocation2 + $0xb4] sm:$0xf]
      %v1379 = vld [vmem:[#allocation2 + $0xb8] sm:$0xf]
      %v1380 = vld [vmem:[#allocation2 + $0xbc] sm:$0x1]
      %v1381 = vld [vmem:[#allocation2 + $0xc0] sm:$0xf]
      %v1382 = vld [vmem:[#allocation2 + $0xc4] sm:$0xf]
      %v1383 = vld [vmem:[#allocation2 + $0xc8] sm:$0x1]
      %v1384 = vld [vmem:[#allocation2 + $0xcc] sm:$0xf]
      %v1385 = vld [vmem:[#allocation2 + $0xd0] sm:$0xf]
      %v1386 = vld [vmem:[#allocation2 + $0xd4] sm:$0x1]
      %v1419 = vunpack.c.l.b16 %v1333
      %v1420 = vunpack.c.l.b16 %v1334
      %v1421 = vunpack.c.l.b16 %v1336
      %v1422 = vunpack.c.l.b16 %v1337
      %v1423 = vunpack.c.l.b16 %v1339
      %v1424 = vunpack.c.l.b16 %v1340
      %v1425 = vunpack.c.l.b16 %v1342
      %v1426 = vunpack.c.l.b16 %v1343
      %v1427 = vunpack.c.l.b16 %v1345
      %v1428 = vunpack.c.l.b16 %v1346
      %v1429 = vunpack.c.l.b16 %v1348
      %v1430 = vunpack.c.l.b16 %v1349
      %v1431 = vunpack.c.l.b16 %v1351
      %v1432 = vunpack.c.l.b16 %v1352
      %v1433 = vunpack.c.l.b16 %v1354
      %v1434 = vunpack.c.l.b16 %v1355
      %v1435 = vunpack.c.l.b16 %v1357
      %v1436 = vunpack.c.l.b16 %v1358
      %v1437 = vunpack.c.l.b16 %v1360
      %v1438 = vunpack.c.l.b16 %v1361
      %v1439 = vunpack.c.l.b16 %v1363
      %v1440 = vunpack.c.l.b16 %v1364
      %v1441 = vunpack.c.l.b16 %v1366
      %v1442 = vunpack.c.l.b16 %v1367
      %v1443 = vunpack.c.l.b16 %v1369
      %v1444 = vunpack.c.l.b16 %v1370
      %v1445 = vunpack.c.l.b16 %v1372
      %v1446 = vunpack.c.l.b16 %v1373
      %v1447 = vunpack.c.l.b16 %v1375
      %v1448 = vunpack.c.l.b16 %v1376
      %v1449 = vunpack.c.l.b16 %v1378
      %v1450 = vunpack.c.l.b16 %v1379
      %v1451 = vpack.c.b16 %v1420, %v1419
      %v1452 = vpack.c.b16 %v1422, %v1421
      %v1453 = vpack.c.b16 %v1424, %v1423
      %v1454 = vpack.c.b16 %v1426, %v1425
      %v1455 = vpack.c.b16 %v1428, %v1427
      %v1456 = vpack.c.b16 %v1430, %v1429
      %v1457 = vpack.c.b16 %v1432, %v1431
      %v1458 = vpack.c.b16 %v1434, %v1433
      %v1459 = vpack.c.b16 %v1436, %v1435
      %v1460 = vpack.c.b16 %v1438, %v1437
      %v1461 = vpack.c.b16 %v1440, %v1439
      %v1462 = vpack.c.b16 %v1442, %v1441
      %v1463 = vpack.c.b16 %v1444, %v1443
      %v1464 = vpack.c.b16 %v1446, %v1445
      %v1465 = vpack.c.b16 %v1448, %v1447
      %v1466 = vpack.c.b16 %v1450, %v1449
      %v1483 = vunpack.c.l.b16 %v1335
      %v1484 = vunpack.c.l.b16 %v1338
      %v1485 = vunpack.c.l.b16 %v1341
      %v1486 = vunpack.c.l.b16 %v1344
      %v1487 = vunpack.c.l.b16 %v1347
      %v1488 = vunpack.c.l.b16 %v1350
      %v1489 = vunpack.c.l.b16 %v1353
      %v1490 = vunpack.c.l.b16 %v1356
      %v1491 = vunpack.c.l.b16 %v1359
      %v1492 = vunpack.c.l.b16 %v1362
      %v1493 = vunpack.c.l.b16 %v1365
      %v1494 = vunpack.c.l.b16 %v1368
      %v1495 = vunpack.c.l.b16 %v1371
      %v1496 = vunpack.c.l.b16 %v1374
      %v1497 = vunpack.c.l.b16 %v1377
      %v1498 = vunpack.c.l.b16 %v1380
      %v1499 = vpack.c.b16 %v1483, %v1483
      %v1500 = vpack.c.b16 %v1484, %v1484
      %v1501 = vpack.c.b16 %v1485, %v1485
      %v1502 = vpack.c.b16 %v1486, %v1486
      %v1503 = vpack.c.b16 %v1487, %v1487
      %v1504 = vpack.c.b16 %v1488, %v1488
      %v1505 = vpack.c.b16 %v1489, %v1489
      %v1506 = vpack.c.b16 %v1490, %v1490
      %v1507 = vpack.c.b16 %v1491, %v1491
      %v1508 = vpack.c.b16 %v1492, %v1492
      %v1509 = vpack.c.b16 %v1493, %v1493
      %v1510 = vpack.c.b16 %v1494, %v1494
      %v1511 = vpack.c.b16 %v1495, %v1495
      %v1512 = vpack.c.b16 %v1496, %v1496
      %v1513 = vpack.c.b16 %v1497, %v1497
      %v1514 = vpack.c.b16 %v1498, %v1498
      %vm1515 = vsmask.f32 7424
      %v1517 = vshrl.u32 %v1451, 16
      %v1519 = vshll.u32 %v1451, 16
      %v1521 = vrot.slane %v1519, 1
      %v1522 = vor.u32 %v1517, %v1521
      %v1524 = vshll.u32 %v1499, 16
      %v1526 = vrot.slane %v1524, 1
      %v1527 = vsel %vm1515, %v1522, %v1526
      %v1529 = vshrl.u32 %v1452, 16
      %v1531 = vshll.u32 %v1452, 16
      %v1533 = vrot.slane %v1531, 1
      %v1534 = vor.u32 %v1529, %v1533
      %v1536 = vshll.u32 %v1500, 16
      %v1538 = vrot.slane %v1536, 1
      %v1539 = vsel %vm1515, %v1534, %v1538
      %v1541 = vshrl.u32 %v1453, 16
      %v1543 = vshll.u32 %v1453, 16
      %v1545 = vrot.slane %v1543, 1
      %v1546 = vor.u32 %v1541, %v1545
      %v1548 = vshll.u32 %v1501, 16
      %v1550 = vrot.slane %v1548, 1
      %v1551 = vsel %vm1515, %v1546, %v1550
      %v1553 = vshrl.u32 %v1454, 16
      %v1555 = vshll.u32 %v1454, 16
      %v1557 = vrot.slane %v1555, 1
      %v1558 = vor.u32 %v1553, %v1557
      %v1560 = vshll.u32 %v1502, 16
      %v1562 = vrot.slane %v1560, 1
      %v1563 = vsel %vm1515, %v1558, %v1562
      %v1565 = vshrl.u32 %v1455, 16
      %v1567 = vshll.u32 %v1455, 16
      %v1569 = vrot.slane %v1567, 1
      %v1570 = vor.u32 %v1565, %v1569
      %v1572 = vshll.u32 %v1503, 16
      %v1574 = vrot.slane %v1572, 1
      %v1575 = vsel %vm1515, %v1570, %v1574
      %v1577 = vshrl.u32 %v1456, 16
      %v1579 = vshll.u32 %v1456, 16
      %v1581 = vrot.slane %v1579, 1
      %v1582 = vor.u32 %v1577, %v1581
      %v1584 = vshll.u32 %v1504, 16
      %v1586 = vrot.slane %v1584, 1
      %v1587 = vsel %vm1515, %v1582, %v1586
      %v1589 = vshrl.u32 %v1457, 16
      %v1591 = vshll.u32 %v1457, 16
      %v1593 = vrot.slane %v1591, 1
      %v1594 = vor.u32 %v1589, %v1593
      %v1596 = vshll.u32 %v1505, 16
      %v1598 = vrot.slane %v1596, 1
      %v1599 = vsel %vm1515, %v1594, %v1598
      %v1601 = vshrl.u32 %v1458, 16
      %v1603 = vshll.u32 %v1458, 16
      %v1605 = vrot.slane %v1603, 1
      %v1606 = vor.u32 %v1601, %v1605
      %v1608 = vshll.u32 %v1506, 16
      %v1610 = vrot.slane %v1608, 1
      %v1611 = vsel %vm1515, %v1606, %v1610
      %v1613 = vshrl.u32 %v1459, 16
      %v1615 = vshll.u32 %v1459, 16
      %v1617 = vrot.slane %v1615, 1
      %v1618 = vor.u32 %v1613, %v1617
      %v1620 = vshll.u32 %v1507, 16
      %v1622 = vrot.slane %v1620, 1
      %v1623 = vsel %vm1515, %v1618, %v1622
      %v1625 = vshrl.u32 %v1460, 16
      %v1627 = vshll.u32 %v1460, 16
      %v1629 = vrot.slane %v1627, 1
      %v1630 = vor.u32 %v1625, %v1629
      %v1632 = vshll.u32 %v1508, 16
      %v1634 = vrot.slane %v1632, 1
      %v1635 = vsel %vm1515, %v1630, %v1634
      %v1637 = vshrl.u32 %v1461, 16
      %v1639 = vshll.u32 %v1461, 16
      %v1641 = vrot.slane %v1639, 1
      %v1642 = vor.u32 %v1637, %v1641
      %v1644 = vshll.u32 %v1509, 16
      %v1646 = vrot.slane %v1644, 1
      %v1647 = vsel %vm1515, %v1642, %v1646
      %v1649 = vshrl.u32 %v1462, 16
      %v1651 = vshll.u32 %v1462, 16
      %v1653 = vrot.slane %v1651, 1
      %v1654 = vor.u32 %v1649, %v1653
      %v1656 = vshll.u32 %v1510, 16
      %v1658 = vrot.slane %v1656, 1
      %v1659 = vsel %vm1515, %v1654, %v1658
      %v1661 = vshrl.u32 %v1463, 16
      %v1663 = vshll.u32 %v1463, 16
      %v1665 = vrot.slane %v1663, 1
      %v1666 = vor.u32 %v1661, %v1665
      %v1668 = vshll.u32 %v1511, 16
      %v1670 = vrot.slane %v1668, 1
      %v1671 = vsel %vm1515, %v1666, %v1670
      %v1673 = vshrl.u32 %v1464, 16
      %v1675 = vshll.u32 %v1464, 16
      %v1677 = vrot.slane %v1675, 1
      %v1678 = vor.u32 %v1673, %v1677
      %v1680 = vshll.u32 %v1512, 16
      %v1682 = vrot.slane %v1680, 1
      %v1683 = vsel %vm1515, %v1678, %v1682
      %v1685 = vshrl.u32 %v1465, 16
      %v1687 = vshll.u32 %v1465, 16
      %v1689 = vrot.slane %v1687, 1
      %v1690 = vor.u32 %v1685, %v1689
      %v1692 = vshll.u32 %v1513, 16
      %v1694 = vrot.slane %v1692, 1
      %v1695 = vsel %vm1515, %v1690, %v1694
      %v1697 = vshrl.u32 %v1466, 16
      %v1699 = vshll.u32 %v1466, 16
      %v1701 = vrot.slane %v1699, 1
      %v1702 = vor.u32 %v1697, %v1701
      %v1704 = vshll.u32 %v1514, 16
      %v1706 = vrot.slane %v1704, 1
      %v1707 = vsel %vm1515, %v1702, %v1706
      %1708 = vrot.lane.b32.xlu0 %v1527, 32
      %v1709 = vpop.permute.xlu0 %1708
      %1710 = vrot.lane.b32.xlu0 %v1539, 32
      %v1711 = vpop.permute.xlu0 %1710
      %1712 = vrot.lane.b32.xlu0 %v1551, 32
      %v1713 = vpop.permute.xlu0 %1712
      %1714 = vrot.lane.b32.xlu0 %v1563, 32
      %v1715 = vpop.permute.xlu0 %1714
      %1716 = vrot.lane.b32.xlu0 %v1575, 32
      %v1717 = vpop.permute.xlu0 %1716
      %1718 = vrot.lane.b32.xlu0 %v1587, 32
      %v1719 = vpop.permute.xlu0 %1718
      %1720 = vrot.lane.b32.xlu0 %v1599, 32
      %v1721 = vpop.permute.xlu0 %1720
      %1722 = vrot.lane.b32.xlu0 %v1611, 32
      %v1723 = vpop.permute.xlu0 %1722
      %1724 = vrot.lane.b32.xlu0 %v1623, 32
      %v1725 = vpop.permute.xlu0 %1724
      %1726 = vrot.lane.b32.xlu0 %v1635, 32
      %v1727 = vpop.permute.xlu0 %1726
      %1728 = vrot.lane.b32.xlu0 %v1647, 32
      %v1729 = vpop.permute.xlu0 %1728
      %1730 = vrot.lane.b32.xlu0 %v1659, 32
      %v1731 = vpop.permute.xlu0 %1730
      %1732 = vrot.lane.b32.xlu0 %v1671, 32
      %v1733 = vpop.permute.xlu0 %1732
      %1734 = vrot.lane.b32.xlu0 %v1683, 32
      %v1735 = vpop.permute.xlu0 %1734
      %1736 = vrot.lane.b32.xlu0 %v1695, 32
      %v1737 = vpop.permute.xlu0 %1736
      %1738 = vrot.lane.b32.xlu0 %v1707, 32
      %v1739 = vpop.permute.xlu0 %1738
      %vm1740 = vcmask 1046528
      %v1741 = vrot.slane %v1451, 1
      %v1742 = vrot.slane %v1499, 1
      %v1743 = vsel %vm1740, %v1741, %v1742
      %v1744 = vrot.slane %v1452, 1
      %v1745 = vrot.slane %v1500, 1
      %v1746 = vsel %vm1740, %v1744, %v1745
      %v1747 = vrot.slane %v1453, 1
      %v1748 = vrot.slane %v1501, 1
      %v1749 = vsel %vm1740, %v1747, %v1748
      %v1750 = vrot.slane %v1454, 1
      %v1751 = vrot.slane %v1502, 1
      %v1752 = vsel %vm1740, %v1750, %v1751
      %v1753 = vrot.slane %v1455, 1
      %v1754 = vrot.slane %v1503, 1
      %v1755 = vsel %vm1740, %v1753, %v1754
      %v1756 = vrot.slane %v1456, 1
      %v1757 = vrot.slane %v1504, 1
      %v1758 = vsel %vm1740, %v1756, %v1757
      %v1759 = vrot.slane %v1457, 1
      %v1760 = vrot.slane %v1505, 1
      %v1761 = vsel %vm1740, %v1759, %v1760
      %v1762 = vrot.slane %v1458, 1
      %v1763 = vrot.slane %v1506, 1
      %v1764 = vsel %vm1740, %v1762, %v1763
      %v1765 = vrot.slane %v1459, 1
      %v1766 = vrot.slane %v1507, 1
      %v1767 = vsel %vm1740, %v1765, %v1766
      %v1768 = vrot.slane %v1460, 1
      %v1769 = vrot.slane %v1508, 1
      %v1770 = vsel %vm1740, %v1768, %v1769
      %v1771 = vrot.slane %v1461, 1
      %v1772 = vrot.slane %v1509, 1
      %v1773 = vsel %vm1740, %v1771, %v1772
      %v1774 = vrot.slane %v1462, 1
      %v1775 = vrot.slane %v1510, 1
      %v1776 = vsel %vm1740, %v1774, %v1775
      %v1777 = vrot.slane %v1463, 1
      %v1778 = vrot.slane %v1511, 1
      %v1779 = vsel %vm1740, %v1777, %v1778
      %v1780 = vrot.slane %v1464, 1
      %v1781 = vrot.slane %v1512, 1
      %v1782 = vsel %vm1740, %v1780, %v1781
      %v1783 = vrot.slane %v1465, 1
      %v1784 = vrot.slane %v1513, 1
      %v1785 = vsel %vm1740, %v1783, %v1784
      %v1786 = vrot.slane %v1466, 1
      %v1787 = vrot.slane %v1514, 1
      %v1788 = vsel %vm1740, %v1786, %v1787
      %1789 = vrot.lane.b32.xlu0 %v1743, 64
      %v1790 = vpop.permute.xlu0 %1789
      %1791 = vrot.lane.b32.xlu0 %v1746, 64
      %v1792 = vpop.permute.xlu0 %1791
      %1793 = vrot.lane.b32.xlu0 %v1749, 64
      %v1794 = vpop.permute.xlu0 %1793
      %1795 = vrot.lane.b32.xlu0 %v1752, 64
      %v1796 = vpop.permute.xlu0 %1795
      %1797 = vrot.lane.b32.xlu0 %v1755, 64
      %v1798 = vpop.permute.xlu0 %1797
      %1799 = vrot.lane.b32.xlu0 %v1758, 64
      %v1800 = vpop.permute.xlu0 %1799
      %1801 = vrot.lane.b32.xlu0 %v1761, 64
      %v1802 = vpop.permute.xlu0 %1801
      %1803 = vrot.lane.b32.xlu0 %v1764, 64
      %v1804 = vpop.permute.xlu0 %1803
      %1805 = vrot.lane.b32.xlu0 %v1767, 64
      %v1806 = vpop.permute.xlu0 %1805
      %1807 = vrot.lane.b32.xlu0 %v1770, 64
      %v1808 = vpop.permute.xlu0 %1807
      %1809 = vrot.lane.b32.xlu0 %v1773, 64
      %v1810 = vpop.permute.xlu0 %1809
      %1811 = vrot.lane.b32.xlu0 %v1776, 64
      %v1812 = vpop.permute.xlu0 %1811
      %1813 = vrot.lane.b32.xlu0 %v1779, 64
      %v1814 = vpop.permute.xlu0 %1813
      %1815 = vrot.lane.b32.xlu0 %v1782, 64
      %v1816 = vpop.permute.xlu0 %1815
      %1817 = vrot.lane.b32.xlu0 %v1785, 64
      %v1818 = vpop.permute.xlu0 %1817
      %1819 = vrot.lane.b32.xlu0 %v1788, 64
      %v1820 = vpop.permute.xlu0 %1819
      %vm1821 = vcmask 261120
      %v1823 = vsel %vm1821, %v1451, %v1709
      %v1825 = vsel %vm1821, %v1452, %v1711
      %v1827 = vsel %vm1821, %v1453, %v1713
      %v1829 = vsel %vm1821, %v1454, %v1715
      %v1831 = vsel %vm1821, %v1455, %v1717
      %v1833 = vsel %vm1821, %v1456, %v1719
      %v1835 = vsel %vm1821, %v1457, %v1721
      %v1837 = vsel %vm1821, %v1458, %v1723
      %v1839 = vsel %vm1821, %v1459, %v1725
      %v1841 = vsel %vm1821, %v1460, %v1727
      %v1843 = vsel %vm1821, %v1461, %v1729
      %v1845 = vsel %vm1821, %v1462, %v1731
      %v1847 = vsel %vm1821, %v1463, %v1733
      %v1849 = vsel %vm1821, %v1464, %v1735
      %v1851 = vsel %vm1821, %v1465, %v1737
      %v1853 = vsel %vm1821, %v1466, %v1739
      %vm1854 = vcmask 523264
      %v1856 = vsel %vm1854, %v1823, %v1790
      %v1858 = vsel %vm1854, %v1825, %v1792
      %v1860 = vsel %vm1854, %v1827, %v1794
      %v1862 = vsel %vm1854, %v1829, %v1796
      %v1864 = vsel %vm1854, %v1831, %v1798
      %v1866 = vsel %vm1854, %v1833, %v1800
      %v1868 = vsel %vm1854, %v1835, %v1802
      %v1870 = vsel %vm1854, %v1837, %v1804
      %v1872 = vsel %vm1854, %v1839, %v1806
      %v1874 = vsel %vm1854, %v1841, %v1808
      %v1876 = vsel %vm1854, %v1843, %v1810
      %v1878 = vsel %vm1854, %v1845, %v1812
      %v1880 = vsel %vm1854, %v1847, %v1814
      %v1882 = vsel %vm1854, %v1849, %v1816
      %v1884 = vsel %vm1854, %v1851, %v1818
      %v1886 = vsel %vm1854, %v1853, %v1820
      %v1887 = vld [vmem:[%s2] sm:$0xf]
      %v1888 = vld [vmem:[%s2 + $0x4] sm:$0xf]
      %v1889 = vld [vmem:[%s2 + $0x8] sm:$0xf]
      %v1890 = vld [vmem:[%s2 + $0xc] sm:$0xf]
      %v1891 = vld [vmem:[%s2 + $0x10] sm:$0xf]
      %v1892 = vld [vmem:[%s2 + $0x14] sm:$0xf]
      %v1893 = vld [vmem:[%s2 + $0x18] sm:$0xf]
      %v1894 = vld [vmem:[%s2 + $0x1c] sm:$0xf]
      %v1895 = vld [vmem:[%s2 + $0x20] sm:$0xf]
      %v1896 = vld [vmem:[%s2 + $0x24] sm:$0xf]
      %v1897 = vld [vmem:[%s2 + $0x28] sm:$0xf]
      %v1898 = vld [vmem:[%s2 + $0x2c] sm:$0xf]
      %v1901 = vunpack.c.l.b16 %v1381
      %v1902 = vunpack.c.l.b16 %v1382
      %v1903 = vpack.c.b16 %v1902, %v1901
      %v1905 = vunpack.c.l.b16 %v1383
      %v1906 = vpack.c.b16 %v1905, %v1905
      %v1908 = vshrl.u32 %v1903, 16
      %v1910 = vshll.u32 %v1903, 16
      %v1912 = vrot.slane %v1910, 1
      %v1913 = vor.u32 %v1908, %v1912
      %v1915 = vshll.u32 %v1906, 16
      %v1917 = vrot.slane %v1915, 1
      %v1918 = vsel %vm1515, %v1913, %v1917
      %1919 = vrot.lane.b32.xlu0 %v1918, 32
      %v1920 = vpop.permute.xlu0 %1919
      %v1921 = vrot.slane %v1903, 1
      %v1922 = vrot.slane %v1906, 1
      %v1923 = vsel %vm1740, %v1921, %v1922
      %1924 = vrot.lane.b32.xlu0 %v1923, 64
      %v1925 = vpop.permute.xlu0 %1924
      %v1927 = vsel %vm1821, %v1903, %v1920
      %v1929 = vsel %vm1854, %v1927, %v1925
      %s1930 = scalar_lea.vmem %s2, 48
      %v1931 = vld [vmem:[%s1930] sm:$0xf]
      %v1932 = vld [vmem:[%s1930 + $0x4] sm:$0xf]
      %v1933 = vld [vmem:[%s1930 + $0x8] sm:$0xf]
      %v1934 = vld [vmem:[%s1930 + $0xc] sm:$0xf]
      %v1935 = vld [vmem:[%s1930 + $0x10] sm:$0xf]
      %v1936 = vld [vmem:[%s1930 + $0x14] sm:$0xf]
      %v1937 = vld [vmem:[%s1930 + $0x18] sm:$0xf]
      %v1938 = vld [vmem:[%s1930 + $0x1c] sm:$0xf]
      %v1939 = vld [vmem:[%s1930 + $0x20] sm:$0xf]
      %v1940 = vld [vmem:[%s1930 + $0x24] sm:$0xf]
      %v1941 = vld [vmem:[%s1930 + $0x28] sm:$0xf]
      %v1942 = vld [vmem:[%s1930 + $0x2c] sm:$0xf]
      %v1955 = vunpack.c.l.b16 %v1931
      %v1956 = vunpack.c.l.b16 %v1932
      %v1957 = vunpack.c.l.b16 %v1933
      %v1958 = vunpack.c.l.b16 %v1934
      %v1959 = vunpack.c.l.b16 %v1935
      %v1960 = vunpack.c.l.b16 %v1936
      %v1961 = vunpack.c.l.b16 %v1937
      %v1962 = vunpack.c.l.b16 %v1938
      %v1963 = vunpack.c.l.b16 %v1939
      %v1964 = vunpack.c.l.b16 %v1940
      %v1965 = vunpack.c.l.b16 %v1941
      %v1966 = vunpack.c.l.b16 %v1942
      %v1967 = vpack.c.b16 %v1956, %v1955
      %v1968 = vpack.c.b16 %v1958, %v1957
      %v1969 = vpack.c.b16 %v1960, %v1959
      %v1970 = vpack.c.b16 %v1962, %v1961
      %v1971 = vpack.c.b16 %v1964, %v1963
      %v1972 = vpack.c.b16 %v1966, %v1965
      %vm1979 = vcmask 785408
      %v1980 = vsel %vm1979, %v1858, 0
      %v1982 = vsel %vm1979, %v1860, 0
      %v1984 = vsel %vm1979, %v1862, 0
      %v1986 = vsel %vm1979, %v1864, 0
      %v1988 = vsel %vm1979, %v1866, 0
      %v1990 = vsel %vm1979, %v1868, 0
      %v1992 = vsel %vm1979, %v1870, 0
      %v1994 = vsel %vm1979, %v1872, 0
      %v1996 = vsel %vm1979, %v1874, 0
      %v1998 = vsel %vm1979, %v1876, 0
      %v2000 = vsel %vm1979, %v1878, 0
      %v2002 = vsel %vm1979, %v1880, 0
      %v2004 = vsel %vm1979, %v1882, 0
      %v2006 = vsel %vm1979, %v1884, 0
      %v2008 = vsel %vm1979, %v1886, 0
      %v2010 = vsel %vm1979, %v1929, 0
      %2012 = vmatprep.subr.bf16.mxu0 0
      %2013 = vmatpush1.bf16.msra.mxu0 %v1967
      %2014 = vmatprep.subr.bf16.mxu0 0
      %2015 = vmatpush1.bf16.msra.mxu0 %v1968
      %2016 = vmatprep.subr.bf16.mxu0 0
      %2017 = vmatpush1.bf16.msra.mxu0 %v1969
      %2018 = vmatprep.subr.bf16.mxu0 0
      %2019 = vmatpush1.bf16.msra.mxu0 %v1970
      %2020 = vmatprep.subr.bf16.mxu0 0
      %2021 = vmatpush1.bf16.msra.mxu0 %v1971
      %2022 = vmatprep.subr.bf16.mxu0 0
      %2023 = vmatpush1.bf16.msra.mxu0 %v1972
      %2024 = vmatprep.subr.bf16.mxu0 0
      %2025 = vmatpush1.bf16.msra.mxu0 0
      %2026 = vmatprep.subr.bf16.mxu0 0
      %2027 = vmatpush1.bf16.msra.mxu0 0
      %2028 = vmatprep.subr.bf16.mxu0 0
      %2029 = vmatpush1.bf16.msra.mxu0 0
      %2030 = vmatprep.subr.bf16.mxu0 0
      %2031 = vmatpush1.bf16.msra.mxu0 0
      %2032 = vmatprep.subr.bf16.mxu0 0
      %2033 = vmatpush1.bf16.msra.mxu0 0
      %2034 = vmatprep.subr.bf16.mxu0 0
      %2035 = vmatpush1.bf16.msra.mxu0 0
      %2036 = vmatprep.subr.bf16.mxu0 0
      %2037 = vmatpush1.bf16.msra.mxu0 0
      %2038 = vmatprep.subr.bf16.mxu0 0
      %2039 = vmatpush1.bf16.msra.mxu0 0
      %2040 = vmatprep.subr.bf16.mxu0 0
      %2041 = vmatpush1.bf16.msra.mxu0 0
      %2042 = vmatprep.subr.bf16.mxu0 0
      %2043 = vmatpush1.bf16.msra.mxu0 0
      %2044 = vmatprep.mubr.bf16.mxu0 0
      %2045 = vmatmul.mubr.bf16.gmra.mrb[0].mxu0 %v1980
      %v2046 = vpop.f32.mrb[0].mxu0
      %v2047 = vadd.f32 0.0, %v2046
      %v2048 = vpop.f32.mrb[0].mxu0
      %v2049 = vpop.f32.mrb[0].mxu0
      %v2050 = vadd.f32 0.0, %v2049
      %v2051 = vpop.f32.mrb[0].mxu0
      %2052 = vmatprep.mubr.bf16.mxu0 0
      %2053 = vmatmul.mubr.bf16.gmra.mrb[0].mxu0 %v1982
      %v2054 = vpop.f32.mrb[0].mxu0
      %v2055 = vadd.f32 0.0, %v2054
      %v2056 = vpop.f32.mrb[0].mxu0
      %v2057 = vpop.f32.mrb[0].mxu0
      %v2058 = vadd.f32 0.0, %v2057
      %v2059 = vpop.f32.mrb[0].mxu0
      %2060 = vmatprep.mubr.bf16.mxu0 0
      %2061 = vmatmul.mubr.bf16.gmra.mrb[0].mxu0 %v1984
      %v2062 = vpop.f32.mrb[0].mxu0
      %v2063 = vadd.f32 0.0, %v2062
      %v2064 = vpop.f32.mrb[0].mxu0
      %v2065 = vpop.f32.mrb[0].mxu0
      %v2066 = vadd.f32 0.0, %v2065
      %v2067 = vpop.f32.mrb[0].mxu0
      %2068 = vmatprep.mubr.bf16.mxu0 0
      %2069 = vmatmul.mubr.bf16.gmra.mrb[0].mxu0 %v1986
      %v2070 = vpop.f32.mrb[0].mxu0
      %v2071 = vadd.f32 0.0, %v2070
      %v2072 = vpop.f32.mrb[0].mxu0
      %v2073 = vpop.f32.mrb[0].mxu0
      %v2074 = vadd.f32 0.0, %v2073
      %v2075 = vpop.f32.mrb[0].mxu0
      %2076 = vmatprep.mubr.bf16.mxu0 0
      %2077 = vmatmul.mubr.bf16.gmra.mrb[0].mxu0 %v1988
      %v2078 = vpop.f32.mrb[0].mxu0
      %v2079 = vadd.f32 0.0, %v2078
      %v2080 = vpop.f32.mrb[0].mxu0
      %v2081 = vpop.f32.mrb[0].mxu0
      %v2082 = vadd.f32 0.0, %v2081
      %v2083 = vpop.f32.mrb[0].mxu0
      %2084 = vmatprep.mubr.bf16.mxu0 0
      %2085 = vmatmul.mubr.bf16.gmra.mrb[0].mxu0 %v1990
      %v2086 = vpop.f32.mrb[0].mxu0
      %v2087 = vadd.f32 0.0, %v2086
      %v2088 = vpop.f32.mrb[0].mxu0
      %v2089 = vpop.f32.mrb[0].mxu0
      %v2090 = vadd.f32 0.0, %v2089
      %v2091 = vpop.f32.mrb[0].mxu0
      %2092 = vmatprep.mubr.bf16.mxu0 0
      %2093 = vmatmul.mubr.bf16.gmra.mrb[0].mxu0 %v1992
      %v2094 = vpop.f32.mrb[0].mxu0
      %v2095 = vadd.f32 0.0, %v2094
      %v2096 = vpop.f32.mrb[0].mxu0
      %v2097 = vpop.f32.mrb[0].mxu0
      %v2098 = vadd.f32 0.0, %v2097
      %v2099 = vpop.f32.mrb[0].mxu0
      %2100 = vmatprep.mubr.bf16.mxu0 0
      %2101 = vmatmul.mubr.bf16.gmra.mrb[0].mxu0 %v1994
      %v2102 = vpop.f32.mrb[0].mxu0
      %v2103 = vadd.f32 0.0, %v2102
      %v2104 = vpop.f32.mrb[0].mxu0
      %v2105 = vpop.f32.mrb[0].mxu0
      %v2106 = vadd.f32 0.0, %v2105
      %v2107 = vpop.f32.mrb[0].mxu0
      %2108 = vmatprep.mubr.bf16.mxu0 0
      %2109 = vmatmul.mubr.bf16.gmra.mrb[0].mxu0 %v1996
      %v2110 = vpop.f32.mrb[0].mxu0
      %v2111 = vadd.f32 0.0, %v2110
      %v2112 = vpop.f32.mrb[0].mxu0
      %v2113 = vpop.f32.mrb[0].mxu0
      %v2114 = vadd.f32 0.0, %v2113
      %v2115 = vpop.f32.mrb[0].mxu0
      %2116 = vmatprep.mubr.bf16.mxu0 0
      %2117 = vmatmul.mubr.bf16.gmra.mrb[0].mxu0 %v1998
      %v2118 = vpop.f32.mrb[0].mxu0
      %v2119 = vadd.f32 0.0, %v2118
      %v2120 = vpop.f32.mrb[0].mxu0
      %v2121 = vpop.f32.mrb[0].mxu0
      %v2122 = vadd.f32 0.0, %v2121
      %v2123 = vpop.f32.mrb[0].mxu0
      %2124 = vmatprep.mubr.bf16.mxu0 0
      %2125 = vmatmul.mubr.bf16.gmra.mrb[0].mxu0 %v2000
      %v2126 = vpop.f32.mrb[0].mxu0
      %v2127 = vadd.f32 0.0, %v2126
      %v2128 = vpop.f32.mrb[0].mxu0
      %v2129 = vpop.f32.mrb[0].mxu0
      %v2130 = vadd.f32 0.0, %v2129
      %v2131 = vpop.f32.mrb[0].mxu0
      %2132 = vmatprep.mubr.bf16.mxu0 0
      %2133 = vmatmul.mubr.bf16.gmra.mrb[0].mxu0 %v2002
      %v2134 = vpop.f32.mrb[0].mxu0
      %v2135 = vadd.f32 0.0, %v2134
      %v2136 = vpop.f32.mrb[0].mxu0
      %v2137 = vpop.f32.mrb[0].mxu0
      %v2138 = vadd.f32 0.0, %v2137
      %v2139 = vpop.f32.mrb[0].mxu0
      %2140 = vmatprep.mubr.bf16.mxu0 0
      %2141 = vmatmul.mubr.bf16.gmra.mrb[0].mxu0 %v2004
      %v2142 = vpop.f32.mrb[0].mxu0
      %v2143 = vadd.f32 0.0, %v2142
      %v2144 = vpop.f32.mrb[0].mxu0
      %v2145 = vpop.f32.mrb[0].mxu0
      %v2146 = vadd.f32 0.0, %v2145
      %v2147 = vpop.f32.mrb[0].mxu0
      %2148 = vmatprep.mubr.bf16.mxu0 0
      %2149 = vmatmul.mubr.bf16.gmra.mrb[0].mxu0 %v2006
      %v2150 = vpop.f32.mrb[0].mxu0
      %v2151 = vadd.f32 0.0, %v2150
      %v2152 = vpop.f32.mrb[0].mxu0
      %v2153 = vpop.f32.mrb[0].mxu0
      %v2154 = vadd.f32 0.0, %v2153
      %v2155 = vpop.f32.mrb[0].mxu0
      %2156 = vmatprep.mubr.bf16.mxu0 0
      %2157 = vmatmul.mubr.bf16.gmra.mrb[0].mxu0 %v2008
      %v2158 = vpop.f32.mrb[0].mxu0
      %v2159 = vadd.f32 0.0, %v2158
      %v2160 = vpop.f32.mrb[0].mxu0
      %v2161 = vpop.f32.mrb[0].mxu0
      %v2162 = vadd.f32 0.0, %v2161
      %v2163 = vpop.f32.mrb[0].mxu0
      %2164 = vmatprep.mubr.bf16.mxu0 0
      %2165 = vmatmul.mubr.bf16.gmra.mrb[0].mxu0 %v2010
      %v2166 = vpop.f32.mrb[0].mxu0
      %v2167 = vadd.f32 0.0, %v2166
      %v2168 = vpop.f32.mrb[0].mxu0
      %v2169 = vpop.f32.mrb[0].mxu0
      %v2170 = vadd.f32 0.0, %v2169
      %v2171 = vpop.f32.mrb[0].mxu0
      %2172 = vdwg.mxu0
      %v2185 = vunpack.c.l.b16 %v1887
      %v2186 = vunpack.c.l.b16 %v1888
      %v2187 = vunpack.c.l.b16 %v1889
      %v2188 = vunpack.c.l.b16 %v1890
      %v2189 = vunpack.c.l.b16 %v1891
      %v2190 = vunpack.c.l.b16 %v1892
      %v2191 = vunpack.c.l.b16 %v1893
      %v2192 = vunpack.c.l.b16 %v1894
      %v2193 = vunpack.c.l.b16 %v1895
      %v2194 = vunpack.c.l.b16 %v1896
      %v2195 = vunpack.c.l.b16 %v1897
      %v2196 = vunpack.c.l.b16 %v1898
      %v2197 = vpack.c.b16 %v2186, %v2185
      %v2198 = vpack.c.b16 %v2188, %v2187
      %v2199 = vpack.c.b16 %v2190, %v2189
      %v2200 = vpack.c.b16 %v2192, %v2191
      %v2201 = vpack.c.b16 %v2194, %v2193
      %v2202 = vpack.c.b16 %v2196, %v2195
      %v2209 = vsel %vm1979, %v1856, 0
      %2211 = vmatprep.subr.bf16.mxu0 0
      %2212 = vmatpush1.bf16.msra.mxu0 %v2197
      %2213 = vmatprep.subr.bf16.mxu0 0
      %2214 = vmatpush1.bf16.msra.mxu0 %v2198
      %2215 = vmatprep.subr.bf16.mxu0 0
      %2216 = vmatpush1.bf16.msra.mxu0 %v2199
      %2217 = vmatprep.subr.bf16.mxu0 0
      %2218 = vmatpush1.bf16.msra.mxu0 %v2200
      %2219 = vmatprep.subr.bf16.mxu0 0
      %2220 = vmatpush1.bf16.msra.mxu0 %v2201
      %2221 = vmatprep.subr.bf16.mxu0 0
      %2222 = vmatpush1.bf16.msra.mxu0 %v2202
      %2223 = vmatprep.subr.bf16.mxu0 0
      %2224 = vmatpush1.bf16.msra.mxu0 0
      %2225 = vmatprep.subr.bf16.mxu0 0
      %2226 = vmatpush1.bf16.msra.mxu0 0
      %2227 = vmatprep.subr.bf16.mxu0 0
      %2228 = vmatpush1.bf16.msra.mxu0 0
      %2229 = vmatprep.subr.bf16.mxu0 0
      %2230 = vmatpush1.bf16.msra.mxu0 0
      %2231 = vmatprep.subr.bf16.mxu0 0
      %2232 = vmatpush1.bf16.msra.mxu0 0
      %2233 = vmatprep.subr.bf16.mxu0 0
      %2234 = vmatpush1.bf16.msra.mxu0 0
      %2235 = vmatprep.subr.bf16.mxu0 0
      %2236 = vmatpush1.bf16.msra.mxu0 0
      %2237 = vmatprep.subr.bf16.mxu0 0
      %2238 = vmatpush1.bf16.msra.mxu0 0
      %2239 = vmatprep.subr.bf16.mxu0 0
      %2240 = vmatpush1.bf16.msra.mxu0 0
      %2241 = vmatprep.subr.bf16.mxu0 0
      %2242 = vmatpush1.bf16.msra.mxu0 0
      %2243 = vmatprep.mubr.bf16.mxu0 0
      %2244 = vmatmul.mubr.bf16.gmra.mrb[0].mxu0 %v2209
      %v2245 = vpop.f32.mrb[0].mxu0
      %v2246 = vadd.f32 %v2047, %v2245
      %v2247 = vpop.f32.mrb[0].mxu0
      %v2248 = vpop.f32.mrb[0].mxu0
      %v2249 = vadd.f32 %v2050, %v2248
      %v2250 = vpop.f32.mrb[0].mxu0
      %2251 = vmatprep.mubr.bf16.mxu0 0
      %2252 = vmatmul.mubr.bf16.gmra.mrb[0].mxu0 %v1980
      %v2253 = vpop.f32.mrb[0].mxu0
      %v2254 = vadd.f32 %v2055, %v2253
      %v2255 = vpop.f32.mrb[0].mxu0
      %v2256 = vpop.f32.mrb[0].mxu0
      %v2257 = vadd.f32 %v2058, %v2256
      %v2258 = vpop.f32.mrb[0].mxu0
      %2259 = vmatprep.mubr.bf16.mxu0 0
      %2260 = vmatmul.mubr.bf16.gmra.mrb[0].mxu0 %v1982
      %v2261 = vpop.f32.mrb[0].mxu0
      %v2262 = vadd.f32 %v2063, %v2261
      %v2263 = vpop.f32.mrb[0].mxu0
      %v2264 = vpop.f32.mrb[0].mxu0
      %v2265 = vadd.f32 %v2066, %v2264
      %v2266 = vpop.f32.mrb[0].mxu0
      %2267 = vmatprep.mubr.bf16.mxu0 0
      %2268 = vmatmul.mubr.bf16.gmra.mrb[0].mxu0 %v1984
      %v2269 = vpop.f32.mrb[0].mxu0
      %v2270 = vadd.f32 %v2071, %v2269
      %v2271 = vpop.f32.mrb[0].mxu0
      %v2272 = vpop.f32.mrb[0].mxu0
      %v2273 = vadd.f32 %v2074, %v2272
      %v2274 = vpop.f32.mrb[0].mxu0
      %2275 = vmatprep.mubr.bf16.mxu0 0
      %2276 = vmatmul.mubr.bf16.gmra.mrb[0].mxu0 %v1986
      %v2277 = vpop.f32.mrb[0].mxu0
      %v2278 = vadd.f32 %v2079, %v2277
      %v2279 = vpop.f32.mrb[0].mxu0
      %v2280 = vpop.f32.mrb[0].mxu0
      %v2281 = vadd.f32 %v2082, %v2280
      %v2282 = vpop.f32.mrb[0].mxu0
      %2283 = vmatprep.mubr.bf16.mxu0 0
      %2284 = vmatmul.mubr.bf16.gmra.mrb[0].mxu0 %v1988
      %v2285 = vpop.f32.mrb[0].mxu0
      %v2286 = vadd.f32 %v2087, %v2285
      %v2287 = vpop.f32.mrb[0].mxu0
      %v2288 = vpop.f32.mrb[0].mxu0
      %v2289 = vadd.f32 %v2090, %v2288
      %v2290 = vpop.f32.mrb[0].mxu0
      %2291 = vmatprep.mubr.bf16.mxu0 0
      %2292 = vmatmul.mubr.bf16.gmra.mrb[0].mxu0 %v1990
      %v2293 = vpop.f32.mrb[0].mxu0
      %v2294 = vadd.f32 %v2095, %v2293
      %v2295 = vpop.f32.mrb[0].mxu0
      %v2296 = vpop.f32.mrb[0].mxu0
      %v2297 = vadd.f32 %v2098, %v2296
      %v2298 = vpop.f32.mrb[0].mxu0
      %2299 = vmatprep.mubr.bf16.mxu0 0
      %2300 = vmatmul.mubr.bf16.gmra.mrb[0].mxu0 %v1992
      %v2301 = vpop.f32.mrb[0].mxu0
      %v2302 = vadd.f32 %v2103, %v2301
      %v2303 = vpop.f32.mrb[0].mxu0
      %v2304 = vpop.f32.mrb[0].mxu0
      %v2305 = vadd.f32 %v2106, %v2304
      %v2306 = vpop.f32.mrb[0].mxu0
      %2307 = vmatprep.mubr.bf16.mxu0 0
      %2308 = vmatmul.mubr.bf16.gmra.mrb[0].mxu0 %v1994
      %v2309 = vpop.f32.mrb[0].mxu0
      %v2310 = vadd.f32 %v2111, %v2309
      %v2311 = vpop.f32.mrb[0].mxu0
      %v2312 = vpop.f32.mrb[0].mxu0
      %v2313 = vadd.f32 %v2114, %v2312
      %v2314 = vpop.f32.mrb[0].mxu0
      %2315 = vmatprep.mubr.bf16.mxu0 0
      %2316 = vmatmul.mubr.bf16.gmra.mrb[0].mxu0 %v1996
      %v2317 = vpop.f32.mrb[0].mxu0
      %v2318 = vadd.f32 %v2119, %v2317
      %v2319 = vpop.f32.mrb[0].mxu0
      %v2320 = vpop.f32.mrb[0].mxu0
      %v2321 = vadd.f32 %v2122, %v2320
      %v2322 = vpop.f32.mrb[0].mxu0
      %2323 = vmatprep.mubr.bf16.mxu0 0
      %2324 = vmatmul.mubr.bf16.gmra.mrb[0].mxu0 %v1998
      %v2325 = vpop.f32.mrb[0].mxu0
      %v2326 = vadd.f32 %v2127, %v2325
      %v2327 = vpop.f32.mrb[0].mxu0
      %v2328 = vpop.f32.mrb[0].mxu0
      %v2329 = vadd.f32 %v2130, %v2328
      %v2330 = vpop.f32.mrb[0].mxu0
      %2331 = vmatprep.mubr.bf16.mxu0 0
      %2332 = vmatmul.mubr.bf16.gmra.mrb[0].mxu0 %v2000
      %v2333 = vpop.f32.mrb[0].mxu0
      %v2334 = vadd.f32 %v2135, %v2333
      %v2335 = vpop.f32.mrb[0].mxu0
      %v2336 = vpop.f32.mrb[0].mxu0
      %v2337 = vadd.f32 %v2138, %v2336
      %v2338 = vpop.f32.mrb[0].mxu0
      %2339 = vmatprep.mubr.bf16.mxu0 0
      %2340 = vmatmul.mubr.bf16.gmra.mrb[0].mxu0 %v2002
      %v2341 = vpop.f32.mrb[0].mxu0
      %v2342 = vadd.f32 %v2143, %v2341
      %v2343 = vpop.f32.mrb[0].mxu0
      %v2344 = vpop.f32.mrb[0].mxu0
      %v2345 = vadd.f32 %v2146, %v2344
      %v2346 = vpop.f32.mrb[0].mxu0
      %2347 = vmatprep.mubr.bf16.mxu0 0
      %2348 = vmatmul.mubr.bf16.gmra.mrb[0].mxu0 %v2004
      %v2349 = vpop.f32.mrb[0].mxu0
      %v2350 = vadd.f32 %v2151, %v2349
      %v2351 = vpop.f32.mrb[0].mxu0
      %v2352 = vpop.f32.mrb[0].mxu0
      %v2353 = vadd.f32 %v2154, %v2352
      %v2354 = vpop.f32.mrb[0].mxu0
      %2355 = vmatprep.mubr.bf16.mxu0 0
      %2356 = vmatmul.mubr.bf16.gmra.mrb[0].mxu0 %v2006
      %v2357 = vpop.f32.mrb[0].mxu0
      %v2358 = vadd.f32 %v2159, %v2357
      %v2359 = vpop.f32.mrb[0].mxu0
      %v2360 = vpop.f32.mrb[0].mxu0
      %v2361 = vadd.f32 %v2162, %v2360
      %v2362 = vpop.f32.mrb[0].mxu0
      %2363 = vmatprep.mubr.bf16.mxu0 0
      %2364 = vmatmul.mubr.bf16.gmra.mrb[0].mxu0 %v2008
      %v2365 = vpop.f32.mrb[0].mxu0
      %v2366 = vadd.f32 %v2167, %v2365
      %v2367 = vpop.f32.mrb[0].mxu0
      %v2368 = vpop.f32.mrb[0].mxu0
      %v2369 = vadd.f32 %v2170, %v2368
      %v2370 = vpop.f32.mrb[0].mxu0
      %2371 = vdwg.mxu0
      %v2374 = vunpack.c.l.b16 %v1384
      %v2375 = vunpack.c.l.b16 %v1385
      %v2376 = vpack.c.b16 %v2375, %v2374
      %v2378 = vunpack.c.l.b16 %v1386
      %v2379 = vpack.c.b16 %v2378, %v2378
      %v2381 = vshrl.u32 %v2376, 16
      %v2383 = vshll.u32 %v2376, 16
      %v2385 = vrot.slane %v2383, 1
      %v2386 = vor.u32 %v2381, %v2385
      %v2388 = vshll.u32 %v2379, 16
      %v2390 = vrot.slane %v2388, 1
      %v2391 = vsel %vm1515, %v2386, %v2390
      %2392 = vrot.lane.b32.xlu0 %v2391, 32
      %v2393 = vpop.permute.xlu0 %2392
      %v2394 = vrot.slane %v2376, 1
      %v2395 = vrot.slane %v2379, 1
      %v2396 = vsel %vm1740, %v2394, %v2395
      %2397 = vrot.lane.b32.xlu0 %v2396, 64
      %v2398 = vpop.permute.xlu0 %2397
      %v2400 = vsel %vm1821, %v2376, %v2393
      %v2402 = vsel %vm1854, %v2400, %v2398
      %s2403 = scalar_lea.vmem %s2, 96
      %v2404 = vld [vmem:[%s2403] sm:$0xf]
      %v2405 = vld [vmem:[%s2403 + $0x4] sm:$0xf]
      %v2406 = vld [vmem:[%s2403 + $0x8] sm:$0xf]
      %v2407 = vld [vmem:[%s2403 + $0xc] sm:$0xf]
      %v2408 = vld [vmem:[%s2403 + $0x10] sm:$0xf]
      %v2409 = vld [vmem:[%s2403 + $0x14] sm:$0xf]
      %v2410 = vld [vmem:[%s2403 + $0x18] sm:$0xf]
      %v2411 = vld [vmem:[%s2403 + $0x1c] sm:$0xf]
      %v2412 = vld [vmem:[%s2403 + $0x20] sm:$0xf]
      %v2413 = vld [vmem:[%s2403 + $0x24] sm:$0xf]
      %v2414 = vld [vmem:[%s2403 + $0x28] sm:$0xf]
      %v2415 = vld [vmem:[%s2403 + $0x2c] sm:$0xf]
      %v2428 = vunpack.c.l.b16 %v2404
      %v2429 = vunpack.c.l.b16 %v2405
      %v2430 = vunpack.c.l.b16 %v2406
      %v2431 = vunpack.c.l.b16 %v2407
      %v2432 = vunpack.c.l.b16 %v2408
      %v2433 = vunpack.c.l.b16 %v2409
      %v2434 = vunpack.c.l.b16 %v2410
      %v2435 = vunpack.c.l.b16 %v2411
      %v2436 = vunpack.c.l.b16 %v2412
      %v2437 = vunpack.c.l.b16 %v2413
      %v2438 = vunpack.c.l.b16 %v2414
      %v2439 = vunpack.c.l.b16 %v2415
      %v2440 = vpack.c.b16 %v2429, %v2428
      %v2441 = vpack.c.b16 %v2431, %v2430
      %v2442 = vpack.c.b16 %v2433, %v2432
      %v2443 = vpack.c.b16 %v2435, %v2434
      %v2444 = vpack.c.b16 %v2437, %v2436
      %v2445 = vpack.c.b16 %v2439, %v2438
      %v2452 = vsel %vm1979, %v2402, 0
      %2454 = vmatprep.subr.bf16.mxu0 0
      %2455 = vmatpush1.bf16.msra.mxu0 %v2440
      %2456 = vmatprep.subr.bf16.mxu0 0
      %2457 = vmatpush1.bf16.msra.mxu0 %v2441
      %2458 = vmatprep.subr.bf16.mxu0 0
      %2459 = vmatpush1.bf16.msra.mxu0 %v2442
      %2460 = vmatprep.subr.bf16.mxu0 0
      %2461 = vmatpush1.bf16.msra.mxu0 %v2443
      %2462 = vmatprep.subr.bf16.mxu0 0
      %2463 = vmatpush1.bf16.msra.mxu0 %v2444
      %2464 = vmatprep.subr.bf16.mxu0 0
      %2465 = vmatpush1.bf16.msra.mxu0 %v2445
      %2466 = vmatprep.subr.bf16.mxu0 0
      %2467 = vmatpush1.bf16.msra.mxu0 0
      %2468 = vmatprep.subr.bf16.mxu0 0
      %2469 = vmatpush1.bf16.msra.mxu0 0
      %2470 = vmatprep.subr.bf16.mxu0 0
      %2471 = vmatpush1.bf16.msra.mxu0 0
      %2472 = vmatprep.subr.bf16.mxu0 0
      %2473 = vmatpush1.bf16.msra.mxu0 0
      %2474 = vmatprep.subr.bf16.mxu0 0
      %2475 = vmatpush1.bf16.msra.mxu0 0
      %2476 = vmatprep.subr.bf16.mxu0 0
      %2477 = vmatpush1.bf16.msra.mxu0 0
      %2478 = vmatprep.subr.bf16.mxu0 0
      %2479 = vmatpush1.bf16.msra.mxu0 0
      %2480 = vmatprep.subr.bf16.mxu0 0
      %2481 = vmatpush1.bf16.msra.mxu0 0
      %2482 = vmatprep.subr.bf16.mxu0 0
      %2483 = vmatpush1.bf16.msra.mxu0 0
      %2484 = vmatprep.subr.bf16.mxu0 0
      %2485 = vmatpush1.bf16.msra.mxu0 0
      %2486 = vmatprep.mubr.bf16.mxu0 0
      %2487 = vmatmul.mubr.bf16.gmra.mrb[0].mxu0 %v1982
      %v2488 = vpop.f32.mrb[0].mxu0
      %v2489 = vadd.f32 0.0, %v2488
      %v2490 = vpop.f32.mrb[0].mxu0
      %v2491 = vpop.f32.mrb[0].mxu0
      %v2492 = vadd.f32 0.0, %v2491
      %v2493 = vpop.f32.mrb[0].mxu0
      %2494 = vmatprep.mubr.bf16.mxu0 0
      %2495 = vmatmul.mubr.bf16.gmra.mrb[0].mxu0 %v1984
      %v2496 = vpop.f32.mrb[0].mxu0
      %v2497 = vadd.f32 0.0, %v2496
      %v2498 = vpop.f32.mrb[0].mxu0
      %v2499 = vpop.f32.mrb[0].mxu0
      %v2500 = vadd.f32 0.0, %v2499
      %v2501 = vpop.f32.mrb[0].mxu0
      %2502 = vmatprep.mubr.bf16.mxu0 0
      %2503 = vmatmul.mubr.bf16.gmra.mrb[0].mxu0 %v1986
      %v2504 = vpop.f32.mrb[0].mxu0
      %v2505 = vadd.f32 0.0, %v2504
      %v2506 = vpop.f32.mrb[0].mxu0
      %v2507 = vpop.f32.mrb[0].mxu0
      %v2508 = vadd.f32 0.0, %v2507
      %v2509 = vpop.f32.mrb[0].mxu0
      %2510 = vmatprep.mubr.bf16.mxu0 0
      %2511 = vmatmul.mubr.bf16.gmra.mrb[0].mxu0 %v1988
      %v2512 = vpop.f32.mrb[0].mxu0
      %v2513 = vadd.f32 0.0, %v2512
      %v2514 = vpop.f32.mrb[0].mxu0
      %v2515 = vpop.f32.mrb[0].mxu0
      %v2516 = vadd.f32 0.0, %v2515
      %v2517 = vpop.f32.mrb[0].mxu0
      %2518 = vmatprep.mubr.bf16.mxu0 0
      %2519 = vmatmul.mubr.bf16.gmra.mrb[0].mxu0 %v1990
      %v2520 = vpop.f32.mrb[0].mxu0
      %v2521 = vadd.f32 0.0, %v2520
      %v2522 = vpop.f32.mrb[0].mxu0
      %v2523 = vpop.f32.mrb[0].mxu0
      %v2524 = vadd.f32 0.0, %v2523
      %v2525 = vpop.f32.mrb[0].mxu0
      %2526 = vmatprep.mubr.bf16.mxu0 0
      %2527 = vmatmul.mubr.bf16.gmra.mrb[0].mxu0 %v1992
      %v2528 = vpop.f32.mrb[0].mxu0
      %v2529 = vadd.f32 0.0, %v2528
      %v2530 = vpop.f32.mrb[0].mxu0
      %v2531 = vpop.f32.mrb[0].mxu0
      %v2532 = vadd.f32 0.0, %v2531
      %v2533 = vpop.f32.mrb[0].mxu0
      %2534 = vmatprep.mubr.bf16.mxu0 0
      %2535 = vmatmul.mubr.bf16.gmra.mrb[0].mxu0 %v1994
      %v2536 = vpop.f32.mrb[0].mxu0
      %v2537 = vadd.f32 0.0, %v2536
      %v2538 = vpop.f32.mrb[0].mxu0
      %v2539 = vpop.f32.mrb[0].mxu0
      %v2540 = vadd.f32 0.0, %v2539
      %v2541 = vpop.f32.mrb[0].mxu0
      %2542 = vmatprep.mubr.bf16.mxu0 0
      %2543 = vmatmul.mubr.bf16.gmra.mrb[0].mxu0 %v1996
      %v2544 = vpop.f32.mrb[0].mxu0
      %v2545 = vadd.f32 0.0, %v2544
      %v2546 = vpop.f32.mrb[0].mxu0
      %v2547 = vpop.f32.mrb[0].mxu0
      %v2548 = vadd.f32 0.0, %v2547
      %v2549 = vpop.f32.mrb[0].mxu0
      %2550 = vmatprep.mubr.bf16.mxu0 0
      %2551 = vmatmul.mubr.bf16.gmra.mrb[0].mxu0 %v1998
      %v2552 = vpop.f32.mrb[0].mxu0
      %v2553 = vadd.f32 0.0, %v2552
      %v2554 = vpop.f32.mrb[0].mxu0
      %v2555 = vpop.f32.mrb[0].mxu0
      %v2556 = vadd.f32 0.0, %v2555
      %v2557 = vpop.f32.mrb[0].mxu0
      %2558 = vmatprep.mubr.bf16.mxu0 0
      %2559 = vmatmul.mubr.bf16.gmra.mrb[0].mxu0 %v2000
      %v2560 = vpop.f32.mrb[0].mxu0
      %v2561 = vadd.f32 0.0, %v2560
      %v2562 = vpop.f32.mrb[0].mxu0
      %v2563 = vpop.f32.mrb[0].mxu0
      %v2564 = vadd.f32 0.0, %v2563
      %v2565 = vpop.f32.mrb[0].mxu0
      %2566 = vmatprep.mubr.bf16.mxu0 0
      %2567 = vmatmul.mubr.bf16.gmra.mrb[0].mxu0 %v2002
      %v2568 = vpop.f32.mrb[0].mxu0
      %v2569 = vadd.f32 0.0, %v2568
      %v2570 = vpop.f32.mrb[0].mxu0
      %v2571 = vpop.f32.mrb[0].mxu0
      %v2572 = vadd.f32 0.0, %v2571
      %v2573 = vpop.f32.mrb[0].mxu0
      %2574 = vmatprep.mubr.bf16.mxu0 0
      %2575 = vmatmul.mubr.bf16.gmra.mrb[0].mxu0 %v2004
      %v2576 = vpop.f32.mrb[0].mxu0
      %v2577 = vadd.f32 0.0, %v2576
      %v2578 = vpop.f32.mrb[0].mxu0
      %v2579 = vpop.f32.mrb[0].mxu0
      %v2580 = vadd.f32 0.0, %v2579
      %v2581 = vpop.f32.mrb[0].mxu0
      %2582 = vmatprep.mubr.bf16.mxu0 0
      %2583 = vmatmul.mubr.bf16.gmra.mrb[0].mxu0 %v2006
      %v2584 = vpop.f32.mrb[0].mxu0
      %v2585 = vadd.f32 0.0, %v2584
      %v2586 = vpop.f32.mrb[0].mxu0
      %v2587 = vpop.f32.mrb[0].mxu0
      %v2588 = vadd.f32 0.0, %v2587
      %v2589 = vpop.f32.mrb[0].mxu0
      %2590 = vmatprep.mubr.bf16.mxu0 0
      %2591 = vmatmul.mubr.bf16.gmra.mrb[0].mxu0 %v2008
      %v2592 = vpop.f32.mrb[0].mxu0
      %v2593 = vadd.f32 0.0, %v2592
      %v2594 = vpop.f32.mrb[0].mxu0
      %v2595 = vpop.f32.mrb[0].mxu0
      %v2596 = vadd.f32 0.0, %v2595
      %v2597 = vpop.f32.mrb[0].mxu0
      %2598 = vmatprep.mubr.bf16.mxu0 0
      %2599 = vmatmul.mubr.bf16.gmra.mrb[0].mxu0 %v2010
      %v2600 = vpop.f32.mrb[0].mxu0
      %v2601 = vadd.f32 0.0, %v2600
      %v2602 = vpop.f32.mrb[0].mxu0
      %v2603 = vpop.f32.mrb[0].mxu0
      %v2604 = vadd.f32 0.0, %v2603
      %v2605 = vpop.f32.mrb[0].mxu0
      %2606 = vmatprep.mubr.bf16.mxu0 0
      %2607 = vmatmul.mubr.bf16.gmra.mrb[0].mxu0 %v2452
      %v2608 = vpop.f32.mrb[0].mxu0
      %v2609 = vadd.f32 0.0, %v2608
      %v2610 = vpop.f32.mrb[0].mxu0
      %v2611 = vpop.f32.mrb[0].mxu0
      %v2612 = vadd.f32 0.0, %v2611
      %v2613 = vpop.f32.mrb[0].mxu0
      %2614 = vdwg.mxu0
      %v2615 = vadd.f32 %v2246, %v2489
      %v2616 = vadd.f32 %v2249, %v2492
      %v2617 = vadd.f32 %v2254, %v2497
      %v2618 = vadd.f32 %v2257, %v2500
      %v2619 = vadd.f32 %v2262, %v2505
      %v2620 = vadd.f32 %v2265, %v2508
      %v2621 = vadd.f32 %v2270, %v2513
      %v2622 = vadd.f32 %v2273, %v2516
      %v2623 = vadd.f32 %v2278, %v2521
      %v2624 = vadd.f32 %v2281, %v2524
      %v2625 = vadd.f32 %v2286, %v2529
      %v2626 = vadd.f32 %v2289, %v2532
      %v2627 = vadd.f32 %v2294, %v2537
      %v2628 = vadd.f32 %v2297, %v2540
      %v2629 = vadd.f32 %v2302, %v2545
      %v2630 = vadd.f32 %v2305, %v2548
      %v2631 = vadd.f32 %v2310, %v2553
      %v2632 = vadd.f32 %v2313, %v2556
      %v2633 = vadd.f32 %v2318, %v2561
      %v2634 = vadd.f32 %v2321, %v2564
      %v2635 = vadd.f32 %v2326, %v2569
      %v2636 = vadd.f32 %v2329, %v2572
      %v2637 = vadd.f32 %v2334, %v2577
      %v2638 = vadd.f32 %v2337, %v2580
      %v2639 = vadd.f32 %v2342, %v2585
      %v2640 = vadd.f32 %v2345, %v2588
      %v2641 = vadd.f32 %v2350, %v2593
      %v2642 = vadd.f32 %v2353, %v2596
      %v2643 = vadd.f32 %v2358, %v2601
      %v2644 = vadd.f32 %v2361, %v2604
      %v2645 = vadd.f32 %v2366, %v2609
      %v2646 = vadd.f32 %v2369, %v2612
      %v2647 = vld [vmem:[%s3] sm:$0x1]
      %v2649 = vlaneseq
      %v2650 = vshrl.u32 %v2649, 7
      %v2651 = vsub.s32 0, %v2650
      %v2652 = vrot.slane %v2647, %v2651
      %v2654 = vadd.f32 %v2615, %v2652
      %v2655 = vadd.f32 %v2616, %v2652
      %v2656 = vadd.f32 %v2617, %v2652
      %v2657 = vadd.f32 %v2618, %v2652
      %v2658 = vadd.f32 %v2619, %v2652
      %v2659 = vadd.f32 %v2620, %v2652
      %v2660 = vadd.f32 %v2621, %v2652
      %v2661 = vadd.f32 %v2622, %v2652
      %v2662 = vadd.f32 %v2623, %v2652
      %v2663 = vadd.f32 %v2624, %v2652
      %v2664 = vadd.f32 %v2625, %v2652
      %v2665 = vadd.f32 %v2626, %v2652
      %v2666 = vadd.f32 %v2627, %v2652
      %v2667 = vadd.f32 %v2628, %v2652
      %v2668 = vadd.f32 %v2629, %v2652
      %v2669 = vadd.f32 %v2630, %v2652
      %v2670 = vadd.f32 %v2631, %v2652
      %v2671 = vadd.f32 %v2632, %v2652
      %v2672 = vadd.f32 %v2633, %v2652
      %v2673 = vadd.f32 %v2634, %v2652
      %v2674 = vadd.f32 %v2635, %v2652
      %v2675 = vadd.f32 %v2636, %v2652
      %v2676 = vadd.f32 %v2637, %v2652
      %v2677 = vadd.f32 %v2638, %v2652
      %v2678 = vadd.f32 %v2639, %v2652
      %v2679 = vadd.f32 %v2640, %v2652
      %v2680 = vadd.f32 %v2641, %v2652
      %v2681 = vadd.f32 %v2642, %v2652
      %v2682 = vadd.f32 %v2643, %v2652
      %v2683 = vadd.f32 %v2644, %v2652
      %v2684 = vadd.f32 %v2645, %v2652
      %v2685 = vadd.f32 %v2646, %v2652
      %v2686 = vmax.f32 %v2654, 0.0
      %v2687 = vmax.f32 %v2655, 0.0
      %v2688 = vmax.f32 %v2656, 0.0
      %v2689 = vmax.f32 %v2657, 0.0
      %v2690 = vmax.f32 %v2658, 0.0
      %v2691 = vmax.f32 %v2659, 0.0
      %v2692 = vmax.f32 %v2660, 0.0
      %v2693 = vmax.f32 %v2661, 0.0
      %v2694 = vmax.f32 %v2662, 0.0
      %v2695 = vmax.f32 %v2663, 0.0
      %v2696 = vmax.f32 %v2664, 0.0
      %v2697 = vmax.f32 %v2665, 0.0
      %v2698 = vmax.f32 %v2666, 0.0
      %v2699 = vmax.f32 %v2667, 0.0
      %v2700 = vmax.f32 %v2668, 0.0
      %v2701 = vmax.f32 %v2669, 0.0
      %v2702 = vmax.f32 %v2670, 0.0
      %v2703 = vmax.f32 %v2671, 0.0
      %v2704 = vmax.f32 %v2672, 0.0
      %v2705 = vmax.f32 %v2673, 0.0
      %v2706 = vmax.f32 %v2674, 0.0
      %v2707 = vmax.f32 %v2675, 0.0
      %v2708 = vmax.f32 %v2676, 0.0
      %v2709 = vmax.f32 %v2677, 0.0
      %v2710 = vmax.f32 %v2678, 0.0
      %v2711 = vmax.f32 %v2679, 0.0
      %v2712 = vmax.f32 %v2680, 0.0
      %v2713 = vmax.f32 %v2681, 0.0
      %v2714 = vmax.f32 %v2682, 0.0
      %v2715 = vmax.f32 %v2683, 0.0
      %v2716 = vmax.f32 %v2684, 0.0
      %v2717 = vmax.f32 %v2685, 0.0
      %v2718 = vpack.c.bf16 %v2687, %v2686
      %v2719 = vpack.c.bf16 %v2689, %v2688
      %v2720 = vpack.c.bf16 %v2691, %v2690
      %v2721 = vpack.c.bf16 %v2693, %v2692
      %v2722 = vpack.c.bf16 %v2695, %v2694
      %v2723 = vpack.c.bf16 %v2697, %v2696
      %v2724 = vpack.c.bf16 %v2699, %v2698
      %v2725 = vpack.c.bf16 %v2701, %v2700
      %v2726 = vpack.c.bf16 %v2703, %v2702
      %v2727 = vpack.c.bf16 %v2705, %v2704
      %v2728 = vpack.c.bf16 %v2707, %v2706
      %v2729 = vpack.c.bf16 %v2709, %v2708
      %v2730 = vpack.c.bf16 %v2711, %v2710
      %v2731 = vpack.c.bf16 %v2713, %v2712
      %v2732 = vpack.c.bf16 %v2715, %v2714
      %v2733 = vpack.c.bf16 %v2717, %v2716
      %v2750 = vunpack.c.l.b16 %v2718
      %v2751 = vunpack.c.h.b16 %v2718
      %v2752 = vunpack.c.l.b16 %v2719
      %v2753 = vunpack.c.h.b16 %v2719
      %v2754 = vunpack.c.l.b16 %v2720
      %v2755 = vunpack.c.h.b16 %v2720
      %v2756 = vunpack.c.l.b16 %v2721
      %v2757 = vunpack.c.h.b16 %v2721
      %v2758 = vunpack.c.l.b16 %v2722
      %v2759 = vunpack.c.h.b16 %v2722
      %v2760 = vunpack.c.l.b16 %v2723
      %v2761 = vunpack.c.h.b16 %v2723
      %v2762 = vunpack.c.l.b16 %v2724
      %v2763 = vunpack.c.h.b16 %v2724
      %v2764 = vunpack.c.l.b16 %v2725
      %v2765 = vunpack.c.h.b16 %v2725
      %v2766 = vunpack.c.l.b16 %v2726
      %v2767 = vunpack.c.h.b16 %v2726
      %v2768 = vunpack.c.l.b16 %v2727
      %v2769 = vunpack.c.h.b16 %v2727
      %v2770 = vunpack.c.l.b16 %v2728
      %v2771 = vunpack.c.h.b16 %v2728
      %v2772 = vunpack.c.l.b16 %v2729
      %v2773 = vunpack.c.h.b16 %v2729
      %v2774 = vunpack.c.l.b16 %v2730
      %v2775 = vunpack.c.h.b16 %v2730
      %v2776 = vunpack.c.l.b16 %v2731
      %v2777 = vunpack.c.h.b16 %v2731
      %v2778 = vunpack.c.l.b16 %v2732
      %v2779 = vunpack.c.h.b16 %v2732
      %v2780 = vunpack.c.l.b16 %v2733
      %v2781 = vunpack.c.h.b16 %v2733
      %v2782 = vpack.c.b16 %v2750, %v2750
      %v2783 = vpack.c.b16 %v2751, %v2751
      %v2784 = vpack.c.b16 %v2752, %v2752
      %v2785 = vpack.c.b16 %v2753, %v2753
      %v2786 = vpack.c.b16 %v2754, %v2754
      %v2787 = vpack.c.b16 %v2755, %v2755
      %v2788 = vpack.c.b16 %v2756, %v2756
      %v2789 = vpack.c.b16 %v2757, %v2757
      %v2790 = vpack.c.b16 %v2758, %v2758
      %v2791 = vpack.c.b16 %v2759, %v2759
      %v2792 = vpack.c.b16 %v2760, %v2760
      %v2793 = vpack.c.b16 %v2761, %v2761
      %v2794 = vpack.c.b16 %v2762, %v2762
      %v2795 = vpack.c.b16 %v2763, %v2763
      %v2796 = vpack.c.b16 %v2764, %v2764
      %v2797 = vpack.c.b16 %v2765, %v2765
      %v2798 = vpack.c.b16 %v2766, %v2766
      %v2799 = vpack.c.b16 %v2767, %v2767
      %v2800 = vpack.c.b16 %v2768, %v2768
      %v2801 = vpack.c.b16 %v2769, %v2769
      %v2802 = vpack.c.b16 %v2770, %v2770
      %v2803 = vpack.c.b16 %v2771, %v2771
      %v2804 = vpack.c.b16 %v2772, %v2772
      %v2805 = vpack.c.b16 %v2773, %v2773
      %v2806 = vpack.c.b16 %v2774, %v2774
      %v2807 = vpack.c.b16 %v2775, %v2775
      %v2808 = vpack.c.b16 %v2776, %v2776
      %v2809 = vpack.c.b16 %v2777, %v2777
      %v2810 = vpack.c.b16 %v2778, %v2778
      %v2811 = vpack.c.b16 %v2779, %v2779
      %v2812 = vpack.c.b16 %v2780, %v2780
      %v2813 = vpack.c.b16 %v2781, %v2781
      %vm2846 = vcmask 125952
      %2847 = vst.msk [vmem:[%s197] sm:$0xf] %vm2846, %v2782
      %2848 = vst.msk [vmem:[%s197 + $0x4] sm:$0xf] %vm2846, %v2783
      %2849 = vst.msk [vmem:[%s197 + $0x8] sm:$0xf] %vm2846, %v2784
      %2850 = vst.msk [vmem:[%s197 + $0xc] sm:$0xf] %vm2846, %v2785
      %2851 = vst.msk [vmem:[%s197 + $0x10] sm:$0xf] %vm2846, %v2786
      %2852 = vst.msk [vmem:[%s197 + $0x14] sm:$0xf] %vm2846, %v2787
      %2853 = vst.msk [vmem:[%s197 + $0x18] sm:$0xf] %vm2846, %v2788
      %2854 = vst.msk [vmem:[%s197 + $0x1c] sm:$0xf] %vm2846, %v2789
      %2855 = vst.msk [vmem:[%s197 + $0x20] sm:$0xf] %vm2846, %v2790
      %2856 = vst.msk [vmem:[%s197 + $0x24] sm:$0xf] %vm2846, %v2791
      %2857 = vst.msk [vmem:[%s197 + $0x28] sm:$0xf] %vm2846, %v2792
      %2858 = vst.msk [vmem:[%s197 + $0x2c] sm:$0xf] %vm2846, %v2793
      %2859 = vst.msk [vmem:[%s197 + $0x30] sm:$0xf] %vm2846, %v2794
      %2860 = vst.msk [vmem:[%s197 + $0x34] sm:$0xf] %vm2846, %v2795
      %2861 = vst.msk [vmem:[%s197 + $0x38] sm:$0xf] %vm2846, %v2796
      %2862 = vst.msk [vmem:[%s197 + $0x3c] sm:$0xf] %vm2846, %v2797
      %2863 = vst.msk [vmem:[%s197 + $0x40] sm:$0xf] %vm2846, %v2798
      %2864 = vst.msk [vmem:[%s197 + $0x44] sm:$0xf] %vm2846, %v2799
      %2865 = vst.msk [vmem:[%s197 + $0x48] sm:$0xf] %vm2846, %v2800
      %2866 = vst.msk [vmem:[%s197 + $0x4c] sm:$0xf] %vm2846, %v2801
      %2867 = vst.msk [vmem:[%s197 + $0x50] sm:$0xf] %vm2846, %v2802
      %2868 = vst.msk [vmem:[%s197 + $0x54] sm:$0xf] %vm2846, %v2803
      %2869 = vst.msk [vmem:[%s197 + $0x58] sm:$0xf] %vm2846, %v2804
      %2870 = vst.msk [vmem:[%s197 + $0x5c] sm:$0xf] %vm2846, %v2805
      %2871 = vst.msk [vmem:[%s197 + $0x60] sm:$0xf] %vm2846, %v2806
      %2872 = vst.msk [vmem:[%s197 + $0x64] sm:$0xf] %vm2846, %v2807
      %2873 = vst.msk [vmem:[%s197 + $0x68] sm:$0xf] %vm2846, %v2808
      %2874 = vst.msk [vmem:[%s197 + $0x6c] sm:$0xf] %vm2846, %v2809
      %2875 = vst.msk [vmem:[%s197 + $0x70] sm:$0xf] %vm2846, %v2810
      %2876 = vst.msk [vmem:[%s197 + $0x74] sm:$0xf] %vm2846, %v2811
      %2877 = vst.msk [vmem:[%s197 + $0x78] sm:$0xf] %vm2846, %v2812
      %2878 = vst.msk [vmem:[%s197 + $0x7c] sm:$0xf] %vm2846, %v2813
      %p2879 = scmp.lt.s32.totalorder %s15, 1
      %s2880 = scalar_select %p2879, %s15, 1
      %s2881 = smul.addr %s2880, 32
      %s2882 = smul.addr %s2881, 4
      %s2883 = scalar_lea.vmem %s4, %s2882
      // Predicated region
      $region37: #{attention_unet_right_forward.2} parent=35 // pred_check
        %p2884 = pneg %p122
      $region38: #{attention_unet_right_forward.2} parent=35 // pred_check_branch
        %2886 = sbr.rel (%p2884) target = $region40
      $region39: #{attention_unet_right_forward.2} parent=35 // pred_region
        _
      $region40: #{attention_unet_right_forward.2} parent=35 // pred_fallthru
        _
    $region36: #{attention_unet_right_forward.2} parent=5 // pred_fallthru
      _
    %p2887 = scmp.le.s32.totalorder 2, %s10
    // Predicated region
    $region41: #{attention_unet_right_forward.2} parent=5 // pred_check
      %p2888 = pneg %p2887
    $region42: #{attention_unet_right_forward.2} parent=5 // pred_check_branch
      %2890 = sbr.rel (%p2888) target = $region44
    $region43: #{attention_unet_right_forward.2} parent=5 // pred_region
      %s2891 = ssub.s32 %s10, 2
      // Predicated region
      $region45: #{attention_unet_right_forward.2} parent=43 // pred_check
        %p2892 = pneg %p128
      $region46: #{attention_unet_right_forward.2} parent=43 // pred_check_branch
        %2894 = sbr.rel (%p2892) target = $region48
      $region47: #{attention_unet_right_forward.2} parent=43 // pred_region
        %p2895 = scmp.lt.s32.totalorder %s16, 1
        %s2896 = scalar_select %p2895, %s16, 1
        %s2897 = smul.addr %s2896, 32
        %s2898 = smul.addr %s2897, 4
        %s2899 = scalar_lea.vmem %s4, %s2898
      $region48: #{attention_unet_right_forward.2} parent=43 // pred_fallthru
        _
    $region44: #{attention_unet_right_forward.2} parent=5 // pred_fallthru
      _
  $region6: #{attention_unet_right_forward.2} parent=0 // loop_footer
    %s14 = sadd.s32 1, %s10
  $region7: #{attention_unet_right_forward.2} parent=0 // loop_footer_branch
    %9 = sbr.rel target = $region3
  $region8: #{attention_unet_right_forward.2} parent=0 // loop_exit
    _

// kernel: attention_unet_right_forward.3
$region0: #{attention_unet_right_forward.3}
  #allocation0 [shape = 'u32[]', space=smem, size = 0x4, offset = 0x4, fixed_abs, tag = 'smem constant byte address 0x4 - core index']
  #allocation1 [shape = 'u32[144,128]{1,0:T(1,128)}', space=vmem, size = 0x12000, scoped, tag = 'internal scratch']
  #allocation2 [shape = 'bf16[18,18,16]{2,1,0:T(8,128)(2,1)}', space=vmem, size = 0x1b000, scoped, tag = 'scratch operand']
  #allocation3 [shape = 'f32[1,1]{1,0:T(1,128)S(1)}', space=vmem, size = 0x200, scoped, tag = 'scoped memory for attention_unet_right_forward.3']
  %s0 = inlined_call_operand.vmem [shape: bf16[2,16,16,16], index: 0, kind: input, shape index: {}]
  %s1 = inlined_call_operand.vmem [shape: bf16[2,16,16,16], index: 1, kind: input, shape index: {}]
  %s2 = inlined_call_operand.vmem [shape: bf16[16,8], index: 2, kind: input, shape index: {}]
  %s3 = inlined_call_operand.vmem [shape: bf16[16,8], index: 3, kind: input, shape index: {}]
  %s4 = inlined_call_operand.vmem [shape: f32[1,8], index: 4, kind: input, shape index: {}]
  %s5 = inlined_call_operand.vmem [shape: f32[1,8], index: 5, kind: input, shape index: {}]
  %s6 = inlined_call_operand.<no memory space> [shape: f32[1,1], index: 6, kind: input, shape index: {}]
  %s7 = inlined_call_operand.vmem [shape: bf16[3,48,16], index: 7, kind: input, shape index: {}]
  %s8 = inlined_call_operand.vmem [shape: bf16[3,48,16], index: 8, kind: input, shape index: {}]
  %s9 = inlined_call_operand.vmem [shape: f32[1,16], index: 9, kind: input, shape index: {}]
  %s10 = inlined_call_operand.vmem [shape: bf16[3,48,16], index: 10, kind: input, shape index: {}]
  %s11 = inlined_call_operand.vmem [shape: f32[1,16], index: 11, kind: input, shape index: {}]
  %s12 = inlined_call_operand.vmem [shape: f32[2,256,16], index: 12, kind: output, shape index: {}]
  %s13 = sld [smem:[#allocation0]]
  $region81: #{attention_unet_right_forward.3} parent=0
    _
  %s15 = ssub.s32 1, %s13
  %s16 = scalar_select 0, %s15, %s13
  %v17 = vstv %s6
  %18 = vst [vmem:[#allocation3] sm:$0x1] %v17
  loop: start=0, step=1, limit=4
  $region2: #{attention_unet_right_forward.3} parent=0 // loop_pre_header
    _
  $region3: #{attention_unet_right_forward.3} parent=0 // loop_header
    %s20 = sphi 0, %s24
    %p21 = scmp.ge.s32.totalorder %s20, 4
    %s30 = sphi 0, %s32
    %s33 = sphi 0, %s30
    %s34 = sphi 0, %s33
    %s50 = sphi 0, %s34
    %s56 = sphi 0, %s58
    %s59 = sphi 0, %s56
    %s60 = sphi 0, %s59
    %s76 = sphi 0, %s60
    %s80 = sphi 0, %s80
    %s82 = sphi 0, %s80
    %s83 = sphi 0, %s82
    %s97 = sphi 0, %s83
    %s101 = sphi 0, %s101
    %s103 = sphi 0, %s101
    %s104 = sphi 0, %s103
    %s118 = sphi 0, %s104
    %s122 = sphi 0, %s122
    %s124 = sphi 0, %s122
    %s125 = sphi 0, %s124
    %s139 = sphi 0, %s125
    %s143 = sphi 0, %s143
    %s145 = sphi 0, %s143
    %s146 = sphi 0, %s145
    %s160 = sphi 0, %s146
    %s164 = sphi 0, %s164
    %s166 = sphi 0, %s164
    %s167 = sphi 0, %s166
    %s181 = sphi 0, %s167
    %s185 = sphi 0, %s185
    %s187 = sphi 0, %s185
    %s188 = sphi 0, %s187
    %s202 = sphi 0, %s188
    %s206 = sphi 0, %s206
    %s208 = sphi 0, %s206
    %s209 = sphi 0, %s208
    %s223 = sphi 0, %s209
    %s227 = sphi 0, %s227
    %s229 = sphi 0, %s227
    %s230 = sphi 0, %s229
    %s244 = sphi 0, %s230
    %s248 = sphi 0, %s248
    %s250 = sphi 0, %s248
    %s251 = sphi 0, %s250
    %s265 = sphi 0, %s251
    %s269 = sphi 0, %s269
    %s271 = sphi 0, %s269
    %s272 = sphi 0, %s271
    %s286 = sphi 0, %s272
    %s292 = sphi 0, %s294
    %s295 = sphi 0, %s292
    %s296 = sphi 0, %s295
    %s312 = sphi 0, %s296
  $region4: #{attention_unet_right_forward.3} parent=0 // loop_header_branch
    %23 = sbr.rel (%p21) target = $region8
  $region5: #{attention_unet_right_forward.3} parent=0 // loop_body
    %s25 = ssub.s32 %s20, 1
    %s26 = ssub.s32 %s20, 2
    %s27 = sadd.s32 %s20, 1
    %s28 = ssub.s32 %s20, %s27
    %p29 = scmp.eq.s32.totalorder %s28, 0
    %s31 = sadd.s32 %s30, 1
    %s32 = scalar_select %p29, %s30, %s31
    %p35 = pneg %p29
    %p36 = scmp.eq.s32.totalorder %s20, 1
    %p37 = por %p35, %p36
    %p38 = scmp.ne.s32.totalorder %s30, %s33
    %p39 = scmp.eq.s32.totalorder %s20, 0
    %p40 = por %p38, %p39
    %p41 = scmp.ne.s32.totalorder %s30, %s33
    %p42 = scmp.eq.s32.totalorder %s25, 1
    %p43 = por %p41, %p42
    %p44 = scmp.ne.s32.totalorder %s33, %s34
    %p45 = scmp.eq.s32.totalorder %s25, 0
    %p46 = por %p44, %p45
    %p47 = scmp.ne.s32.totalorder %s33, %s34
    %p48 = scmp.eq.s32.totalorder %s26, 1
    %p49 = por %p47, %p48
    %p51 = scmp.ne.s32.totalorder %s34, %s50
    %p52 = scmp.eq.s32.totalorder %s26, 0
    %p53 = por %p51, %p52
    %s54 = ssub.s32 %s20, %s27
    %p55 = scmp.eq.s32.totalorder %s54, 0
    %s57 = sadd.s32 %s56, 1
    %s58 = scalar_select %p55, %s56, %s57
    %p61 = pneg %p55
    %p62 = scmp.eq.s32.totalorder %s20, 1
    %p63 = por %p61, %p62
    %p64 = scmp.ne.s32.totalorder %s56, %s59
    %p65 = scmp.eq.s32.totalorder %s20, 0
    %p66 = por %p64, %p65
    %p67 = scmp.ne.s32.totalorder %s56, %s59
    %p68 = scmp.eq.s32.totalorder %s25, 1
    %p69 = por %p67, %p68
    %p70 = scmp.ne.s32.totalorder %s59, %s60
    %p71 = scmp.eq.s32.totalorder %s25, 0
    %p72 = por %p70, %p71
    %p73 = scmp.ne.s32.totalorder %s59, %s60
    %p74 = scmp.eq.s32.totalorder %s26, 1
    %p75 = por %p73, %p74
    %p77 = scmp.ne.s32.totalorder %s60, %s76
    %p78 = scmp.eq.s32.totalorder %s26, 0
    %p79 = por %p77, %p78
    %s81 = sadd.s32 %s80, 1
    %p84 = scmp.eq.s32.totalorder %s20, 1
    %p85 = scmp.ne.s32.totalorder %s80, %s82
    %p86 = scmp.eq.s32.totalorder %s20, 0
    %p87 = por %p85, %p86
    %p88 = scmp.ne.s32.totalorder %s80, %s82
    %p89 = scmp.eq.s32.totalorder %s25, 1
    %p90 = por %p88, %p89
    %p91 = scmp.ne.s32.totalorder %s82, %s83
    %p92 = scmp.eq.s32.totalorder %s25, 0
    %p93 = por %p91, %p92
    %p94 = scmp.ne.s32.totalorder %s82, %s83
    %p95 = scmp.eq.s32.totalorder %s26, 1
    %p96 = por %p94, %p95
    %p98 = scmp.ne.s32.totalorder %s83, %s97
    %p99 = scmp.eq.s32.totalorder %s26, 0
    %p100 = por %p98, %p99
    %s102 = sadd.s32 %s101, 1
    %p105 = scmp.eq.s32.totalorder %s20, 1
    %p106 = scmp.ne.s32.totalorder %s101, %s103
    %p107 = scmp.eq.s32.totalorder %s20, 0
    %p108 = por %p106, %p107
    %p109 = scmp.ne.s32.totalorder %s101, %s103
    %p110 = scmp.eq.s32.totalorder %s25, 1
    %p111 = por %p109, %p110
    %p112 = scmp.ne.s32.totalorder %s103, %s104
    %p113 = scmp.eq.s32.totalorder %s25, 0
    %p114 = por %p112, %p113
    %p115 = scmp.ne.s32.totalorder %s103, %s104
    %p116 = scmp.eq.s32.totalorder %s26, 1
    %p117 = por %p115, %p116
    %p119 = scmp.ne.s32.totalorder %s104, %s118
    %p120 = scmp.eq.s32.totalorder %s26, 0
    %p121 = por %p119, %p120
    %s123 = sadd.s32 %s122, 1
    %p126 = scmp.eq.s32.totalorder %s20, 1
    %p127 = scmp.ne.s32.totalorder %s122, %s124
    %p128 = scmp.eq.s32.totalorder %s20, 0
    %p129 = por %p127, %p128
    %p130 = scmp.ne.s32.totalorder %s122, %s124
    %p131 = scmp.eq.s32.totalorder %s25, 1
    %p132 = por %p130, %p131
    %p133 = scmp.ne.s32.totalorder %s124, %s125
    %p134 = scmp.eq.s32.totalorder %s25, 0
    %p135 = por %p133, %p134
    %p136 = scmp.ne.s32.totalorder %s124, %s125
    %p137 = scmp.eq.s32.totalorder %s26, 1
    %p138 = por %p136, %p137
    %p140 = scmp.ne.s32.totalorder %s125, %s139
    %p141 = scmp.eq.s32.totalorder %s26, 0
    %p142 = por %p140, %p141
    %s144 = sadd.s32 %s143, 1
    %p147 = scmp.eq.s32.totalorder %s20, 1
    %p148 = scmp.ne.s32.totalorder %s143, %s145
    %p149 = scmp.eq.s32.totalorder %s20, 0
    %p150 = por %p148, %p149
    %p151 = scmp.ne.s32.totalorder %s143, %s145
    %p152 = scmp.eq.s32.totalorder %s25, 1
    %p153 = por %p151, %p152
    %p154 = scmp.ne.s32.totalorder %s145, %s146
    %p155 = scmp.eq.s32.totalorder %s25, 0
    %p156 = por %p154, %p155
    %p157 = scmp.ne.s32.totalorder %s145, %s146
    %p158 = scmp.eq.s32.totalorder %s26, 1
    %p159 = por %p157, %p158
    %p161 = scmp.ne.s32.totalorder %s146, %s160
    %p162 = scmp.eq.s32.totalorder %s26, 0
    %p163 = por %p161, %p162
    %s165 = sadd.s32 %s164, 1
    %p168 = scmp.eq.s32.totalorder %s20, 1
    %p169 = scmp.ne.s32.totalorder %s164, %s166
    %p170 = scmp.eq.s32.totalorder %s20, 0
    %p171 = por %p169, %p170
    %p172 = scmp.ne.s32.totalorder %s164, %s166
    %p173 = scmp.eq.s32.totalorder %s25, 1
    %p174 = por %p172, %p173
    %p175 = scmp.ne.s32.totalorder %s166, %s167
    %p176 = scmp.eq.s32.totalorder %s25, 0
    %p177 = por %p175, %p176
    %p178 = scmp.ne.s32.totalorder %s166, %s167
    %p179 = scmp.eq.s32.totalorder %s26, 1
    %p180 = por %p178, %p179
    %p182 = scmp.ne.s32.totalorder %s167, %s181
    %p183 = scmp.eq.s32.totalorder %s26, 0
    %p184 = por %p182, %p183
    %s186 = sadd.s32 %s185, 1
    %p189 = scmp.eq.s32.totalorder %s20, 1
    %p190 = scmp.ne.s32.totalorder %s185, %s187
    %p191 = scmp.eq.s32.totalorder %s20, 0
    %p192 = por %p190, %p191
    %p193 = scmp.ne.s32.totalorder %s185, %s187
    %p194 = scmp.eq.s32.totalorder %s25, 1
    %p195 = por %p193, %p194
    %p196 = scmp.ne.s32.totalorder %s187, %s188
    %p197 = scmp.eq.s32.totalorder %s25, 0
    %p198 = por %p196, %p197
    %p199 = scmp.ne.s32.totalorder %s187, %s188
    %p200 = scmp.eq.s32.totalorder %s26, 1
    %p201 = por %p199, %p200
    %p203 = scmp.ne.s32.totalorder %s188, %s202
    %p204 = scmp.eq.s32.totalorder %s26, 0
    %p205 = por %p203, %p204
    %s207 = sadd.s32 %s206, 1
    %p210 = scmp.eq.s32.totalorder %s20, 1
    %p211 = scmp.ne.s32.totalorder %s206, %s208
    %p212 = scmp.eq.s32.totalorder %s20, 0
    %p213 = por %p211, %p212
    %p214 = scmp.ne.s32.totalorder %s206, %s208
    %p215 = scmp.eq.s32.totalorder %s25, 1
    %p216 = por %p214, %p215
    %p217 = scmp.ne.s32.totalorder %s208, %s209
    %p218 = scmp.eq.s32.totalorder %s25, 0
    %p219 = por %p217, %p218
    %p220 = scmp.ne.s32.totalorder %s208, %s209
    %p221 = scmp.eq.s32.totalorder %s26, 1
    %p222 = por %p220, %p221
    %p224 = scmp.ne.s32.totalorder %s209, %s223
    %p225 = scmp.eq.s32.totalorder %s26, 0
    %p226 = por %p224, %p225
    %s228 = sadd.s32 %s227, 1
    %p231 = scmp.eq.s32.totalorder %s20, 1
    %p232 = scmp.ne.s32.totalorder %s227, %s229
    %p233 = scmp.eq.s32.totalorder %s20, 0
    %p234 = por %p232, %p233
    %p235 = scmp.ne.s32.totalorder %s227, %s229
    %p236 = scmp.eq.s32.totalorder %s25, 1
    %p237 = por %p235, %p236
    %p238 = scmp.ne.s32.totalorder %s229, %s230
    %p239 = scmp.eq.s32.totalorder %s25, 0
    %p240 = por %p238, %p239
    %p241 = scmp.ne.s32.totalorder %s229, %s230
    %p242 = scmp.eq.s32.totalorder %s26, 1
    %p243 = por %p241, %p242
    %p245 = scmp.ne.s32.totalorder %s230, %s244
    %p246 = scmp.eq.s32.totalorder %s26, 0
    %p247 = por %p245, %p246
    %s249 = sadd.s32 %s248, 1
    %p252 = scmp.eq.s32.totalorder %s20, 1
    %p253 = scmp.ne.s32.totalorder %s248, %s250
    %p254 = scmp.eq.s32.totalorder %s20, 0
    %p255 = por %p253, %p254
    %p256 = scmp.ne.s32.totalorder %s248, %s250
    %p257 = scmp.eq.s32.totalorder %s25, 1
    %p258 = por %p256, %p257
    %p259 = scmp.ne.s32.totalorder %s250, %s251
    %p260 = scmp.eq.s32.totalorder %s25, 0
    %p261 = por %p259, %p260
    %p262 = scmp.ne.s32.totalorder %s250, %s251
    %p263 = scmp.eq.s32.totalorder %s26, 1
    %p264 = por %p262, %p263
    %p266 = scmp.ne.s32.totalorder %s251, %s265
    %p267 = scmp.eq.s32.totalorder %s26, 0
    %p268 = por %p266, %p267
    %s270 = sadd.s32 %s269, 1
    %p273 = scmp.eq.s32.totalorder %s20, 1
    %p274 = scmp.ne.s32.totalorder %s269, %s271
    %p275 = scmp.eq.s32.totalorder %s20, 0
    %p276 = por %p274, %p275
    %p277 = scmp.ne.s32.totalorder %s269, %s271
    %p278 = scmp.eq.s32.totalorder %s25, 1
    %p279 = por %p277, %p278
    %p280 = scmp.ne.s32.totalorder %s271, %s272
    %p281 = scmp.eq.s32.totalorder %s25, 0
    %p282 = por %p280, %p281
    %p283 = scmp.ne.s32.totalorder %s271, %s272
    %p284 = scmp.eq.s32.totalorder %s26, 1
    %p285 = por %p283, %p284
    %p287 = scmp.ne.s32.totalorder %s272, %s286
    %p288 = scmp.eq.s32.totalorder %s26, 0
    %p289 = por %p287, %p288
    %s290 = ssub.s32 %s20, %s27
    %p291 = scmp.eq.s32.totalorder %s290, 0
    %s293 = sadd.s32 %s292, 1
    %s294 = scalar_select %p291, %s292, %s293
    %p297 = pneg %p291
    %p298 = scmp.eq.s32.totalorder %s20, 1
    %p299 = por %p297, %p298
    %p300 = scmp.ne.s32.totalorder %s292, %s295
    %p301 = scmp.eq.s32.totalorder %s20, 0
    %p302 = por %p300, %p301
    %p303 = scmp.ne.s32.totalorder %s292, %s295
    %p304 = scmp.eq.s32.totalorder %s25, 1
    %p305 = por %p303, %p304
    %p306 = scmp.ne.s32.totalorder %s295, %s296
    %p307 = scmp.eq.s32.totalorder %s25, 0
    %p308 = por %p306, %p307
    %p309 = scmp.ne.s32.totalorder %s295, %s296
    %p310 = scmp.eq.s32.totalorder %s26, 1
    %p311 = por %p309, %p310
    %p313 = scmp.ne.s32.totalorder %s296, %s312
    %p314 = scmp.eq.s32.totalorder %s26, 0
    %p315 = por %p313, %p314
    %p316 = scmp.le.s32.totalorder 1, %s20
    %p317 = scmp.lt.s32.totalorder %s20, 3
    %p318 = pnand %p316, %p317
    %p319 = pneg %p318
    // Predicated region
    $region9: #{attention_unet_right_forward.3} parent=5 // pred_check
      _
    $region10: #{attention_unet_right_forward.3} parent=5 // pred_check_branch
      %321 = sbr.rel (%p318) target = $region12
    $region11: #{attention_unet_right_forward.3} parent=5 // pred_region
      %s322 = ssub.s32 %s20, 1
      // Predicated region
      $region13: #{attention_unet_right_forward.3} parent=11 // pred_check
        %p323 = pneg %p93
      $region14: #{attention_unet_right_forward.3} parent=11 // pred_check_branch
        %325 = sbr.rel (%p323) target = $region16
      $region15: #{attention_unet_right_forward.3} parent=11 // pred_region
        _
      $region16: #{attention_unet_right_forward.3} parent=11 // pred_fallthru
        _
      // Predicated region
      $region17: #{attention_unet_right_forward.3} parent=11 // pred_check
        %p326 = pneg %p114
      $region18: #{attention_unet_right_forward.3} parent=11 // pred_check_branch
        %328 = sbr.rel (%p326) target = $region20
      $region19: #{attention_unet_right_forward.3} parent=11 // pred_region
        _
      $region20: #{attention_unet_right_forward.3} parent=11 // pred_fallthru
        _
      // Predicated region
      $region21: #{attention_unet_right_forward.3} parent=11 // pred_check
        %p329 = pneg %p135
      $region22: #{attention_unet_right_forward.3} parent=11 // pred_check_branch
        %331 = sbr.rel (%p329) target = $region24
      $region23: #{attention_unet_right_forward.3} parent=11 // pred_region
        _
      $region24: #{attention_unet_right_forward.3} parent=11 // pred_fallthru
        _
      // Predicated region
      $region25: #{attention_unet_right_forward.3} parent=11 // pred_check
        %p332 = pneg %p156
      $region26: #{attention_unet_right_forward.3} parent=11 // pred_check_branch
        %334 = sbr.rel (%p332) target = $region28
      $region27: #{attention_unet_right_forward.3} parent=11 // pred_region
        _
      $region28: #{attention_unet_right_forward.3} parent=11 // pred_fallthru
        _
      // Predicated region
      $region29: #{attention_unet_right_forward.3} parent=11 // pred_check
        %p335 = pneg %p177
      $region30: #{attention_unet_right_forward.3} parent=11 // pred_check_branch
        %337 = sbr.rel (%p335) target = $region32
      $region31: #{attention_unet_right_forward.3} parent=11 // pred_region
        _
      $region32: #{attention_unet_right_forward.3} parent=11 // pred_fallthru
        _
      // Predicated region
      $region33: #{attention_unet_right_forward.3} parent=11 // pred_check
        %p338 = pneg %p198
      $region34: #{attention_unet_right_forward.3} parent=11 // pred_check_branch
        %340 = sbr.rel (%p338) target = $region36
      $region35: #{attention_unet_right_forward.3} parent=11 // pred_region
        _
      $region36: #{attention_unet_right_forward.3} parent=11 // pred_fallthru
        _
      // Predicated region
      $region37: #{attention_unet_right_forward.3} parent=11 // pred_check
        %p341 = pneg %p219
      $region38: #{attention_unet_right_forward.3} parent=11 // pred_check_branch
        %343 = sbr.rel (%p341) target = $region40
      $region39: #{attention_unet_right_forward.3} parent=11 // pred_region
        _
      $region40: #{attention_unet_right_forward.3} parent=11 // pred_fallthru
        _
      // Predicated region
      $region41: #{attention_unet_right_forward.3} parent=11 // pred_check
        %p344 = pneg %p240
      $region42: #{attention_unet_right_forward.3} parent=11 // pred_check_branch
        %346 = sbr.rel (%p344) target = $region44
      $region43: #{attention_unet_right_forward.3} parent=11 // pred_region
        _
      $region44: #{attention_unet_right_forward.3} parent=11 // pred_fallthru
        _
      // Predicated region
      $region45: #{attention_unet_right_forward.3} parent=11 // pred_check
        %p347 = pneg %p261
      $region46: #{attention_unet_right_forward.3} parent=11 // pred_check_branch
        %349 = sbr.rel (%p347) target = $region48
      $region47: #{attention_unet_right_forward.3} parent=11 // pred_region
        _
      $region48: #{attention_unet_right_forward.3} parent=11 // pred_fallthru
        _
      // Predicated region
      $region49: #{attention_unet_right_forward.3} parent=11 // pred_check
        %p350 = pneg %p282
      $region50: #{attention_unet_right_forward.3} parent=11 // pred_check_branch
        %352 = sbr.rel (%p350) target = $region52
      $region51: #{attention_unet_right_forward.3} parent=11 // pred_region
        _
      $region52: #{attention_unet_right_forward.3} parent=11 // pred_fallthru
        _
    $region12: #{attention_unet_right_forward.3} parent=5 // pred_fallthru
      _
    %p353 = scmp.lt.s32.totalorder %s20, 2
    // Predicated region
    $region53: #{attention_unet_right_forward.3} parent=5 // pred_check
      %p354 = pneg %p353
    $region54: #{attention_unet_right_forward.3} parent=5 // pred_check_branch
      %356 = sbr.rel (%p354) target = $region56
    $region55: #{attention_unet_right_forward.3} parent=5 // pred_region
      // Predicated region
      $region57: #{attention_unet_right_forward.3} parent=55 // pred_check
        %p357 = pneg %p40
      $region58: #{attention_unet_right_forward.3} parent=55 // pred_check_branch
        %359 = sbr.rel (%p357) target = $region60
      $region59: #{attention_unet_right_forward.3} parent=55 // pred_region
        %p360 = scmp.lt.s32.totalorder %s20, 1
        %s361 = scalar_select %p360, %s20, 1
        %s362 = smul.addr %s361, 32
        %s363 = smul.addr %s362, 4
        %s364 = scalar_lea.vmem %s0, %s363
      $region60: #{attention_unet_right_forward.3} parent=55 // pred_fallthru
        _
      // Predicated region
      $region61: #{attention_unet_right_forward.3} parent=55 // pred_check
        %p365 = pneg %p66
      $region62: #{attention_unet_right_forward.3} parent=55 // pred_check_branch
        %367 = sbr.rel (%p365) target = $region64
      $region63: #{attention_unet_right_forward.3} parent=55 // pred_region
        %p368 = scmp.lt.s32.totalorder %s20, 1
        %s369 = scalar_select %p368, %s20, 1
        %s370 = smul.addr %s369, 32
        %s371 = smul.addr %s370, 4
        %s372 = scalar_lea.vmem %s1, %s371
      $region64: #{attention_unet_right_forward.3} parent=55 // pred_fallthru
        _
    $region56: #{attention_unet_right_forward.3} parent=5 // pred_fallthru
      _
    %p373 = scmp.le.s32.totalorder 1, %s20
    %p374 = scmp.lt.s32.totalorder %s20, 3
    %p375 = pnand %p373, %p374
    %p376 = pneg %p375
    // Predicated region
    $region65: #{attention_unet_right_forward.3} parent=5 // pred_check
      _
    $region66: #{attention_unet_right_forward.3} parent=5 // pred_check_branch
      %378 = sbr.rel (%p375) target = $region68
    $region67: #{attention_unet_right_forward.3} parent=5 // pred_region
      %s379 = ssub.s32 %s20, 1
      %p380 = scmp.lt.s32.totalorder %s25, 1
      %s381 = scalar_select %p380, %s25, 1
      %s382 = smul.addr %s381, 32
      %s383 = smul.addr %s382, 4
      %s384 = scalar_lea.vmem %s0, %s383
      %p385 = pneg %p46
      %p386 = pneg %p43
      %p387 = scmp.lt.s32.totalorder %s25, 1
      %s388 = scalar_select %p387, %s25, 1
      %s389 = smul.addr %s388, 32
      %s390 = smul.addr %s389, 4
      %s391 = scalar_lea.vmem %s1, %s390
      %p392 = pneg %p72
      %p393 = pneg %p69
      %p394 = pneg %p93
      %p395 = pneg %p90
      %p396 = pneg %p114
      %p397 = pneg %p111
      %p398 = pneg %p135
      %p399 = pneg %p132
      %p400 = pneg %p156
      %p401 = pneg %p153
      %p402 = pneg %p177
      %p403 = pneg %p174
      %p404 = pneg %p198
      %p405 = pneg %p195
      %p406 = pneg %p219
      %p407 = pneg %p216
      %p408 = pneg %p240
      %p409 = pneg %p237
      %p410 = pneg %p261
      %p411 = pneg %p258
      %p412 = pneg %p282
      %p413 = pneg %p279
      %p414 = pneg %p308
      %p415 = pneg %p305
      %p416 = scmp.lt.s32.totalorder %s25, 1
      %s417 = scalar_select %p416, %s25, 1
      %s418 = smul.addr %s417, 32
      %s419 = smul.addr %s418, 8
      %s420 = scalar_lea.vmem %s12, %s419
      %p421 = scmp.lt.s32.totalorder %s25, 1
      %s422 = scalar_select %p421, %s25, 1
      %s423 = smul.addr %s422, 32
      %s424 = smul.addr %s423, 4
      %s425 = scalar_lea.vmem %s0, %s424
      %p426 = scmp.lt.s32.totalorder %s25, 1
      %s427 = scalar_select %p426, %s25, 1
      %s428 = smul.addr %s427, 32
      %s429 = smul.addr %s428, 4
      %s430 = scalar_lea.vmem %s1, %s429
      %p431 = scmp.lt.s32.totalorder %s25, 1
      %s432 = scalar_select %p431, %s25, 1
      %s433 = smul.addr %s432, 32
      %s434 = smul.addr %s433, 8
      %s435 = scalar_lea.vmem %s12, %s434
      %vm437 = vcmask 125952
      %438 = vst.msk [vmem:[#allocation2] sm:$0xf] %vm437, 0
      %439 = vst.msk [vmem:[#allocation2 + $0x4] sm:$0xf] %vm437, 0
      %vm440 = vcmask 122880
      %441 = vst.msk [vmem:[#allocation2 + $0x8] sm:$0x1] %vm440, 0
      %442 = vst.msk [vmem:[#allocation2 + $0xc] sm:$0xf] %vm437, 0
      %443 = vst.msk [vmem:[#allocation2 + $0x10] sm:$0xf] %vm437, 0
      %444 = vst.msk [vmem:[#allocation2 + $0x14] sm:$0x1] %vm440, 0
      %445 = vst.msk [vmem:[#allocation2 + $0x18] sm:$0xf] %vm437, 0
      %446 = vst.msk [vmem:[#allocation2 + $0x1c] sm:$0xf] %vm437, 0
      %447 = vst.msk [vmem:[#allocation2 + $0x20] sm:$0x1] %vm440, 0
      %448 = vst.msk [vmem:[#allocation2 + $0x24] sm:$0xf] %vm437, 0
      %449 = vst.msk [vmem:[#allocation2 + $0x28] sm:$0xf] %vm437, 0
      %450 = vst.msk [vmem:[#allocation2 + $0x2c] sm:$0x1] %vm440, 0
      %451 = vst.msk [vmem:[#allocation2 + $0x30] sm:$0xf] %vm437, 0
      %452 = vst.msk [vmem:[#allocation2 + $0x34] sm:$0xf] %vm437, 0
      %453 = vst.msk [vmem:[#allocation2 + $0x38] sm:$0x1] %vm440, 0
      %454 = vst.msk [vmem:[#allocation2 + $0x3c] sm:$0xf] %vm437, 0
      %455 = vst.msk [vmem:[#allocation2 + $0x40] sm:$0xf] %vm437, 0
      %456 = vst.msk [vmem:[#allocation2 + $0x44] sm:$0x1] %vm440, 0
      %457 = vst.msk [vmem:[#allocation2 + $0x48] sm:$0xf] %vm437, 0
      %458 = vst.msk [vmem:[#allocation2 + $0x4c] sm:$0xf] %vm437, 0
      %459 = vst.msk [vmem:[#allocation2 + $0x50] sm:$0x1] %vm440, 0
      %460 = vst.msk [vmem:[#allocation2 + $0x54] sm:$0xf] %vm437, 0
      %461 = vst.msk [vmem:[#allocation2 + $0x58] sm:$0xf] %vm437, 0
      %462 = vst.msk [vmem:[#allocation2 + $0x5c] sm:$0x1] %vm440, 0
      %463 = vst.msk [vmem:[#allocation2 + $0x60] sm:$0xf] %vm437, 0
      %464 = vst.msk [vmem:[#allocation2 + $0x64] sm:$0xf] %vm437, 0
      %465 = vst.msk [vmem:[#allocation2 + $0x68] sm:$0x1] %vm440, 0
      %466 = vst.msk [vmem:[#allocation2 + $0x6c] sm:$0xf] %vm437, 0
      %467 = vst.msk [vmem:[#allocation2 + $0x70] sm:$0xf] %vm437, 0
      %468 = vst.msk [vmem:[#allocation2 + $0x74] sm:$0x1] %vm440, 0
      %469 = vst.msk [vmem:[#allocation2 + $0x78] sm:$0xf] %vm437, 0
      %470 = vst.msk [vmem:[#allocation2 + $0x7c] sm:$0xf] %vm437, 0
      %471 = vst.msk [vmem:[#allocation2 + $0x80] sm:$0x1] %vm440, 0
      %472 = vst.msk [vmem:[#allocation2 + $0x84] sm:$0xf] %vm437, 0
      %473 = vst.msk [vmem:[#allocation2 + $0x88] sm:$0xf] %vm437, 0
      %474 = vst.msk [vmem:[#allocation2 + $0x8c] sm:$0x1] %vm440, 0
      %475 = vst.msk [vmem:[#allocation2 + $0x90] sm:$0xf] %vm437, 0
      %476 = vst.msk [vmem:[#allocation2 + $0x94] sm:$0xf] %vm437, 0
      %477 = vst.msk [vmem:[#allocation2 + $0x98] sm:$0x1] %vm440, 0
      %478 = vst.msk [vmem:[#allocation2 + $0x9c] sm:$0xf] %vm437, 0
      %479 = vst.msk [vmem:[#allocation2 + $0xa0] sm:$0xf] %vm437, 0
      %480 = vst.msk [vmem:[#allocation2 + $0xa4] sm:$0x1] %vm440, 0
      %481 = vst.msk [vmem:[#allocation2 + $0xa8] sm:$0xf] %vm437, 0
      %482 = vst.msk [vmem:[#allocation2 + $0xac] sm:$0xf] %vm437, 0
      %483 = vst.msk [vmem:[#allocation2 + $0xb0] sm:$0x1] %vm440, 0
      %484 = vst.msk [vmem:[#allocation2 + $0xb4] sm:$0xf] %vm437, 0
      %485 = vst.msk [vmem:[#allocation2 + $0xb8] sm:$0xf] %vm437, 0
      %486 = vst.msk [vmem:[#allocation2 + $0xbc] sm:$0x1] %vm440, 0
      %487 = vst.msk [vmem:[#allocation2 + $0xc0] sm:$0xf] %vm437, 0
      %488 = vst.msk [vmem:[#allocation2 + $0xc4] sm:$0xf] %vm437, 0
      %489 = vst.msk [vmem:[#allocation2 + $0xc8] sm:$0x1] %vm440, 0
      %490 = vst.msk [vmem:[#allocation2 + $0xcc] sm:$0xf] %vm437, 0
      %491 = vst.msk [vmem:[#allocation2 + $0xd0] sm:$0xf] %vm437, 0
      %492 = vst.msk [vmem:[#allocation2 + $0xd4] sm:$0x1] %vm440, 0
      %v493 = vld [vmem:[%s425] sm:$0xf]
      %v494 = vld [vmem:[%s425 + $0x4] sm:$0xf]
      %v495 = vld [vmem:[%s425 + $0x8] sm:$0xf]
      %v496 = vld [vmem:[%s425 + $0xc] sm:$0xf]
      %v497 = vld [vmem:[%s425 + $0x10] sm:$0xf]
      %v498 = vld [vmem:[%s425 + $0x14] sm:$0xf]
      %v499 = vld [vmem:[%s425 + $0x18] sm:$0xf]
      %v500 = vld [vmem:[%s425 + $0x1c] sm:$0xf]
      %v501 = vld [vmem:[%s425 + $0x20] sm:$0xf]
      %v502 = vld [vmem:[%s425 + $0x24] sm:$0xf]
      %v503 = vld [vmem:[%s425 + $0x28] sm:$0xf]
      %v504 = vld [vmem:[%s425 + $0x2c] sm:$0xf]
      %v505 = vld [vmem:[%s425 + $0x30] sm:$0xf]
      %v506 = vld [vmem:[%s425 + $0x34] sm:$0xf]
      %v507 = vld [vmem:[%s425 + $0x38] sm:$0xf]
      %v508 = vld [vmem:[%s425 + $0x3c] sm:$0xf]
      %v509 = vld [vmem:[%s425 + $0x40] sm:$0xf]
      %v510 = vld [vmem:[%s425 + $0x44] sm:$0xf]
      %v511 = vld [vmem:[%s425 + $0x48] sm:$0xf]
      %v512 = vld [vmem:[%s425 + $0x4c] sm:$0xf]
      %v513 = vld [vmem:[%s425 + $0x50] sm:$0xf]
      %v514 = vld [vmem:[%s425 + $0x54] sm:$0xf]
      %v515 = vld [vmem:[%s425 + $0x58] sm:$0xf]
      %v516 = vld [vmem:[%s425 + $0x5c] sm:$0xf]
      %v517 = vld [vmem:[%s425 + $0x60] sm:$0xf]
      %v518 = vld [vmem:[%s425 + $0x64] sm:$0xf]
      %v519 = vld [vmem:[%s425 + $0x68] sm:$0xf]
      %v520 = vld [vmem:[%s425 + $0x6c] sm:$0xf]
      %v521 = vld [vmem:[%s425 + $0x70] sm:$0xf]
      %v522 = vld [vmem:[%s425 + $0x74] sm:$0xf]
      %v523 = vld [vmem:[%s425 + $0x78] sm:$0xf]
      %v524 = vld [vmem:[%s425 + $0x7c] sm:$0xf]
      %v525 = vld [vmem:[%s430] sm:$0xf]
      %v526 = vld [vmem:[%s430 + $0x4] sm:$0xf]
      %v527 = vld [vmem:[%s430 + $0x8] sm:$0xf]
      %v528 = vld [vmem:[%s430 + $0xc] sm:$0xf]
      %v529 = vld [vmem:[%s430 + $0x10] sm:$0xf]
      %v530 = vld [vmem:[%s430 + $0x14] sm:$0xf]
      %v531 = vld [vmem:[%s430 + $0x18] sm:$0xf]
      %v532 = vld [vmem:[%s430 + $0x1c] sm:$0xf]
      %v533 = vld [vmem:[%s430 + $0x20] sm:$0xf]
      %v534 = vld [vmem:[%s430 + $0x24] sm:$0xf]
      %v535 = vld [vmem:[%s430 + $0x28] sm:$0xf]
      %v536 = vld [vmem:[%s430 + $0x2c] sm:$0xf]
      %v537 = vld [vmem:[%s430 + $0x30] sm:$0xf]
      %v538 = vld [vmem:[%s430 + $0x34] sm:$0xf]
      %v539 = vld [vmem:[%s430 + $0x38] sm:$0xf]
      %v540 = vld [vmem:[%s430 + $0x3c] sm:$0xf]
      %v541 = vld [vmem:[%s430 + $0x40] sm:$0xf]
      %v542 = vld [vmem:[%s430 + $0x44] sm:$0xf]
      %v543 = vld [vmem:[%s430 + $0x48] sm:$0xf]
      %v544 = vld [vmem:[%s430 + $0x4c] sm:$0xf]
      %v545 = vld [vmem:[%s430 + $0x50] sm:$0xf]
      %v546 = vld [vmem:[%s430 + $0x54] sm:$0xf]
      %v547 = vld [vmem:[%s430 + $0x58] sm:$0xf]
      %v548 = vld [vmem:[%s430 + $0x5c] sm:$0xf]
      %v549 = vld [vmem:[%s430 + $0x60] sm:$0xf]
      %v550 = vld [vmem:[%s430 + $0x64] sm:$0xf]
      %v551 = vld [vmem:[%s430 + $0x68] sm:$0xf]
      %v552 = vld [vmem:[%s430 + $0x6c] sm:$0xf]
      %v553 = vld [vmem:[%s430 + $0x70] sm:$0xf]
      %v554 = vld [vmem:[%s430 + $0x74] sm:$0xf]
      %v555 = vld [vmem:[%s430 + $0x78] sm:$0xf]
      %v556 = vld [vmem:[%s430 + $0x7c] sm:$0xf]
      %v557 = vld [vmem:[%s2] sm:$0xf]
      %v558 = vld [vmem:[%s2 + $0x4] sm:$0xf]
      %v559 = vld [vmem:[%s3] sm:$0xf]
      %v560 = vld [vmem:[%s3 + $0x4] sm:$0xf]
      %v593 = vunpack.c.l.b16 %v525
      %v594 = vunpack.c.l.b16 %v526
      %v595 = vunpack.c.l.b16 %v527
      %v596 = vunpack.c.l.b16 %v528
      %v597 = vunpack.c.l.b16 %v529
      %v598 = vunpack.c.l.b16 %v530
      %v599 = vunpack.c.l.b16 %v531
      %v600 = vunpack.c.l.b16 %v532
      %v601 = vunpack.c.l.b16 %v533
      %v602 = vunpack.c.l.b16 %v534
      %v603 = vunpack.c.l.b16 %v535
      %v604 = vunpack.c.l.b16 %v536
      %v605 = vunpack.c.l.b16 %v537
      %v606 = vunpack.c.l.b16 %v538
      %v607 = vunpack.c.l.b16 %v539
      %v608 = vunpack.c.l.b16 %v540
      %v609 = vunpack.c.l.b16 %v541
      %v610 = vunpack.c.l.b16 %v542
      %v611 = vunpack.c.l.b16 %v543
      %v612 = vunpack.c.l.b16 %v544
      %v613 = vunpack.c.l.b16 %v545
      %v614 = vunpack.c.l.b16 %v546
      %v615 = vunpack.c.l.b16 %v547
      %v616 = vunpack.c.l.b16 %v548
      %v617 = vunpack.c.l.b16 %v549
      %v618 = vunpack.c.l.b16 %v550
      %v619 = vunpack.c.l.b16 %v551
      %v620 = vunpack.c.l.b16 %v552
      %v621 = vunpack.c.l.b16 %v553
      %v622 = vunpack.c.l.b16 %v554
      %v623 = vunpack.c.l.b16 %v555
      %v624 = vunpack.c.l.b16 %v556
      %v625 = vpack.c.b16 %v594, %v593
      %v626 = vpack.c.b16 %v596, %v595
      %v627 = vpack.c.b16 %v598, %v597
      %v628 = vpack.c.b16 %v600, %v599
      %v629 = vpack.c.b16 %v602, %v601
      %v630 = vpack.c.b16 %v604, %v603
      %v631 = vpack.c.b16 %v606, %v605
      %v632 = vpack.c.b16 %v608, %v607
      %v633 = vpack.c.b16 %v610, %v609
      %v634 = vpack.c.b16 %v612, %v611
      %v635 = vpack.c.b16 %v614, %v613
      %v636 = vpack.c.b16 %v616, %v615
      %v637 = vpack.c.b16 %v618, %v617
      %v638 = vpack.c.b16 %v620, %v619
      %v639 = vpack.c.b16 %v622, %v621
      %v640 = vpack.c.b16 %v624, %v623
      %v643 = vunpack.c.l.b16 %v559
      %v644 = vunpack.c.l.b16 %v560
      %v645 = vpack.c.b16 %v644, %v643
      %vm647 = vcmask 130048
      %v649 = vsel %vm647, %v625, 0
      %v652 = vsel %vm647, %v626, 0
      %v655 = vsel %vm647, %v627, 0
      %v658 = vsel %vm647, %v628, 0
      %v661 = vsel %vm647, %v629, 0
      %v664 = vsel %vm647, %v630, 0
      %v667 = vsel %vm647, %v631, 0
      %v670 = vsel %vm647, %v632, 0
      %v673 = vsel %vm647, %v633, 0
      %v676 = vsel %vm647, %v634, 0
      %v679 = vsel %vm647, %v635, 0
      %v682 = vsel %vm647, %v636, 0
      %v685 = vsel %vm647, %v637, 0
      %v688 = vsel %vm647, %v638, 0
      %v691 = vsel %vm647, %v639, 0
      %v694 = vsel %vm647, %v640, 0
      %696 = vmatprep.subr.bf16.mxu0 0
      %697 = vmatpush1.bf16.msra.mxu0 %v645
      %698 = vmatprep.subr.bf16.mxu0 0
      %699 = vmatpush1.bf16.msra.mxu0 0
      %700 = vmatprep.subr.bf16.mxu0 0
      %701 = vmatpush1.bf16.msra.mxu0 0
      %702 = vmatprep.subr.bf16.mxu0 0
      %703 = vmatpush1.bf16.msra.mxu0 0
      %704 = vmatprep.subr.bf16.mxu0 0
      %705 = vmatpush1.bf16.msra.mxu0 0
      %706 = vmatprep.subr.bf16.mxu0 0
      %707 = vmatpush1.bf16.msra.mxu0 0
      %708 = vmatprep.subr.bf16.mxu0 0
      %709 = vmatpush1.bf16.msra.mxu0 0
      %710 = vmatprep.subr.bf16.mxu0 0
      %711 = vmatpush1.bf16.msra.mxu0 0
      %712 = vmatprep.subr.bf16.mxu0 0
      %713 = vmatpush1.bf16.msra.mxu0 0
      %714 = vmatprep.subr.bf16.mxu0 0
      %715 = vmatpush1.bf16.msra.mxu0 0
      %716 = vmatprep.subr.bf16.mxu0 0
      %717 = vmatpush1.bf16.msra.mxu0 0
      %718 = vmatprep.subr.bf16.mxu0 0
      %719 = vmatpush1.bf16.msra.mxu0 0
      %720 = vmatprep.subr.bf16.mxu0 0
      %721 = vmatpush1.bf16.msra.mxu0 0
      %722 = vmatprep.subr.bf16.mxu0 0
      %723 = vmatpush1.bf16.msra.mxu0 0
      %724 = vmatprep.subr.bf16.mxu0 0
      %725 = vmatpush1.bf16.msra.mxu0 0
      %726 = vmatprep.subr.bf16.mxu0 0
      %727 = vmatpush1.bf16.msra.mxu0 0
      %728 = vmatprep.mubr.bf16.mxu0 0
      %729 = vmatmul.mubr.bf16.gmra.mrb[0].mxu0 %v649
      %v730 = vpop.f32.mrb[0].mxu0
      %v731 = vadd.f32 0.0, %v730
      %v732 = vpop.f32.mrb[0].mxu0
      %v733 = vpop.f32.mrb[0].mxu0
      %v734 = vadd.f32 0.0, %v733
      %v735 = vpop.f32.mrb[0].mxu0
      %736 = vmatprep.mubr.bf16.mxu0 0
      %737 = vmatmul.mubr.bf16.gmra.mrb[0].mxu0 %v652
      %v738 = vpop.f32.mrb[0].mxu0
      %v739 = vadd.f32 0.0, %v738
      %v740 = vpop.f32.mrb[0].mxu0
      %v741 = vpop.f32.mrb[0].mxu0
      %v742 = vadd.f32 0.0, %v741
      %v743 = vpop.f32.mrb[0].mxu0
      %744 = vmatprep.mubr.bf16.mxu0 0
      %745 = vmatmul.mubr.bf16.gmra.mrb[0].mxu0 %v655
      %v746 = vpop.f32.mrb[0].mxu0
      %v747 = vadd.f32 0.0, %v746
      %v748 = vpop.f32.mrb[0].mxu0
      %v749 = vpop.f32.mrb[0].mxu0
      %v750 = vadd.f32 0.0, %v749
      %v751 = vpop.f32.mrb[0].mxu0
      %752 = vmatprep.mubr.bf16.mxu0 0
      %753 = vmatmul.mubr.bf16.gmra.mrb[0].mxu0 %v658
      %v754 = vpop.f32.mrb[0].mxu0
      %v755 = vadd.f32 0.0, %v754
      %v756 = vpop.f32.mrb[0].mxu0
      %v757 = vpop.f32.mrb[0].mxu0
      %v758 = vadd.f32 0.0, %v757
      %v759 = vpop.f32.mrb[0].mxu0
      %760 = vmatprep.mubr.bf16.mxu0 0
      %761 = vmatmul.mubr.bf16.gmra.mrb[0].mxu0 %v661
      %v762 = vpop.f32.mrb[0].mxu0
      %v763 = vadd.f32 0.0, %v762
      %v764 = vpop.f32.mrb[0].mxu0
      %v765 = vpop.f32.mrb[0].mxu0
      %v766 = vadd.f32 0.0, %v765
      %v767 = vpop.f32.mrb[0].mxu0
      %768 = vmatprep.mubr.bf16.mxu0 0
      %769 = vmatmul.mubr.bf16.gmra.mrb[0].mxu0 %v664
      %v770 = vpop.f32.mrb[0].mxu0
      %v771 = vadd.f32 0.0, %v770
      %v772 = vpop.f32.mrb[0].mxu0
      %v773 = vpop.f32.mrb[0].mxu0
      %v774 = vadd.f32 0.0, %v773
      %v775 = vpop.f32.mrb[0].mxu0
      %776 = vmatprep.mubr.bf16.mxu0 0
      %777 = vmatmul.mubr.bf16.gmra.mrb[0].mxu0 %v667
      %v778 = vpop.f32.mrb[0].mxu0
      %v779 = vadd.f32 0.0, %v778
      %v780 = vpop.f32.mrb[0].mxu0
      %v781 = vpop.f32.mrb[0].mxu0
      %v782 = vadd.f32 0.0, %v781
      %v783 = vpop.f32.mrb[0].mxu0
      %784 = vmatprep.mubr.bf16.mxu0 0
      %785 = vmatmul.mubr.bf16.gmra.mrb[0].mxu0 %v670
      %v786 = vpop.f32.mrb[0].mxu0
      %v787 = vadd.f32 0.0, %v786
      %v788 = vpop.f32.mrb[0].mxu0
      %v789 = vpop.f32.mrb[0].mxu0
      %v790 = vadd.f32 0.0, %v789
      %v791 = vpop.f32.mrb[0].mxu0
      %792 = vmatprep.mubr.bf16.mxu0 0
      %793 = vmatmul.mubr.bf16.gmra.mrb[0].mxu0 %v673
      %v794 = vpop.f32.mrb[0].mxu0
      %v795 = vadd.f32 0.0, %v794
      %v796 = vpop.f32.mrb[0].mxu0
      %v797 = vpop.f32.mrb[0].mxu0
      %v798 = vadd.f32 0.0, %v797
      %v799 = vpop.f32.mrb[0].mxu0
      %800 = vmatprep.mubr.bf16.mxu0 0
      %801 = vmatmul.mubr.bf16.gmra.mrb[0].mxu0 %v676
      %v802 = vpop.f32.mrb[0].mxu0
      %v803 = vadd.f32 0.0, %v802
      %v804 = vpop.f32.mrb[0].mxu0
      %v805 = vpop.f32.mrb[0].mxu0
      %v806 = vadd.f32 0.0, %v805
      %v807 = vpop.f32.mrb[0].mxu0
      %808 = vmatprep.mubr.bf16.mxu0 0
      %809 = vmatmul.mubr.bf16.gmra.mrb[0].mxu0 %v679
      %v810 = vpop.f32.mrb[0].mxu0
      %v811 = vadd.f32 0.0, %v810
      %v812 = vpop.f32.mrb[0].mxu0
      %v813 = vpop.f32.mrb[0].mxu0
      %v814 = vadd.f32 0.0, %v813
      %v815 = vpop.f32.mrb[0].mxu0
      %816 = vmatprep.mubr.bf16.mxu0 0
      %817 = vmatmul.mubr.bf16.gmra.mrb[0].mxu0 %v682
      %v818 = vpop.f32.mrb[0].mxu0
      %v819 = vadd.f32 0.0, %v818
      %v820 = vpop.f32.mrb[0].mxu0
      %v821 = vpop.f32.mrb[0].mxu0
      %v822 = vadd.f32 0.0, %v821
      %v823 = vpop.f32.mrb[0].mxu0
      %824 = vmatprep.mubr.bf16.mxu0 0
      %825 = vmatmul.mubr.bf16.gmra.mrb[0].mxu0 %v685
      %v826 = vpop.f32.mrb[0].mxu0
      %v827 = vadd.f32 0.0, %v826
      %v828 = vpop.f32.mrb[0].mxu0
      %v829 = vpop.f32.mrb[0].mxu0
      %v830 = vadd.f32 0.0, %v829
      %v831 = vpop.f32.mrb[0].mxu0
      %832 = vmatprep.mubr.bf16.mxu0 0
      %833 = vmatmul.mubr.bf16.gmra.mrb[0].mxu0 %v688
      %v834 = vpop.f32.mrb[0].mxu0
      %v835 = vadd.f32 0.0, %v834
      %v836 = vpop.f32.mrb[0].mxu0
      %v837 = vpop.f32.mrb[0].mxu0
      %v838 = vadd.f32 0.0, %v837
      %v839 = vpop.f32.mrb[0].mxu0
      %840 = vmatprep.mubr.bf16.mxu0 0
      %841 = vmatmul.mubr.bf16.gmra.mrb[0].mxu0 %v691
      %v842 = vpop.f32.mrb[0].mxu0
      %v843 = vadd.f32 0.0, %v842
      %v844 = vpop.f32.mrb[0].mxu0
      %v845 = vpop.f32.mrb[0].mxu0
      %v846 = vadd.f32 0.0, %v845
      %v847 = vpop.f32.mrb[0].mxu0
      %848 = vmatprep.mubr.bf16.mxu0 0
      %849 = vmatmul.mubr.bf16.gmra.mrb[0].mxu0 %v694
      %v850 = vpop.f32.mrb[0].mxu0
      %v851 = vadd.f32 0.0, %v850
      %v852 = vpop.f32.mrb[0].mxu0
      %v853 = vpop.f32.mrb[0].mxu0
      %v854 = vadd.f32 0.0, %v853
      %v855 = vpop.f32.mrb[0].mxu0
      %856 = vdwg.mxu0
      %v889 = vunpack.c.l.b16 %v493
      %v890 = vunpack.c.l.b16 %v494
      %v891 = vunpack.c.l.b16 %v495
      %v892 = vunpack.c.l.b16 %v496
      %v893 = vunpack.c.l.b16 %v497
      %v894 = vunpack.c.l.b16 %v498
      %v895 = vunpack.c.l.b16 %v499
      %v896 = vunpack.c.l.b16 %v500
      %v897 = vunpack.c.l.b16 %v501
      %v898 = vunpack.c.l.b16 %v502
      %v899 = vunpack.c.l.b16 %v503
      %v900 = vunpack.c.l.b16 %v504
      %v901 = vunpack.c.l.b16 %v505
      %v902 = vunpack.c.l.b16 %v506
      %v903 = vunpack.c.l.b16 %v507
      %v904 = vunpack.c.l.b16 %v508
      %v905 = vunpack.c.l.b16 %v509
      %v906 = vunpack.c.l.b16 %v510
      %v907 = vunpack.c.l.b16 %v511
      %v908 = vunpack.c.l.b16 %v512
      %v909 = vunpack.c.l.b16 %v513
      %v910 = vunpack.c.l.b16 %v514
      %v911 = vunpack.c.l.b16 %v515
      %v912 = vunpack.c.l.b16 %v516
      %v913 = vunpack.c.l.b16 %v517
      %v914 = vunpack.c.l.b16 %v518
      %v915 = vunpack.c.l.b16 %v519
      %v916 = vunpack.c.l.b16 %v520
      %v917 = vunpack.c.l.b16 %v521
      %v918 = vunpack.c.l.b16 %v522
      %v919 = vunpack.c.l.b16 %v523
      %v920 = vunpack.c.l.b16 %v524
      %v921 = vpack.c.b16 %v890, %v889
      %v922 = vpack.c.b16 %v892, %v891
      %v923 = vpack.c.b16 %v894, %v893
      %v924 = vpack.c.b16 %v896, %v895
      %v925 = vpack.c.b16 %v898, %v897
      %v926 = vpack.c.b16 %v900, %v899
      %v927 = vpack.c.b16 %v902, %v901
      %v928 = vpack.c.b16 %v904, %v903
      %v929 = vpack.c.b16 %v906, %v905
      %v930 = vpack.c.b16 %v908, %v907
      %v931 = vpack.c.b16 %v910, %v909
      %v932 = vpack.c.b16 %v912, %v911
      %v933 = vpack.c.b16 %v914, %v913
      %v934 = vpack.c.b16 %v916, %v915
      %v935 = vpack.c.b16 %v918, %v917
      %v936 = vpack.c.b16 %v920, %v919
      %v939 = vunpack.c.l.b16 %v557
      %v940 = vunpack.c.l.b16 %v558
      %v941 = vpack.c.b16 %v940, %v939
      %v944 = vsel %vm647, %v921, 0
      %v947 = vsel %vm647, %v922, 0
      %v950 = vsel %vm647, %v923, 0
      %v953 = vsel %vm647, %v924, 0
      %v956 = vsel %vm647, %v925, 0
      %v959 = vsel %vm647, %v926, 0
      %v962 = vsel %vm647, %v927, 0
      %v965 = vsel %vm647, %v928, 0
      %v968 = vsel %vm647, %v929, 0
      %v971 = vsel %vm647, %v930, 0
      %v974 = vsel %vm647, %v931, 0
      %v977 = vsel %vm647, %v932, 0
      %v980 = vsel %vm647, %v933, 0
      %v983 = vsel %vm647, %v934, 0
      %v986 = vsel %vm647, %v935, 0
      %v989 = vsel %vm647, %v936, 0
      %991 = vmatprep.subr.bf16.mxu0 0
      %992 = vmatpush1.bf16.msra.mxu0 %v941
      %993 = vmatprep.subr.bf16.mxu0 0
      %994 = vmatpush1.bf16.msra.mxu0 0
      %995 = vmatprep.subr.bf16.mxu0 0
      %996 = vmatpush1.bf16.msra.mxu0 0
      %997 = vmatprep.subr.bf16.mxu0 0
      %998 = vmatpush1.bf16.msra.mxu0 0
      %999 = vmatprep.subr.bf16.mxu0 0
      %1000 = vmatpush1.bf16.msra.mxu0 0
      %1001 = vmatprep.subr.bf16.mxu0 0
      %1002 = vmatpush1.bf16.msra.mxu0 0
      %1003 = vmatprep.subr.bf16.mxu0 0
      %1004 = vmatpush1.bf16.msra.mxu0 0
      %1005 = vmatprep.subr.bf16.mxu0 0
      %1006 = vmatpush1.bf16.msra.mxu0 0
      %1007 = vmatprep.subr.bf16.mxu0 0
      %1008 = vmatpush1.bf16.msra.mxu0 0
      %1009 = vmatprep.subr.bf16.mxu0 0
      %1010 = vmatpush1.bf16.msra.mxu0 0
      %1011 = vmatprep.subr.bf16.mxu0 0
      %1012 = vmatpush1.bf16.msra.mxu0 0
      %1013 = vmatprep.subr.bf16.mxu0 0
      %1014 = vmatpush1.bf16.msra.mxu0 0
      %1015 = vmatprep.subr.bf16.mxu0 0
      %1016 = vmatpush1.bf16.msra.mxu0 0
      %1017 = vmatprep.subr.bf16.mxu0 0
      %1018 = vmatpush1.bf16.msra.mxu0 0
      %1019 = vmatprep.subr.bf16.mxu0 0
      %1020 = vmatpush1.bf16.msra.mxu0 0
      %1021 = vmatprep.subr.bf16.mxu0 0
      %1022 = vmatpush1.bf16.msra.mxu0 0
      %1023 = vmatprep.mubr.bf16.mxu0 0
      %1024 = vmatmul.mubr.bf16.gmra.mrb[0].mxu0 %v944
      %v1025 = vpop.f32.mrb[0].mxu0
      %v1026 = vadd.f32 %v731, %v1025
      %v1027 = vpop.f32.mrb[0].mxu0
      %v1028 = vpop.f32.mrb[0].mxu0
      %v1029 = vadd.f32 %v734, %v1028
      %v1030 = vpop.f32.mrb[0].mxu0
      %1031 = vmatprep.mubr.bf16.mxu0 0
      %1032 = vmatmul.mubr.bf16.gmra.mrb[0].mxu0 %v947
      %v1033 = vpop.f32.mrb[0].mxu0
      %v1034 = vadd.f32 %v739, %v1033
      %v1035 = vpop.f32.mrb[0].mxu0
      %v1036 = vpop.f32.mrb[0].mxu0
      %v1037 = vadd.f32 %v742, %v1036
      %v1038 = vpop.f32.mrb[0].mxu0
      %1039 = vmatprep.mubr.bf16.mxu0 0
      %1040 = vmatmul.mubr.bf16.gmra.mrb[0].mxu0 %v950
      %v1041 = vpop.f32.mrb[0].mxu0
      %v1042 = vadd.f32 %v747, %v1041
      %v1043 = vpop.f32.mrb[0].mxu0
      %v1044 = vpop.f32.mrb[0].mxu0
      %v1045 = vadd.f32 %v750, %v1044
      %v1046 = vpop.f32.mrb[0].mxu0
      %1047 = vmatprep.mubr.bf16.mxu0 0
      %1048 = vmatmul.mubr.bf16.gmra.mrb[0].mxu0 %v953
      %v1049 = vpop.f32.mrb[0].mxu0
      %v1050 = vadd.f32 %v755, %v1049
      %v1051 = vpop.f32.mrb[0].mxu0
      %v1052 = vpop.f32.mrb[0].mxu0
      %v1053 = vadd.f32 %v758, %v1052
      %v1054 = vpop.f32.mrb[0].mxu0
      %1055 = vmatprep.mubr.bf16.mxu0 0
      %1056 = vmatmul.mubr.bf16.gmra.mrb[0].mxu0 %v956
      %v1057 = vpop.f32.mrb[0].mxu0
      %v1058 = vadd.f32 %v763, %v1057
      %v1059 = vpop.f32.mrb[0].mxu0
      %v1060 = vpop.f32.mrb[0].mxu0
      %v1061 = vadd.f32 %v766, %v1060
      %v1062 = vpop.f32.mrb[0].mxu0
      %1063 = vmatprep.mubr.bf16.mxu0 0
      %1064 = vmatmul.mubr.bf16.gmra.mrb[0].mxu0 %v959
      %v1065 = vpop.f32.mrb[0].mxu0
      %v1066 = vadd.f32 %v771, %v1065
      %v1067 = vpop.f32.mrb[0].mxu0
      %v1068 = vpop.f32.mrb[0].mxu0
      %v1069 = vadd.f32 %v774, %v1068
      %v1070 = vpop.f32.mrb[0].mxu0
      %1071 = vmatprep.mubr.bf16.mxu0 0
      %1072 = vmatmul.mubr.bf16.gmra.mrb[0].mxu0 %v962
      %v1073 = vpop.f32.mrb[0].mxu0
      %v1074 = vadd.f32 %v779, %v1073
      %v1075 = vpop.f32.mrb[0].mxu0
      %v1076 = vpop.f32.mrb[0].mxu0
      %v1077 = vadd.f32 %v782, %v1076
      %v1078 = vpop.f32.mrb[0].mxu0
      %1079 = vmatprep.mubr.bf16.mxu0 0
      %1080 = vmatmul.mubr.bf16.gmra.mrb[0].mxu0 %v965
      %v1081 = vpop.f32.mrb[0].mxu0
      %v1082 = vadd.f32 %v787, %v1081
      %v1083 = vpop.f32.mrb[0].mxu0
      %v1084 = vpop.f32.mrb[0].mxu0
      %v1085 = vadd.f32 %v790, %v1084
      %v1086 = vpop.f32.mrb[0].mxu0
      %1087 = vmatprep.mubr.bf16.mxu0 0
      %1088 = vmatmul.mubr.bf16.gmra.mrb[0].mxu0 %v968
      %v1089 = vpop.f32.mrb[0].mxu0
      %v1090 = vadd.f32 %v795, %v1089
      %v1091 = vpop.f32.mrb[0].mxu0
      %v1092 = vpop.f32.mrb[0].mxu0
      %v1093 = vadd.f32 %v798, %v1092
      %v1094 = vpop.f32.mrb[0].mxu0
      %1095 = vmatprep.mubr.bf16.mxu0 0
      %1096 = vmatmul.mubr.bf16.gmra.mrb[0].mxu0 %v971
      %v1097 = vpop.f32.mrb[0].mxu0
      %v1098 = vadd.f32 %v803, %v1097
      %v1099 = vpop.f32.mrb[0].mxu0
      %v1100 = vpop.f32.mrb[0].mxu0
      %v1101 = vadd.f32 %v806, %v1100
      %v1102 = vpop.f32.mrb[0].mxu0
      %1103 = vmatprep.mubr.bf16.mxu0 0
      %1104 = vmatmul.mubr.bf16.gmra.mrb[0].mxu0 %v974
      %v1105 = vpop.f32.mrb[0].mxu0
      %v1106 = vadd.f32 %v811, %v1105
      %v1107 = vpop.f32.mrb[0].mxu0
      %v1108 = vpop.f32.mrb[0].mxu0
      %v1109 = vadd.f32 %v814, %v1108
      %v1110 = vpop.f32.mrb[0].mxu0
      %1111 = vmatprep.mubr.bf16.mxu0 0
      %1112 = vmatmul.mubr.bf16.gmra.mrb[0].mxu0 %v977
      %v1113 = vpop.f32.mrb[0].mxu0
      %v1114 = vadd.f32 %v819, %v1113
      %v1115 = vpop.f32.mrb[0].mxu0
      %v1116 = vpop.f32.mrb[0].mxu0
      %v1117 = vadd.f32 %v822, %v1116
      %v1118 = vpop.f32.mrb[0].mxu0
      %1119 = vmatprep.mubr.bf16.mxu0 0
      %1120 = vmatmul.mubr.bf16.gmra.mrb[0].mxu0 %v980
      %v1121 = vpop.f32.mrb[0].mxu0
      %v1122 = vadd.f32 %v827, %v1121
      %v1123 = vpop.f32.mrb[0].mxu0
      %v1124 = vpop.f32.mrb[0].mxu0
      %v1125 = vadd.f32 %v830, %v1124
      %v1126 = vpop.f32.mrb[0].mxu0
      %1127 = vmatprep.mubr.bf16.mxu0 0
      %1128 = vmatmul.mubr.bf16.gmra.mrb[0].mxu0 %v983
      %v1129 = vpop.f32.mrb[0].mxu0
      %v1130 = vadd.f32 %v835, %v1129
      %v1131 = vpop.f32.mrb[0].mxu0
      %v1132 = vpop.f32.mrb[0].mxu0
      %v1133 = vadd.f32 %v838, %v1132
      %v1134 = vpop.f32.mrb[0].mxu0
      %1135 = vmatprep.mubr.bf16.mxu0 0
      %1136 = vmatmul.mubr.bf16.gmra.mrb[0].mxu0 %v986
      %v1137 = vpop.f32.mrb[0].mxu0
      %v1138 = vadd.f32 %v843, %v1137
      %v1139 = vpop.f32.mrb[0].mxu0
      %v1140 = vpop.f32.mrb[0].mxu0
      %v1141 = vadd.f32 %v846, %v1140
      %v1142 = vpop.f32.mrb[0].mxu0
      %1143 = vmatprep.mubr.bf16.mxu0 0
      %1144 = vmatmul.mubr.bf16.gmra.mrb[0].mxu0 %v989
      %v1145 = vpop.f32.mrb[0].mxu0
      %v1146 = vadd.f32 %v851, %v1145
      %v1147 = vpop.f32.mrb[0].mxu0
      %v1148 = vpop.f32.mrb[0].mxu0
      %v1149 = vadd.f32 %v854, %v1148
      %v1150 = vpop.f32.mrb[0].mxu0
      %1151 = vdwg.mxu0
      %v1152 = vld [vmem:[%s4] sm:$0x1]
      %v1154 = vlaneseq
      %v1155 = vshrl.u32 %v1154, 7
      %v1156 = vsub.s32 0, %v1155
      %v1157 = vrot.slane %v1152, %v1156
      %v1159 = vadd.f32 %v1026, %v1157
      %v1160 = vadd.f32 %v1029, %v1157
      %v1161 = vadd.f32 %v1034, %v1157
      %v1162 = vadd.f32 %v1037, %v1157
      %v1163 = vadd.f32 %v1042, %v1157
      %v1164 = vadd.f32 %v1045, %v1157
      %v1165 = vadd.f32 %v1050, %v1157
      %v1166 = vadd.f32 %v1053, %v1157
      %v1167 = vadd.f32 %v1058, %v1157
      %v1168 = vadd.f32 %v1061, %v1157
      %v1169 = vadd.f32 %v1066, %v1157
      %v1170 = vadd.f32 %v1069, %v1157
      %v1171 = vadd.f32 %v1074, %v1157
      %v1172 = vadd.f32 %v1077, %v1157
      %v1173 = vadd.f32 %v1082, %v1157
      %v1174 = vadd.f32 %v1085, %v1157
      %v1175 = vadd.f32 %v1090, %v1157
      %v1176 = vadd.f32 %v1093, %v1157
      %v1177 = vadd.f32 %v1098, %v1157
      %v1178 = vadd.f32 %v1101, %v1157
      %v1179 = vadd.f32 %v1106, %v1157
      %v1180 = vadd.f32 %v1109, %v1157
      %v1181 = vadd.f32 %v1114, %v1157
      %v1182 = vadd.f32 %v1117, %v1157
      %v1183 = vadd.f32 %v1122, %v1157
      %v1184 = vadd.f32 %v1125, %v1157
      %v1185 = vadd.f32 %v1130, %v1157
      %v1186 = vadd.f32 %v1133, %v1157
      %v1187 = vadd.f32 %v1138, %v1157
      %v1188 = vadd.f32 %v1141, %v1157
      %v1189 = vadd.f32 %v1146, %v1157
      %v1190 = vadd.f32 %v1149, %v1157
      %v1191 = vmax.f32 %v1159, 0.0
      %v1192 = vmax.f32 %v1160, 0.0
      %v1193 = vmax.f32 %v1161, 0.0
      %v1194 = vmax.f32 %v1162, 0.0
      %v1195 = vmax.f32 %v1163, 0.0
      %v1196 = vmax.f32 %v1164, 0.0
      %v1197 = vmax.f32 %v1165, 0.0
      %v1198 = vmax.f32 %v1166, 0.0
      %v1199 = vmax.f32 %v1167, 0.0
      %v1200 = vmax.f32 %v1168, 0.0
      %v1201 = vmax.f32 %v1169, 0.0
      %v1202 = vmax.f32 %v1170, 0.0
      %v1203 = vmax.f32 %v1171, 0.0
      %v1204 = vmax.f32 %v1172, 0.0
      %v1205 = vmax.f32 %v1173, 0.0
      %v1206 = vmax.f32 %v1174, 0.0
      %v1207 = vmax.f32 %v1175, 0.0
      %v1208 = vmax.f32 %v1176, 0.0
      %v1209 = vmax.f32 %v1177, 0.0
      %v1210 = vmax.f32 %v1178, 0.0
      %v1211 = vmax.f32 %v1179, 0.0
      %v1212 = vmax.f32 %v1180, 0.0
      %v1213 = vmax.f32 %v1181, 0.0
      %v1214 = vmax.f32 %v1182, 0.0
      %v1215 = vmax.f32 %v1183, 0.0
      %v1216 = vmax.f32 %v1184, 0.0
      %v1217 = vmax.f32 %v1185, 0.0
      %v1218 = vmax.f32 %v1186, 0.0
      %v1219 = vmax.f32 %v1187, 0.0
      %v1220 = vmax.f32 %v1188, 0.0
      %v1221 = vmax.f32 %v1189, 0.0
      %v1222 = vmax.f32 %v1190, 0.0
      %v1223 = vld [vmem:[%s5] sm:$0x1]
      %v1225 = vlaneseq
      %v1226 = vshrl.u32 %v1225, 7
      %v1227 = vsub.s32 0, %v1226
      %v1228 = vrot.slane %v1223, %v1227
      %v1230 = vmul.f32 %v1191, %v1228
      %v1231 = vmul.f32 %v1192, %v1228
      %v1232 = vmul.f32 %v1193, %v1228
      %v1233 = vmul.f32 %v1194, %v1228
      %v1234 = vmul.f32 %v1195, %v1228
      %v1235 = vmul.f32 %v1196, %v1228
      %v1236 = vmul.f32 %v1197, %v1228
      %v1237 = vmul.f32 %v1198, %v1228
      %v1238 = vmul.f32 %v1199, %v1228
      %v1239 = vmul.f32 %v1200, %v1228
      %v1240 = vmul.f32 %v1201, %v1228
      %v1241 = vmul.f32 %v1202, %v1228
      %v1242 = vmul.f32 %v1203, %v1228
      %v1243 = vmul.f32 %v1204, %v1228
      %v1244 = vmul.f32 %v1205, %v1228
      %v1245 = vmul.f32 %v1206, %v1228
      %v1246 = vmul.f32 %v1207, %v1228
      %v1247 = vmul.f32 %v1208, %v1228
      %v1248 = vmul.f32 %v1209, %v1228
      %v1249 = vmul.f32 %v1210, %v1228
      %v1250 = vmul.f32 %v1211, %v1228
      %v1251 = vmul.f32 %v1212, %v1228
      %v1252 = vmul.f32 %v1213, %v1228
      %v1253 = vmul.f32 %v1214, %v1228
      %v1254 = vmul.f32 %v1215, %v1228
      %v1255 = vmul.f32 %v1216, %v1228
      %v1256 = vmul.f32 %v1217, %v1228
      %v1257 = vmul.f32 %v1218, %v1228
      %v1258 = vmul.f32 %v1219, %v1228
      %v1259 = vmul.f32 %v1220, %v1228
      %v1260 = vmul.f32 %v1221, %v1228
      %v1261 = vmul.f32 %v1222, %v1228
      %vm1262 = vcmask 64512
      %v1263 = vsel %vm1262, %v1230, 0.0
      %1264 = vadd.xlane.f32.xlu0 %v1263
      %v1265 = vpop.xlane.xlu0 %1264
      %v1266 = vsel %vm1262, %v1231, 0.0
      %1267 = vadd.xlane.f32.xlu0 %v1266
      %v1268 = vpop.xlane.xlu0 %1267
      %v1269 = vsel %vm1262, %v1232, 0.0
      %1270 = vadd.xlane.f32.xlu0 %v1269
      %v1271 = vpop.xlane.xlu0 %1270
      %v1272 = vsel %vm1262, %v1233, 0.0
      %1273 = vadd.xlane.f32.xlu0 %v1272
      %v1274 = vpop.xlane.xlu0 %1273
      %v1275 = vsel %vm1262, %v1234, 0.0
      %1276 = vadd.xlane.f32.xlu0 %v1275
      %v1277 = vpop.xlane.xlu0 %1276
      %v1278 = vsel %vm1262, %v1235, 0.0
      %1279 = vadd.xlane.f32.xlu0 %v1278
      %v1280 = vpop.xlane.xlu0 %1279
      %v1281 = vsel %vm1262, %v1236, 0.0
      %1282 = vadd.xlane.f32.xlu0 %v1281
      %v1283 = vpop.xlane.xlu0 %1282
      %v1284 = vsel %vm1262, %v1237, 0.0
      %1285 = vadd.xlane.f32.xlu0 %v1284
      %v1286 = vpop.xlane.xlu0 %1285
      %v1287 = vsel %vm1262, %v1238, 0.0
      %1288 = vadd.xlane.f32.xlu0 %v1287
      %v1289 = vpop.xlane.xlu0 %1288
      %v1290 = vsel %vm1262, %v1239, 0.0
      %1291 = vadd.xlane.f32.xlu0 %v1290
      %v1292 = vpop.xlane.xlu0 %1291
      %v1293 = vsel %vm1262, %v1240, 0.0
      %1294 = vadd.xlane.f32.xlu0 %v1293
      %v1295 = vpop.xlane.xlu0 %1294
      %v1296 = vsel %vm1262, %v1241, 0.0
      %1297 = vadd.xlane.f32.xlu0 %v1296
      %v1298 = vpop.xlane.xlu0 %1297
      %v1299 = vsel %vm1262, %v1242, 0.0
      %1300 = vadd.xlane.f32.xlu0 %v1299
      %v1301 = vpop.xlane.xlu0 %1300
      %v1302 = vsel %vm1262, %v1243, 0.0
      %1303 = vadd.xlane.f32.xlu0 %v1302
      %v1304 = vpop.xlane.xlu0 %1303
      %v1305 = vsel %vm1262, %v1244, 0.0
      %1306 = vadd.xlane.f32.xlu0 %v1305
      %v1307 = vpop.xlane.xlu0 %1306
      %v1308 = vsel %vm1262, %v1245, 0.0
      %1309 = vadd.xlane.f32.xlu0 %v1308
      %v1310 = vpop.xlane.xlu0 %1309
      %v1311 = vsel %vm1262, %v1246, 0.0
      %1312 = vadd.xlane.f32.xlu0 %v1311
      %v1313 = vpop.xlane.xlu0 %1312
      %v1314 = vsel %vm1262, %v1247, 0.0
      %1315 = vadd.xlane.f32.xlu0 %v1314
      %v1316 = vpop.xlane.xlu0 %1315
      %v1317 = vsel %vm1262, %v1248, 0.0
      %1318 = vadd.xlane.f32.xlu0 %v1317
      %v1319 = vpop.xlane.xlu0 %1318
      %v1320 = vsel %vm1262, %v1249, 0.0
      %1321 = vadd.xlane.f32.xlu0 %v1320
      %v1322 = vpop.xlane.xlu0 %1321
      %v1323 = vsel %vm1262, %v1250, 0.0
      %1324 = vadd.xlane.f32.xlu0 %v1323
      %v1325 = vpop.xlane.xlu0 %1324
      %v1326 = vsel %vm1262, %v1251, 0.0
      %1327 = vadd.xlane.f32.xlu0 %v1326
      %v1328 = vpop.xlane.xlu0 %1327
      %v1329 = vsel %vm1262, %v1252, 0.0
      %1330 = vadd.xlane.f32.xlu0 %v1329
      %v1331 = vpop.xlane.xlu0 %1330
      %v1332 = vsel %vm1262, %v1253, 0.0
      %1333 = vadd.xlane.f32.xlu0 %v1332
      %v1334 = vpop.xlane.xlu0 %1333
      %v1335 = vsel %vm1262, %v1254, 0.0
      %1336 = vadd.xlane.f32.xlu0 %v1335
      %v1337 = vpop.xlane.xlu0 %1336
      %v1338 = vsel %vm1262, %v1255, 0.0
      %1339 = vadd.xlane.f32.xlu0 %v1338
      %v1340 = vpop.xlane.xlu0 %1339
      %v1341 = vsel %vm1262, %v1256, 0.0
      %1342 = vadd.xlane.f32.xlu0 %v1341
      %v1343 = vpop.xlane.xlu0 %1342
      %v1344 = vsel %vm1262, %v1257, 0.0
      %1345 = vadd.xlane.f32.xlu0 %v1344
      %v1346 = vpop.xlane.xlu0 %1345
      %v1347 = vsel %vm1262, %v1258, 0.0
      %1348 = vadd.xlane.f32.xlu0 %v1347
      %v1349 = vpop.xlane.xlu0 %1348
      %v1350 = vsel %vm1262, %v1259, 0.0
      %1351 = vadd.xlane.f32.xlu0 %v1350
      %v1352 = vpop.xlane.xlu0 %1351
      %v1353 = vsel %vm1262, %v1260, 0.0
      %1354 = vadd.xlane.f32.xlu0 %v1353
      %v1355 = vpop.xlane.xlu0 %1354
      %v1356 = vsel %vm1262, %v1261, 0.0
      %1357 = vadd.xlane.f32.xlu0 %v1356
      %v1358 = vpop.xlane.xlu0 %1357
      %v1359 = vld [vmem:[#allocation3] sm:$0x1]
      %v1361 = vlaneseq
      %v1362 = vshrl.u32 %v1361, 7
      %v1363 = vsub.s32 0, %v1362
      %v1364 = vrot.slane %v1359, %v1363
      %v1366 = vadd.f32 %v1265, %v1364
      %v1367 = vadd.f32 %v1268, %v1364
      %v1368 = vadd.f32 %v1271, %v1364
      %v1369 = vadd.f32 %v1274, %v1364
      %v1370 = vadd.f32 %v1277, %v1364
      %v1371 = vadd.f32 %v1280, %v1364
      %v1372 = vadd.f32 %v1283, %v1364
      %v1373 = vadd.f32 %v1286, %v1364
      %v1374 = vadd.f32 %v1289, %v1364
      %v1375 = vadd.f32 %v1292, %v1364
      %v1376 = vadd.f32 %v1295, %v1364
      %v1377 = vadd.f32 %v1298, %v1364
      %v1378 = vadd.f32 %v1301, %v1364
      %v1379 = vadd.f32 %v1304, %v1364
      %v1380 = vadd.f32 %v1307, %v1364
      %v1381 = vadd.f32 %v1310, %v1364
      %v1382 = vadd.f32 %v1313, %v1364
      %v1383 = vadd.f32 %v1316, %v1364
      %v1384 = vadd.f32 %v1319, %v1364
      %v1385 = vadd.f32 %v1322, %v1364
      %v1386 = vadd.f32 %v1325, %v1364
      %v1387 = vadd.f32 %v1328, %v1364
      %v1388 = vadd.f32 %v1331, %v1364
      %v1389 = vadd.f32 %v1334, %v1364
      %v1390 = vadd.f32 %v1337, %v1364
      %v1391 = vadd.f32 %v1340, %v1364
      %v1392 = vadd.f32 %v1343, %v1364
      %v1393 = vadd.f32 %v1346, %v1364
      %v1394 = vadd.f32 %v1349, %v1364
      %v1395 = vadd.f32 %v1352, %v1364
      %v1396 = vadd.f32 %v1355, %v1364
      %v1397 = vadd.f32 %v1358, %v1364
      %v1398 = vxor.u32 %v1366, 2147483648
      %v1399 = vxor.u32 %v1367, 2147483648
      %v1400 = vxor.u32 %v1368, 2147483648
      %v1401 = vxor.u32 %v1369, 2147483648
      %v1402 = vxor.u32 %v1370, 2147483648
      %v1403 = vxor.u32 %v1371, 2147483648
      %v1404 = vxor.u32 %v1372, 2147483648
      %v1405 = vxor.u32 %v1373, 2147483648
      %v1406 = vxor.u32 %v1374, 2147483648
      %v1407 = vxor.u32 %v1375, 2147483648
      %v1408 = vxor.u32 %v1376, 2147483648
      %v1409 = vxor.u32 %v1377, 2147483648
      %v1410 = vxor.u32 %v1378, 2147483648
      %v1411 = vxor.u32 %v1379, 2147483648
      %v1412 = vxor.u32 %v1380, 2147483648
      %v1413 = vxor.u32 %v1381, 2147483648
      %v1414 = vxor.u32 %v1382, 2147483648
      %v1415 = vxor.u32 %v1383, 2147483648
      %v1416 = vxor.u32 %v1384, 2147483648
      %v1417 = vxor.u32 %v1385, 2147483648
      %v1418 = vxor.u32 %v1386, 2147483648
      %v1419 = vxor.u32 %v1387, 2147483648
      %v1420 = vxor.u32 %v1388, 2147483648
      %v1421 = vxor.u32 %v1389, 2147483648
      %v1422 = vxor.u32 %v1390, 2147483648
      %v1423 = vxor.u32 %v1391, 2147483648
      %v1424 = vxor.u32 %v1392, 2147483648
      %v1425 = vxor.u32 %v1393, 2147483648
      %v1426 = vxor.u32 %v1394, 2147483648
      %v1427 = vxor.u32 %v1395, 2147483648
      %v1428 = vxor.u32 %v1396, 2147483648
      %v1429 = vxor.u32 %v1397, 2147483648
      %v1430 = vmul.f32 %v1398, 1.442695
      %v1431 = vpow.pop %v1430
      %v1432 = vmul.f32 %v1399, 1.442695
      %v1433 = vpow.pop %v1432
      %v1434 = vmul.f32 %v1400, 1.442695
      %v1435 = vpow.pop %v1434
      %v1436 = vmul.f32 %v1401, 1.442695
      %v1437 = vpow.pop %v1436
      %v1438 = vmul.f32 %v1402, 1.442695
      %v1439 = vpow.pop %v1438
      %v1440 = vmul.f32 %v1403, 1.442695
      %v1441 = vpow.pop %v1440
      %v1442 = vmul.f32 %v1404, 1.442695
      %v1443 = vpow.pop %v1442
      %v1444 = vmul.f32 %v1405, 1.442695
      %v1445 = vpow.pop %v1444
      %v1446 = vmul.f32 %v1406, 1.442695
      %v1447 = vpow.pop %v1446
      %v1448 = vmul.f32 %v1407, 1.442695
      %v1449 = vpow.pop %v1448
      %v1450 = vmul.f32 %v1408, 1.442695
      %v1451 = vpow.pop %v1450
      %v1452 = vmul.f32 %v1409, 1.442695
      %v1453 = vpow.pop %v1452
      %v1454 = vmul.f32 %v1410, 1.442695
      %v1455 = vpow.pop %v1454
      %v1456 = vmul.f32 %v1411, 1.442695
      %v1457 = vpow.pop %v1456
      %v1458 = vmul.f32 %v1412, 1.442695
      %v1459 = vpow.pop %v1458
      %v1460 = vmul.f32 %v1413, 1.442695
      %v1461 = vpow.pop %v1460
      %v1462 = vmul.f32 %v1414, 1.442695
      %v1463 = vpow.pop %v1462
      %v1464 = vmul.f32 %v1415, 1.442695
      %v1465 = vpow.pop %v1464
      %v1466 = vmul.f32 %v1416, 1.442695
      %v1467 = vpow.pop %v1466
      %v1468 = vmul.f32 %v1417, 1.442695
      %v1469 = vpow.pop %v1468
      %v1470 = vmul.f32 %v1418, 1.442695
      %v1471 = vpow.pop %v1470
      %v1472 = vmul.f32 %v1419, 1.442695
      %v1473 = vpow.pop %v1472
      %v1474 = vmul.f32 %v1420, 1.442695
      %v1475 = vpow.pop %v1474
      %v1476 = vmul.f32 %v1421, 1.442695
      %v1477 = vpow.pop %v1476
      %v1478 = vmul.f32 %v1422, 1.442695
      %v1479 = vpow.pop %v1478
      %v1480 = vmul.f32 %v1423, 1.442695
      %v1481 = vpow.pop %v1480
      %v1482 = vmul.f32 %v1424, 1.442695
      %v1483 = vpow.pop %v1482
      %v1484 = vmul.f32 %v1425, 1.442695
      %v1485 = vpow.pop %v1484
      %v1486 = vmul.f32 %v1426, 1.442695
      %v1487 = vpow.pop %v1486
      %v1488 = vmul.f32 %v1427, 1.442695
      %v1489 = vpow.pop %v1488
      %v1490 = vmul.f32 %v1428, 1.442695
      %v1491 = vpow.pop %v1490
      %v1492 = vmul.f32 %v1429, 1.442695
      %v1493 = vpow.pop %v1492
      %v1494 = vadd.f32 %v1431, 1.0
      %v1495 = vadd.f32 %v1433, 1.0
      %v1496 = vadd.f32 %v1435, 1.0
      %v1497 = vadd.f32 %v1437, 1.0
      %v1498 = vadd.f32 %v1439, 1.0
      %v1499 = vadd.f32 %v1441, 1.0
      %v1500 = vadd.f32 %v1443, 1.0
      %v1501 = vadd.f32 %v1445, 1.0
      %v1502 = vadd.f32 %v1447, 1.0
      %v1503 = vadd.f32 %v1449, 1.0
      %v1504 = vadd.f32 %v1451, 1.0
      %v1505 = vadd.f32 %v1453, 1.0
      %v1506 = vadd.f32 %v1455, 1.0
      %v1507 = vadd.f32 %v1457, 1.0
      %v1508 = vadd.f32 %v1459, 1.0
      %v1509 = vadd.f32 %v1461, 1.0
      %v1510 = vadd.f32 %v1463, 1.0
      %v1511 = vadd.f32 %v1465, 1.0
      %v1512 = vadd.f32 %v1467, 1.0
      %v1513 = vadd.f32 %v1469, 1.0
      %v1514 = vadd.f32 %v1471, 1.0
      %v1515 = vadd.f32 %v1473, 1.0
      %v1516 = vadd.f32 %v1475, 1.0
      %v1517 = vadd.f32 %v1477, 1.0
      %v1518 = vadd.f32 %v1479, 1.0
      %v1519 = vadd.f32 %v1481, 1.0
      %v1520 = vadd.f32 %v1483, 1.0
      %v1521 = vadd.f32 %v1485, 1.0
      %v1522 = vadd.f32 %v1487, 1.0
      %v1523 = vadd.f32 %v1489, 1.0
      %v1524 = vadd.f32 %v1491, 1.0
      %v1525 = vadd.f32 %v1493, 1.0
      %v1526 = vrcp.pop %v1494
      %v1527 = vmul.f32 1.0, %v1526
      %v1528 = vrcp.pop %v1495
      %v1529 = vmul.f32 1.0, %v1528
      %v1530 = vrcp.pop %v1496
      %v1531 = vmul.f32 1.0, %v1530
      %v1532 = vrcp.pop %v1497
      %v1533 = vmul.f32 1.0, %v1532
      %v1534 = vrcp.pop %v1498
      %v1535 = vmul.f32 1.0, %v1534
      %v1536 = vrcp.pop %v1499
      %v1537 = vmul.f32 1.0, %v1536
      %v1538 = vrcp.pop %v1500
      %v1539 = vmul.f32 1.0, %v1538
      %v1540 = vrcp.pop %v1501
      %v1541 = vmul.f32 1.0, %v1540
      %v1542 = vrcp.pop %v1502
      %v1543 = vmul.f32 1.0, %v1542
      %v1544 = vrcp.pop %v1503
      %v1545 = vmul.f32 1.0, %v1544
      %v1546 = vrcp.pop %v1504
      %v1547 = vmul.f32 1.0, %v1546
      %v1548 = vrcp.pop %v1505
      %v1549 = vmul.f32 1.0, %v1548
      %v1550 = vrcp.pop %v1506
      %v1551 = vmul.f32 1.0, %v1550
      %v1552 = vrcp.pop %v1507
      %v1553 = vmul.f32 1.0, %v1552
      %v1554 = vrcp.pop %v1508
      %v1555 = vmul.f32 1.0, %v1554
      %v1556 = vrcp.pop %v1509
      %v1557 = vmul.f32 1.0, %v1556
      %v1558 = vrcp.pop %v1510
      %v1559 = vmul.f32 1.0, %v1558
      %v1560 = vrcp.pop %v1511
      %v1561 = vmul.f32 1.0, %v1560
      %v1562 = vrcp.pop %v1512
      %v1563 = vmul.f32 1.0, %v1562
      %v1564 = vrcp.pop %v1513
      %v1565 = vmul.f32 1.0, %v1564
      %v1566 = vrcp.pop %v1514
      %v1567 = vmul.f32 1.0, %v1566
      %v1568 = vrcp.pop %v1515
      %v1569 = vmul.f32 1.0, %v1568
      %v1570 = vrcp.pop %v1516
      %v1571 = vmul.f32 1.0, %v1570
      %v1572 = vrcp.pop %v1517
      %v1573 = vmul.f32 1.0, %v1572
      %v1574 = vrcp.pop %v1518
      %v1575 = vmul.f32 1.0, %v1574
      %v1576 = vrcp.pop %v1519
      %v1577 = vmul.f32 1.0, %v1576
      %v1578 = vrcp.pop %v1520
      %v1579 = vmul.f32 1.0, %v1578
      %v1580 = vrcp.pop %v1521
      %v1581 = vmul.f32 1.0, %v1580
      %v1582 = vrcp.pop %v1522
      %v1583 = vmul.f32 1.0, %v1582
      %v1584 = vrcp.pop %v1523
      %v1585 = vmul.f32 1.0, %v1584
      %v1586 = vrcp.pop %v1524
      %v1587 = vmul.f32 1.0, %v1586
      %v1588 = vrcp.pop %v1525
      %v1589 = vmul.f32 1.0, %v1588
      %v1590 = vunpack.c.l.bf16 %v525
      %v1591 = vunpack.c.l.bf16 %v526
      %v1592 = vunpack.c.l.bf16 %v527
      %v1593 = vunpack.c.l.bf16 %v528
      %v1594 = vunpack.c.l.bf16 %v529
      %v1595 = vunpack.c.l.bf16 %v530
      %v1596 = vunpack.c.l.bf16 %v531
      %v1597 = vunpack.c.l.bf16 %v532
      %v1598 = vunpack.c.l.bf16 %v533
      %v1599 = vunpack.c.l.bf16 %v534
      %v1600 = vunpack.c.l.bf16 %v535
      %v1601 = vunpack.c.l.bf16 %v536
      %v1602 = vunpack.c.l.bf16 %v537
      %v1603 = vunpack.c.l.bf16 %v538
      %v1604 = vunpack.c.l.bf16 %v539
      %v1605 = vunpack.c.l.bf16 %v540
      %v1606 = vunpack.c.l.bf16 %v541
      %v1607 = vunpack.c.l.bf16 %v542
      %v1608 = vunpack.c.l.bf16 %v543
      %v1609 = vunpack.c.l.bf16 %v544
      %v1610 = vunpack.c.l.bf16 %v545
      %v1611 = vunpack.c.l.bf16 %v546
      %v1612 = vunpack.c.l.bf16 %v547
      %v1613 = vunpack.c.l.bf16 %v548
      %v1614 = vunpack.c.l.bf16 %v549
      %v1615 = vunpack.c.l.bf16 %v550
      %v1616 = vunpack.c.l.bf16 %v551
      %v1617 = vunpack.c.l.bf16 %v552
      %v1618 = vunpack.c.l.bf16 %v553
      %v1619 = vunpack.c.l.bf16 %v554
      %v1620 = vunpack.c.l.bf16 %v555
      %v1621 = vunpack.c.l.bf16 %v556
      %1623 = vset.pattern.permute.xlu0 0
      %1624 = vperm.xlu0 %1623, %v1527
      %v1625 = vpop.permute.xlu0 %1624
      %1628 = vset.pattern.permute.xlu0 0
      %1629 = vperm.xlu0 %1628, %v1529
      %v1630 = vpop.permute.xlu0 %1629
      %1633 = vset.pattern.permute.xlu0 0
      %1634 = vperm.xlu0 %1633, %v1531
      %v1635 = vpop.permute.xlu0 %1634
      %1638 = vset.pattern.permute.xlu0 0
      %1639 = vperm.xlu0 %1638, %v1533
      %v1640 = vpop.permute.xlu0 %1639
      %1643 = vset.pattern.permute.xlu0 0
      %1644 = vperm.xlu0 %1643, %v1535
      %v1645 = vpop.permute.xlu0 %1644
      %1648 = vset.pattern.permute.xlu0 0
      %1649 = vperm.xlu0 %1648, %v1537
      %v1650 = vpop.permute.xlu0 %1649
      %1653 = vset.pattern.permute.xlu0 0
      %1654 = vperm.xlu0 %1653, %v1539
      %v1655 = vpop.permute.xlu0 %1654
      %1658 = vset.pattern.permute.xlu0 0
      %1659 = vperm.xlu0 %1658, %v1541
      %v1660 = vpop.permute.xlu0 %1659
      %1663 = vset.pattern.permute.xlu0 0
      %1664 = vperm.xlu0 %1663, %v1543
      %v1665 = vpop.permute.xlu0 %1664
      %1668 = vset.pattern.permute.xlu0 0
      %1669 = vperm.xlu0 %1668, %v1545
      %v1670 = vpop.permute.xlu0 %1669
      %1673 = vset.pattern.permute.xlu0 0
      %1674 = vperm.xlu0 %1673, %v1547
      %v1675 = vpop.permute.xlu0 %1674
      %1678 = vset.pattern.permute.xlu0 0
      %1679 = vperm.xlu0 %1678, %v1549
      %v1680 = vpop.permute.xlu0 %1679
      %1683 = vset.pattern.permute.xlu0 0
      %1684 = vperm.xlu0 %1683, %v1551
      %v1685 = vpop.permute.xlu0 %1684
      %1688 = vset.pattern.permute.xlu0 0
      %1689 = vperm.xlu0 %1688, %v1553
      %v1690 = vpop.permute.xlu0 %1689
      %1693 = vset.pattern.permute.xlu0 0
      %1694 = vperm.xlu0 %1693, %v1555
      %v1695 = vpop.permute.xlu0 %1694
      %1698 = vset.pattern.permute.xlu0 0
      %1699 = vperm.xlu0 %1698, %v1557
      %v1700 = vpop.permute.xlu0 %1699
      %1703 = vset.pattern.permute.xlu0 0
      %1704 = vperm.xlu0 %1703, %v1559
      %v1705 = vpop.permute.xlu0 %1704
      %1708 = vset.pattern.permute.xlu0 0
      %1709 = vperm.xlu0 %1708, %v1561
      %v1710 = vpop.permute.xlu0 %1709
      %1713 = vset.pattern.permute.xlu0 0
      %1714 = vperm.xlu0 %1713, %v1563
      %v1715 = vpop.permute.xlu0 %1714
      %1718 = vset.pattern.permute.xlu0 0
      %1719 = vperm.xlu0 %1718, %v1565
      %v1720 = vpop.permute.xlu0 %1719
      %1723 = vset.pattern.permute.xlu0 0
      %1724 = vperm.xlu0 %1723, %v1567
      %v1725 = vpop.permute.xlu0 %1724
      %1728 = vset.pattern.permute.xlu0 0
      %1729 = vperm.xlu0 %1728, %v1569
      %v1730 = vpop.permute.xlu0 %1729
      %1733 = vset.pattern.permute.xlu0 0
      %1734 = vperm.xlu0 %1733, %v1571
      %v1735 = vpop.permute.xlu0 %1734
      %1738 = vset.pattern.permute.xlu0 0
      %1739 = vperm.xlu0 %1738, %v1573
      %v1740 = vpop.permute.xlu0 %1739
      %1743 = vset.pattern.permute.xlu0 0
      %1744 = vperm.xlu0 %1743, %v1575
      %v1745 = vpop.permute.xlu0 %1744
      %1748 = vset.pattern.permute.xlu0 0
      %1749 = vperm.xlu0 %1748, %v1577
      %v1750 = vpop.permute.xlu0 %1749
      %1753 = vset.pattern.permute.xlu0 0
      %1754 = vperm.xlu0 %1753, %v1579
      %v1755 = vpop.permute.xlu0 %1754
      %1758 = vset.pattern.permute.xlu0 0
      %1759 = vperm.xlu0 %1758, %v1581
      %v1760 = vpop.permute.xlu0 %1759
      %1763 = vset.pattern.permute.xlu0 0
      %1764 = vperm.xlu0 %1763, %v1583
      %v1765 = vpop.permute.xlu0 %1764
      %1768 = vset.pattern.permute.xlu0 0
      %1769 = vperm.xlu0 %1768, %v1585
      %v1770 = vpop.permute.xlu0 %1769
      %1773 = vset.pattern.permute.xlu0 0
      %1774 = vperm.xlu0 %1773, %v1587
      %v1775 = vpop.permute.xlu0 %1774
      %1778 = vset.pattern.permute.xlu0 0
      %1779 = vperm.xlu0 %1778, %v1589
      %v1780 = vpop.permute.xlu0 %1779
      %v1782 = vmul.f32 %v1590, %v1625
      %v1783 = vmul.f32 %v1591, %v1630
      %v1784 = vmul.f32 %v1592, %v1635
      %v1785 = vmul.f32 %v1593, %v1640
      %v1786 = vmul.f32 %v1594, %v1645
      %v1787 = vmul.f32 %v1595, %v1650
      %v1788 = vmul.f32 %v1596, %v1655
      %v1789 = vmul.f32 %v1597, %v1660
      %v1790 = vmul.f32 %v1598, %v1665
      %v1791 = vmul.f32 %v1599, %v1670
      %v1792 = vmul.f32 %v1600, %v1675
      %v1793 = vmul.f32 %v1601, %v1680
      %v1794 = vmul.f32 %v1602, %v1685
      %v1795 = vmul.f32 %v1603, %v1690
      %v1796 = vmul.f32 %v1604, %v1695
      %v1797 = vmul.f32 %v1605, %v1700
      %v1798 = vmul.f32 %v1606, %v1705
      %v1799 = vmul.f32 %v1607, %v1710
      %v1800 = vmul.f32 %v1608, %v1715
      %v1801 = vmul.f32 %v1609, %v1720
      %v1802 = vmul.f32 %v1610, %v1725
      %v1803 = vmul.f32 %v1611, %v1730
      %v1804 = vmul.f32 %v1612, %v1735
      %v1805 = vmul.f32 %v1613, %v1740
      %v1806 = vmul.f32 %v1614, %v1745
      %v1807 = vmul.f32 %v1615, %v1750
      %v1808 = vmul.f32 %v1616, %v1755
      %v1809 = vmul.f32 %v1617, %v1760
      %v1810 = vmul.f32 %v1618, %v1765
      %v1811 = vmul.f32 %v1619, %v1770
      %v1812 = vmul.f32 %v1620, %v1775
      %v1813 = vmul.f32 %v1621, %v1780
      %v1814 = vpack.c.bf16 %v1783, %v1782
      %v1815 = vpack.c.bf16 %v1785, %v1784
      %v1816 = vpack.c.bf16 %v1787, %v1786
      %v1817 = vpack.c.bf16 %v1789, %v1788
      %v1818 = vpack.c.bf16 %v1791, %v1790
      %v1819 = vpack.c.bf16 %v1793, %v1792
      %v1820 = vpack.c.bf16 %v1795, %v1794
      %v1821 = vpack.c.bf16 %v1797, %v1796
      %v1822 = vpack.c.bf16 %v1799, %v1798
      %v1823 = vpack.c.bf16 %v1801, %v1800
      %v1824 = vpack.c.bf16 %v1803, %v1802
      %v1825 = vpack.c.bf16 %v1805, %v1804
      %v1826 = vpack.c.bf16 %v1807, %v1806
      %v1827 = vpack.c.bf16 %v1809, %v1808
      %v1828 = vpack.c.bf16 %v1811, %v1810
      %v1829 = vpack.c.bf16 %v1813, %v1812
      %vm1830 = vsmask.f32 256
      %vm1831 = vsmask.f32 4368
      %vm1832 = vmor %vm1830, %vm1831
      %v1834 = vshrl.u32 %v493, 16
      %v1836 = vrot.slane %v1834, 7
      %v1837 = vshll.u32 %v493, 16
      %v1839 = vor.u32 %v1836, %v1837
      %v1840 = vrot.slane %v1836, 4
      %v1842 = vshrl.u32 %v494, 16
      %v1844 = vrot.slane %v1842, 7
      %v1845 = vshll.u32 %v494, 16
      %v1847 = vor.u32 %v1844, %v1845
      %v1848 = vsel %vm1832, %v1840, %v1847
      %v1849 = vrot.slane %v1844, 4
      %v1851 = vshrl.u32 %v495, 16
      %v1853 = vrot.slane %v1851, 7
      %v1854 = vshll.u32 %v495, 16
      %v1856 = vor.u32 %v1853, %v1854
      %v1857 = vrot.slane %v1853, 4
      %v1859 = vshrl.u32 %v496, 16
      %v1861 = vrot.slane %v1859, 7
      %v1862 = vshll.u32 %v496, 16
      %v1864 = vor.u32 %v1861, %v1862
      %v1865 = vsel %vm1832, %v1857, %v1864
      %v1866 = vrot.slane %v1861, 4
      %v1868 = vshrl.u32 %v497, 16
      %v1870 = vrot.slane %v1868, 7
      %v1871 = vshll.u32 %v497, 16
      %v1873 = vor.u32 %v1870, %v1871
      %v1874 = vrot.slane %v1870, 4
      %v1876 = vshrl.u32 %v498, 16
      %v1878 = vrot.slane %v1876, 7
      %v1879 = vshll.u32 %v498, 16
      %v1881 = vor.u32 %v1878, %v1879
      %v1882 = vsel %vm1832, %v1874, %v1881
      %v1883 = vrot.slane %v1878, 4
      %v1885 = vshrl.u32 %v499, 16
      %v1887 = vrot.slane %v1885, 7
      %v1888 = vshll.u32 %v499, 16
      %v1890 = vor.u32 %v1887, %v1888
      %v1891 = vrot.slane %v1887, 4
      %v1893 = vshrl.u32 %v500, 16
      %v1895 = vrot.slane %v1893, 7
      %v1896 = vshll.u32 %v500, 16
      %v1898 = vor.u32 %v1895, %v1896
      %v1899 = vsel %vm1832, %v1891, %v1898
      %v1900 = vrot.slane %v1895, 4
      %v1902 = vshrl.u32 %v501, 16
      %v1904 = vrot.slane %v1902, 7
      %v1905 = vshll.u32 %v501, 16
      %v1907 = vor.u32 %v1904, %v1905
      %v1908 = vrot.slane %v1904, 4
      %v1910 = vshrl.u32 %v502, 16
      %v1912 = vrot.slane %v1910, 7
      %v1913 = vshll.u32 %v502, 16
      %v1915 = vor.u32 %v1912, %v1913
      %v1916 = vsel %vm1832, %v1908, %v1915
      %v1917 = vrot.slane %v1912, 4
      %v1919 = vshrl.u32 %v503, 16
      %v1921 = vrot.slane %v1919, 7
      %v1922 = vshll.u32 %v503, 16
      %v1924 = vor.u32 %v1921, %v1922
      %v1925 = vrot.slane %v1921, 4
      %v1927 = vshrl.u32 %v504, 16
      %v1929 = vrot.slane %v1927, 7
      %v1930 = vshll.u32 %v504, 16
      %v1932 = vor.u32 %v1929, %v1930
      %v1933 = vsel %vm1832, %v1925, %v1932
      %v1934 = vrot.slane %v1929, 4
      %v1936 = vshrl.u32 %v505, 16
      %v1938 = vrot.slane %v1936, 7
      %v1939 = vshll.u32 %v505, 16
      %v1941 = vor.u32 %v1938, %v1939
      %v1942 = vrot.slane %v1938, 4
      %v1944 = vshrl.u32 %v506, 16
      %v1946 = vrot.slane %v1944, 7
      %v1947 = vshll.u32 %v506, 16
      %v1949 = vor.u32 %v1946, %v1947
      %v1950 = vsel %vm1832, %v1942, %v1949
      %v1951 = vrot.slane %v1946, 4
      %v1953 = vshrl.u32 %v507, 16
      %v1955 = vrot.slane %v1953, 7
      %v1956 = vshll.u32 %v507, 16
      %v1958 = vor.u32 %v1955, %v1956
      %v1959 = vrot.slane %v1955, 4
      %v1961 = vshrl.u32 %v508, 16
      %v1963 = vrot.slane %v1961, 7
      %v1964 = vshll.u32 %v508, 16
      %v1966 = vor.u32 %v1963, %v1964
      %v1967 = vsel %vm1832, %v1959, %v1966
      %v1968 = vrot.slane %v1963, 4
      %v1970 = vshrl.u32 %v509, 16
      %v1972 = vrot.slane %v1970, 7
      %v1973 = vshll.u32 %v509, 16
      %v1975 = vor.u32 %v1972, %v1973
      %v1976 = vrot.slane %v1972, 4
      %v1978 = vshrl.u32 %v510, 16
      %v1980 = vrot.slane %v1978, 7
      %v1981 = vshll.u32 %v510, 16
      %v1983 = vor.u32 %v1980, %v1981
      %v1984 = vsel %vm1832, %v1976, %v1983
      %v1985 = vrot.slane %v1980, 4
      %v1987 = vshrl.u32 %v511, 16
      %v1989 = vrot.slane %v1987, 7
      %v1990 = vshll.u32 %v511, 16
      %v1992 = vor.u32 %v1989, %v1990
      %v1993 = vrot.slane %v1989, 4
      %v1995 = vshrl.u32 %v512, 16
      %v1997 = vrot.slane %v1995, 7
      %v1998 = vshll.u32 %v512, 16
      %v2000 = vor.u32 %v1997, %v1998
      %v2001 = vsel %vm1832, %v1993, %v2000
      %v2002 = vrot.slane %v1997, 4
      %v2004 = vshrl.u32 %v513, 16
      %v2006 = vrot.slane %v2004, 7
      %v2007 = vshll.u32 %v513, 16
      %v2009 = vor.u32 %v2006, %v2007
      %v2010 = vrot.slane %v2006, 4
      %v2012 = vshrl.u32 %v514, 16
      %v2014 = vrot.slane %v2012, 7
      %v2015 = vshll.u32 %v514, 16
      %v2017 = vor.u32 %v2014, %v2015
      %v2018 = vsel %vm1832, %v2010, %v2017
      %v2019 = vrot.slane %v2014, 4
      %v2021 = vshrl.u32 %v515, 16
      %v2023 = vrot.slane %v2021, 7
      %v2024 = vshll.u32 %v515, 16
      %v2026 = vor.u32 %v2023, %v2024
      %v2027 = vrot.slane %v2023, 4
      %v2029 = vshrl.u32 %v516, 16
      %v2031 = vrot.slane %v2029, 7
      %v2032 = vshll.u32 %v516, 16
      %v2034 = vor.u32 %v2031, %v2032
      %v2035 = vsel %vm1832, %v2027, %v2034
      %v2036 = vrot.slane %v2031, 4
      %v2038 = vshrl.u32 %v517, 16
      %v2040 = vrot.slane %v2038, 7
      %v2041 = vshll.u32 %v517, 16
      %v2043 = vor.u32 %v2040, %v2041
      %v2044 = vrot.slane %v2040, 4
      %v2046 = vshrl.u32 %v518, 16
      %v2048 = vrot.slane %v2046, 7
      %v2049 = vshll.u32 %v518, 16
      %v2051 = vor.u32 %v2048, %v2049
      %v2052 = vsel %vm1832, %v2044, %v2051
      %v2053 = vrot.slane %v2048, 4
      %v2055 = vshrl.u32 %v519, 16
      %v2057 = vrot.slane %v2055, 7
      %v2058 = vshll.u32 %v519, 16
      %v2060 = vor.u32 %v2057, %v2058
      %v2061 = vrot.slane %v2057, 4
      %v2063 = vshrl.u32 %v520, 16
      %v2065 = vrot.slane %v2063, 7
      %v2066 = vshll.u32 %v520, 16
      %v2068 = vor.u32 %v2065, %v2066
      %v2069 = vsel %vm1832, %v2061, %v2068
      %v2070 = vrot.slane %v2065, 4
      %v2072 = vshrl.u32 %v521, 16
      %v2074 = vrot.slane %v2072, 7
      %v2075 = vshll.u32 %v521, 16
      %v2077 = vor.u32 %v2074, %v2075
      %v2078 = vrot.slane %v2074, 4
      %v2080 = vshrl.u32 %v522, 16
      %v2082 = vrot.slane %v2080, 7
      %v2083 = vshll.u32 %v522, 16
      %v2085 = vor.u32 %v2082, %v2083
      %v2086 = vsel %vm1832, %v2078, %v2085
      %v2087 = vrot.slane %v2082, 4
      %v2089 = vshrl.u32 %v523, 16
      %v2091 = vrot.slane %v2089, 7
      %v2092 = vshll.u32 %v523, 16
      %v2094 = vor.u32 %v2091, %v2092
      %v2095 = vrot.slane %v2091, 4
      %v2097 = vshrl.u32 %v524, 16
      %v2099 = vrot.slane %v2097, 7
      %v2100 = vshll.u32 %v524, 16
      %v2102 = vor.u32 %v2099, %v2100
      %v2103 = vsel %vm1832, %v2095, %v2102
      %v2104 = vrot.slane %v2099, 4
      %s2153 = scalar_lea.vmem [#allocation2], 12
      %vm2154 = vcmask 125952
      %vm2155 = vsmask.f32 7938
      %vm2156 = vmand %vm2154, %vm2155
      %v2157 = vld [vmem:[%s2153] sm:$0xf]
      %v2158 = vsel %vm2156, %v1839, %v2157
      %2159 = vst [vmem:[%s2153] sm:$0xf] %v2158
      %2160 = vst.msk [vmem:[%s2153 + $0x4] sm:$0xf] %vm437, %v1848
      %vm2161 = vcmask 122880
      %vm2162 = vmand %vm2161, %vm1830
      %v2163 = vld [vmem:[%s2153 + $0x8] sm:$0x1]
      %v2164 = vsel %vm2162, %v1849, %v2163
      %2165 = vst [vmem:[%s2153 + $0x8] sm:$0x1] %v2164
      %v2166 = vld [vmem:[%s2153 + $0xc] sm:$0xf]
      %v2167 = vsel %vm2156, %v1856, %v2166
      %2168 = vst [vmem:[%s2153 + $0xc] sm:$0xf] %v2167
      %2169 = vst.msk [vmem:[%s2153 + $0x10] sm:$0xf] %vm437, %v1865
      %v2170 = vld [vmem:[%s2153 + $0x14] sm:$0x1]
      %v2171 = vsel %vm2162, %v1866, %v2170
      %2172 = vst [vmem:[%s2153 + $0x14] sm:$0x1] %v2171
      %v2173 = vld [vmem:[%s2153 + $0x18] sm:$0xf]
      %v2174 = vsel %vm2156, %v1873, %v2173
      %2175 = vst [vmem:[%s2153 + $0x18] sm:$0xf] %v2174
      %2176 = vst.msk [vmem:[%s2153 + $0x1c] sm:$0xf] %vm437, %v1882
      %v2177 = vld [vmem:[%s2153 + $0x20] sm:$0x1]
      %v2178 = vsel %vm2162, %v1883, %v2177
      %2179 = vst [vmem:[%s2153 + $0x20] sm:$0x1] %v2178
      %v2180 = vld [vmem:[%s2153 + $0x24] sm:$0xf]
      %v2181 = vsel %vm2156, %v1890, %v2180
      %2182 = vst [vmem:[%s2153 + $0x24] sm:$0xf] %v2181
      %2183 = vst.msk [vmem:[%s2153 + $0x28] sm:$0xf] %vm437, %v1899
      %v2184 = vld [vmem:[%s2153 + $0x2c] sm:$0x1]
      %v2185 = vsel %vm2162, %v1900, %v2184
      %2186 = vst [vmem:[%s2153 + $0x2c] sm:$0x1] %v2185
      %v2187 = vld [vmem:[%s2153 + $0x30] sm:$0xf]
      %v2188 = vsel %vm2156, %v1907, %v2187
      %2189 = vst [vmem:[%s2153 + $0x30] sm:$0xf] %v2188
      %2190 = vst.msk [vmem:[%s2153 + $0x34] sm:$0xf] %vm437, %v1916
      %v2191 = vld [vmem:[%s2153 + $0x38] sm:$0x1]
      %v2192 = vsel %vm2162, %v1917, %v2191
      %2193 = vst [vmem:[%s2153 + $0x38] sm:$0x1] %v2192
      %v2194 = vld [vmem:[%s2153 + $0x3c] sm:$0xf]
      %v2195 = vsel %vm2156, %v1924, %v2194
      %2196 = vst [vmem:[%s2153 + $0x3c] sm:$0xf] %v2195
      %2197 = vst.msk [vmem:[%s2153 + $0x40] sm:$0xf] %vm437, %v1933
      %v2198 = vld [vmem:[%s2153 + $0x44] sm:$0x1]
      %v2199 = vsel %vm2162, %v1934, %v2198
      %2200 = vst [vmem:[%s2153 + $0x44] sm:$0x1] %v2199
      %v2201 = vld [vmem:[%s2153 + $0x48] sm:$0xf]
      %v2202 = vsel %vm2156, %v1941, %v2201
      %2203 = vst [vmem:[%s2153 + $0x48] sm:$0xf] %v2202
      %2204 = vst.msk [vmem:[%s2153 + $0x4c] sm:$0xf] %vm437, %v1950
      %v2205 = vld [vmem:[%s2153 + $0x50] sm:$0x1]
      %v2206 = vsel %vm2162, %v1951, %v2205
      %2207 = vst [vmem:[%s2153 + $0x50] sm:$0x1] %v2206
      %v2208 = vld [vmem:[%s2153 + $0x54] sm:$0xf]
      %v2209 = vsel %vm2156, %v1958, %v2208
      %2210 = vst [vmem:[%s2153 + $0x54] sm:$0xf] %v2209
      %2211 = vst.msk [vmem:[%s2153 + $0x58] sm:$0xf] %vm437, %v1967
      %v2212 = vld [vmem:[%s2153 + $0x5c] sm:$0x1]
      %v2213 = vsel %vm2162, %v1968, %v2212
      %2214 = vst [vmem:[%s2153 + $0x5c] sm:$0x1] %v2213
      %v2215 = vld [vmem:[%s2153 + $0x60] sm:$0xf]
      %v2216 = vsel %vm2156, %v1975, %v2215
      %2217 = vst [vmem:[%s2153 + $0x60] sm:$0xf] %v2216
      %2218 = vst.msk [vmem:[%s2153 + $0x64] sm:$0xf] %vm437, %v1984
      %v2219 = vld [vmem:[%s2153 + $0x68] sm:$0x1]
      %v2220 = vsel %vm2162, %v1985, %v2219
      %2221 = vst [vmem:[%s2153 + $0x68] sm:$0x1] %v2220
      %v2222 = vld [vmem:[%s2153 + $0x6c] sm:$0xf]
      %v2223 = vsel %vm2156, %v1992, %v2222
      %2224 = vst [vmem:[%s2153 + $0x6c] sm:$0xf] %v2223
      %2225 = vst.msk [vmem:[%s2153 + $0x70] sm:$0xf] %vm437, %v2001
      %v2226 = vld [vmem:[%s2153 + $0x74] sm:$0x1]
      %v2227 = vsel %vm2162, %v2002, %v2226
      %2228 = vst [vmem:[%s2153 + $0x74] sm:$0x1] %v2227
      %v2229 = vld [vmem:[%s2153 + $0x78] sm:$0xf]
      %v2230 = vsel %vm2156, %v2009, %v2229
      %2231 = vst [vmem:[%s2153 + $0x78] sm:$0xf] %v2230
      %2232 = vst.msk [vmem:[%s2153 + $0x7c] sm:$0xf] %vm437, %v2018
      %v2233 = vld [vmem:[%s2153 + $0x80] sm:$0x1]
      %v2234 = vsel %vm2162, %v2019, %v2233
      %2235 = vst [vmem:[%s2153 + $0x80] sm:$0x1] %v2234
      %v2236 = vld [vmem:[%s2153 + $0x84] sm:$0xf]
      %v2237 = vsel %vm2156, %v2026, %v2236
      %2238 = vst [vmem:[%s2153 + $0x84] sm:$0xf] %v2237
      %2239 = vst.msk [vmem:[%s2153 + $0x88] sm:$0xf] %vm437, %v2035
      %v2240 = vld [vmem:[%s2153 + $0x8c] sm:$0x1]
      %v2241 = vsel %vm2162, %v2036, %v2240
      %2242 = vst [vmem:[%s2153 + $0x8c] sm:$0x1] %v2241
      %v2243 = vld [vmem:[%s2153 + $0x90] sm:$0xf]
      %v2244 = vsel %vm2156, %v2043, %v2243
      %2245 = vst [vmem:[%s2153 + $0x90] sm:$0xf] %v2244
      %2246 = vst.msk [vmem:[%s2153 + $0x94] sm:$0xf] %vm437, %v2052
      %v2247 = vld [vmem:[%s2153 + $0x98] sm:$0x1]
      %v2248 = vsel %vm2162, %v2053, %v2247
      %2249 = vst [vmem:[%s2153 + $0x98] sm:$0x1] %v2248
      %v2250 = vld [vmem:[%s2153 + $0x9c] sm:$0xf]
      %v2251 = vsel %vm2156, %v2060, %v2250
      %2252 = vst [vmem:[%s2153 + $0x9c] sm:$0xf] %v2251
      %2253 = vst.msk [vmem:[%s2153 + $0xa0] sm:$0xf] %vm437, %v2069
      %v2254 = vld [vmem:[%s2153 + $0xa4] sm:$0x1]
      %v2255 = vsel %vm2162, %v2070, %v2254
      %2256 = vst [vmem:[%s2153 + $0xa4] sm:$0x1] %v2255
      %v2257 = vld [vmem:[%s2153 + $0xa8] sm:$0xf]
      %v2258 = vsel %vm2156, %v2077, %v2257
      %2259 = vst [vmem:[%s2153 + $0xa8] sm:$0xf] %v2258
      %2260 = vst.msk [vmem:[%s2153 + $0xac] sm:$0xf] %vm437, %v2086
      %v2261 = vld [vmem:[%s2153 + $0xb0] sm:$0x1]
      %v2262 = vsel %vm2162, %v2087, %v2261
      %2263 = vst [vmem:[%s2153 + $0xb0] sm:$0x1] %v2262
      %v2264 = vld [vmem:[%s2153 + $0xb4] sm:$0xf]
      %v2265 = vsel %vm2156, %v2094, %v2264
      %2266 = vst [vmem:[%s2153 + $0xb4] sm:$0xf] %v2265
      %2267 = vst.msk [vmem:[%s2153 + $0xb8] sm:$0xf] %vm437, %v2103
      %v2268 = vld [vmem:[%s2153 + $0xbc] sm:$0x1]
      %v2269 = vsel %vm2162, %v2104, %v2268
      %2270 = vst [vmem:[%s2153 + $0xbc] sm:$0x1] %v2269
      %v2271 = vld [vmem:[#allocation2] sm:$0xf]
      %v2272 = vld [vmem:[#allocation2 + $0x4] sm:$0xf]
      %v2273 = vld [vmem:[#allocation2 + $0x8] sm:$0x1]
      %v2274 = vld [vmem:[#allocation2 + $0xc] sm:$0xf]
      %v2275 = vld [vmem:[#allocation2 + $0x10] sm:$0xf]
      %v2276 = vld [vmem:[#allocation2 + $0x14] sm:$0x1]
      %v2277 = vld [vmem:[#allocation2 + $0x18] sm:$0xf]
      %v2278 = vld [vmem:[#allocation2 + $0x1c] sm:$0xf]
      %v2279 = vld [vmem:[#allocation2 + $0x20] sm:$0x1]
      %v2280 = vld [vmem:[#allocation2 + $0x24] sm:$0xf]
      %v2281 = vld [vmem:[#allocation2 + $0x28] sm:$0xf]
      %v2282 = vld [vmem:[#allocation2 + $0x2c] sm:$0x1]
      %v2283 = vld [vmem:[#allocation2 + $0x30] sm:$0xf]
      %v2284 = vld [vmem:[#allocation2 + $0x34] sm:$0xf]
      %v2285 = vld [vmem:[#allocation2 + $0x38] sm:$0x1]
      %v2286 = vld [vmem:[#allocation2 + $0x3c] sm:$0xf]
      %v2287 = vld [vmem:[#allocation2 + $0x40] sm:$0xf]
      %v2288 = vld [vmem:[#allocation2 + $0x44] sm:$0x1]
      %v2289 = vld [vmem:[#allocation2 + $0x48] sm:$0xf]
      %v2290 = vld [vmem:[#allocation2 + $0x4c] sm:$0xf]
      %v2291 = vld [vmem:[#allocation2 + $0x50] sm:$0x1]
      %v2292 = vld [vmem:[#allocation2 + $0x54] sm:$0xf]
      %v2293 = vld [vmem:[#allocation2 + $0x58] sm:$0xf]
      %v2294 = vld [vmem:[#allocation2 + $0x5c] sm:$0x1]
      %v2295 = vld [vmem:[#allocation2 + $0x60] sm:$0xf]
      %v2296 = vld [vmem:[#allocation2 + $0x64] sm:$0xf]
      %v2297 = vld [vmem:[#allocation2 + $0x68] sm:$0x1]
      %v2298 = vld [vmem:[#allocation2 + $0x6c] sm:$0xf]
      %v2299 = vld [vmem:[#allocation2 + $0x70] sm:$0xf]
      %v2300 = vld [vmem:[#allocation2 + $0x74] sm:$0x1]
      %v2301 = vld [vmem:[#allocation2 + $0x78] sm:$0xf]
      %v2302 = vld [vmem:[#allocation2 + $0x7c] sm:$0xf]
      %v2303 = vld [vmem:[#allocation2 + $0x80] sm:$0x1]
      %v2304 = vld [vmem:[#allocation2 + $0x84] sm:$0xf]
      %v2305 = vld [vmem:[#allocation2 + $0x88] sm:$0xf]
      %v2306 = vld [vmem:[#allocation2 + $0x8c] sm:$0x1]
      %v2307 = vld [vmem:[#allocation2 + $0x90] sm:$0xf]
      %v2308 = vld [vmem:[#allocation2 + $0x94] sm:$0xf]
      %v2309 = vld [vmem:[#allocation2 + $0x98] sm:$0x1]
      %v2310 = vld [vmem:[#allocation2 + $0x9c] sm:$0xf]
      %v2311 = vld [vmem:[#allocation2 + $0xa0] sm:$0xf]
      %v2312 = vld [vmem:[#allocation2 + $0xa4] sm:$0x1]
      %v2313 = vld [vmem:[#allocation2 + $0xa8] sm:$0xf]
      %v2314 = vld [vmem:[#allocation2 + $0xac] sm:$0xf]
      %v2315 = vld [vmem:[#allocation2 + $0xb0] sm:$0x1]
      %v2316 = vld [vmem:[#allocation2 + $0xb4] sm:$0xf]
      %v2317 = vld [vmem:[#allocation2 + $0xb8] sm:$0xf]
      %v2318 = vld [vmem:[#allocation2 + $0xbc] sm:$0x1]
      %v2319 = vld [vmem:[#allocation2 + $0xc0] sm:$0xf]
      %v2320 = vld [vmem:[#allocation2 + $0xc4] sm:$0xf]
      %v2321 = vld [vmem:[#allocation2 + $0xc8] sm:$0x1]
      %v2322 = vld [vmem:[#allocation2 + $0xcc] sm:$0xf]
      %v2323 = vld [vmem:[#allocation2 + $0xd0] sm:$0xf]
      %v2324 = vld [vmem:[#allocation2 + $0xd4] sm:$0x1]
      %v2357 = vunpack.c.l.b16 %v2271
      %v2358 = vunpack.c.l.b16 %v2272
      %v2359 = vunpack.c.l.b16 %v2274
      %v2360 = vunpack.c.l.b16 %v2275
      %v2361 = vunpack.c.l.b16 %v2277
      %v2362 = vunpack.c.l.b16 %v2278
      %v2363 = vunpack.c.l.b16 %v2280
      %v2364 = vunpack.c.l.b16 %v2281
      %v2365 = vunpack.c.l.b16 %v2283
      %v2366 = vunpack.c.l.b16 %v2284
      %v2367 = vunpack.c.l.b16 %v2286
      %v2368 = vunpack.c.l.b16 %v2287
      %v2369 = vunpack.c.l.b16 %v2289
      %v2370 = vunpack.c.l.b16 %v2290
      %v2371 = vunpack.c.l.b16 %v2292
      %v2372 = vunpack.c.l.b16 %v2293
      %v2373 = vunpack.c.l.b16 %v2295
      %v2374 = vunpack.c.l.b16 %v2296
      %v2375 = vunpack.c.l.b16 %v2298
      %v2376 = vunpack.c.l.b16 %v2299
      %v2377 = vunpack.c.l.b16 %v2301
      %v2378 = vunpack.c.l.b16 %v2302
      %v2379 = vunpack.c.l.b16 %v2304
      %v2380 = vunpack.c.l.b16 %v2305
      %v2381 = vunpack.c.l.b16 %v2307
      %v2382 = vunpack.c.l.b16 %v2308
      %v2383 = vunpack.c.l.b16 %v2310
      %v2384 = vunpack.c.l.b16 %v2311
      %v2385 = vunpack.c.l.b16 %v2313
      %v2386 = vunpack.c.l.b16 %v2314
      %v2387 = vunpack.c.l.b16 %v2316
      %v2388 = vunpack.c.l.b16 %v2317
      %v2389 = vpack.c.b16 %v2358, %v2357
      %v2390 = vpack.c.b16 %v2360, %v2359
      %v2391 = vpack.c.b16 %v2362, %v2361
      %v2392 = vpack.c.b16 %v2364, %v2363
      %v2393 = vpack.c.b16 %v2366, %v2365
      %v2394 = vpack.c.b16 %v2368, %v2367
      %v2395 = vpack.c.b16 %v2370, %v2369
      %v2396 = vpack.c.b16 %v2372, %v2371
      %v2397 = vpack.c.b16 %v2374, %v2373
      %v2398 = vpack.c.b16 %v2376, %v2375
      %v2399 = vpack.c.b16 %v2378, %v2377
      %v2400 = vpack.c.b16 %v2380, %v2379
      %v2401 = vpack.c.b16 %v2382, %v2381
      %v2402 = vpack.c.b16 %v2384, %v2383
      %v2403 = vpack.c.b16 %v2386, %v2385
      %v2404 = vpack.c.b16 %v2388, %v2387
      %v2421 = vunpack.c.l.b16 %v2273
      %v2422 = vunpack.c.l.b16 %v2276
      %v2423 = vunpack.c.l.b16 %v2279
      %v2424 = vunpack.c.l.b16 %v2282
      %v2425 = vunpack.c.l.b16 %v2285
      %v2426 = vunpack.c.l.b16 %v2288
      %v2427 = vunpack.c.l.b16 %v2291
      %v2428 = vunpack.c.l.b16 %v2294
      %v2429 = vunpack.c.l.b16 %v2297
      %v2430 = vunpack.c.l.b16 %v2300
      %v2431 = vunpack.c.l.b16 %v2303
      %v2432 = vunpack.c.l.b16 %v2306
      %v2433 = vunpack.c.l.b16 %v2309
      %v2434 = vunpack.c.l.b16 %v2312
      %v2435 = vunpack.c.l.b16 %v2315
      %v2436 = vunpack.c.l.b16 %v2318
      %v2437 = vpack.c.b16 %v2421, %v2421
      %v2438 = vpack.c.b16 %v2422, %v2422
      %v2439 = vpack.c.b16 %v2423, %v2423
      %v2440 = vpack.c.b16 %v2424, %v2424
      %v2441 = vpack.c.b16 %v2425, %v2425
      %v2442 = vpack.c.b16 %v2426, %v2426
      %v2443 = vpack.c.b16 %v2427, %v2427
      %v2444 = vpack.c.b16 %v2428, %v2428
      %v2445 = vpack.c.b16 %v2429, %v2429
      %v2446 = vpack.c.b16 %v2430, %v2430
      %v2447 = vpack.c.b16 %v2431, %v2431
      %v2448 = vpack.c.b16 %v2432, %v2432
      %v2449 = vpack.c.b16 %v2433, %v2433
      %v2450 = vpack.c.b16 %v2434, %v2434
      %v2451 = vpack.c.b16 %v2435, %v2435
      %v2452 = vpack.c.b16 %v2436, %v2436
      %vm2453 = vsmask.f32 7424
      %v2455 = vshrl.u32 %v2389, 16
      %v2457 = vshll.u32 %v2389, 16
      %v2459 = vrot.slane %v2457, 1
      %v2460 = vor.u32 %v2455, %v2459
      %v2462 = vshll.u32 %v2437, 16
      %v2464 = vrot.slane %v2462, 1
      %v2465 = vsel %vm2453, %v2460, %v2464
      %v2467 = vshrl.u32 %v2390, 16
      %v2469 = vshll.u32 %v2390, 16
      %v2471 = vrot.slane %v2469, 1
      %v2472 = vor.u32 %v2467, %v2471
      %v2474 = vshll.u32 %v2438, 16
      %v2476 = vrot.slane %v2474, 1
      %v2477 = vsel %vm2453, %v2472, %v2476
      %v2479 = vshrl.u32 %v2391, 16
      %v2481 = vshll.u32 %v2391, 16
      %v2483 = vrot.slane %v2481, 1
      %v2484 = vor.u32 %v2479, %v2483
      %v2486 = vshll.u32 %v2439, 16
      %v2488 = vrot.slane %v2486, 1
      %v2489 = vsel %vm2453, %v2484, %v2488
      %v2491 = vshrl.u32 %v2392, 16
      %v2493 = vshll.u32 %v2392, 16
      %v2495 = vrot.slane %v2493, 1
      %v2496 = vor.u32 %v2491, %v2495
      %v2498 = vshll.u32 %v2440, 16
      %v2500 = vrot.slane %v2498, 1
      %v2501 = vsel %vm2453, %v2496, %v2500
      %v2503 = vshrl.u32 %v2393, 16
      %v2505 = vshll.u32 %v2393, 16
      %v2507 = vrot.slane %v2505, 1
      %v2508 = vor.u32 %v2503, %v2507
      %v2510 = vshll.u32 %v2441, 16
      %v2512 = vrot.slane %v2510, 1
      %v2513 = vsel %vm2453, %v2508, %v2512
      %v2515 = vshrl.u32 %v2394, 16
      %v2517 = vshll.u32 %v2394, 16
      %v2519 = vrot.slane %v2517, 1
      %v2520 = vor.u32 %v2515, %v2519
      %v2522 = vshll.u32 %v2442, 16
      %v2524 = vrot.slane %v2522, 1
      %v2525 = vsel %vm2453, %v2520, %v2524
      %v2527 = vshrl.u32 %v2395, 16
      %v2529 = vshll.u32 %v2395, 16
      %v2531 = vrot.slane %v2529, 1
      %v2532 = vor.u32 %v2527, %v2531
      %v2534 = vshll.u32 %v2443, 16
      %v2536 = vrot.slane %v2534, 1
      %v2537 = vsel %vm2453, %v2532, %v2536
      %v2539 = vshrl.u32 %v2396, 16
      %v2541 = vshll.u32 %v2396, 16
      %v2543 = vrot.slane %v2541, 1
      %v2544 = vor.u32 %v2539, %v2543
      %v2546 = vshll.u32 %v2444, 16
      %v2548 = vrot.slane %v2546, 1
      %v2549 = vsel %vm2453, %v2544, %v2548
      %v2551 = vshrl.u32 %v2397, 16
      %v2553 = vshll.u32 %v2397, 16
      %v2555 = vrot.slane %v2553, 1
      %v2556 = vor.u32 %v2551, %v2555
      %v2558 = vshll.u32 %v2445, 16
      %v2560 = vrot.slane %v2558, 1
      %v2561 = vsel %vm2453, %v2556, %v2560
      %v2563 = vshrl.u32 %v2398, 16
      %v2565 = vshll.u32 %v2398, 16
      %v2567 = vrot.slane %v2565, 1
      %v2568 = vor.u32 %v2563, %v2567
      %v2570 = vshll.u32 %v2446, 16
      %v2572 = vrot.slane %v2570, 1
      %v2573 = vsel %vm2453, %v2568, %v2572
      %v2575 = vshrl.u32 %v2399, 16
      %v2577 = vshll.u32 %v2399, 16
      %v2579 = vrot.slane %v2577, 1
      %v2580 = vor.u32 %v2575, %v2579
      %v2582 = vshll.u32 %v2447, 16
      %v2584 = vrot.slane %v2582, 1
      %v2585 = vsel %vm2453, %v2580, %v2584
      %v2587 = vshrl.u32 %v2400, 16
      %v2589 = vshll.u32 %v2400, 16
      %v2591 = vrot.slane %v2589, 1
      %v2592 = vor.u32 %v2587, %v2591
      %v2594 = vshll.u32 %v2448, 16
      %v2596 = vrot.slane %v2594, 1
      %v2597 = vsel %vm2453, %v2592, %v2596
      %v2599 = vshrl.u32 %v2401, 16
      %v2601 = vshll.u32 %v2401, 16
      %v2603 = vrot.slane %v2601, 1
      %v2604 = vor.u32 %v2599, %v2603
      %v2606 = vshll.u32 %v2449, 16
      %v2608 = vrot.slane %v2606, 1
      %v2609 = vsel %vm2453, %v2604, %v2608
      %v2611 = vshrl.u32 %v2402, 16
      %v2613 = vshll.u32 %v2402, 16
      %v2615 = vrot.slane %v2613, 1
      %v2616 = vor.u32 %v2611, %v2615
      %v2618 = vshll.u32 %v2450, 16
      %v2620 = vrot.slane %v2618, 1
      %v2621 = vsel %vm2453, %v2616, %v2620
      %v2623 = vshrl.u32 %v2403, 16
      %v2625 = vshll.u32 %v2403, 16
      %v2627 = vrot.slane %v2625, 1
      %v2628 = vor.u32 %v2623, %v2627
      %v2630 = vshll.u32 %v2451, 16
      %v2632 = vrot.slane %v2630, 1
      %v2633 = vsel %vm2453, %v2628, %v2632
      %v2635 = vshrl.u32 %v2404, 16
      %v2637 = vshll.u32 %v2404, 16
      %v2639 = vrot.slane %v2637, 1
      %v2640 = vor.u32 %v2635, %v2639
      %v2642 = vshll.u32 %v2452, 16
      %v2644 = vrot.slane %v2642, 1
      %v2645 = vsel %vm2453, %v2640, %v2644
      %2646 = vrot.lane.b32.xlu0 %v2465, 16
      %v2647 = vpop.permute.xlu0 %2646
      %2648 = vrot.lane.b32.xlu0 %v2477, 16
      %v2649 = vpop.permute.xlu0 %2648
      %2650 = vrot.lane.b32.xlu0 %v2489, 16
      %v2651 = vpop.permute.xlu0 %2650
      %2652 = vrot.lane.b32.xlu0 %v2501, 16
      %v2653 = vpop.permute.xlu0 %2652
      %2654 = vrot.lane.b32.xlu0 %v2513, 16
      %v2655 = vpop.permute.xlu0 %2654
      %2656 = vrot.lane.b32.xlu0 %v2525, 16
      %v2657 = vpop.permute.xlu0 %2656
      %2658 = vrot.lane.b32.xlu0 %v2537, 16
      %v2659 = vpop.permute.xlu0 %2658
      %2660 = vrot.lane.b32.xlu0 %v2549, 16
      %v2661 = vpop.permute.xlu0 %2660
      %2662 = vrot.lane.b32.xlu0 %v2561, 16
      %v2663 = vpop.permute.xlu0 %2662
      %2664 = vrot.lane.b32.xlu0 %v2573, 16
      %v2665 = vpop.permute.xlu0 %2664
      %2666 = vrot.lane.b32.xlu0 %v2585, 16
      %v2667 = vpop.permute.xlu0 %2666
      %2668 = vrot.lane.b32.xlu0 %v2597, 16
      %v2669 = vpop.permute.xlu0 %2668
      %2670 = vrot.lane.b32.xlu0 %v2609, 16
      %v2671 = vpop.permute.xlu0 %2670
      %2672 = vrot.lane.b32.xlu0 %v2621, 16
      %v2673 = vpop.permute.xlu0 %2672
      %2674 = vrot.lane.b32.xlu0 %v2633, 16
      %v2675 = vpop.permute.xlu0 %2674
      %2676 = vrot.lane.b32.xlu0 %v2645, 16
      %v2677 = vpop.permute.xlu0 %2676
      %vm2678 = vcmask 1046528
      %v2679 = vrot.slane %v2389, 1
      %v2680 = vrot.slane %v2437, 1
      %v2681 = vsel %vm2678, %v2679, %v2680
      %v2682 = vrot.slane %v2390, 1
      %v2683 = vrot.slane %v2438, 1
      %v2684 = vsel %vm2678, %v2682, %v2683
      %v2685 = vrot.slane %v2391, 1
      %v2686 = vrot.slane %v2439, 1
      %v2687 = vsel %vm2678, %v2685, %v2686
      %v2688 = vrot.slane %v2392, 1
      %v2689 = vrot.slane %v2440, 1
      %v2690 = vsel %vm2678, %v2688, %v2689
      %v2691 = vrot.slane %v2393, 1
      %v2692 = vrot.slane %v2441, 1
      %v2693 = vsel %vm2678, %v2691, %v2692
      %v2694 = vrot.slane %v2394, 1
      %v2695 = vrot.slane %v2442, 1
      %v2696 = vsel %vm2678, %v2694, %v2695
      %v2697 = vrot.slane %v2395, 1
      %v2698 = vrot.slane %v2443, 1
      %v2699 = vsel %vm2678, %v2697, %v2698
      %v2700 = vrot.slane %v2396, 1
      %v2701 = vrot.slane %v2444, 1
      %v2702 = vsel %vm2678, %v2700, %v2701
      %v2703 = vrot.slane %v2397, 1
      %v2704 = vrot.slane %v2445, 1
      %v2705 = vsel %vm2678, %v2703, %v2704
      %v2706 = vrot.slane %v2398, 1
      %v2707 = vrot.slane %v2446, 1
      %v2708 = vsel %vm2678, %v2706, %v2707
      %v2709 = vrot.slane %v2399, 1
      %v2710 = vrot.slane %v2447, 1
      %v2711 = vsel %vm2678, %v2709, %v2710
      %v2712 = vrot.slane %v2400, 1
      %v2713 = vrot.slane %v2448, 1
      %v2714 = vsel %vm2678, %v2712, %v2713
      %v2715 = vrot.slane %v2401, 1
      %v2716 = vrot.slane %v2449, 1
      %v2717 = vsel %vm2678, %v2715, %v2716
      %v2718 = vrot.slane %v2402, 1
      %v2719 = vrot.slane %v2450, 1
      %v2720 = vsel %vm2678, %v2718, %v2719
      %v2721 = vrot.slane %v2403, 1
      %v2722 = vrot.slane %v2451, 1
      %v2723 = vsel %vm2678, %v2721, %v2722
      %v2724 = vrot.slane %v2404, 1
      %v2725 = vrot.slane %v2452, 1
      %v2726 = vsel %vm2678, %v2724, %v2725
      %2727 = vrot.lane.b32.xlu0 %v2681, 32
      %v2728 = vpop.permute.xlu0 %2727
      %2729 = vrot.lane.b32.xlu0 %v2684, 32
      %v2730 = vpop.permute.xlu0 %2729
      %2731 = vrot.lane.b32.xlu0 %v2687, 32
      %v2732 = vpop.permute.xlu0 %2731
      %2733 = vrot.lane.b32.xlu0 %v2690, 32
      %v2734 = vpop.permute.xlu0 %2733
      %2735 = vrot.lane.b32.xlu0 %v2693, 32
      %v2736 = vpop.permute.xlu0 %2735
      %2737 = vrot.lane.b32.xlu0 %v2696, 32
      %v2738 = vpop.permute.xlu0 %2737
      %2739 = vrot.lane.b32.xlu0 %v2699, 32
      %v2740 = vpop.permute.xlu0 %2739
      %2741 = vrot.lane.b32.xlu0 %v2702, 32
      %v2742 = vpop.permute.xlu0 %2741
      %2743 = vrot.lane.b32.xlu0 %v2705, 32
      %v2744 = vpop.permute.xlu0 %2743
      %2745 = vrot.lane.b32.xlu0 %v2708, 32
      %v2746 = vpop.permute.xlu0 %2745
      %2747 = vrot.lane.b32.xlu0 %v2711, 32
      %v2748 = vpop.permute.xlu0 %2747
      %2749 = vrot.lane.b32.xlu0 %v2714, 32
      %v2750 = vpop.permute.xlu0 %2749
      %2751 = vrot.lane.b32.xlu0 %v2717, 32
      %v2752 = vpop.permute.xlu0 %2751
      %2753 = vrot.lane.b32.xlu0 %v2720, 32
      %v2754 = vpop.permute.xlu0 %2753
      %2755 = vrot.lane.b32.xlu0 %v2723, 32
      %v2756 = vpop.permute.xlu0 %2755
      %2757 = vrot.lane.b32.xlu0 %v2726, 32
      %v2758 = vpop.permute.xlu0 %2757
      %v2760 = vsel %vm647, %v2389, %v2647
      %v2762 = vsel %vm647, %v2390, %v2649
      %v2764 = vsel %vm647, %v2391, %v2651
      %v2766 = vsel %vm647, %v2392, %v2653
      %v2768 = vsel %vm647, %v2393, %v2655
      %v2770 = vsel %vm647, %v2394, %v2657
      %v2772 = vsel %vm647, %v2395, %v2659
      %v2774 = vsel %vm647, %v2396, %v2661
      %v2776 = vsel %vm647, %v2397, %v2663
      %v2778 = vsel %vm647, %v2398, %v2665
      %v2780 = vsel %vm647, %v2399, %v2667
      %v2782 = vsel %vm647, %v2400, %v2669
      %v2784 = vsel %vm647, %v2401, %v2671
      %v2786 = vsel %vm647, %v2402, %v2673
      %v2788 = vsel %vm647, %v2403, %v2675
      %v2790 = vsel %vm647, %v2404, %v2677
      %vm2791 = vcmask 261120
      %v2793 = vsel %vm2791, %v2760, %v2728
      %v2795 = vsel %vm2791, %v2762, %v2730
      %v2797 = vsel %vm2791, %v2764, %v2732
      %v2799 = vsel %vm2791, %v2766, %v2734
      %v2801 = vsel %vm2791, %v2768, %v2736
      %v2803 = vsel %vm2791, %v2770, %v2738
      %v2805 = vsel %vm2791, %v2772, %v2740
      %v2807 = vsel %vm2791, %v2774, %v2742
      %v2809 = vsel %vm2791, %v2776, %v2744
      %v2811 = vsel %vm2791, %v2778, %v2746
      %v2813 = vsel %vm2791, %v2780, %v2748
      %v2815 = vsel %vm2791, %v2782, %v2750
      %v2817 = vsel %vm2791, %v2784, %v2752
      %v2819 = vsel %vm2791, %v2786, %v2754
      %v2821 = vsel %vm2791, %v2788, %v2756
      %v2823 = vsel %vm2791, %v2790, %v2758
      %v2824 = vld [vmem:[%s7] sm:$0xf]
      %v2825 = vld [vmem:[%s7 + $0x4] sm:$0xf]
      %v2826 = vld [vmem:[%s7 + $0x8] sm:$0xf]
      %v2827 = vld [vmem:[%s7 + $0xc] sm:$0xf]
      %v2828 = vld [vmem:[%s7 + $0x10] sm:$0xf]
      %v2829 = vld [vmem:[%s7 + $0x14] sm:$0xf]
      %v2832 = vunpack.c.l.b16 %v2319
      %v2833 = vunpack.c.l.b16 %v2320
      %v2834 = vpack.c.b16 %v2833, %v2832
      %v2836 = vunpack.c.l.b16 %v2321
      %v2837 = vpack.c.b16 %v2836, %v2836
      %v2839 = vshrl.u32 %v2834, 16
      %v2841 = vshll.u32 %v2834, 16
      %v2843 = vrot.slane %v2841, 1
      %v2844 = vor.u32 %v2839, %v2843
      %v2846 = vshll.u32 %v2837, 16
      %v2848 = vrot.slane %v2846, 1
      %v2849 = vsel %vm2453, %v2844, %v2848
      %2850 = vrot.lane.b32.xlu0 %v2849, 16
      %v2851 = vpop.permute.xlu0 %2850
      %v2852 = vrot.slane %v2834, 1
      %v2853 = vrot.slane %v2837, 1
      %v2854 = vsel %vm2678, %v2852, %v2853
      %2855 = vrot.lane.b32.xlu0 %v2854, 32
      %v2856 = vpop.permute.xlu0 %2855
      %v2858 = vsel %vm647, %v2834, %v2851
      %v2860 = vsel %vm2791, %v2858, %v2856
      %s2861 = scalar_lea.vmem %s7, 24
      %v2862 = vld [vmem:[%s2861] sm:$0xf]
      %v2863 = vld [vmem:[%s2861 + $0x4] sm:$0xf]
      %v2864 = vld [vmem:[%s2861 + $0x8] sm:$0xf]
      %v2865 = vld [vmem:[%s2861 + $0xc] sm:$0xf]
      %v2866 = vld [vmem:[%s2861 + $0x10] sm:$0xf]
      %v2867 = vld [vmem:[%s2861 + $0x14] sm:$0xf]
      %v2874 = vunpack.c.l.b16 %v2862
      %v2875 = vunpack.c.l.b16 %v2863
      %v2876 = vunpack.c.l.b16 %v2864
      %v2877 = vunpack.c.l.b16 %v2865
      %v2878 = vunpack.c.l.b16 %v2866
      %v2879 = vunpack.c.l.b16 %v2867
      %v2880 = vpack.c.b16 %v2875, %v2874
      %v2881 = vpack.c.b16 %v2877, %v2876
      %v2882 = vpack.c.b16 %v2879, %v2878
      %vm2886 = vcmask 392192
      %v2887 = vsel %vm2886, %v2795, 0
      %v2889 = vsel %vm2886, %v2797, 0
      %v2891 = vsel %vm2886, %v2799, 0
      %v2893 = vsel %vm2886, %v2801, 0
      %v2895 = vsel %vm2886, %v2803, 0
      %v2897 = vsel %vm2886, %v2805, 0
      %v2899 = vsel %vm2886, %v2807, 0
      %v2901 = vsel %vm2886, %v2809, 0
      %v2903 = vsel %vm2886, %v2811, 0
      %v2905 = vsel %vm2886, %v2813, 0
      %v2907 = vsel %vm2886, %v2815, 0
      %v2909 = vsel %vm2886, %v2817, 0
      %v2911 = vsel %vm2886, %v2819, 0
      %v2913 = vsel %vm2886, %v2821, 0
      %v2915 = vsel %vm2886, %v2823, 0
      %v2917 = vsel %vm2886, %v2860, 0
      %2919 = vmatprep.subr.bf16.mxu0 0
      %2920 = vmatpush1.bf16.msra.mxu0 %v2880
      %2921 = vmatprep.subr.bf16.mxu0 0
      %2922 = vmatpush1.bf16.msra.mxu0 %v2881
      %2923 = vmatprep.subr.bf16.mxu0 0
      %2924 = vmatpush1.bf16.msra.mxu0 %v2882
      %2925 = vmatprep.subr.bf16.mxu0 0
      %2926 = vmatpush1.bf16.msra.mxu0 0
      %2927 = vmatprep.subr.bf16.mxu0 0
      %2928 = vmatpush1.bf16.msra.mxu0 0
      %2929 = vmatprep.subr.bf16.mxu0 0
      %2930 = vmatpush1.bf16.msra.mxu0 0
      %2931 = vmatprep.subr.bf16.mxu0 0
      %2932 = vmatpush1.bf16.msra.mxu0 0
      %2933 = vmatprep.subr.bf16.mxu0 0
      %2934 = vmatpush1.bf16.msra.mxu0 0
      %2935 = vmatprep.subr.bf16.mxu0 0
      %2936 = vmatpush1.bf16.msra.mxu0 0
      %2937 = vmatprep.subr.bf16.mxu0 0
      %2938 = vmatpush1.bf16.msra.mxu0 0
      %2939 = vmatprep.subr.bf16.mxu0 0
      %2940 = vmatpush1.bf16.msra.mxu0 0
      %2941 = vmatprep.subr.bf16.mxu0 0
      %2942 = vmatpush1.bf16.msra.mxu0 0
      %2943 = vmatprep.subr.bf16.mxu0 0
      %2944 = vmatpush1.bf16.msra.mxu0 0
      %2945 = vmatprep.subr.bf16.mxu0 0
      %2946 = vmatpush1.bf16.msra.mxu0 0
      %2947 = vmatprep.subr.bf16.mxu0 0
      %2948 = vmatpush1.bf16.msra.mxu0 0
      %2949 = vmatprep.subr.bf16.mxu0 0
      %2950 = vmatpush1.bf16.msra.mxu0 0
      %2951 = vmatprep.mubr.bf16.mxu0 0
      %2952 = vmatmul.mubr.bf16.gmra.mrb[0].mxu0 %v2887
      %v2953 = vpop.f32.mrb[0].mxu0
      %v2954 = vadd.f32 0.0, %v2953
      %v2955 = vpop.f32.mrb[0].mxu0
      %v2956 = vpop.f32.mrb[0].mxu0
      %v2957 = vadd.f32 0.0, %v2956
      %v2958 = vpop.f32.mrb[0].mxu0
      %2959 = vmatprep.mubr.bf16.mxu0 0
      %2960 = vmatmul.mubr.bf16.gmra.mrb[0].mxu0 %v2889
      %v2961 = vpop.f32.mrb[0].mxu0
      %v2962 = vadd.f32 0.0, %v2961
      %v2963 = vpop.f32.mrb[0].mxu0
      %v2964 = vpop.f32.mrb[0].mxu0
      %v2965 = vadd.f32 0.0, %v2964
      %v2966 = vpop.f32.mrb[0].mxu0
      %2967 = vmatprep.mubr.bf16.mxu0 0
      %2968 = vmatmul.mubr.bf16.gmra.mrb[0].mxu0 %v2891
      %v2969 = vpop.f32.mrb[0].mxu0
      %v2970 = vadd.f32 0.0, %v2969
      %v2971 = vpop.f32.mrb[0].mxu0
      %v2972 = vpop.f32.mrb[0].mxu0
      %v2973 = vadd.f32 0.0, %v2972
      %v2974 = vpop.f32.mrb[0].mxu0
      %2975 = vmatprep.mubr.bf16.mxu0 0
      %2976 = vmatmul.mubr.bf16.gmra.mrb[0].mxu0 %v2893
      %v2977 = vpop.f32.mrb[0].mxu0
      %v2978 = vadd.f32 0.0, %v2977
      %v2979 = vpop.f32.mrb[0].mxu0
      %v2980 = vpop.f32.mrb[0].mxu0
      %v2981 = vadd.f32 0.0, %v2980
      %v2982 = vpop.f32.mrb[0].mxu0
      %2983 = vmatprep.mubr.bf16.mxu0 0
      %2984 = vmatmul.mubr.bf16.gmra.mrb[0].mxu0 %v2895
      %v2985 = vpop.f32.mrb[0].mxu0
      %v2986 = vadd.f32 0.0, %v2985
      %v2987 = vpop.f32.mrb[0].mxu0
      %v2988 = vpop.f32.mrb[0].mxu0
      %v2989 = vadd.f32 0.0, %v2988
      %v2990 = vpop.f32.mrb[0].mxu0
      %2991 = vmatprep.mubr.bf16.mxu0 0
      %2992 = vmatmul.mubr.bf16.gmra.mrb[0].mxu0 %v2897
      %v2993 = vpop.f32.mrb[0].mxu0
      %v2994 = vadd.f32 0.0, %v2993
      %v2995 = vpop.f32.mrb[0].mxu0
      %v2996 = vpop.f32.mrb[0].mxu0
      %v2997 = vadd.f32 0.0, %v2996
      %v2998 = vpop.f32.mrb[0].mxu0
      %2999 = vmatprep.mubr.bf16.mxu0 0
      %3000 = vmatmul.mubr.bf16.gmra.mrb[0].mxu0 %v2899
      %v3001 = vpop.f32.mrb[0].mxu0
      %v3002 = vadd.f32 0.0, %v3001
      %v3003 = vpop.f32.mrb[0].mxu0
      %v3004 = vpop.f32.mrb[0].mxu0
      %v3005 = vadd.f32 0.0, %v3004
      %v3006 = vpop.f32.mrb[0].mxu0
      %3007 = vmatprep.mubr.bf16.mxu0 0
      %3008 = vmatmul.mubr.bf16.gmra.mrb[0].mxu0 %v2901
      %v3009 = vpop.f32.mrb[0].mxu0
      %v3010 = vadd.f32 0.0, %v3009
      %v3011 = vpop.f32.mrb[0].mxu0
      %v3012 = vpop.f32.mrb[0].mxu0
      %v3013 = vadd.f32 0.0, %v3012
      %v3014 = vpop.f32.mrb[0].mxu0
      %3015 = vmatprep.mubr.bf16.mxu0 0
      %3016 = vmatmul.mubr.bf16.gmra.mrb[0].mxu0 %v2903
      %v3017 = vpop.f32.mrb[0].mxu0
      %v3018 = vadd.f32 0.0, %v3017
      %v3019 = vpop.f32.mrb[0].mxu0
      %v3020 = vpop.f32.mrb[0].mxu0
      %v3021 = vadd.f32 0.0, %v3020
      %v3022 = vpop.f32.mrb[0].mxu0
      %3023 = vmatprep.mubr.bf16.mxu0 0
      %3024 = vmatmul.mubr.bf16.gmra.mrb[0].mxu0 %v2905
      %v3025 = vpop.f32.mrb[0].mxu0
      %v3026 = vadd.f32 0.0, %v3025
      %v3027 = vpop.f32.mrb[0].mxu0
      %v3028 = vpop.f32.mrb[0].mxu0
      %v3029 = vadd.f32 0.0, %v3028
      %v3030 = vpop.f32.mrb[0].mxu0
      %3031 = vmatprep.mubr.bf16.mxu0 0
      %3032 = vmatmul.mubr.bf16.gmra.mrb[0].mxu0 %v2907
      %v3033 = vpop.f32.mrb[0].mxu0
      %v3034 = vadd.f32 0.0, %v3033
      %v3035 = vpop.f32.mrb[0].mxu0
      %v3036 = vpop.f32.mrb[0].mxu0
      %v3037 = vadd.f32 0.0, %v3036
      %v3038 = vpop.f32.mrb[0].mxu0
      %3039 = vmatprep.mubr.bf16.mxu0 0
      %3040 = vmatmul.mubr.bf16.gmra.mrb[0].mxu0 %v2909
      %v3041 = vpop.f32.mrb[0].mxu0
      %v3042 = vadd.f32 0.0, %v3041
      %v3043 = vpop.f32.mrb[0].mxu0
      %v3044 = vpop.f32.mrb[0].mxu0
      %v3045 = vadd.f32 0.0, %v3044
      %v3046 = vpop.f32.mrb[0].mxu0
      %3047 = vmatprep.mubr.bf16.mxu0 0
      %3048 = vmatmul.mubr.bf16.gmra.mrb[0].mxu0 %v2911
      %v3049 = vpop.f32.mrb[0].mxu0
      %v3050 = vadd.f32 0.0, %v3049
      %v3051 = vpop.f32.mrb[0].mxu0
      %v3052 = vpop.f32.mrb[0].mxu0
      %v3053 = vadd.f32 0.0, %v3052
      %v3054 = vpop.f32.mrb[0].mxu0
      %3055 = vmatprep.mubr.bf16.mxu0 0
      %3056 = vmatmul.mubr.bf16.gmra.mrb[0].mxu0 %v2913
      %v3057 = vpop.f32.mrb[0].mxu0
      %v3058 = vadd.f32 0.0, %v3057
      %v3059 = vpop.f32.mrb[0].mxu0
      %v3060 = vpop.f32.mrb[0].mxu0
      %v3061 = vadd.f32 0.0, %v3060
      %v3062 = vpop.f32.mrb[0].mxu0
      %3063 = vmatprep.mubr.bf16.mxu0 0
      %3064 = vmatmul.mubr.bf16.gmra.mrb[0].mxu0 %v2915
      %v3065 = vpop.f32.mrb[0].mxu0
      %v3066 = vadd.f32 0.0, %v3065
      %v3067 = vpop.f32.mrb[0].mxu0
      %v3068 = vpop.f32.mrb[0].mxu0
      %v3069 = vadd.f32 0.0, %v3068
      %v3070 = vpop.f32.mrb[0].mxu0
      %3071 = vmatprep.mubr.bf16.mxu0 0
      %3072 = vmatmul.mubr.bf16.gmra.mrb[0].mxu0 %v2917
      %v3073 = vpop.f32.mrb[0].mxu0
      %v3074 = vadd.f32 0.0, %v3073
      %v3075 = vpop.f32.mrb[0].mxu0
      %v3076 = vpop.f32.mrb[0].mxu0
      %v3077 = vadd.f32 0.0, %v3076
      %v3078 = vpop.f32.mrb[0].mxu0
      %3079 = vdwg.mxu0
      %v3086 = vunpack.c.l.b16 %v2824
      %v3087 = vunpack.c.l.b16 %v2825
      %v3088 = vunpack.c.l.b16 %v2826
      %v3089 = vunpack.c.l.b16 %v2827
      %v3090 = vunpack.c.l.b16 %v2828
      %v3091 = vunpack.c.l.b16 %v2829
      %v3092 = vpack.c.b16 %v3087, %v3086
      %v3093 = vpack.c.b16 %v3089, %v3088
      %v3094 = vpack.c.b16 %v3091, %v3090
      %v3098 = vsel %vm2886, %v2793, 0
      %3100 = vmatprep.subr.bf16.mxu0 0
      %3101 = vmatpush1.bf16.msra.mxu0 %v3092
      %3102 = vmatprep.subr.bf16.mxu0 0
      %3103 = vmatpush1.bf16.msra.mxu0 %v3093
      %3104 = vmatprep.subr.bf16.mxu0 0
      %3105 = vmatpush1.bf16.msra.mxu0 %v3094
      %3106 = vmatprep.subr.bf16.mxu0 0
      %3107 = vmatpush1.bf16.msra.mxu0 0
      %3108 = vmatprep.subr.bf16.mxu0 0
      %3109 = vmatpush1.bf16.msra.mxu0 0
      %3110 = vmatprep.subr.bf16.mxu0 0
      %3111 = vmatpush1.bf16.msra.mxu0 0
      %3112 = vmatprep.subr.bf16.mxu0 0
      %3113 = vmatpush1.bf16.msra.mxu0 0
      %3114 = vmatprep.subr.bf16.mxu0 0
      %3115 = vmatpush1.bf16.msra.mxu0 0
      %3116 = vmatprep.subr.bf16.mxu0 0
      %3117 = vmatpush1.bf16.msra.mxu0 0
      %3118 = vmatprep.subr.bf16.mxu0 0
      %3119 = vmatpush1.bf16.msra.mxu0 0
      %3120 = vmatprep.subr.bf16.mxu0 0
      %3121 = vmatpush1.bf16.msra.mxu0 0
      %3122 = vmatprep.subr.bf16.mxu0 0
      %3123 = vmatpush1.bf16.msra.mxu0 0
      %3124 = vmatprep.subr.bf16.mxu0 0
      %3125 = vmatpush1.bf16.msra.mxu0 0
      %3126 = vmatprep.subr.bf16.mxu0 0
      %3127 = vmatpush1.bf16.msra.mxu0 0
      %3128 = vmatprep.subr.bf16.mxu0 0
      %3129 = vmatpush1.bf16.msra.mxu0 0
      %3130 = vmatprep.subr.bf16.mxu0 0
      %3131 = vmatpush1.bf16.msra.mxu0 0
      %3132 = vmatprep.mubr.bf16.mxu0 0
      %3133 = vmatmul.mubr.bf16.gmra.mrb[0].mxu0 %v3098
      %v3134 = vpop.f32.mrb[0].mxu0
      %v3135 = vadd.f32 %v2954, %v3134
      %v3136 = vpop.f32.mrb[0].mxu0
      %v3137 = vpop.f32.mrb[0].mxu0
      %v3138 = vadd.f32 %v2957, %v3137
      %v3139 = vpop.f32.mrb[0].mxu0
      %3140 = vmatprep.mubr.bf16.mxu0 0
      %3141 = vmatmul.mubr.bf16.gmra.mrb[0].mxu0 %v2887
      %v3142 = vpop.f32.mrb[0].mxu0
      %v3143 = vadd.f32 %v2962, %v3142
      %v3144 = vpop.f32.mrb[0].mxu0
      %v3145 = vpop.f32.mrb[0].mxu0
      %v3146 = vadd.f32 %v2965, %v3145
      %v3147 = vpop.f32.mrb[0].mxu0
      %3148 = vmatprep.mubr.bf16.mxu0 0
      %3149 = vmatmul.mubr.bf16.gmra.mrb[0].mxu0 %v2889
      %v3150 = vpop.f32.mrb[0].mxu0
      %v3151 = vadd.f32 %v2970, %v3150
      %v3152 = vpop.f32.mrb[0].mxu0
      %v3153 = vpop.f32.mrb[0].mxu0
      %v3154 = vadd.f32 %v2973, %v3153
      %v3155 = vpop.f32.mrb[0].mxu0
      %3156 = vmatprep.mubr.bf16.mxu0 0
      %3157 = vmatmul.mubr.bf16.gmra.mrb[0].mxu0 %v2891
      %v3158 = vpop.f32.mrb[0].mxu0
      %v3159 = vadd.f32 %v2978, %v3158
      %v3160 = vpop.f32.mrb[0].mxu0
      %v3161 = vpop.f32.mrb[0].mxu0
      %v3162 = vadd.f32 %v2981, %v3161
      %v3163 = vpop.f32.mrb[0].mxu0
      %3164 = vmatprep.mubr.bf16.mxu0 0
      %3165 = vmatmul.mubr.bf16.gmra.mrb[0].mxu0 %v2893
      %v3166 = vpop.f32.mrb[0].mxu0
      %v3167 = vadd.f32 %v2986, %v3166
      %v3168 = vpop.f32.mrb[0].mxu0
      %v3169 = vpop.f32.mrb[0].mxu0
      %v3170 = vadd.f32 %v2989, %v3169
      %v3171 = vpop.f32.mrb[0].mxu0
      %3172 = vmatprep.mubr.bf16.mxu0 0
      %3173 = vmatmul.mubr.bf16.gmra.mrb[0].mxu0 %v2895
      %v3174 = vpop.f32.mrb[0].mxu0
      %v3175 = vadd.f32 %v2994, %v3174
      %v3176 = vpop.f32.mrb[0].mxu0
      %v3177 = vpop.f32.mrb[0].mxu0
      %v3178 = vadd.f32 %v2997, %v3177
      %v3179 = vpop.f32.mrb[0].mxu0
      %3180 = vmatprep.mubr.bf16.mxu0 0
      %3181 = vmatmul.mubr.bf16.gmra.mrb[0].mxu0 %v2897
      %v3182 = vpop.f32.mrb[0].mxu0
      %v3183 = vadd.f32 %v3002, %v3182
      %v3184 = vpop.f32.mrb[0].mxu0
      %v3185 = vpop.f32.mrb[0].mxu0
      %v3186 = vadd.f32 %v3005, %v3185
      %v3187 = vpop.f32.mrb[0].mxu0
      %3188 = vmatprep.mubr.bf16.mxu0 0
      %3189 = vmatmul.mubr.bf16.gmra.mrb[0].mxu0 %v2899
      %v3190 = vpop.f32.mrb[0].mxu0
      %v3191 = vadd.f32 %v3010, %v3190
      %v3192 = vpop.f32.mrb[0].mxu0
      %v3193 = vpop.f32.mrb[0].mxu0
      %v3194 = vadd.f32 %v3013, %v3193
      %v3195 = vpop.f32.mrb[0].mxu0
      %3196 = vmatprep.mubr.bf16.mxu0 0
      %3197 = vmatmul.mubr.bf16.gmra.mrb[0].mxu0 %v2901
      %v3198 = vpop.f32.mrb[0].mxu0
      %v3199 = vadd.f32 %v3018, %v3198
      %v3200 = vpop.f32.mrb[0].mxu0
      %v3201 = vpop.f32.mrb[0].mxu0
      %v3202 = vadd.f32 %v3021, %v3201
      %v3203 = vpop.f32.mrb[0].mxu0
      %3204 = vmatprep.mubr.bf16.mxu0 0
      %3205 = vmatmul.mubr.bf16.gmra.mrb[0].mxu0 %v2903
      %v3206 = vpop.f32.mrb[0].mxu0
      %v3207 = vadd.f32 %v3026, %v3206
      %v3208 = vpop.f32.mrb[0].mxu0
      %v3209 = vpop.f32.mrb[0].mxu0
      %v3210 = vadd.f32 %v3029, %v3209
      %v3211 = vpop.f32.mrb[0].mxu0
      %3212 = vmatprep.mubr.bf16.mxu0 0
      %3213 = vmatmul.mubr.bf16.gmra.mrb[0].mxu0 %v2905
      %v3214 = vpop.f32.mrb[0].mxu0
      %v3215 = vadd.f32 %v3034, %v3214
      %v3216 = vpop.f32.mrb[0].mxu0
      %v3217 = vpop.f32.mrb[0].mxu0
      %v3218 = vadd.f32 %v3037, %v3217
      %v3219 = vpop.f32.mrb[0].mxu0
      %3220 = vmatprep.mubr.bf16.mxu0 0
      %3221 = vmatmul.mubr.bf16.gmra.mrb[0].mxu0 %v2907
      %v3222 = vpop.f32.mrb[0].mxu0
      %v3223 = vadd.f32 %v3042, %v3222
      %v3224 = vpop.f32.mrb[0].mxu0
      %v3225 = vpop.f32.mrb[0].mxu0
      %v3226 = vadd.f32 %v3045, %v3225
      %v3227 = vpop.f32.mrb[0].mxu0
      %3228 = vmatprep.mubr.bf16.mxu0 0
      %3229 = vmatmul.mubr.bf16.gmra.mrb[0].mxu0 %v2909
      %v3230 = vpop.f32.mrb[0].mxu0
      %v3231 = vadd.f32 %v3050, %v3230
      %v3232 = vpop.f32.mrb[0].mxu0
      %v3233 = vpop.f32.mrb[0].mxu0
      %v3234 = vadd.f32 %v3053, %v3233
      %v3235 = vpop.f32.mrb[0].mxu0
      %3236 = vmatprep.mubr.bf16.mxu0 0
      %3237 = vmatmul.mubr.bf16.gmra.mrb[0].mxu0 %v2911
      %v3238 = vpop.f32.mrb[0].mxu0
      %v3239 = vadd.f32 %v3058, %v3238
      %v3240 = vpop.f32.mrb[0].mxu0
      %v3241 = vpop.f32.mrb[0].mxu0
      %v3242 = vadd.f32 %v3061, %v3241
      %v3243 = vpop.f32.mrb[0].mxu0
      %3244 = vmatprep.mubr.bf16.mxu0 0
      %3245 = vmatmul.mubr.bf16.gmra.mrb[0].mxu0 %v2913
      %v3246 = vpop.f32.mrb[0].mxu0
      %v3247 = vadd.f32 %v3066, %v3246
      %v3248 = vpop.f32.mrb[0].mxu0
      %v3249 = vpop.f32.mrb[0].mxu0
      %v3250 = vadd.f32 %v3069, %v3249
      %v3251 = vpop.f32.mrb[0].mxu0
      %3252 = vmatprep.mubr.bf16.mxu0 0
      %3253 = vmatmul.mubr.bf16.gmra.mrb[0].mxu0 %v2915
      %v3254 = vpop.f32.mrb[0].mxu0
      %v3255 = vadd.f32 %v3074, %v3254
      %v3256 = vpop.f32.mrb[0].mxu0
      %v3257 = vpop.f32.mrb[0].mxu0
      %v3258 = vadd.f32 %v3077, %v3257
      %v3259 = vpop.f32.mrb[0].mxu0
      %3260 = vdwg.mxu0
      %v3263 = vunpack.c.l.b16 %v2322
      %v3264 = vunpack.c.l.b16 %v2323
      %v3265 = vpack.c.b16 %v3264, %v3263
      %v3267 = vunpack.c.l.b16 %v2324
      %v3268 = vpack.c.b16 %v3267, %v3267
      %v3270 = vshrl.u32 %v3265, 16
      %v3272 = vshll.u32 %v3265, 16
      %v3274 = vrot.slane %v3272, 1
      %v3275 = vor.u32 %v3270, %v3274
      %v3277 = vshll.u32 %v3268, 16
      %v3279 = vrot.slane %v3277, 1
      %v3280 = vsel %vm2453, %v3275, %v3279
      %3281 = vrot.lane.b32.xlu0 %v3280, 16
      %v3282 = vpop.permute.xlu0 %3281
      %v3283 = vrot.slane %v3265, 1
      %v3284 = vrot.slane %v3268, 1
      %v3285 = vsel %vm2678, %v3283, %v3284
      %3286 = vrot.lane.b32.xlu0 %v3285, 32
      %v3287 = vpop.permute.xlu0 %3286
      %v3289 = vsel %vm647, %v3265, %v3282
      %v3291 = vsel %vm2791, %v3289, %v3287
      %s3292 = scalar_lea.vmem %s7, 48
      %v3293 = vld [vmem:[%s3292] sm:$0xf]
      %v3294 = vld [vmem:[%s3292 + $0x4] sm:$0xf]
      %v3295 = vld [vmem:[%s3292 + $0x8] sm:$0xf]
      %v3296 = vld [vmem:[%s3292 + $0xc] sm:$0xf]
      %v3297 = vld [vmem:[%s3292 + $0x10] sm:$0xf]
      %v3298 = vld [vmem:[%s3292 + $0x14] sm:$0xf]
      %v3305 = vunpack.c.l.b16 %v3293
      %v3306 = vunpack.c.l.b16 %v3294
      %v3307 = vunpack.c.l.b16 %v3295
      %v3308 = vunpack.c.l.b16 %v3296
      %v3309 = vunpack.c.l.b16 %v3297
      %v3310 = vunpack.c.l.b16 %v3298
      %v3311 = vpack.c.b16 %v3306, %v3305
      %v3312 = vpack.c.b16 %v3308, %v3307
      %v3313 = vpack.c.b16 %v3310, %v3309
      %v3317 = vsel %vm2886, %v3291, 0
      %3319 = vmatprep.subr.bf16.mxu0 0
      %3320 = vmatpush1.bf16.msra.mxu0 %v3311
      %3321 = vmatprep.subr.bf16.mxu0 0
      %3322 = vmatpush1.bf16.msra.mxu0 %v3312
      %3323 = vmatprep.subr.bf16.mxu0 0
      %3324 = vmatpush1.bf16.msra.mxu0 %v3313
      %3325 = vmatprep.subr.bf16.mxu0 0
      %3326 = vmatpush1.bf16.msra.mxu0 0
      %3327 = vmatprep.subr.bf16.mxu0 0
      %3328 = vmatpush1.bf16.msra.mxu0 0
      %3329 = vmatprep.subr.bf16.mxu0 0
      %3330 = vmatpush1.bf16.msra.mxu0 0
      %3331 = vmatprep.subr.bf16.mxu0 0
      %3332 = vmatpush1.bf16.msra.mxu0 0
      %3333 = vmatprep.subr.bf16.mxu0 0
      %3334 = vmatpush1.bf16.msra.mxu0 0
      %3335 = vmatprep.subr.bf16.mxu0 0
      %3336 = vmatpush1.bf16.msra.mxu0 0
      %3337 = vmatprep.subr.bf16.mxu0 0
      %3338 = vmatpush1.bf16.msra.mxu0 0
      %3339 = vmatprep.subr.bf16.mxu0 0
      %3340 = vmatpush1.bf16.msra.mxu0 0
      %3341 = vmatprep.subr.bf16.mxu0 0
      %3342 = vmatpush1.bf16.msra.mxu0 0
      %3343 = vmatprep.subr.bf16.mxu0 0
      %3344 = vmatpush1.bf16.msra.mxu0 0
      %3345 = vmatprep.subr.bf16.mxu0 0
      %3346 = vmatpush1.bf16.msra.mxu0 0
      %3347 = vmatprep.subr.bf16.mxu0 0
      %3348 = vmatpush1.bf16.msra.mxu0 0
      %3349 = vmatprep.subr.bf16.mxu0 0
      %3350 = vmatpush1.bf16.msra.mxu0 0
      %3351 = vmatprep.mubr.bf16.mxu0 0
      %3352 = vmatmul.mubr.bf16.gmra.mrb[0].mxu0 %v2889
      %v3353 = vpop.f32.mrb[0].mxu0
      %v3354 = vadd.f32 0.0, %v3353
      %v3355 = vpop.f32.mrb[0].mxu0
      %v3356 = vpop.f32.mrb[0].mxu0
      %v3357 = vadd.f32 0.0, %v3356
      %v3358 = vpop.f32.mrb[0].mxu0
      %3359 = vmatprep.mubr.bf16.mxu0 0
      %3360 = vmatmul.mubr.bf16.gmra.mrb[0].mxu0 %v2891
      %v3361 = vpop.f32.mrb[0].mxu0
      %v3362 = vadd.f32 0.0, %v3361
      %v3363 = vpop.f32.mrb[0].mxu0
      %v3364 = vpop.f32.mrb[0].mxu0
      %v3365 = vadd.f32 0.0, %v3364
      %v3366 = vpop.f32.mrb[0].mxu0
      %3367 = vmatprep.mubr.bf16.mxu0 0
      %3368 = vmatmul.mubr.bf16.gmra.mrb[0].mxu0 %v2893
      %v3369 = vpop.f32.mrb[0].mxu0
      %v3370 = vadd.f32 0.0, %v3369
      %v3371 = vpop.f32.mrb[0].mxu0
      %v3372 = vpop.f32.mrb[0].mxu0
      %v3373 = vadd.f32 0.0, %v3372
      %v3374 = vpop.f32.mrb[0].mxu0
      %3375 = vmatprep.mubr.bf16.mxu0 0
      %3376 = vmatmul.mubr.bf16.gmra.mrb[0].mxu0 %v2895
      %v3377 = vpop.f32.mrb[0].mxu0
      %v3378 = vadd.f32 0.0, %v3377
      %v3379 = vpop.f32.mrb[0].mxu0
      %v3380 = vpop.f32.mrb[0].mxu0
      %v3381 = vadd.f32 0.0, %v3380
      %v3382 = vpop.f32.mrb[0].mxu0
      %3383 = vmatprep.mubr.bf16.mxu0 0
      %3384 = vmatmul.mubr.bf16.gmra.mrb[0].mxu0 %v2897
      %v3385 = vpop.f32.mrb[0].mxu0
      %v3386 = vadd.f32 0.0, %v3385
      %v3387 = vpop.f32.mrb[0].mxu0
      %v3388 = vpop.f32.mrb[0].mxu0
      %v3389 = vadd.f32 0.0, %v3388
      %v3390 = vpop.f32.mrb[0].mxu0
      %3391 = vmatprep.mubr.bf16.mxu0 0
      %3392 = vmatmul.mubr.bf16.gmra.mrb[0].mxu0 %v2899
      %v3393 = vpop.f32.mrb[0].mxu0
      %v3394 = vadd.f32 0.0, %v3393
      %v3395 = vpop.f32.mrb[0].mxu0
      %v3396 = vpop.f32.mrb[0].mxu0
      %v3397 = vadd.f32 0.0, %v3396
      %v3398 = vpop.f32.mrb[0].mxu0
      %3399 = vmatprep.mubr.bf16.mxu0 0
      %3400 = vmatmul.mubr.bf16.gmra.mrb[0].mxu0 %v2901
      %v3401 = vpop.f32.mrb[0].mxu0
      %v3402 = vadd.f32 0.0, %v3401
      %v3403 = vpop.f32.mrb[0].mxu0
      %v3404 = vpop.f32.mrb[0].mxu0
      %v3405 = vadd.f32 0.0, %v3404
      %v3406 = vpop.f32.mrb[0].mxu0
      %3407 = vmatprep.mubr.bf16.mxu0 0
      %3408 = vmatmul.mubr.bf16.gmra.mrb[0].mxu0 %v2903
      %v3409 = vpop.f32.mrb[0].mxu0
      %v3410 = vadd.f32 0.0, %v3409
      %v3411 = vpop.f32.mrb[0].mxu0
      %v3412 = vpop.f32.mrb[0].mxu0
      %v3413 = vadd.f32 0.0, %v3412
      %v3414 = vpop.f32.mrb[0].mxu0
      %3415 = vmatprep.mubr.bf16.mxu0 0
      %3416 = vmatmul.mubr.bf16.gmra.mrb[0].mxu0 %v2905
      %v3417 = vpop.f32.mrb[0].mxu0
      %v3418 = vadd.f32 0.0, %v3417
      %v3419 = vpop.f32.mrb[0].mxu0
      %v3420 = vpop.f32.mrb[0].mxu0
      %v3421 = vadd.f32 0.0, %v3420
      %v3422 = vpop.f32.mrb[0].mxu0
      %3423 = vmatprep.mubr.bf16.mxu0 0
      %3424 = vmatmul.mubr.bf16.gmra.mrb[0].mxu0 %v2907
      %v3425 = vpop.f32.mrb[0].mxu0
      %v3426 = vadd.f32 0.0, %v3425
      %v3427 = vpop.f32.mrb[0].mxu0
      %v3428 = vpop.f32.mrb[0].mxu0
      %v3429 = vadd.f32 0.0, %v3428
      %v3430 = vpop.f32.mrb[0].mxu0
      %3431 = vmatprep.mubr.bf16.mxu0 0
      %3432 = vmatmul.mubr.bf16.gmra.mrb[0].mxu0 %v2909
      %v3433 = vpop.f32.mrb[0].mxu0
      %v3434 = vadd.f32 0.0, %v3433
      %v3435 = vpop.f32.mrb[0].mxu0
      %v3436 = vpop.f32.mrb[0].mxu0
      %v3437 = vadd.f32 0.0, %v3436
      %v3438 = vpop.f32.mrb[0].mxu0
      %3439 = vmatprep.mubr.bf16.mxu0 0
      %3440 = vmatmul.mubr.bf16.gmra.mrb[0].mxu0 %v2911
      %v3441 = vpop.f32.mrb[0].mxu0
      %v3442 = vadd.f32 0.0, %v3441
      %v3443 = vpop.f32.mrb[0].mxu0
      %v3444 = vpop.f32.mrb[0].mxu0
      %v3445 = vadd.f32 0.0, %v3444
      %v3446 = vpop.f32.mrb[0].mxu0
      %3447 = vmatprep.mubr.bf16.mxu0 0
      %3448 = vmatmul.mubr.bf16.gmra.mrb[0].mxu0 %v2913
      %v3449 = vpop.f32.mrb[0].mxu0
      %v3450 = vadd.f32 0.0, %v3449
      %v3451 = vpop.f32.mrb[0].mxu0
      %v3452 = vpop.f32.mrb[0].mxu0
      %v3453 = vadd.f32 0.0, %v3452
      %v3454 = vpop.f32.mrb[0].mxu0
      %3455 = vmatprep.mubr.bf16.mxu0 0
      %3456 = vmatmul.mubr.bf16.gmra.mrb[0].mxu0 %v2915
      %v3457 = vpop.f32.mrb[0].mxu0
      %v3458 = vadd.f32 0.0, %v3457
      %v3459 = vpop.f32.mrb[0].mxu0
      %v3460 = vpop.f32.mrb[0].mxu0
      %v3461 = vadd.f32 0.0, %v3460
      %v3462 = vpop.f32.mrb[0].mxu0
      %3463 = vmatprep.mubr.bf16.mxu0 0
      %3464 = vmatmul.mubr.bf16.gmra.mrb[0].mxu0 %v2917
      %v3465 = vpop.f32.mrb[0].mxu0
      %v3466 = vadd.f32 0.0, %v3465
      %v3467 = vpop.f32.mrb[0].mxu0
      %v3468 = vpop.f32.mrb[0].mxu0
      %v3469 = vadd.f32 0.0, %v3468
      %v3470 = vpop.f32.mrb[0].mxu0
      %3471 = vmatprep.mubr.bf16.mxu0 0
      %3472 = vmatmul.mubr.bf16.gmra.mrb[0].mxu0 %v3317
      %v3473 = vpop.f32.mrb[0].mxu0
      %v3474 = vadd.f32 0.0, %v3473
      %v3475 = vpop.f32.mrb[0].mxu0
      %v3476 = vpop.f32.mrb[0].mxu0
      %v3477 = vadd.f32 0.0, %v3476
      %v3478 = vpop.f32.mrb[0].mxu0
      %3479 = vdwg.mxu0
      %v3480 = vadd.f32 %v3135, %v3354
      %v3481 = vadd.f32 %v3138, %v3357
      %v3482 = vadd.f32 %v3143, %v3362
      %v3483 = vadd.f32 %v3146, %v3365
      %v3484 = vadd.f32 %v3151, %v3370
      %v3485 = vadd.f32 %v3154, %v3373
      %v3486 = vadd.f32 %v3159, %v3378
      %v3487 = vadd.f32 %v3162, %v3381
      %v3488 = vadd.f32 %v3167, %v3386
      %v3489 = vadd.f32 %v3170, %v3389
      %v3490 = vadd.f32 %v3175, %v3394
      %v3491 = vadd.f32 %v3178, %v3397
      %v3492 = vadd.f32 %v3183, %v3402
      %v3493 = vadd.f32 %v3186, %v3405
      %v3494 = vadd.f32 %v3191, %v3410
      %v3495 = vadd.f32 %v3194, %v3413
      %v3496 = vadd.f32 %v3199, %v3418
      %v3497 = vadd.f32 %v3202, %v3421
      %v3498 = vadd.f32 %v3207, %v3426
      %v3499 = vadd.f32 %v3210, %v3429
      %v3500 = vadd.f32 %v3215, %v3434
      %v3501 = vadd.f32 %v3218, %v3437
      %v3502 = vadd.f32 %v3223, %v3442
      %v3503 = vadd.f32 %v3226, %v3445
      %v3504 = vadd.f32 %v3231, %v3450
      %v3505 = vadd.f32 %v3234, %v3453
      %v3506 = vadd.f32 %v3239, %v3458
      %v3507 = vadd.f32 %v3242, %v3461
      %v3508 = vadd.f32 %v3247, %v3466
      %v3509 = vadd.f32 %v3250, %v3469
      %v3510 = vadd.f32 %v3255, %v3474
      %v3511 = vadd.f32 %v3258, %v3477
      %v3528 = vunpack.c.l.b16 %v1814
      %v3529 = vunpack.c.h.b16 %v1814
      %v3530 = vunpack.c.l.b16 %v1815
      %v3531 = vunpack.c.h.b16 %v1815
      %v3532 = vunpack.c.l.b16 %v1816
      %v3533 = vunpack.c.h.b16 %v1816
      %v3534 = vunpack.c.l.b16 %v1817
      %v3535 = vunpack.c.h.b16 %v1817
      %v3536 = vunpack.c.l.b16 %v1818
      %v3537 = vunpack.c.h.b16 %v1818
      %v3538 = vunpack.c.l.b16 %v1819
      %v3539 = vunpack.c.h.b16 %v1819
      %v3540 = vunpack.c.l.b16 %v1820
      %v3541 = vunpack.c.h.b16 %v1820
      %v3542 = vunpack.c.l.b16 %v1821
      %v3543 = vunpack.c.h.b16 %v1821
      %v3544 = vunpack.c.l.b16 %v1822
      %v3545 = vunpack.c.h.b16 %v1822
      %v3546 = vunpack.c.l.b16 %v1823
      %v3547 = vunpack.c.h.b16 %v1823
      %v3548 = vunpack.c.l.b16 %v1824
      %v3549 = vunpack.c.h.b16 %v1824
      %v3550 = vunpack.c.l.b16 %v1825
      %v3551 = vunpack.c.h.b16 %v1825
      %v3552 = vunpack.c.l.b16 %v1826
      %v3553 = vunpack.c.h.b16 %v1826
      %v3554 = vunpack.c.l.b16 %v1827
      %v3555 = vunpack.c.h.b16 %v1827
      %v3556 = vunpack.c.l.b16 %v1828
      %v3557 = vunpack.c.h.b16 %v1828
      %v3558 = vunpack.c.l.b16 %v1829
      %v3559 = vunpack.c.h.b16 %v1829
      %v3560 = vpack.c.b16 %v3528, %v3528
      %v3561 = vpack.c.b16 %v3529, %v3529
      %v3562 = vpack.c.b16 %v3530, %v3530
      %v3563 = vpack.c.b16 %v3531, %v3531
      %v3564 = vpack.c.b16 %v3532, %v3532
      %v3565 = vpack.c.b16 %v3533, %v3533
      %v3566 = vpack.c.b16 %v3534, %v3534
      %v3567 = vpack.c.b16 %v3535, %v3535
      %v3568 = vpack.c.b16 %v3536, %v3536
      %v3569 = vpack.c.b16 %v3537, %v3537
      %v3570 = vpack.c.b16 %v3538, %v3538
      %v3571 = vpack.c.b16 %v3539, %v3539
      %v3572 = vpack.c.b16 %v3540, %v3540
      %v3573 = vpack.c.b16 %v3541, %v3541
      %v3574 = vpack.c.b16 %v3542, %v3542
      %v3575 = vpack.c.b16 %v3543, %v3543
      %v3576 = vpack.c.b16 %v3544, %v3544
      %v3577 = vpack.c.b16 %v3545, %v3545
      %v3578 = vpack.c.b16 %v3546, %v3546
      %v3579 = vpack.c.b16 %v3547, %v3547
      %v3580 = vpack.c.b16 %v3548, %v3548
      %v3581 = vpack.c.b16 %v3549, %v3549
      %v3582 = vpack.c.b16 %v3550, %v3550
      %v3583 = vpack.c.b16 %v3551, %v3551
      %v3584 = vpack.c.b16 %v3552, %v3552
      %v3585 = vpack.c.b16 %v3553, %v3553
      %v3586 = vpack.c.b16 %v3554, %v3554
      %v3587 = vpack.c.b16 %v3555, %v3555
      %v3588 = vpack.c.b16 %v3556, %v3556
      %v3589 = vpack.c.b16 %v3557, %v3557
      %v3590 = vpack.c.b16 %v3558, %v3558
      %v3591 = vpack.c.b16 %v3559, %v3559
      %v3593 = vshrl.u32 %v3560, 16
      %v3595 = vrot.slane %v3593, 7
      %v3596 = vshll.u32 %v3560, 16
      %v3598 = vor.u32 %v3595, %v3596
      %v3599 = vrot.slane %v3595, 4
      %v3601 = vshrl.u32 %v3561, 16
      %v3603 = vrot.slane %v3601, 7
      %v3604 = vshll.u32 %v3561, 16
      %v3606 = vor.u32 %v3603, %v3604
      %v3607 = vsel %vm1832, %v3599, %v3606
      %v3608 = vrot.slane %v3603, 4
      %v3610 = vshrl.u32 %v3562, 16
      %v3612 = vrot.slane %v3610, 7
      %v3613 = vshll.u32 %v3562, 16
      %v3615 = vor.u32 %v3612, %v3613
      %v3616 = vrot.slane %v3612, 4
      %v3618 = vshrl.u32 %v3563, 16
      %v3620 = vrot.slane %v3618, 7
      %v3621 = vshll.u32 %v3563, 16
      %v3623 = vor.u32 %v3620, %v3621
      %v3624 = vsel %vm1832, %v3616, %v3623
      %v3625 = vrot.slane %v3620, 4
      %v3627 = vshrl.u32 %v3564, 16
      %v3629 = vrot.slane %v3627, 7
      %v3630 = vshll.u32 %v3564, 16
      %v3632 = vor.u32 %v3629, %v3630
      %v3633 = vrot.slane %v3629, 4
      %v3635 = vshrl.u32 %v3565, 16
      %v3637 = vrot.slane %v3635, 7
      %v3638 = vshll.u32 %v3565, 16
      %v3640 = vor.u32 %v3637, %v3638
      %v3641 = vsel %vm1832, %v3633, %v3640
      %v3642 = vrot.slane %v3637, 4
      %v3644 = vshrl.u32 %v3566, 16
      %v3646 = vrot.slane %v3644, 7
      %v3647 = vshll.u32 %v3566, 16
      %v3649 = vor.u32 %v3646, %v3647
      %v3650 = vrot.slane %v3646, 4
      %v3652 = vshrl.u32 %v3567, 16
      %v3654 = vrot.slane %v3652, 7
      %v3655 = vshll.u32 %v3567, 16
      %v3657 = vor.u32 %v3654, %v3655
      %v3658 = vsel %vm1832, %v3650, %v3657
      %v3659 = vrot.slane %v3654, 4
      %v3661 = vshrl.u32 %v3568, 16
      %v3663 = vrot.slane %v3661, 7
      %v3664 = vshll.u32 %v3568, 16
      %v3666 = vor.u32 %v3663, %v3664
      %v3667 = vrot.slane %v3663, 4
      %v3669 = vshrl.u32 %v3569, 16
      %v3671 = vrot.slane %v3669, 7
      %v3672 = vshll.u32 %v3569, 16
      %v3674 = vor.u32 %v3671, %v3672
      %v3675 = vsel %vm1832, %v3667, %v3674
      %v3676 = vrot.slane %v3671, 4
      %v3678 = vshrl.u32 %v3570, 16
      %v3680 = vrot.slane %v3678, 7
      %v3681 = vshll.u32 %v3570, 16
      %v3683 = vor.u32 %v3680, %v3681
      %v3684 = vrot.slane %v3680, 4
      %v3686 = vshrl.u32 %v3571, 16
      %v3688 = vrot.slane %v3686, 7
      %v3689 = vshll.u32 %v3571, 16
      %v3691 = vor.u32 %v3688, %v3689
      %v3692 = vsel %vm1832, %v3684, %v3691
      %v3693 = vrot.slane %v3688, 4
      %v3695 = vshrl.u32 %v3572, 16
      %v3697 = vrot.slane %v3695, 7
      %v3698 = vshll.u32 %v3572, 16
      %v3700 = vor.u32 %v3697, %v3698
      %v3701 = vrot.slane %v3697, 4
      %v3703 = vshrl.u32 %v3573, 16
      %v3705 = vrot.slane %v3703, 7
      %v3706 = vshll.u32 %v3573, 16
      %v3708 = vor.u32 %v3705, %v3706
      %v3709 = vsel %vm1832, %v3701, %v3708
      %v3710 = vrot.slane %v3705, 4
      %v3712 = vshrl.u32 %v3574, 16
      %v3714 = vrot.slane %v3712, 7
      %v3715 = vshll.u32 %v3574, 16
      %v3717 = vor.u32 %v3714, %v3715
      %v3718 = vrot.slane %v3714, 4
      %v3720 = vshrl.u32 %v3575, 16
      %v3722 = vrot.slane %v3720, 7
      %v3723 = vshll.u32 %v3575, 16
      %v3725 = vor.u32 %v3722, %v3723
      %v3726 = vsel %vm1832, %v3718, %v3725
      %v3727 = vrot.slane %v3722, 4
      %v3729 = vshrl.u32 %v3576, 16
      %v3731 = vrot.slane %v3729, 7
      %v3732 = vshll.u32 %v3576, 16
      %v3734 = vor.u32 %v3731, %v3732
      %v3735 = vrot.slane %v3731, 4
      %v3737 = vshrl.u32 %v3577, 16
      %v3739 = vrot.slane %v3737, 7
      %v3740 = vshll.u32 %v3577, 16
      %v3742 = vor.u32 %v3739, %v3740
      %v3743 = vsel %vm1832, %v3735, %v3742
      %v3744 = vrot.slane %v3739, 4
      %v3746 = vshrl.u32 %v3578, 16
      %v3748 = vrot.slane %v3746, 7
      %v3749 = vshll.u32 %v3578, 16
      %v3751 = vor.u32 %v3748, %v3749
      %v3752 = vrot.slane %v3748, 4
      %v3754 = vshrl.u32 %v3579, 16
      %v3756 = vrot.slane %v3754, 7
      %v3757 = vshll.u32 %v3579, 16
      %v3759 = vor.u32 %v3756, %v3757
      %v3760 = vsel %vm1832, %v3752, %v3759
      %v3761 = vrot.slane %v3756, 4
      %v3763 = vshrl.u32 %v3580, 16
      %v3765 = vrot.slane %v3763, 7
      %v3766 = vshll.u32 %v3580, 16
      %v3768 = vor.u32 %v3765, %v3766
      %v3769 = vrot.slane %v3765, 4
      %v3771 = vshrl.u32 %v3581, 16
      %v3773 = vrot.slane %v3771, 7
      %v3774 = vshll.u32 %v3581, 16
      %v3776 = vor.u32 %v3773, %v3774
      %v3777 = vsel %vm1832, %v3769, %v3776
      %v3778 = vrot.slane %v3773, 4
      %v3780 = vshrl.u32 %v3582, 16
      %v3782 = vrot.slane %v3780, 7
      %v3783 = vshll.u32 %v3582, 16
      %v3785 = vor.u32 %v3782, %v3783
      %v3786 = vrot.slane %v3782, 4
      %v3788 = vshrl.u32 %v3583, 16
      %v3790 = vrot.slane %v3788, 7
      %v3791 = vshll.u32 %v3583, 16
      %v3793 = vor.u32 %v3790, %v3791
      %v3794 = vsel %vm1832, %v3786, %v3793
      %v3795 = vrot.slane %v3790, 4
      %v3797 = vshrl.u32 %v3584, 16
      %v3799 = vrot.slane %v3797, 7
      %v3800 = vshll.u32 %v3584, 16
      %v3802 = vor.u32 %v3799, %v3800
      %v3803 = vrot.slane %v3799, 4
      %v3805 = vshrl.u32 %v3585, 16
      %v3807 = vrot.slane %v3805, 7
      %v3808 = vshll.u32 %v3585, 16
      %v3810 = vor.u32 %v3807, %v3808
      %v3811 = vsel %vm1832, %v3803, %v3810
      %v3812 = vrot.slane %v3807, 4
      %v3814 = vshrl.u32 %v3586, 16
      %v3816 = vrot.slane %v3814, 7
      %v3817 = vshll.u32 %v3586, 16
      %v3819 = vor.u32 %v3816, %v3817
      %v3820 = vrot.slane %v3816, 4
      %v3822 = vshrl.u32 %v3587, 16
      %v3824 = vrot.slane %v3822, 7
      %v3825 = vshll.u32 %v3587, 16
      %v3827 = vor.u32 %v3824, %v3825
      %v3828 = vsel %vm1832, %v3820, %v3827
      %v3829 = vrot.slane %v3824, 4
      %v3831 = vshrl.u32 %v3588, 16
      %v3833 = vrot.slane %v3831, 7
      %v3834 = vshll.u32 %v3588, 16
      %v3836 = vor.u32 %v3833, %v3834
      %v3837 = vrot.slane %v3833, 4
      %v3839 = vshrl.u32 %v3589, 16
      %v3841 = vrot.slane %v3839, 7
      %v3842 = vshll.u32 %v3589, 16
      %v3844 = vor.u32 %v3841, %v3842
      %v3845 = vsel %vm1832, %v3837, %v3844
      %v3846 = vrot.slane %v3841, 4
      %v3848 = vshrl.u32 %v3590, 16
      %v3850 = vrot.slane %v3848, 7
      %v3851 = vshll.u32 %v3590, 16
      %v3853 = vor.u32 %v3850, %v3851
      %v3854 = vrot.slane %v3850, 4
      %v3856 = vshrl.u32 %v3591, 16
      %v3858 = vrot.slane %v3856, 7
      %v3859 = vshll.u32 %v3591, 16
      %v3861 = vor.u32 %v3858, %v3859
      %v3862 = vsel %vm1832, %v3854, %v3861
      %v3863 = vrot.slane %v3858, 4
      %v3912 = vld [vmem:[%s2153] sm:$0xf]
      %v3913 = vsel %vm2156, %v3598, %v3912
      %3914 = vst [vmem:[%s2153] sm:$0xf] %v3913
      %3915 = vst.msk [vmem:[%s2153 + $0x4] sm:$0xf] %vm437, %v3607
      %v3916 = vld [vmem:[%s2153 + $0x8] sm:$0x1]
      %v3917 = vsel %vm2162, %v3608, %v3916
      %3918 = vst [vmem:[%s2153 + $0x8] sm:$0x1] %v3917
      %v3919 = vld [vmem:[%s2153 + $0xc] sm:$0xf]
      %v3920 = vsel %vm2156, %v3615, %v3919
      %3921 = vst [vmem:[%s2153 + $0xc] sm:$0xf] %v3920
      %3922 = vst.msk [vmem:[%s2153 + $0x10] sm:$0xf] %vm437, %v3624
      %v3923 = vld [vmem:[%s2153 + $0x14] sm:$0x1]
      %v3924 = vsel %vm2162, %v3625, %v3923
      %3925 = vst [vmem:[%s2153 + $0x14] sm:$0x1] %v3924
      %v3926 = vld [vmem:[%s2153 + $0x18] sm:$0xf]
      %v3927 = vsel %vm2156, %v3632, %v3926
      %3928 = vst [vmem:[%s2153 + $0x18] sm:$0xf] %v3927
      %3929 = vst.msk [vmem:[%s2153 + $0x1c] sm:$0xf] %vm437, %v3641
      %v3930 = vld [vmem:[%s2153 + $0x20] sm:$0x1]
      %v3931 = vsel %vm2162, %v3642, %v3930
      %3932 = vst [vmem:[%s2153 + $0x20] sm:$0x1] %v3931
      %v3933 = vld [vmem:[%s2153 + $0x24] sm:$0xf]
      %v3934 = vsel %vm2156, %v3649, %v3933
      %3935 = vst [vmem:[%s2153 + $0x24] sm:$0xf] %v3934
      %3936 = vst.msk [vmem:[%s2153 + $0x28] sm:$0xf] %vm437, %v3658
      %v3937 = vld [vmem:[%s2153 + $0x2c] sm:$0x1]
      %v3938 = vsel %vm2162, %v3659, %v3937
      %3939 = vst [vmem:[%s2153 + $0x2c] sm:$0x1] %v3938
      %v3940 = vld [vmem:[%s2153 + $0x30] sm:$0xf]
      %v3941 = vsel %vm2156, %v3666, %v3940
      %3942 = vst [vmem:[%s2153 + $0x30] sm:$0xf] %v3941
      %3943 = vst.msk [vmem:[%s2153 + $0x34] sm:$0xf] %vm437, %v3675
      %v3944 = vld [vmem:[%s2153 + $0x38] sm:$0x1]
      %v3945 = vsel %vm2162, %v3676, %v3944
      %3946 = vst [vmem:[%s2153 + $0x38] sm:$0x1] %v3945
      %v3947 = vld [vmem:[%s2153 + $0x3c] sm:$0xf]
      %v3948 = vsel %vm2156, %v3683, %v3947
      %3949 = vst [vmem:[%s2153 + $0x3c] sm:$0xf] %v3948
      %3950 = vst.msk [vmem:[%s2153 + $0x40] sm:$0xf] %vm437, %v3692
      %v3951 = vld [vmem:[%s2153 + $0x44] sm:$0x1]
      %v3952 = vsel %vm2162, %v3693, %v3951
      %3953 = vst [vmem:[%s2153 + $0x44] sm:$0x1] %v3952
      %v3954 = vld [vmem:[%s2153 + $0x48] sm:$0xf]
      %v3955 = vsel %vm2156, %v3700, %v3954
      %3956 = vst [vmem:[%s2153 + $0x48] sm:$0xf] %v3955
      %3957 = vst.msk [vmem:[%s2153 + $0x4c] sm:$0xf] %vm437, %v3709
      %v3958 = vld [vmem:[%s2153 + $0x50] sm:$0x1]
      %v3959 = vsel %vm2162, %v3710, %v3958
      %3960 = vst [vmem:[%s2153 + $0x50] sm:$0x1] %v3959
      %v3961 = vld [vmem:[%s2153 + $0x54] sm:$0xf]
      %v3962 = vsel %vm2156, %v3717, %v3961
      %3963 = vst [vmem:[%s2153 + $0x54] sm:$0xf] %v3962
      %3964 = vst.msk [vmem:[%s2153 + $0x58] sm:$0xf] %vm437, %v3726
      %v3965 = vld [vmem:[%s2153 + $0x5c] sm:$0x1]
      %v3966 = vsel %vm2162, %v3727, %v3965
      %3967 = vst [vmem:[%s2153 + $0x5c] sm:$0x1] %v3966
      %v3968 = vld [vmem:[%s2153 + $0x60] sm:$0xf]
      %v3969 = vsel %vm2156, %v3734, %v3968
      %3970 = vst [vmem:[%s2153 + $0x60] sm:$0xf] %v3969
      %3971 = vst.msk [vmem:[%s2153 + $0x64] sm:$0xf] %vm437, %v3743
      %v3972 = vld [vmem:[%s2153 + $0x68] sm:$0x1]
      %v3973 = vsel %vm2162, %v3744, %v3972
      %3974 = vst [vmem:[%s2153 + $0x68] sm:$0x1] %v3973
      %v3975 = vld [vmem:[%s2153 + $0x6c] sm:$0xf]
      %v3976 = vsel %vm2156, %v3751, %v3975
      %3977 = vst [vmem:[%s2153 + $0x6c] sm:$0xf] %v3976
      %3978 = vst.msk [vmem:[%s2153 + $0x70] sm:$0xf] %vm437, %v3760
      %v3979 = vld [vmem:[%s2153 + $0x74] sm:$0x1]
      %v3980 = vsel %vm2162, %v3761, %v3979
      %3981 = vst [vmem:[%s2153 + $0x74] sm:$0x1] %v3980
      %v3982 = vld [vmem:[%s2153 + $0x78] sm:$0xf]
      %v3983 = vsel %vm2156, %v3768, %v3982
      %3984 = vst [vmem:[%s2153 + $0x78] sm:$0xf] %v3983
      %3985 = vst.msk [vmem:[%s2153 + $0x7c] sm:$0xf] %vm437, %v3777
      %v3986 = vld [vmem:[%s2153 + $0x80] sm:$0x1]
      %v3987 = vsel %vm2162, %v3778, %v3986
      %3988 = vst [vmem:[%s2153 + $0x80] sm:$0x1] %v3987
      %v3989 = vld [vmem:[%s2153 + $0x84] sm:$0xf]
      %v3990 = vsel %vm2156, %v3785, %v3989
      %3991 = vst [vmem:[%s2153 + $0x84] sm:$0xf] %v3990
      %3992 = vst.msk [vmem:[%s2153 + $0x88] sm:$0xf] %vm437, %v3794
      %v3993 = vld [vmem:[%s2153 + $0x8c] sm:$0x1]
      %v3994 = vsel %vm2162, %v3795, %v3993
      %3995 = vst [vmem:[%s2153 + $0x8c] sm:$0x1] %v3994
      %v3996 = vld [vmem:[%s2153 + $0x90] sm:$0xf]
      %v3997 = vsel %vm2156, %v3802, %v3996
      %3998 = vst [vmem:[%s2153 + $0x90] sm:$0xf] %v3997
      %3999 = vst.msk [vmem:[%s2153 + $0x94] sm:$0xf] %vm437, %v3811
      %v4000 = vld [vmem:[%s2153 + $0x98] sm:$0x1]
      %v4001 = vsel %vm2162, %v3812, %v4000
      %4002 = vst [vmem:[%s2153 + $0x98] sm:$0x1] %v4001
      %v4003 = vld [vmem:[%s2153 + $0x9c] sm:$0xf]
      %v4004 = vsel %vm2156, %v3819, %v4003
      %4005 = vst [vmem:[%s2153 + $0x9c] sm:$0xf] %v4004
      %4006 = vst.msk [vmem:[%s2153 + $0xa0] sm:$0xf] %vm437, %v3828
      %v4007 = vld [vmem:[%s2153 + $0xa4] sm:$0x1]
      %v4008 = vsel %vm2162, %v3829, %v4007
      %4009 = vst [vmem:[%s2153 + $0xa4] sm:$0x1] %v4008
      %v4010 = vld [vmem:[%s2153 + $0xa8] sm:$0xf]
      %v4011 = vsel %vm2156, %v3836, %v4010
      %4012 = vst [vmem:[%s2153 + $0xa8] sm:$0xf] %v4011
      %4013 = vst.msk [vmem:[%s2153 + $0xac] sm:$0xf] %vm437, %v3845
      %v4014 = vld [vmem:[%s2153 + $0xb0] sm:$0x1]
      %v4015 = vsel %vm2162, %v3846, %v4014
      %4016 = vst [vmem:[%s2153 + $0xb0] sm:$0x1] %v4015
      %v4017 = vld [vmem:[%s2153 + $0xb4] sm:$0xf]
      %v4018 = vsel %vm2156, %v3853, %v4017
      %4019 = vst [vmem:[%s2153 + $0xb4] sm:$0xf] %v4018
      %4020 = vst.msk [vmem:[%s2153 + $0xb8] sm:$0xf] %vm437, %v3862
      %v4021 = vld [vmem:[%s2153 + $0xbc] sm:$0x1]
      %v4022 = vsel %vm2162, %v3863, %v4021
      %4023 = vst [vmem:[%s2153 + $0xbc] sm:$0x1] %v4022
      %v4024 = vld [vmem:[#allocation2] sm:$0xf]
      %v4025 = vld [vmem:[#allocation2 + $0x4] sm:$0xf]
      %v4026 = vld [vmem:[#allocation2 + $0x8] sm:$0x1]
      %v4027 = vld [vmem:[#allocation2 + $0xc] sm:$0xf]
      %v4028 = vld [vmem:[#allocation2 + $0x10] sm:$0xf]
      %v4029 = vld [vmem:[#allocation2 + $0x14] sm:$0x1]
      %v4030 = vld [vmem:[#allocation2 + $0x18] sm:$0xf]
      %v4031 = vld [vmem:[#allocation2 + $0x1c] sm:$0xf]
      %v4032 = vld [vmem:[#allocation2 + $0x20] sm:$0x1]
      %v4033 = vld [vmem:[#allocation2 + $0x24] sm:$0xf]
      %v4034 = vld [vmem:[#allocation2 + $0x28] sm:$0xf]
      %v4035 = vld [vmem:[#allocation2 + $0x2c] sm:$0x1]
      %v4036 = vld [vmem:[#allocation2 + $0x30] sm:$0xf]
      %v4037 = vld [vmem:[#allocation2 + $0x34] sm:$0xf]
      %v4038 = vld [vmem:[#allocation2 + $0x38] sm:$0x1]
      %v4039 = vld [vmem:[#allocation2 + $0x3c] sm:$0xf]
      %v4040 = vld [vmem:[#allocation2 + $0x40] sm:$0xf]
      %v4041 = vld [vmem:[#allocation2 + $0x44] sm:$0x1]
      %v4042 = vld [vmem:[#allocation2 + $0x48] sm:$0xf]
      %v4043 = vld [vmem:[#allocation2 + $0x4c] sm:$0xf]
      %v4044 = vld [vmem:[#allocation2 + $0x50] sm:$0x1]
      %v4045 = vld [vmem:[#allocation2 + $0x54] sm:$0xf]
      %v4046 = vld [vmem:[#allocation2 + $0x58] sm:$0xf]
      %v4047 = vld [vmem:[#allocation2 + $0x5c] sm:$0x1]
      %v4048 = vld [vmem:[#allocation2 + $0x60] sm:$0xf]
      %v4049 = vld [vmem:[#allocation2 + $0x64] sm:$0xf]
      %v4050 = vld [vmem:[#allocation2 + $0x68] sm:$0x1]
      %v4051 = vld [vmem:[#allocation2 + $0x6c] sm:$0xf]
      %v4052 = vld [vmem:[#allocation2 + $0x70] sm:$0xf]
      %v4053 = vld [vmem:[#allocation2 + $0x74] sm:$0x1]
      %v4054 = vld [vmem:[#allocation2 + $0x78] sm:$0xf]
      %v4055 = vld [vmem:[#allocation2 + $0x7c] sm:$0xf]
      %v4056 = vld [vmem:[#allocation2 + $0x80] sm:$0x1]
      %v4057 = vld [vmem:[#allocation2 + $0x84] sm:$0xf]
      %v4058 = vld [vmem:[#allocation2 + $0x88] sm:$0xf]
      %v4059 = vld [vmem:[#allocation2 + $0x8c] sm:$0x1]
      %v4060 = vld [vmem:[#allocation2 + $0x90] sm:$0xf]
      %v4061 = vld [vmem:[#allocation2 + $0x94] sm:$0xf]
      %v4062 = vld [vmem:[#allocation2 + $0x98] sm:$0x1]
      %v4063 = vld [vmem:[#allocation2 + $0x9c] sm:$0xf]
      %v4064 = vld [vmem:[#allocation2 + $0xa0] sm:$0xf]
      %v4065 = vld [vmem:[#allocation2 + $0xa4] sm:$0x1]
      %v4066 = vld [vmem:[#allocation2 + $0xa8] sm:$0xf]
      %v4067 = vld [vmem:[#allocation2 + $0xac] sm:$0xf]
      %v4068 = vld [vmem:[#allocation2 + $0xb0] sm:$0x1]
      %v4069 = vld [vmem:[#allocation2 + $0xb4] sm:$0xf]
      %v4070 = vld [vmem:[#allocation2 + $0xb8] sm:$0xf]
      %v4071 = vld [vmem:[#allocation2 + $0xbc] sm:$0x1]
      %v4072 = vld [vmem:[#allocation2 + $0xc0] sm:$0xf]
      %v4073 = vld [vmem:[#allocation2 + $0xc4] sm:$0xf]
      %v4074 = vld [vmem:[#allocation2 + $0xc8] sm:$0x1]
      %v4075 = vld [vmem:[#allocation2 + $0xcc] sm:$0xf]
      %v4076 = vld [vmem:[#allocation2 + $0xd0] sm:$0xf]
      %v4077 = vld [vmem:[#allocation2 + $0xd4] sm:$0x1]
      %v4110 = vunpack.c.l.b16 %v4024
      %v4111 = vunpack.c.l.b16 %v4025
      %v4112 = vunpack.c.l.b16 %v4027
      %v4113 = vunpack.c.l.b16 %v4028
      %v4114 = vunpack.c.l.b16 %v4030
      %v4115 = vunpack.c.l.b16 %v4031
      %v4116 = vunpack.c.l.b16 %v4033
      %v4117 = vunpack.c.l.b16 %v4034
      %v4118 = vunpack.c.l.b16 %v4036
      %v4119 = vunpack.c.l.b16 %v4037
      %v4120 = vunpack.c.l.b16 %v4039
      %v4121 = vunpack.c.l.b16 %v4040
      %v4122 = vunpack.c.l.b16 %v4042
      %v4123 = vunpack.c.l.b16 %v4043
      %v4124 = vunpack.c.l.b16 %v4045
      %v4125 = vunpack.c.l.b16 %v4046
      %v4126 = vunpack.c.l.b16 %v4048
      %v4127 = vunpack.c.l.b16 %v4049
      %v4128 = vunpack.c.l.b16 %v4051
      %v4129 = vunpack.c.l.b16 %v4052
      %v4130 = vunpack.c.l.b16 %v4054
      %v4131 = vunpack.c.l.b16 %v4055
      %v4132 = vunpack.c.l.b16 %v4057
      %v4133 = vunpack.c.l.b16 %v4058
      %v4134 = vunpack.c.l.b16 %v4060
      %v4135 = vunpack.c.l.b16 %v4061
      %v4136 = vunpack.c.l.b16 %v4063
      %v4137 = vunpack.c.l.b16 %v4064
      %v4138 = vunpack.c.l.b16 %v4066
      %v4139 = vunpack.c.l.b16 %v4067
      %v4140 = vunpack.c.l.b16 %v4069
      %v4141 = vunpack.c.l.b16 %v4070
      %v4142 = vpack.c.b16 %v4111, %v4110
      %v4143 = vpack.c.b16 %v4113, %v4112
      %v4144 = vpack.c.b16 %v4115, %v4114
      %v4145 = vpack.c.b16 %v4117, %v4116
      %v4146 = vpack.c.b16 %v4119, %v4118
      %v4147 = vpack.c.b16 %v4121, %v4120
      %v4148 = vpack.c.b16 %v4123, %v4122
      %v4149 = vpack.c.b16 %v4125, %v4124
      %v4150 = vpack.c.b16 %v4127, %v4126
      %v4151 = vpack.c.b16 %v4129, %v4128
      %v4152 = vpack.c.b16 %v4131, %v4130
      %v4153 = vpack.c.b16 %v4133, %v4132
      %v4154 = vpack.c.b16 %v4135, %v4134
      %v4155 = vpack.c.b16 %v4137, %v4136
      %v4156 = vpack.c.b16 %v4139, %v4138
      %v4157 = vpack.c.b16 %v4141, %v4140
      %v4174 = vunpack.c.l.b16 %v4026
      %v4175 = vunpack.c.l.b16 %v4029
      %v4176 = vunpack.c.l.b16 %v4032
      %v4177 = vunpack.c.l.b16 %v4035
      %v4178 = vunpack.c.l.b16 %v4038
      %v4179 = vunpack.c.l.b16 %v4041
      %v4180 = vunpack.c.l.b16 %v4044
      %v4181 = vunpack.c.l.b16 %v4047
      %v4182 = vunpack.c.l.b16 %v4050
      %v4183 = vunpack.c.l.b16 %v4053
      %v4184 = vunpack.c.l.b16 %v4056
      %v4185 = vunpack.c.l.b16 %v4059
      %v4186 = vunpack.c.l.b16 %v4062
      %v4187 = vunpack.c.l.b16 %v4065
      %v4188 = vunpack.c.l.b16 %v4068
      %v4189 = vunpack.c.l.b16 %v4071
      %v4190 = vpack.c.b16 %v4174, %v4174
      %v4191 = vpack.c.b16 %v4175, %v4175
      %v4192 = vpack.c.b16 %v4176, %v4176
      %v4193 = vpack.c.b16 %v4177, %v4177
      %v4194 = vpack.c.b16 %v4178, %v4178
      %v4195 = vpack.c.b16 %v4179, %v4179
      %v4196 = vpack.c.b16 %v4180, %v4180
      %v4197 = vpack.c.b16 %v4181, %v4181
      %v4198 = vpack.c.b16 %v4182, %v4182
      %v4199 = vpack.c.b16 %v4183, %v4183
      %v4200 = vpack.c.b16 %v4184, %v4184
      %v4201 = vpack.c.b16 %v4185, %v4185
      %v4202 = vpack.c.b16 %v4186, %v4186
      %v4203 = vpack.c.b16 %v4187, %v4187
      %v4204 = vpack.c.b16 %v4188, %v4188
      %v4205 = vpack.c.b16 %v4189, %v4189
      %v4207 = vshrl.u32 %v4142, 16
      %v4209 = vshll.u32 %v4142, 16
      %v4211 = vrot.slane %v4209, 1
      %v4212 = vor.u32 %v4207, %v4211
      %v4214 = vshll.u32 %v4190, 16
      %v4216 = vrot.slane %v4214, 1
      %v4217 = vsel %vm2453, %v4212, %v4216
      %v4219 = vshrl.u32 %v4143, 16
      %v4221 = vshll.u32 %v4143, 16
      %v4223 = vrot.slane %v4221, 1
      %v4224 = vor.u32 %v4219, %v4223
      %v4226 = vshll.u32 %v4191, 16
      %v4228 = vrot.slane %v4226, 1
      %v4229 = vsel %vm2453, %v4224, %v4228
      %v4231 = vshrl.u32 %v4144, 16
      %v4233 = vshll.u32 %v4144, 16
      %v4235 = vrot.slane %v4233, 1
      %v4236 = vor.u32 %v4231, %v4235
      %v4238 = vshll.u32 %v4192, 16
      %v4240 = vrot.slane %v4238, 1
      %v4241 = vsel %vm2453, %v4236, %v4240
      %v4243 = vshrl.u32 %v4145, 16
      %v4245 = vshll.u32 %v4145, 16
      %v4247 = vrot.slane %v4245, 1
      %v4248 = vor.u32 %v4243, %v4247
      %v4250 = vshll.u32 %v4193, 16
      %v4252 = vrot.slane %v4250, 1
      %v4253 = vsel %vm2453, %v4248, %v4252
      %v4255 = vshrl.u32 %v4146, 16
      %v4257 = vshll.u32 %v4146, 16
      %v4259 = vrot.slane %v4257, 1
      %v4260 = vor.u32 %v4255, %v4259
      %v4262 = vshll.u32 %v4194, 16
      %v4264 = vrot.slane %v4262, 1
      %v4265 = vsel %vm2453, %v4260, %v4264
      %v4267 = vshrl.u32 %v4147, 16
      %v4269 = vshll.u32 %v4147, 16
      %v4271 = vrot.slane %v4269, 1
      %v4272 = vor.u32 %v4267, %v4271
      %v4274 = vshll.u32 %v4195, 16
      %v4276 = vrot.slane %v4274, 1
      %v4277 = vsel %vm2453, %v4272, %v4276
      %v4279 = vshrl.u32 %v4148, 16
      %v4281 = vshll.u32 %v4148, 16
      %v4283 = vrot.slane %v4281, 1
      %v4284 = vor.u32 %v4279, %v4283
      %v4286 = vshll.u32 %v4196, 16
      %v4288 = vrot.slane %v4286, 1
      %v4289 = vsel %vm2453, %v4284, %v4288
      %v4291 = vshrl.u32 %v4149, 16
      %v4293 = vshll.u32 %v4149, 16
      %v4295 = vrot.slane %v4293, 1
      %v4296 = vor.u32 %v4291, %v4295
      %v4298 = vshll.u32 %v4197, 16
      %v4300 = vrot.slane %v4298, 1
      %v4301 = vsel %vm2453, %v4296, %v4300
      %v4303 = vshrl.u32 %v4150, 16
      %v4305 = vshll.u32 %v4150, 16
      %v4307 = vrot.slane %v4305, 1
      %v4308 = vor.u32 %v4303, %v4307
      %v4310 = vshll.u32 %v4198, 16
      %v4312 = vrot.slane %v4310, 1
      %v4313 = vsel %vm2453, %v4308, %v4312
      %v4315 = vshrl.u32 %v4151, 16
      %v4317 = vshll.u32 %v4151, 16
      %v4319 = vrot.slane %v4317, 1
      %v4320 = vor.u32 %v4315, %v4319
      %v4322 = vshll.u32 %v4199, 16
      %v4324 = vrot.slane %v4322, 1
      %v4325 = vsel %vm2453, %v4320, %v4324
      %v4327 = vshrl.u32 %v4152, 16
      %v4329 = vshll.u32 %v4152, 16
      %v4331 = vrot.slane %v4329, 1
      %v4332 = vor.u32 %v4327, %v4331
      %v4334 = vshll.u32 %v4200, 16
      %v4336 = vrot.slane %v4334, 1
      %v4337 = vsel %vm2453, %v4332, %v4336
      %v4339 = vshrl.u32 %v4153, 16
      %v4341 = vshll.u32 %v4153, 16
      %v4343 = vrot.slane %v4341, 1
      %v4344 = vor.u32 %v4339, %v4343
      %v4346 = vshll.u32 %v4201, 16
      %v4348 = vrot.slane %v4346, 1
      %v4349 = vsel %vm2453, %v4344, %v4348
      %v4351 = vshrl.u32 %v4154, 16
      %v4353 = vshll.u32 %v4154, 16
      %v4355 = vrot.slane %v4353, 1
      %v4356 = vor.u32 %v4351, %v4355
      %v4358 = vshll.u32 %v4202, 16
      %v4360 = vrot.slane %v4358, 1
      %v4361 = vsel %vm2453, %v4356, %v4360
      %v4363 = vshrl.u32 %v4155, 16
      %v4365 = vshll.u32 %v4155, 16
      %v4367 = vrot.slane %v4365, 1
      %v4368 = vor.u32 %v4363, %v4367
      %v4370 = vshll.u32 %v4203, 16
      %v4372 = vrot.slane %v4370, 1
      %v4373 = vsel %vm2453, %v4368, %v4372
      %v4375 = vshrl.u32 %v4156, 16
      %v4377 = vshll.u32 %v4156, 16
      %v4379 = vrot.slane %v4377, 1
      %v4380 = vor.u32 %v4375, %v4379
      %v4382 = vshll.u32 %v4204, 16
      %v4384 = vrot.slane %v4382, 1
      %v4385 = vsel %vm2453, %v4380, %v4384
      %v4387 = vshrl.u32 %v4157, 16
      %v4389 = vshll.u32 %v4157, 16
      %v4391 = vrot.slane %v4389, 1
      %v4392 = vor.u32 %v4387, %v4391
      %v4394 = vshll.u32 %v4205, 16
      %v4396 = vrot.slane %v4394, 1
      %v4397 = vsel %vm2453, %v4392, %v4396
      %4398 = vrot.lane.b32.xlu0 %v4217, 16
      %v4399 = vpop.permute.xlu0 %4398
      %4400 = vrot.lane.b32.xlu0 %v4229, 16
      %v4401 = vpop.permute.xlu0 %4400
      %4402 = vrot.lane.b32.xlu0 %v4241, 16
      %v4403 = vpop.permute.xlu0 %4402
      %4404 = vrot.lane.b32.xlu0 %v4253, 16
      %v4405 = vpop.permute.xlu0 %4404
      %4406 = vrot.lane.b32.xlu0 %v4265, 16
      %v4407 = vpop.permute.xlu0 %4406
      %4408 = vrot.lane.b32.xlu0 %v4277, 16
      %v4409 = vpop.permute.xlu0 %4408
      %4410 = vrot.lane.b32.xlu0 %v4289, 16
      %v4411 = vpop.permute.xlu0 %4410
      %4412 = vrot.lane.b32.xlu0 %v4301, 16
      %v4413 = vpop.permute.xlu0 %4412
      %4414 = vrot.lane.b32.xlu0 %v4313, 16
      %v4415 = vpop.permute.xlu0 %4414
      %4416 = vrot.lane.b32.xlu0 %v4325, 16
      %v4417 = vpop.permute.xlu0 %4416
      %4418 = vrot.lane.b32.xlu0 %v4337, 16
      %v4419 = vpop.permute.xlu0 %4418
      %4420 = vrot.lane.b32.xlu0 %v4349, 16
      %v4421 = vpop.permute.xlu0 %4420
      %4422 = vrot.lane.b32.xlu0 %v4361, 16
      %v4423 = vpop.permute.xlu0 %4422
      %4424 = vrot.lane.b32.xlu0 %v4373, 16
      %v4425 = vpop.permute.xlu0 %4424
      %4426 = vrot.lane.b32.xlu0 %v4385, 16
      %v4427 = vpop.permute.xlu0 %4426
      %4428 = vrot.lane.b32.xlu0 %v4397, 16
      %v4429 = vpop.permute.xlu0 %4428
      %v4430 = vrot.slane %v4142, 1
      %v4431 = vrot.slane %v4190, 1
      %v4432 = vsel %vm2678, %v4430, %v4431
      %v4433 = vrot.slane %v4143, 1
      %v4434 = vrot.slane %v4191, 1
      %v4435 = vsel %vm2678, %v4433, %v4434
      %v4436 = vrot.slane %v4144, 1
      %v4437 = vrot.slane %v4192, 1
      %v4438 = vsel %vm2678, %v4436, %v4437
      %v4439 = vrot.slane %v4145, 1
      %v4440 = vrot.slane %v4193, 1
      %v4441 = vsel %vm2678, %v4439, %v4440
      %v4442 = vrot.slane %v4146, 1
      %v4443 = vrot.slane %v4194, 1
      %v4444 = vsel %vm2678, %v4442, %v4443
      %v4445 = vrot.slane %v4147, 1
      %v4446 = vrot.slane %v4195, 1
      %v4447 = vsel %vm2678, %v4445, %v4446
      %v4448 = vrot.slane %v4148, 1
      %v4449 = vrot.slane %v4196, 1
      %v4450 = vsel %vm2678, %v4448, %v4449
      %v4451 = vrot.slane %v4149, 1
      %v4452 = vrot.slane %v4197, 1
      %v4453 = vsel %vm2678, %v4451, %v4452
      %v4454 = vrot.slane %v4150, 1
      %v4455 = vrot.slane %v4198, 1
      %v4456 = vsel %vm2678, %v4454, %v4455
      %v4457 = vrot.slane %v4151, 1
      %v4458 = vrot.slane %v4199, 1
      %v4459 = vsel %vm2678, %v4457, %v4458
      %v4460 = vrot.slane %v4152, 1
      %v4461 = vrot.slane %v4200, 1
      %v4462 = vsel %vm2678, %v4460, %v4461
      %v4463 = vrot.slane %v4153, 1
      %v4464 = vrot.slane %v4201, 1
      %v4465 = vsel %vm2678, %v4463, %v4464
      %v4466 = vrot.slane %v4154, 1
      %v4467 = vrot.slane %v4202, 1
      %v4468 = vsel %vm2678, %v4466, %v4467
      %v4469 = vrot.slane %v4155, 1
      %v4470 = vrot.slane %v4203, 1
      %v4471 = vsel %vm2678, %v4469, %v4470
      %v4472 = vrot.slane %v4156, 1
      %v4473 = vrot.slane %v4204, 1
      %v4474 = vsel %vm2678, %v4472, %v4473
      %v4475 = vrot.slane %v4157, 1
      %v4476 = vrot.slane %v4205, 1
      %v4477 = vsel %vm2678, %v4475, %v4476
      %4478 = vrot.lane.b32.xlu0 %v4432, 32
      %v4479 = vpop.permute.xlu0 %4478
      %4480 = vrot.lane.b32.xlu0 %v4435, 32
      %v4481 = vpop.permute.xlu0 %4480
      %4482 = vrot.lane.b32.xlu0 %v4438, 32
      %v4483 = vpop.permute.xlu0 %4482
      %4484 = vrot.lane.b32.xlu0 %v4441, 32
      %v4485 = vpop.permute.xlu0 %4484
      %4486 = vrot.lane.b32.xlu0 %v4444, 32
      %v4487 = vpop.permute.xlu0 %4486
      %4488 = vrot.lane.b32.xlu0 %v4447, 32
      %v4489 = vpop.permute.xlu0 %4488
      %4490 = vrot.lane.b32.xlu0 %v4450, 32
      %v4491 = vpop.permute.xlu0 %4490
      %4492 = vrot.lane.b32.xlu0 %v4453, 32
      %v4493 = vpop.permute.xlu0 %4492
      %4494 = vrot.lane.b32.xlu0 %v4456, 32
      %v4495 = vpop.permute.xlu0 %4494
      %4496 = vrot.lane.b32.xlu0 %v4459, 32
      %v4497 = vpop.permute.xlu0 %4496
      %4498 = vrot.lane.b32.xlu0 %v4462, 32
      %v4499 = vpop.permute.xlu0 %4498
      %4500 = vrot.lane.b32.xlu0 %v4465, 32
      %v4501 = vpop.permute.xlu0 %4500
      %4502 = vrot.lane.b32.xlu0 %v4468, 32
      %v4503 = vpop.permute.xlu0 %4502
      %4504 = vrot.lane.b32.xlu0 %v4471, 32
      %v4505 = vpop.permute.xlu0 %4504
      %4506 = vrot.lane.b32.xlu0 %v4474, 32
      %v4507 = vpop.permute.xlu0 %4506
      %4508 = vrot.lane.b32.xlu0 %v4477, 32
      %v4509 = vpop.permute.xlu0 %4508
      %v4511 = vsel %vm647, %v4142, %v4399
      %v4513 = vsel %vm647, %v4143, %v4401
      %v4515 = vsel %vm647, %v4144, %v4403
      %v4517 = vsel %vm647, %v4145, %v4405
      %v4519 = vsel %vm647, %v4146, %v4407
      %v4521 = vsel %vm647, %v4147, %v4409
      %v4523 = vsel %vm647, %v4148, %v4411
      %v4525 = vsel %vm647, %v4149, %v4413
      %v4527 = vsel %vm647, %v4150, %v4415
      %v4529 = vsel %vm647, %v4151, %v4417
      %v4531 = vsel %vm647, %v4152, %v4419
      %v4533 = vsel %vm647, %v4153, %v4421
      %v4535 = vsel %vm647, %v4154, %v4423
      %v4537 = vsel %vm647, %v4155, %v4425
      %v4539 = vsel %vm647, %v4156, %v4427
      %v4541 = vsel %vm647, %v4157, %v4429
      %v4543 = vsel %vm2791, %v4511, %v4479
      %v4545 = vsel %vm2791, %v4513, %v4481
      %v4547 = vsel %vm2791, %v4515, %v4483
      %v4549 = vsel %vm2791, %v4517, %v4485
      %v4551 = vsel %vm2791, %v4519, %v4487
      %v4553 = vsel %vm2791, %v4521, %v4489
      %v4555 = vsel %vm2791, %v4523, %v4491
      %v4557 = vsel %vm2791, %v4525, %v4493
      %v4559 = vsel %vm2791, %v4527, %v4495
      %v4561 = vsel %vm2791, %v4529, %v4497
      %v4563 = vsel %vm2791, %v4531, %v4499
      %v4565 = vsel %vm2791, %v4533, %v4501
      %v4567 = vsel %vm2791, %v4535, %v4503
      %v4569 = vsel %vm2791, %v4537, %v4505
      %v4571 = vsel %vm2791, %v4539, %v4507
      %v4573 = vsel %vm2791, %v4541, %v4509
      %v4574 = vld [vmem:[%s8] sm:$0xf]
      %v4575 = vld [vmem:[%s8 + $0x4] sm:$0xf]
      %v4576 = vld [vmem:[%s8 + $0x8] sm:$0xf]
      %v4577 = vld [vmem:[%s8 + $0xc] sm:$0xf]
      %v4578 = vld [vmem:[%s8 + $0x10] sm:$0xf]
      %v4579 = vld [vmem:[%s8 + $0x14] sm:$0xf]
      %v4586 = vunpack.c.l.b16 %v4574
      %v4587 = vunpack.c.l.b16 %v4575
      %v4588 = vunpack.c.l.b16 %v4576
      %v4589 = vunpack.c.l.b16 %v4577
      %v4590 = vunpack.c.l.b16 %v4578
      %v4591 = vunpack.c.l.b16 %v4579
      %v4592 = vpack.c.b16 %v4587, %v4586
      %v4593 = vpack.c.b16 %v4589, %v4588
      %v4594 = vpack.c.b16 %v4591, %v4590
      %v4598 = vsel %vm2886, %v4543, 0
      %v4600 = vsel %vm2886, %v4545, 0
      %v4602 = vsel %vm2886, %v4547, 0
      %v4604 = vsel %vm2886, %v4549, 0
      %v4606 = vsel %vm2886, %v4551, 0
      %v4608 = vsel %vm2886, %v4553, 0
      %v4610 = vsel %vm2886, %v4555, 0
      %v4612 = vsel %vm2886, %v4557, 0
      %v4614 = vsel %vm2886, %v4559, 0
      %v4616 = vsel %vm2886, %v4561, 0
      %v4618 = vsel %vm2886, %v4563, 0
      %v4620 = vsel %vm2886, %v4565, 0
      %v4622 = vsel %vm2886, %v4567, 0
      %v4624 = vsel %vm2886, %v4569, 0
      %v4626 = vsel %vm2886, %v4571, 0
      %v4628 = vsel %vm2886, %v4573, 0
      %4630 = vmatprep.subr.bf16.mxu0 0
      %4631 = vmatpush1.bf16.msra.mxu0 %v4592
      %4632 = vmatprep.subr.bf16.mxu0 0
      %4633 = vmatpush1.bf16.msra.mxu0 %v4593
      %4634 = vmatprep.subr.bf16.mxu0 0
      %4635 = vmatpush1.bf16.msra.mxu0 %v4594
      %4636 = vmatprep.subr.bf16.mxu0 0
      %4637 = vmatpush1.bf16.msra.mxu0 0
      %4638 = vmatprep.subr.bf16.mxu0 0
      %4639 = vmatpush1.bf16.msra.mxu0 0
      %4640 = vmatprep.subr.bf16.mxu0 0
      %4641 = vmatpush1.bf16.msra.mxu0 0
      %4642 = vmatprep.subr.bf16.mxu0 0
      %4643 = vmatpush1.bf16.msra.mxu0 0
      %4644 = vmatprep.subr.bf16.mxu0 0
      %4645 = vmatpush1.bf16.msra.mxu0 0
      %4646 = vmatprep.subr.bf16.mxu0 0
      %4647 = vmatpush1.bf16.msra.mxu0 0
      %4648 = vmatprep.subr.bf16.mxu0 0
      %4649 = vmatpush1.bf16.msra.mxu0 0
      %4650 = vmatprep.subr.bf16.mxu0 0
      %4651 = vmatpush1.bf16.msra.mxu0 0
      %4652 = vmatprep.subr.bf16.mxu0 0
      %4653 = vmatpush1.bf16.msra.mxu0 0
      %4654 = vmatprep.subr.bf16.mxu0 0
      %4655 = vmatpush1.bf16.msra.mxu0 0
      %4656 = vmatprep.subr.bf16.mxu0 0
      %4657 = vmatpush1.bf16.msra.mxu0 0
      %4658 = vmatprep.subr.bf16.mxu0 0
      %4659 = vmatpush1.bf16.msra.mxu0 0
      %4660 = vmatprep.subr.bf16.mxu0 0
      %4661 = vmatpush1.bf16.msra.mxu0 0
      %4662 = vmatprep.mubr.bf16.mxu0 0
      %4663 = vmatmul.mubr.bf16.gmra.mrb[0].mxu0 %v4598
      %v4664 = vpop.f32.mrb[0].mxu0
      %v4665 = vadd.f32 0.0, %v4664
      %v4666 = vpop.f32.mrb[0].mxu0
      %v4667 = vpop.f32.mrb[0].mxu0
      %v4668 = vadd.f32 0.0, %v4667
      %v4669 = vpop.f32.mrb[0].mxu0
      %4670 = vmatprep.mubr.bf16.mxu0 0
      %4671 = vmatmul.mubr.bf16.gmra.mrb[0].mxu0 %v4600
      %v4672 = vpop.f32.mrb[0].mxu0
      %v4673 = vadd.f32 0.0, %v4672
      %v4674 = vpop.f32.mrb[0].mxu0
      %v4675 = vpop.f32.mrb[0].mxu0
      %v4676 = vadd.f32 0.0, %v4675
      %v4677 = vpop.f32.mrb[0].mxu0
      %4678 = vmatprep.mubr.bf16.mxu0 0
      %4679 = vmatmul.mubr.bf16.gmra.mrb[0].mxu0 %v4602
      %v4680 = vpop.f32.mrb[0].mxu0
      %v4681 = vadd.f32 0.0, %v4680
      %v4682 = vpop.f32.mrb[0].mxu0
      %v4683 = vpop.f32.mrb[0].mxu0
      %v4684 = vadd.f32 0.0, %v4683
      %v4685 = vpop.f32.mrb[0].mxu0
      %4686 = vmatprep.mubr.bf16.mxu0 0
      %4687 = vmatmul.mubr.bf16.gmra.mrb[0].mxu0 %v4604
      %v4688 = vpop.f32.mrb[0].mxu0
      %v4689 = vadd.f32 0.0, %v4688
      %v4690 = vpop.f32.mrb[0].mxu0
      %v4691 = vpop.f32.mrb[0].mxu0
      %v4692 = vadd.f32 0.0, %v4691
      %v4693 = vpop.f32.mrb[0].mxu0
      %4694 = vmatprep.mubr.bf16.mxu0 0
      %4695 = vmatmul.mubr.bf16.gmra.mrb[0].mxu0 %v4606
      %v4696 = vpop.f32.mrb[0].mxu0
      %v4697 = vadd.f32 0.0, %v4696
      %v4698 = vpop.f32.mrb[0].mxu0
      %v4699 = vpop.f32.mrb[0].mxu0
      %v4700 = vadd.f32 0.0, %v4699
      %v4701 = vpop.f32.mrb[0].mxu0
      %4702 = vmatprep.mubr.bf16.mxu0 0
      %4703 = vmatmul.mubr.bf16.gmra.mrb[0].mxu0 %v4608
      %v4704 = vpop.f32.mrb[0].mxu0
      %v4705 = vadd.f32 0.0, %v4704
      %v4706 = vpop.f32.mrb[0].mxu0
      %v4707 = vpop.f32.mrb[0].mxu0
      %v4708 = vadd.f32 0.0, %v4707
      %v4709 = vpop.f32.mrb[0].mxu0
      %4710 = vmatprep.mubr.bf16.mxu0 0
      %4711 = vmatmul.mubr.bf16.gmra.mrb[0].mxu0 %v4610
      %v4712 = vpop.f32.mrb[0].mxu0
      %v4713 = vadd.f32 0.0, %v4712
      %v4714 = vpop.f32.mrb[0].mxu0
      %v4715 = vpop.f32.mrb[0].mxu0
      %v4716 = vadd.f32 0.0, %v4715
      %v4717 = vpop.f32.mrb[0].mxu0
      %4718 = vmatprep.mubr.bf16.mxu0 0
      %4719 = vmatmul.mubr.bf16.gmra.mrb[0].mxu0 %v4612
      %v4720 = vpop.f32.mrb[0].mxu0
      %v4721 = vadd.f32 0.0, %v4720
      %v4722 = vpop.f32.mrb[0].mxu0
      %v4723 = vpop.f32.mrb[0].mxu0
      %v4724 = vadd.f32 0.0, %v4723
      %v4725 = vpop.f32.mrb[0].mxu0
      %4726 = vmatprep.mubr.bf16.mxu0 0
      %4727 = vmatmul.mubr.bf16.gmra.mrb[0].mxu0 %v4614
      %v4728 = vpop.f32.mrb[0].mxu0
      %v4729 = vadd.f32 0.0, %v4728
      %v4730 = vpop.f32.mrb[0].mxu0
      %v4731 = vpop.f32.mrb[0].mxu0
      %v4732 = vadd.f32 0.0, %v4731
      %v4733 = vpop.f32.mrb[0].mxu0
      %4734 = vmatprep.mubr.bf16.mxu0 0
      %4735 = vmatmul.mubr.bf16.gmra.mrb[0].mxu0 %v4616
      %v4736 = vpop.f32.mrb[0].mxu0
      %v4737 = vadd.f32 0.0, %v4736
      %v4738 = vpop.f32.mrb[0].mxu0
      %v4739 = vpop.f32.mrb[0].mxu0
      %v4740 = vadd.f32 0.0, %v4739
      %v4741 = vpop.f32.mrb[0].mxu0
      %4742 = vmatprep.mubr.bf16.mxu0 0
      %4743 = vmatmul.mubr.bf16.gmra.mrb[0].mxu0 %v4618
      %v4744 = vpop.f32.mrb[0].mxu0
      %v4745 = vadd.f32 0.0, %v4744
      %v4746 = vpop.f32.mrb[0].mxu0
      %v4747 = vpop.f32.mrb[0].mxu0
      %v4748 = vadd.f32 0.0, %v4747
      %v4749 = vpop.f32.mrb[0].mxu0
      %4750 = vmatprep.mubr.bf16.mxu0 0
      %4751 = vmatmul.mubr.bf16.gmra.mrb[0].mxu0 %v4620
      %v4752 = vpop.f32.mrb[0].mxu0
      %v4753 = vadd.f32 0.0, %v4752
      %v4754 = vpop.f32.mrb[0].mxu0
      %v4755 = vpop.f32.mrb[0].mxu0
      %v4756 = vadd.f32 0.0, %v4755
      %v4757 = vpop.f32.mrb[0].mxu0
      %4758 = vmatprep.mubr.bf16.mxu0 0
      %4759 = vmatmul.mubr.bf16.gmra.mrb[0].mxu0 %v4622
      %v4760 = vpop.f32.mrb[0].mxu0
      %v4761 = vadd.f32 0.0, %v4760
      %v4762 = vpop.f32.mrb[0].mxu0
      %v4763 = vpop.f32.mrb[0].mxu0
      %v4764 = vadd.f32 0.0, %v4763
      %v4765 = vpop.f32.mrb[0].mxu0
      %4766 = vmatprep.mubr.bf16.mxu0 0
      %4767 = vmatmul.mubr.bf16.gmra.mrb[0].mxu0 %v4624
      %v4768 = vpop.f32.mrb[0].mxu0
      %v4769 = vadd.f32 0.0, %v4768
      %v4770 = vpop.f32.mrb[0].mxu0
      %v4771 = vpop.f32.mrb[0].mxu0
      %v4772 = vadd.f32 0.0, %v4771
      %v4773 = vpop.f32.mrb[0].mxu0
      %4774 = vmatprep.mubr.bf16.mxu0 0
      %4775 = vmatmul.mubr.bf16.gmra.mrb[0].mxu0 %v4626
      %v4776 = vpop.f32.mrb[0].mxu0
      %v4777 = vadd.f32 0.0, %v4776
      %v4778 = vpop.f32.mrb[0].mxu0
      %v4779 = vpop.f32.mrb[0].mxu0
      %v4780 = vadd.f32 0.0, %v4779
      %v4781 = vpop.f32.mrb[0].mxu0
      %4782 = vmatprep.mubr.bf16.mxu0 0
      %4783 = vmatmul.mubr.bf16.gmra.mrb[0].mxu0 %v4628
      %v4784 = vpop.f32.mrb[0].mxu0
      %v4785 = vadd.f32 0.0, %v4784
      %v4786 = vpop.f32.mrb[0].mxu0
      %v4787 = vpop.f32.mrb[0].mxu0
      %v4788 = vadd.f32 0.0, %v4787
      %v4789 = vpop.f32.mrb[0].mxu0
      %4790 = vdwg.mxu0
      %v4791 = vadd.f32 %v3480, %v4665
      %v4792 = vadd.f32 %v3481, %v4668
      %v4793 = vadd.f32 %v3482, %v4673
      %v4794 = vadd.f32 %v3483, %v4676
      %v4795 = vadd.f32 %v3484, %v4681
      %v4796 = vadd.f32 %v3485, %v4684
      %v4797 = vadd.f32 %v3486, %v4689
      %v4798 = vadd.f32 %v3487, %v4692
      %v4799 = vadd.f32 %v3488, %v4697
      %v4800 = vadd.f32 %v3489, %v4700
      %v4801 = vadd.f32 %v3490, %v4705
      %v4802 = vadd.f32 %v3491, %v4708
      %v4803 = vadd.f32 %v3492, %v4713
      %v4804 = vadd.f32 %v3493, %v4716
      %v4805 = vadd.f32 %v3494, %v4721
      %v4806 = vadd.f32 %v3495, %v4724
      %v4807 = vadd.f32 %v3496, %v4729
      %v4808 = vadd.f32 %v3497, %v4732
      %v4809 = vadd.f32 %v3498, %v4737
      %v4810 = vadd.f32 %v3499, %v4740
      %v4811 = vadd.f32 %v3500, %v4745
      %v4812 = vadd.f32 %v3501, %v4748
      %v4813 = vadd.f32 %v3502, %v4753
      %v4814 = vadd.f32 %v3503, %v4756
      %v4815 = vadd.f32 %v3504, %v4761
      %v4816 = vadd.f32 %v3505, %v4764
      %v4817 = vadd.f32 %v3506, %v4769
      %v4818 = vadd.f32 %v3507, %v4772
      %v4819 = vadd.f32 %v3508, %v4777
      %v4820 = vadd.f32 %v3509, %v4780
      %v4821 = vadd.f32 %v3510, %v4785
      %v4822 = vadd.f32 %v3511, %v4788
      %v4825 = vunpack.c.l.b16 %v4072
      %v4826 = vunpack.c.l.b16 %v4073
      %v4827 = vpack.c.b16 %v4826, %v4825
      %v4829 = vunpack.c.l.b16 %v4074
      %v4830 = vpack.c.b16 %v4829, %v4829
      %v4832 = vshrl.u32 %v4827, 16
      %v4834 = vshll.u32 %v4827, 16
      %v4836 = vrot.slane %v4834, 1
      %v4837 = vor.u32 %v4832, %v4836
      %v4839 = vshll.u32 %v4830, 16
      %v4841 = vrot.slane %v4839, 1
      %v4842 = vsel %vm2453, %v4837, %v4841
      %4843 = vrot.lane.b32.xlu0 %v4842, 16
      %v4844 = vpop.permute.xlu0 %4843
      %v4845 = vrot.slane %v4827, 1
      %v4846 = vrot.slane %v4830, 1
      %v4847 = vsel %vm2678, %v4845, %v4846
      %4848 = vrot.lane.b32.xlu0 %v4847, 32
      %v4849 = vpop.permute.xlu0 %4848
      %v4851 = vsel %vm647, %v4827, %v4844
      %v4853 = vsel %vm2791, %v4851, %v4849
      %s4854 = scalar_lea.vmem %s8, 24
      %v4855 = vld [vmem:[%s4854] sm:$0xf]
      %v4856 = vld [vmem:[%s4854 + $0x4] sm:$0xf]
      %v4857 = vld [vmem:[%s4854 + $0x8] sm:$0xf]
      %v4858 = vld [vmem:[%s4854 + $0xc] sm:$0xf]
      %v4859 = vld [vmem:[%s4854 + $0x10] sm:$0xf]
      %v4860 = vld [vmem:[%s4854 + $0x14] sm:$0xf]
      %v4867 = vunpack.c.l.b16 %v4855
      %v4868 = vunpack.c.l.b16 %v4856
      %v4869 = vunpack.c.l.b16 %v4857
      %v4870 = vunpack.c.l.b16 %v4858
      %v4871 = vunpack.c.l.b16 %v4859
      %v4872 = vunpack.c.l.b16 %v4860
      %v4873 = vpack.c.b16 %v4868, %v4867
      %v4874 = vpack.c.b16 %v4870, %v4869
      %v4875 = vpack.c.b16 %v4872, %v4871
      %v4879 = vsel %vm2886, %v4853, 0
      %4881 = vmatprep.subr.bf16.mxu0 0
      %4882 = vmatpush1.bf16.msra.mxu0 %v4873
      %4883 = vmatprep.subr.bf16.mxu0 0
      %4884 = vmatpush1.bf16.msra.mxu0 %v4874
      %4885 = vmatprep.subr.bf16.mxu0 0
      %4886 = vmatpush1.bf16.msra.mxu0 %v4875
      %4887 = vmatprep.subr.bf16.mxu0 0
      %4888 = vmatpush1.bf16.msra.mxu0 0
      %4889 = vmatprep.subr.bf16.mxu0 0
      %4890 = vmatpush1.bf16.msra.mxu0 0
      %4891 = vmatprep.subr.bf16.mxu0 0
      %4892 = vmatpush1.bf16.msra.mxu0 0
      %4893 = vmatprep.subr.bf16.mxu0 0
      %4894 = vmatpush1.bf16.msra.mxu0 0
      %4895 = vmatprep.subr.bf16.mxu0 0
      %4896 = vmatpush1.bf16.msra.mxu0 0
      %4897 = vmatprep.subr.bf16.mxu0 0
      %4898 = vmatpush1.bf16.msra.mxu0 0
      %4899 = vmatprep.subr.bf16.mxu0 0
      %4900 = vmatpush1.bf16.msra.mxu0 0
      %4901 = vmatprep.subr.bf16.mxu0 0
      %4902 = vmatpush1.bf16.msra.mxu0 0
      %4903 = vmatprep.subr.bf16.mxu0 0
      %4904 = vmatpush1.bf16.msra.mxu0 0
      %4905 = vmatprep.subr.bf16.mxu0 0
      %4906 = vmatpush1.bf16.msra.mxu0 0
      %4907 = vmatprep.subr.bf16.mxu0 0
      %4908 = vmatpush1.bf16.msra.mxu0 0
      %4909 = vmatprep.subr.bf16.mxu0 0
      %4910 = vmatpush1.bf16.msra.mxu0 0
      %4911 = vmatprep.subr.bf16.mxu0 0
      %4912 = vmatpush1.bf16.msra.mxu0 0
      %4913 = vmatprep.mubr.bf16.mxu0 0
      %4914 = vmatmul.mubr.bf16.gmra.mrb[0].mxu0 %v4600
      %v4915 = vpop.f32.mrb[0].mxu0
      %v4916 = vadd.f32 0.0, %v4915
      %v4917 = vpop.f32.mrb[0].mxu0
      %v4918 = vpop.f32.mrb[0].mxu0
      %v4919 = vadd.f32 0.0, %v4918
      %v4920 = vpop.f32.mrb[0].mxu0
      %4921 = vmatprep.mubr.bf16.mxu0 0
      %4922 = vmatmul.mubr.bf16.gmra.mrb[0].mxu0 %v4602
      %v4923 = vpop.f32.mrb[0].mxu0
      %v4924 = vadd.f32 0.0, %v4923
      %v4925 = vpop.f32.mrb[0].mxu0
      %v4926 = vpop.f32.mrb[0].mxu0
      %v4927 = vadd.f32 0.0, %v4926
      %v4928 = vpop.f32.mrb[0].mxu0
      %4929 = vmatprep.mubr.bf16.mxu0 0
      %4930 = vmatmul.mubr.bf16.gmra.mrb[0].mxu0 %v4604
      %v4931 = vpop.f32.mrb[0].mxu0
      %v4932 = vadd.f32 0.0, %v4931
      %v4933 = vpop.f32.mrb[0].mxu0
      %v4934 = vpop.f32.mrb[0].mxu0
      %v4935 = vadd.f32 0.0, %v4934
      %v4936 = vpop.f32.mrb[0].mxu0
      %4937 = vmatprep.mubr.bf16.mxu0 0
      %4938 = vmatmul.mubr.bf16.gmra.mrb[0].mxu0 %v4606
      %v4939 = vpop.f32.mrb[0].mxu0
      %v4940 = vadd.f32 0.0, %v4939
      %v4941 = vpop.f32.mrb[0].mxu0
      %v4942 = vpop.f32.mrb[0].mxu0
      %v4943 = vadd.f32 0.0, %v4942
      %v4944 = vpop.f32.mrb[0].mxu0
      %4945 = vmatprep.mubr.bf16.mxu0 0
      %4946 = vmatmul.mubr.bf16.gmra.mrb[0].mxu0 %v4608
      %v4947 = vpop.f32.mrb[0].mxu0
      %v4948 = vadd.f32 0.0, %v4947
      %v4949 = vpop.f32.mrb[0].mxu0
      %v4950 = vpop.f32.mrb[0].mxu0
      %v4951 = vadd.f32 0.0, %v4950
      %v4952 = vpop.f32.mrb[0].mxu0
      %4953 = vmatprep.mubr.bf16.mxu0 0
      %4954 = vmatmul.mubr.bf16.gmra.mrb[0].mxu0 %v4610
      %v4955 = vpop.f32.mrb[0].mxu0
      %v4956 = vadd.f32 0.0, %v4955
      %v4957 = vpop.f32.mrb[0].mxu0
      %v4958 = vpop.f32.mrb[0].mxu0
      %v4959 = vadd.f32 0.0, %v4958
      %v4960 = vpop.f32.mrb[0].mxu0
      %4961 = vmatprep.mubr.bf16.mxu0 0
      %4962 = vmatmul.mubr.bf16.gmra.mrb[0].mxu0 %v4612
      %v4963 = vpop.f32.mrb[0].mxu0
      %v4964 = vadd.f32 0.0, %v4963
      %v4965 = vpop.f32.mrb[0].mxu0
      %v4966 = vpop.f32.mrb[0].mxu0
      %v4967 = vadd.f32 0.0, %v4966
      %v4968 = vpop.f32.mrb[0].mxu0
      %4969 = vmatprep.mubr.bf16.mxu0 0
      %4970 = vmatmul.mubr.bf16.gmra.mrb[0].mxu0 %v4614
      %v4971 = vpop.f32.mrb[0].mxu0
      %v4972 = vadd.f32 0.0, %v4971
      %v4973 = vpop.f32.mrb[0].mxu0
      %v4974 = vpop.f32.mrb[0].mxu0
      %v4975 = vadd.f32 0.0, %v4974
      %v4976 = vpop.f32.mrb[0].mxu0
      %4977 = vmatprep.mubr.bf16.mxu0 0
      %4978 = vmatmul.mubr.bf16.gmra.mrb[0].mxu0 %v4616
      %v4979 = vpop.f32.mrb[0].mxu0
      %v4980 = vadd.f32 0.0, %v4979
      %v4981 = vpop.f32.mrb[0].mxu0
      %v4982 = vpop.f32.mrb[0].mxu0
      %v4983 = vadd.f32 0.0, %v4982
      %v4984 = vpop.f32.mrb[0].mxu0
      %4985 = vmatprep.mubr.bf16.mxu0 0
      %4986 = vmatmul.mubr.bf16.gmra.mrb[0].mxu0 %v4618
      %v4987 = vpop.f32.mrb[0].mxu0
      %v4988 = vadd.f32 0.0, %v4987
      %v4989 = vpop.f32.mrb[0].mxu0
      %v4990 = vpop.f32.mrb[0].mxu0
      %v4991 = vadd.f32 0.0, %v4990
      %v4992 = vpop.f32.mrb[0].mxu0
      %4993 = vmatprep.mubr.bf16.mxu0 0
      %4994 = vmatmul.mubr.bf16.gmra.mrb[0].mxu0 %v4620
      %v4995 = vpop.f32.mrb[0].mxu0
      %v4996 = vadd.f32 0.0, %v4995
      %v4997 = vpop.f32.mrb[0].mxu0
      %v4998 = vpop.f32.mrb[0].mxu0
      %v4999 = vadd.f32 0.0, %v4998
      %v5000 = vpop.f32.mrb[0].mxu0
      %5001 = vmatprep.mubr.bf16.mxu0 0
      %5002 = vmatmul.mubr.bf16.gmra.mrb[0].mxu0 %v4622
      %v5003 = vpop.f32.mrb[0].mxu0
      %v5004 = vadd.f32 0.0, %v5003
      %v5005 = vpop.f32.mrb[0].mxu0
      %v5006 = vpop.f32.mrb[0].mxu0
      %v5007 = vadd.f32 0.0, %v5006
      %v5008 = vpop.f32.mrb[0].mxu0
      %5009 = vmatprep.mubr.bf16.mxu0 0
      %5010 = vmatmul.mubr.bf16.gmra.mrb[0].mxu0 %v4624
      %v5011 = vpop.f32.mrb[0].mxu0
      %v5012 = vadd.f32 0.0, %v5011
      %v5013 = vpop.f32.mrb[0].mxu0
      %v5014 = vpop.f32.mrb[0].mxu0
      %v5015 = vadd.f32 0.0, %v5014
      %v5016 = vpop.f32.mrb[0].mxu0
      %5017 = vmatprep.mubr.bf16.mxu0 0
      %5018 = vmatmul.mubr.bf16.gmra.mrb[0].mxu0 %v4626
      %v5019 = vpop.f32.mrb[0].mxu0
      %v5020 = vadd.f32 0.0, %v5019
      %v5021 = vpop.f32.mrb[0].mxu0
      %v5022 = vpop.f32.mrb[0].mxu0
      %v5023 = vadd.f32 0.0, %v5022
      %v5024 = vpop.f32.mrb[0].mxu0
      %5025 = vmatprep.mubr.bf16.mxu0 0
      %5026 = vmatmul.mubr.bf16.gmra.mrb[0].mxu0 %v4628
      %v5027 = vpop.f32.mrb[0].mxu0
      %v5028 = vadd.f32 0.0, %v5027
      %v5029 = vpop.f32.mrb[0].mxu0
      %v5030 = vpop.f32.mrb[0].mxu0
      %v5031 = vadd.f32 0.0, %v5030
      %v5032 = vpop.f32.mrb[0].mxu0
      %5033 = vmatprep.mubr.bf16.mxu0 0
      %5034 = vmatmul.mubr.bf16.gmra.mrb[0].mxu0 %v4879
      %v5035 = vpop.f32.mrb[0].mxu0
      %v5036 = vadd.f32 0.0, %v5035
      %v5037 = vpop.f32.mrb[0].mxu0
      %v5038 = vpop.f32.mrb[0].mxu0
      %v5039 = vadd.f32 0.0, %v5038
      %v5040 = vpop.f32.mrb[0].mxu0
      %5041 = vdwg.mxu0
      %v5042 = vadd.f32 %v4791, %v4916
      %v5043 = vadd.f32 %v4792, %v4919
      %v5044 = vadd.f32 %v4793, %v4924
      %v5045 = vadd.f32 %v4794, %v4927
      %v5046 = vadd.f32 %v4795, %v4932
      %v5047 = vadd.f32 %v4796, %v4935
      %v5048 = vadd.f32 %v4797, %v4940
      %v5049 = vadd.f32 %v4798, %v4943
      %v5050 = vadd.f32 %v4799, %v4948
      %v5051 = vadd.f32 %v4800, %v4951
      %v5052 = vadd.f32 %v4801, %v4956
      %v5053 = vadd.f32 %v4802, %v4959
      %v5054 = vadd.f32 %v4803, %v4964
      %v5055 = vadd.f32 %v4804, %v4967
      %v5056 = vadd.f32 %v4805, %v4972
      %v5057 = vadd.f32 %v4806, %v4975
      %v5058 = vadd.f32 %v4807, %v4980
      %v5059 = vadd.f32 %v4808, %v4983
      %v5060 = vadd.f32 %v4809, %v4988
      %v5061 = vadd.f32 %v4810, %v4991
      %v5062 = vadd.f32 %v4811, %v4996
      %v5063 = vadd.f32 %v4812, %v4999
      %v5064 = vadd.f32 %v4813, %v5004
      %v5065 = vadd.f32 %v4814, %v5007
      %v5066 = vadd.f32 %v4815, %v5012
      %v5067 = vadd.f32 %v4816, %v5015
      %v5068 = vadd.f32 %v4817, %v5020
      %v5069 = vadd.f32 %v4818, %v5023
      %v5070 = vadd.f32 %v4819, %v5028
      %v5071 = vadd.f32 %v4820, %v5031
      %v5072 = vadd.f32 %v4821, %v5036
      %v5073 = vadd.f32 %v4822, %v5039
      %v5076 = vunpack.c.l.b16 %v4075
      %v5077 = vunpack.c.l.b16 %v4076
      %v5078 = vpack.c.b16 %v5077, %v5076
      %v5080 = vunpack.c.l.b16 %v4077
      %v5081 = vpack.c.b16 %v5080, %v5080
      %v5083 = vshrl.u32 %v5078, 16
      %v5085 = vshll.u32 %v5078, 16
      %v5087 = vrot.slane %v5085, 1
      %v5088 = vor.u32 %v5083, %v5087
      %v5090 = vshll.u32 %v5081, 16
      %v5092 = vrot.slane %v5090, 1
      %v5093 = vsel %vm2453, %v5088, %v5092
      %5094 = vrot.lane.b32.xlu0 %v5093, 16
      %v5095 = vpop.permute.xlu0 %5094
      %v5096 = vrot.slane %v5078, 1
      %v5097 = vrot.slane %v5081, 1
      %v5098 = vsel %vm2678, %v5096, %v5097
      %5099 = vrot.lane.b32.xlu0 %v5098, 32
      %v5100 = vpop.permute.xlu0 %5099
      %v5102 = vsel %vm647, %v5078, %v5095
      %v5104 = vsel %vm2791, %v5102, %v5100
      %s5105 = scalar_lea.vmem %s8, 48
      %v5106 = vld [vmem:[%s5105] sm:$0xf]
      %v5107 = vld [vmem:[%s5105 + $0x4] sm:$0xf]
      %v5108 = vld [vmem:[%s5105 + $0x8] sm:$0xf]
      %v5109 = vld [vmem:[%s5105 + $0xc] sm:$0xf]
      %v5110 = vld [vmem:[%s5105 + $0x10] sm:$0xf]
      %v5111 = vld [vmem:[%s5105 + $0x14] sm:$0xf]
      %v5118 = vunpack.c.l.b16 %v5106
      %v5119 = vunpack.c.l.b16 %v5107
      %v5120 = vunpack.c.l.b16 %v5108
      %v5121 = vunpack.c.l.b16 %v5109
      %v5122 = vunpack.c.l.b16 %v5110
      %v5123 = vunpack.c.l.b16 %v5111
      %v5124 = vpack.c.b16 %v5119, %v5118
      %v5125 = vpack.c.b16 %v5121, %v5120
      %v5126 = vpack.c.b16 %v5123, %v5122
      %v5130 = vsel %vm2886, %v5104, 0
      %5132 = vmatprep.subr.bf16.mxu0 0
      %5133 = vmatpush1.bf16.msra.mxu0 %v5124
      %5134 = vmatprep.subr.bf16.mxu0 0
      %5135 = vmatpush1.bf16.msra.mxu0 %v5125
      %5136 = vmatprep.subr.bf16.mxu0 0
      %5137 = vmatpush1.bf16.msra.mxu0 %v5126
      %5138 = vmatprep.subr.bf16.mxu0 0
      %5139 = vmatpush1.bf16.msra.mxu0 0
      %5140 = vmatprep.subr.bf16.mxu0 0
      %5141 = vmatpush1.bf16.msra.mxu0 0
      %5142 = vmatprep.subr.bf16.mxu0 0
      %5143 = vmatpush1.bf16.msra.mxu0 0
      %5144 = vmatprep.subr.bf16.mxu0 0
      %5145 = vmatpush1.bf16.msra.mxu0 0
      %5146 = vmatprep.subr.bf16.mxu0 0
      %5147 = vmatpush1.bf16.msra.mxu0 0
      %5148 = vmatprep.subr.bf16.mxu0 0
      %5149 = vmatpush1.bf16.msra.mxu0 0
      %5150 = vmatprep.subr.bf16.mxu0 0
      %5151 = vmatpush1.bf16.msra.mxu0 0
      %5152 = vmatprep.subr.bf16.mxu0 0
      %5153 = vmatpush1.bf16.msra.mxu0 0
      %5154 = vmatprep.subr.bf16.mxu0 0
      %5155 = vmatpush1.bf16.msra.mxu0 0
      %5156 = vmatprep.subr.bf16.mxu0 0
      %5157 = vmatpush1.bf16.msra.mxu0 0
      %5158 = vmatprep.subr.bf16.mxu0 0
      %5159 = vmatpush1.bf16.msra.mxu0 0
      %5160 = vmatprep.subr.bf16.mxu0 0
      %5161 = vmatpush1.bf16.msra.mxu0 0
      %5162 = vmatprep.subr.bf16.mxu0 0
      %5163 = vmatpush1.bf16.msra.mxu0 0
      %5164 = vmatprep.mubr.bf16.mxu0 0
      %5165 = vmatmul.mubr.bf16.gmra.mrb[0].mxu0 %v4602
      %v5166 = vpop.f32.mrb[0].mxu0
      %v5167 = vadd.f32 0.0, %v5166
      %v5168 = vpop.f32.mrb[0].mxu0
      %v5169 = vpop.f32.mrb[0].mxu0
      %v5170 = vadd.f32 0.0, %v5169
      %v5171 = vpop.f32.mrb[0].mxu0
      %5172 = vmatprep.mubr.bf16.mxu0 0
      %5173 = vmatmul.mubr.bf16.gmra.mrb[0].mxu0 %v4604
      %v5174 = vpop.f32.mrb[0].mxu0
      %v5175 = vadd.f32 0.0, %v5174
      %v5176 = vpop.f32.mrb[0].mxu0
      %v5177 = vpop.f32.mrb[0].mxu0
      %v5178 = vadd.f32 0.0, %v5177
      %v5179 = vpop.f32.mrb[0].mxu0
      %5180 = vmatprep.mubr.bf16.mxu0 0
      %5181 = vmatmul.mubr.bf16.gmra.mrb[0].mxu0 %v4606
      %v5182 = vpop.f32.mrb[0].mxu0
      %v5183 = vadd.f32 0.0, %v5182
      %v5184 = vpop.f32.mrb[0].mxu0
      %v5185 = vpop.f32.mrb[0].mxu0
      %v5186 = vadd.f32 0.0, %v5185
      %v5187 = vpop.f32.mrb[0].mxu0
      %5188 = vmatprep.mubr.bf16.mxu0 0
      %5189 = vmatmul.mubr.bf16.gmra.mrb[0].mxu0 %v4608
      %v5190 = vpop.f32.mrb[0].mxu0
      %v5191 = vadd.f32 0.0, %v5190
      %v5192 = vpop.f32.mrb[0].mxu0
      %v5193 = vpop.f32.mrb[0].mxu0
      %v5194 = vadd.f32 0.0, %v5193
      %v5195 = vpop.f32.mrb[0].mxu0
      %5196 = vmatprep.mubr.bf16.mxu0 0
      %5197 = vmatmul.mubr.bf16.gmra.mrb[0].mxu0 %v4610
      %v5198 = vpop.f32.mrb[0].mxu0
      %v5199 = vadd.f32 0.0, %v5198
      %v5200 = vpop.f32.mrb[0].mxu0
      %v5201 = vpop.f32.mrb[0].mxu0
      %v5202 = vadd.f32 0.0, %v5201
      %v5203 = vpop.f32.mrb[0].mxu0
      %5204 = vmatprep.mubr.bf16.mxu0 0
      %5205 = vmatmul.mubr.bf16.gmra.mrb[0].mxu0 %v4612
      %v5206 = vpop.f32.mrb[0].mxu0
      %v5207 = vadd.f32 0.0, %v5206
      %v5208 = vpop.f32.mrb[0].mxu0
      %v5209 = vpop.f32.mrb[0].mxu0
      %v5210 = vadd.f32 0.0, %v5209
      %v5211 = vpop.f32.mrb[0].mxu0
      %5212 = vmatprep.mubr.bf16.mxu0 0
      %5213 = vmatmul.mubr.bf16.gmra.mrb[0].mxu0 %v4614
      %v5214 = vpop.f32.mrb[0].mxu0
      %v5215 = vadd.f32 0.0, %v5214
      %v5216 = vpop.f32.mrb[0].mxu0
      %v5217 = vpop.f32.mrb[0].mxu0
      %v5218 = vadd.f32 0.0, %v5217
      %v5219 = vpop.f32.mrb[0].mxu0
      %5220 = vmatprep.mubr.bf16.mxu0 0
      %5221 = vmatmul.mubr.bf16.gmra.mrb[0].mxu0 %v4616
      %v5222 = vpop.f32.mrb[0].mxu0
      %v5223 = vadd.f32 0.0, %v5222
      %v5224 = vpop.f32.mrb[0].mxu0
      %v5225 = vpop.f32.mrb[0].mxu0
      %v5226 = vadd.f32 0.0, %v5225
      %v5227 = vpop.f32.mrb[0].mxu0
      %5228 = vmatprep.mubr.bf16.mxu0 0
      %5229 = vmatmul.mubr.bf16.gmra.mrb[0].mxu0 %v4618
      %v5230 = vpop.f32.mrb[0].mxu0
      %v5231 = vadd.f32 0.0, %v5230
      %v5232 = vpop.f32.mrb[0].mxu0
      %v5233 = vpop.f32.mrb[0].mxu0
      %v5234 = vadd.f32 0.0, %v5233
      %v5235 = vpop.f32.mrb[0].mxu0
      %5236 = vmatprep.mubr.bf16.mxu0 0
      %5237 = vmatmul.mubr.bf16.gmra.mrb[0].mxu0 %v4620
      %v5238 = vpop.f32.mrb[0].mxu0
      %v5239 = vadd.f32 0.0, %v5238
      %v5240 = vpop.f32.mrb[0].mxu0
      %v5241 = vpop.f32.mrb[0].mxu0
      %v5242 = vadd.f32 0.0, %v5241
      %v5243 = vpop.f32.mrb[0].mxu0
      %5244 = vmatprep.mubr.bf16.mxu0 0
      %5245 = vmatmul.mubr.bf16.gmra.mrb[0].mxu0 %v4622
      %v5246 = vpop.f32.mrb[0].mxu0
      %v5247 = vadd.f32 0.0, %v5246
      %v5248 = vpop.f32.mrb[0].mxu0
      %v5249 = vpop.f32.mrb[0].mxu0
      %v5250 = vadd.f32 0.0, %v5249
      %v5251 = vpop.f32.mrb[0].mxu0
      %5252 = vmatprep.mubr.bf16.mxu0 0
      %5253 = vmatmul.mubr.bf16.gmra.mrb[0].mxu0 %v4624
      %v5254 = vpop.f32.mrb[0].mxu0
      %v5255 = vadd.f32 0.0, %v5254
      %v5256 = vpop.f32.mrb[0].mxu0
      %v5257 = vpop.f32.mrb[0].mxu0
      %v5258 = vadd.f32 0.0, %v5257
      %v5259 = vpop.f32.mrb[0].mxu0
      %5260 = vmatprep.mubr.bf16.mxu0 0
      %5261 = vmatmul.mubr.bf16.gmra.mrb[0].mxu0 %v4626
      %v5262 = vpop.f32.mrb[0].mxu0
      %v5263 = vadd.f32 0.0, %v5262
      %v5264 = vpop.f32.mrb[0].mxu0
      %v5265 = vpop.f32.mrb[0].mxu0
      %v5266 = vadd.f32 0.0, %v5265
      %v5267 = vpop.f32.mrb[0].mxu0
      %5268 = vmatprep.mubr.bf16.mxu0 0
      %5269 = vmatmul.mubr.bf16.gmra.mrb[0].mxu0 %v4628
      %v5270 = vpop.f32.mrb[0].mxu0
      %v5271 = vadd.f32 0.0, %v5270
      %v5272 = vpop.f32.mrb[0].mxu0
      %v5273 = vpop.f32.mrb[0].mxu0
      %v5274 = vadd.f32 0.0, %v5273
      %v5275 = vpop.f32.mrb[0].mxu0
      %5276 = vmatprep.mubr.bf16.mxu0 0
      %5277 = vmatmul.mubr.bf16.gmra.mrb[0].mxu0 %v4879
      %v5278 = vpop.f32.mrb[0].mxu0
      %v5279 = vadd.f32 0.0, %v5278
      %v5280 = vpop.f32.mrb[0].mxu0
      %v5281 = vpop.f32.mrb[0].mxu0
      %v5282 = vadd.f32 0.0, %v5281
      %v5283 = vpop.f32.mrb[0].mxu0
      %5284 = vmatprep.mubr.bf16.mxu0 0
      %5285 = vmatmul.mubr.bf16.gmra.mrb[0].mxu0 %v5130
      %v5286 = vpop.f32.mrb[0].mxu0
      %v5287 = vadd.f32 0.0, %v5286
      %v5288 = vpop.f32.mrb[0].mxu0
      %v5289 = vpop.f32.mrb[0].mxu0
      %v5290 = vadd.f32 0.0, %v5289
      %v5291 = vpop.f32.mrb[0].mxu0
      %5292 = vdwg.mxu0
      %v5293 = vadd.f32 %v5042, %v5167
      %v5294 = vadd.f32 %v5043, %v5170
      %v5295 = vadd.f32 %v5044, %v5175
      %v5296 = vadd.f32 %v5045, %v5178
      %v5297 = vadd.f32 %v5046, %v5183
      %v5298 = vadd.f32 %v5047, %v5186
      %v5299 = vadd.f32 %v5048, %v5191
      %v5300 = vadd.f32 %v5049, %v5194
      %v5301 = vadd.f32 %v5050, %v5199
      %v5302 = vadd.f32 %v5051, %v5202
      %v5303 = vadd.f32 %v5052, %v5207
      %v5304 = vadd.f32 %v5053, %v5210
      %v5305 = vadd.f32 %v5054, %v5215
      %v5306 = vadd.f32 %v5055, %v5218
      %v5307 = vadd.f32 %v5056, %v5223
      %v5308 = vadd.f32 %v5057, %v5226
      %v5309 = vadd.f32 %v5058, %v5231
      %v5310 = vadd.f32 %v5059, %v5234
      %v5311 = vadd.f32 %v5060, %v5239
      %v5312 = vadd.f32 %v5061, %v5242
      %v5313 = vadd.f32 %v5062, %v5247
      %v5314 = vadd.f32 %v5063, %v5250
      %v5315 = vadd.f32 %v5064, %v5255
      %v5316 = vadd.f32 %v5065, %v5258
      %v5317 = vadd.f32 %v5066, %v5263
      %v5318 = vadd.f32 %v5067, %v5266
      %v5319 = vadd.f32 %v5068, %v5271
      %v5320 = vadd.f32 %v5069, %v5274
      %v5321 = vadd.f32 %v5070, %v5279
      %v5322 = vadd.f32 %v5071, %v5282
      %v5323 = vadd.f32 %v5072, %v5287
      %v5324 = vadd.f32 %v5073, %v5290
      %v5325 = vld [vmem:[%s9] sm:$0x1]
      %v5327 = vlaneseq
      %v5328 = vshrl.u32 %v5327, 7
      %v5329 = vsub.s32 0, %v5328
      %v5330 = vrot.slane %v5325, %v5329
      %v5332 = vadd.f32 %v5293, %v5330
      %v5333 = vadd.f32 %v5294, %v5330
      %v5334 = vadd.f32 %v5295, %v5330
      %v5335 = vadd.f32 %v5296, %v5330
      %v5336 = vadd.f32 %v5297, %v5330
      %v5337 = vadd.f32 %v5298, %v5330
      %v5338 = vadd.f32 %v5299, %v5330
      %v5339 = vadd.f32 %v5300, %v5330
      %v5340 = vadd.f32 %v5301, %v5330
      %v5341 = vadd.f32 %v5302, %v5330
      %v5342 = vadd.f32 %v5303, %v5330
      %v5343 = vadd.f32 %v5304, %v5330
      %v5344 = vadd.f32 %v5305, %v5330
      %v5345 = vadd.f32 %v5306, %v5330
      %v5346 = vadd.f32 %v5307, %v5330
      %v5347 = vadd.f32 %v5308, %v5330
      %v5348 = vadd.f32 %v5309, %v5330
      %v5349 = vadd.f32 %v5310, %v5330
      %v5350 = vadd.f32 %v5311, %v5330
      %v5351 = vadd.f32 %v5312, %v5330
      %v5352 = vadd.f32 %v5313, %v5330
      %v5353 = vadd.f32 %v5314, %v5330
      %v5354 = vadd.f32 %v5315, %v5330
      %v5355 = vadd.f32 %v5316, %v5330
      %v5356 = vadd.f32 %v5317, %v5330
      %v5357 = vadd.f32 %v5318, %v5330
      %v5358 = vadd.f32 %v5319, %v5330
      %v5359 = vadd.f32 %v5320, %v5330
      %v5360 = vadd.f32 %v5321, %v5330
      %v5361 = vadd.f32 %v5322, %v5330
      %v5362 = vadd.f32 %v5323, %v5330
      %v5363 = vadd.f32 %v5324, %v5330
      %v5364 = vmax.f32 %v5332, 0.0
      %v5365 = vmax.f32 %v5333, 0.0
      %v5366 = vmax.f32 %v5334, 0.0
      %v5367 = vmax.f32 %v5335, 0.0
      %v5368 = vmax.f32 %v5336, 0.0
      %v5369 = vmax.f32 %v5337, 0.0
      %v5370 = vmax.f32 %v5338, 0.0
      %v5371 = vmax.f32 %v5339, 0.0
      %v5372 = vmax.f32 %v5340, 0.0
      %v5373 = vmax.f32 %v5341, 0.0
      %v5374 = vmax.f32 %v5342, 0.0
      %v5375 = vmax.f32 %v5343, 0.0
      %v5376 = vmax.f32 %v5344, 0.0
      %v5377 = vmax.f32 %v5345, 0.0
      %v5378 = vmax.f32 %v5346, 0.0
      %v5379 = vmax.f32 %v5347, 0.0
      %v5380 = vmax.f32 %v5348, 0.0
      %v5381 = vmax.f32 %v5349, 0.0
      %v5382 = vmax.f32 %v5350, 0.0
      %v5383 = vmax.f32 %v5351, 0.0
      %v5384 = vmax.f32 %v5352, 0.0
      %v5385 = vmax.f32 %v5353, 0.0
      %v5386 = vmax.f32 %v5354, 0.0
      %v5387 = vmax.f32 %v5355, 0.0
      %v5388 = vmax.f32 %v5356, 0.0
      %v5389 = vmax.f32 %v5357, 0.0
      %v5390 = vmax.f32 %v5358, 0.0
      %v5391 = vmax.f32 %v5359, 0.0
      %v5392 = vmax.f32 %v5360, 0.0
      %v5393 = vmax.f32 %v5361, 0.0
      %v5394 = vmax.f32 %v5362, 0.0
      %v5395 = vmax.f32 %v5363, 0.0
      %v5396 = vpack.c.bf16 %v5365, %v5364
      %v5397 = vpack.c.bf16 %v5367, %v5366
      %v5398 = vpack.c.bf16 %v5369, %v5368
      %v5399 = vpack.c.bf16 %v5371, %v5370
      %v5400 = vpack.c.bf16 %v5373, %v5372
      %v5401 = vpack.c.bf16 %v5375, %v5374
      %v5402 = vpack.c.bf16 %v5377, %v5376
      %v5403 = vpack.c.bf16 %v5379, %v5378
      %v5404 = vpack.c.bf16 %v5381, %v5380
      %v5405 = vpack.c.bf16 %v5383, %v5382
      %v5406 = vpack.c.bf16 %v5385, %v5384
      %v5407 = vpack.c.bf16 %v5387, %v5386
      %v5408 = vpack.c.bf16 %v5389, %v5388
      %v5409 = vpack.c.bf16 %v5391, %v5390
      %v5410 = vpack.c.bf16 %v5393, %v5392
      %v5411 = vpack.c.bf16 %v5395, %v5394
      %v5428 = vunpack.c.l.b16 %v5396
      %v5429 = vunpack.c.h.b16 %v5396
      %v5430 = vunpack.c.l.b16 %v5397
      %v5431 = vunpack.c.h.b16 %v5397
      %v5432 = vunpack.c.l.b16 %v5398
      %v5433 = vunpack.c.h.b16 %v5398
      %v5434 = vunpack.c.l.b16 %v5399
      %v5435 = vunpack.c.h.b16 %v5399
      %v5436 = vunpack.c.l.b16 %v5400
      %v5437 = vunpack.c.h.b16 %v5400
      %v5438 = vunpack.c.l.b16 %v5401
      %v5439 = vunpack.c.h.b16 %v5401
      %v5440 = vunpack.c.l.b16 %v5402
      %v5441 = vunpack.c.h.b16 %v5402
      %v5442 = vunpack.c.l.b16 %v5403
      %v5443 = vunpack.c.h.b16 %v5403
      %v5444 = vunpack.c.l.b16 %v5404
      %v5445 = vunpack.c.h.b16 %v5404
      %v5446 = vunpack.c.l.b16 %v5405
      %v5447 = vunpack.c.h.b16 %v5405
      %v5448 = vunpack.c.l.b16 %v5406
      %v5449 = vunpack.c.h.b16 %v5406
      %v5450 = vunpack.c.l.b16 %v5407
      %v5451 = vunpack.c.h.b16 %v5407
      %v5452 = vunpack.c.l.b16 %v5408
      %v5453 = vunpack.c.h.b16 %v5408
      %v5454 = vunpack.c.l.b16 %v5409
      %v5455 = vunpack.c.h.b16 %v5409
      %v5456 = vunpack.c.l.b16 %v5410
      %v5457 = vunpack.c.h.b16 %v5410
      %v5458 = vunpack.c.l.b16 %v5411
      %v5459 = vunpack.c.h.b16 %v5411
      %v5460 = vpack.c.b16 %v5428, %v5428
      %v5461 = vpack.c.b16 %v5429, %v5429
      %v5462 = vpack.c.b16 %v5430, %v5430
      %v5463 = vpack.c.b16 %v5431, %v5431
      %v5464 = vpack.c.b16 %v5432, %v5432
      %v5465 = vpack.c.b16 %v5433, %v5433
      %v5466 = vpack.c.b16 %v5434, %v5434
      %v5467 = vpack.c.b16 %v5435, %v5435
      %v5468 = vpack.c.b16 %v5436, %v5436
      %v5469 = vpack.c.b16 %v5437, %v5437
      %v5470 = vpack.c.b16 %v5438, %v5438
      %v5471 = vpack.c.b16 %v5439, %v5439
      %v5472 = vpack.c.b16 %v5440, %v5440
      %v5473 = vpack.c.b16 %v5441, %v5441
      %v5474 = vpack.c.b16 %v5442, %v5442
      %v5475 = vpack.c.b16 %v5443, %v5443
      %v5476 = vpack.c.b16 %v5444, %v5444
      %v5477 = vpack.c.b16 %v5445, %v5445
      %v5478 = vpack.c.b16 %v5446, %v5446
      %v5479 = vpack.c.b16 %v5447, %v5447
      %v5480 = vpack.c.b16 %v5448, %v5448
      %v5481 = vpack.c.b16 %v5449, %v5449
      %v5482 = vpack.c.b16 %v5450, %v5450
      %v5483 = vpack.c.b16 %v5451, %v5451
      %v5484 = vpack.c.b16 %v5452, %v5452
      %v5485 = vpack.c.b16 %v5453, %v5453
      %v5486 = vpack.c.b16 %v5454, %v5454
      %v5487 = vpack.c.b16 %v5455, %v5455
      %v5488 = vpack.c.b16 %v5456, %v5456
      %v5489 = vpack.c.b16 %v5457, %v5457
      %v5490 = vpack.c.b16 %v5458, %v5458
      %v5491 = vpack.c.b16 %v5459, %v5459
      %v5493 = vshrl.u32 %v5460, 16
      %v5495 = vrot.slane %v5493, 7
      %v5496 = vshll.u32 %v5460, 16
      %v5498 = vor.u32 %v5495, %v5496
      %v5499 = vrot.slane %v5495, 4
      %v5501 = vshrl.u32 %v5461, 16
      %v5503 = vrot.slane %v5501, 7
      %v5504 = vshll.u32 %v5461, 16
      %v5506 = vor.u32 %v5503, %v5504
      %v5507 = vsel %vm1832, %v5499, %v5506
      %v5508 = vrot.slane %v5503, 4
      %v5510 = vshrl.u32 %v5462, 16
      %v5512 = vrot.slane %v5510, 7
      %v5513 = vshll.u32 %v5462, 16
      %v5515 = vor.u32 %v5512, %v5513
      %v5516 = vrot.slane %v5512, 4
      %v5518 = vshrl.u32 %v5463, 16
      %v5520 = vrot.slane %v5518, 7
      %v5521 = vshll.u32 %v5463, 16
      %v5523 = vor.u32 %v5520, %v5521
      %v5524 = vsel %vm1832, %v5516, %v5523
      %v5525 = vrot.slane %v5520, 4
      %v5527 = vshrl.u32 %v5464, 16
      %v5529 = vrot.slane %v5527, 7
      %v5530 = vshll.u32 %v5464, 16
      %v5532 = vor.u32 %v5529, %v5530
      %v5533 = vrot.slane %v5529, 4
      %v5535 = vshrl.u32 %v5465, 16
      %v5537 = vrot.slane %v5535, 7
      %v5538 = vshll.u32 %v5465, 16
      %v5540 = vor.u32 %v5537, %v5538
      %v5541 = vsel %vm1832, %v5533, %v5540
      %v5542 = vrot.slane %v5537, 4
      %v5544 = vshrl.u32 %v5466, 16
      %v5546 = vrot.slane %v5544, 7
      %v5547 = vshll.u32 %v5466, 16
      %v5549 = vor.u32 %v5546, %v5547
      %v5550 = vrot.slane %v5546, 4
      %v5552 = vshrl.u32 %v5467, 16
      %v5554 = vrot.slane %v5552, 7
      %v5555 = vshll.u32 %v5467, 16
      %v5557 = vor.u32 %v5554, %v5555
      %v5558 = vsel %vm1832, %v5550, %v5557
      %v5559 = vrot.slane %v5554, 4
      %v5561 = vshrl.u32 %v5468, 16
      %v5563 = vrot.slane %v5561, 7
      %v5564 = vshll.u32 %v5468, 16
      %v5566 = vor.u32 %v5563, %v5564
      %v5567 = vrot.slane %v5563, 4
      %v5569 = vshrl.u32 %v5469, 16
      %v5571 = vrot.slane %v5569, 7
      %v5572 = vshll.u32 %v5469, 16
      %v5574 = vor.u32 %v5571, %v5572
      %v5575 = vsel %vm1832, %v5567, %v5574
      %v5576 = vrot.slane %v5571, 4
      %v5578 = vshrl.u32 %v5470, 16
      %v5580 = vrot.slane %v5578, 7
      %v5581 = vshll.u32 %v5470, 16
      %v5583 = vor.u32 %v5580, %v5581
      %v5584 = vrot.slane %v5580, 4
      %v5586 = vshrl.u32 %v5471, 16
      %v5588 = vrot.slane %v5586, 7
      %v5589 = vshll.u32 %v5471, 16
      %v5591 = vor.u32 %v5588, %v5589
      %v5592 = vsel %vm1832, %v5584, %v5591
      %v5593 = vrot.slane %v5588, 4
      %v5595 = vshrl.u32 %v5472, 16
      %v5597 = vrot.slane %v5595, 7
      %v5598 = vshll.u32 %v5472, 16
      %v5600 = vor.u32 %v5597, %v5598
      %v5601 = vrot.slane %v5597, 4
      %v5603 = vshrl.u32 %v5473, 16
      %v5605 = vrot.slane %v5603, 7
      %v5606 = vshll.u32 %v5473, 16
      %v5608 = vor.u32 %v5605, %v5606
      %v5609 = vsel %vm1832, %v5601, %v5608
      %v5610 = vrot.slane %v5605, 4
      %v5612 = vshrl.u32 %v5474, 16
      %v5614 = vrot.slane %v5612, 7
      %v5615 = vshll.u32 %v5474, 16
      %v5617 = vor.u32 %v5614, %v5615
      %v5618 = vrot.slane %v5614, 4
      %v5620 = vshrl.u32 %v5475, 16
      %v5622 = vrot.slane %v5620, 7
      %v5623 = vshll.u32 %v5475, 16
      %v5625 = vor.u32 %v5622, %v5623
      %v5626 = vsel %vm1832, %v5618, %v5625
      %v5627 = vrot.slane %v5622, 4
      %v5629 = vshrl.u32 %v5476, 16
      %v5631 = vrot.slane %v5629, 7
      %v5632 = vshll.u32 %v5476, 16
      %v5634 = vor.u32 %v5631, %v5632
      %v5635 = vrot.slane %v5631, 4
      %v5637 = vshrl.u32 %v5477, 16
      %v5639 = vrot.slane %v5637, 7
      %v5640 = vshll.u32 %v5477, 16
      %v5642 = vor.u32 %v5639, %v5640
      %v5643 = vsel %vm1832, %v5635, %v5642
      %v5644 = vrot.slane %v5639, 4
      %v5646 = vshrl.u32 %v5478, 16
      %v5648 = vrot.slane %v5646, 7
      %v5649 = vshll.u32 %v5478, 16
      %v5651 = vor.u32 %v5648, %v5649
      %v5652 = vrot.slane %v5648, 4
      %v5654 = vshrl.u32 %v5479, 16
      %v5656 = vrot.slane %v5654, 7
      %v5657 = vshll.u32 %v5479, 16
      %v5659 = vor.u32 %v5656, %v5657
      %v5660 = vsel %vm1832, %v5652, %v5659
      %v5661 = vrot.slane %v5656, 4
      %v5663 = vshrl.u32 %v5480, 16
      %v5665 = vrot.slane %v5663, 7
      %v5666 = vshll.u32 %v5480, 16
      %v5668 = vor.u32 %v5665, %v5666
      %v5669 = vrot.slane %v5665, 4
      %v5671 = vshrl.u32 %v5481, 16
      %v5673 = vrot.slane %v5671, 7
      %v5674 = vshll.u32 %v5481, 16
      %v5676 = vor.u32 %v5673, %v5674
      %v5677 = vsel %vm1832, %v5669, %v5676
      %v5678 = vrot.slane %v5673, 4
      %v5680 = vshrl.u32 %v5482, 16
      %v5682 = vrot.slane %v5680, 7
      %v5683 = vshll.u32 %v5482, 16
      %v5685 = vor.u32 %v5682, %v5683
      %v5686 = vrot.slane %v5682, 4
      %v5688 = vshrl.u32 %v5483, 16
      %v5690 = vrot.slane %v5688, 7
      %v5691 = vshll.u32 %v5483, 16
      %v5693 = vor.u32 %v5690, %v5691
      %v5694 = vsel %vm1832, %v5686, %v5693
      %v5695 = vrot.slane %v5690, 4
      %v5697 = vshrl.u32 %v5484, 16
      %v5699 = vrot.slane %v5697, 7
      %v5700 = vshll.u32 %v5484, 16
      %v5702 = vor.u32 %v5699, %v5700
      %v5703 = vrot.slane %v5699, 4
      %v5705 = vshrl.u32 %v5485, 16
      %v5707 = vrot.slane %v5705, 7
      %v5708 = vshll.u32 %v5485, 16
      %v5710 = vor.u32 %v5707, %v5708
      %v5711 = vsel %vm1832, %v5703, %v5710
      %v5712 = vrot.slane %v5707, 4
      %v5714 = vshrl.u32 %v5486, 16
      %v5716 = vrot.slane %v5714, 7
      %v5717 = vshll.u32 %v5486, 16
      %v5719 = vor.u32 %v5716, %v5717
      %v5720 = vrot.slane %v5716, 4
      %v5722 = vshrl.u32 %v5487, 16
      %v5724 = vrot.slane %v5722, 7
      %v5725 = vshll.u32 %v5487, 16
      %v5727 = vor.u32 %v5724, %v5725
      %v5728 = vsel %vm1832, %v5720, %v5727
      %v5729 = vrot.slane %v5724, 4
      %v5731 = vshrl.u32 %v5488, 16
      %v5733 = vrot.slane %v5731, 7
      %v5734 = vshll.u32 %v5488, 16
      %v5736 = vor.u32 %v5733, %v5734
      %v5737 = vrot.slane %v5733, 4
      %v5739 = vshrl.u32 %v5489, 16
      %v5741 = vrot.slane %v5739, 7
      %v5742 = vshll.u32 %v5489, 16
      %v5744 = vor.u32 %v5741, %v5742
      %v5745 = vsel %vm1832, %v5737, %v5744
      %v5746 = vrot.slane %v5741, 4
      %v5748 = vshrl.u32 %v5490, 16
      %v5750 = vrot.slane %v5748, 7
      %v5751 = vshll.u32 %v5490, 16
      %v5753 = vor.u32 %v5750, %v5751
      %v5754 = vrot.slane %v5750, 4
      %v5756 = vshrl.u32 %v5491, 16
      %v5758 = vrot.slane %v5756, 7
      %v5759 = vshll.u32 %v5491, 16
      %v5761 = vor.u32 %v5758, %v5759
      %v5762 = vsel %vm1832, %v5754, %v5761
      %v5763 = vrot.slane %v5758, 4
      %v5812 = vld [vmem:[%s2153] sm:$0xf]
      %v5813 = vsel %vm2156, %v5498, %v5812
      %5814 = vst [vmem:[%s2153] sm:$0xf] %v5813
      %5815 = vst.msk [vmem:[%s2153 + $0x4] sm:$0xf] %vm437, %v5507
      %v5816 = vld [vmem:[%s2153 + $0x8] sm:$0x1]
      %v5817 = vsel %vm2162, %v5508, %v5816
      %5818 = vst [vmem:[%s2153 + $0x8] sm:$0x1] %v5817
      %v5819 = vld [vmem:[%s2153 + $0xc] sm:$0xf]
      %v5820 = vsel %vm2156, %v5515, %v5819
      %5821 = vst [vmem:[%s2153 + $0xc] sm:$0xf] %v5820
      %5822 = vst.msk [vmem:[%s2153 + $0x10] sm:$0xf] %vm437, %v5524
      %v5823 = vld [vmem:[%s2153 + $0x14] sm:$0x1]
      %v5824 = vsel %vm2162, %v5525, %v5823
      %5825 = vst [vmem:[%s2153 + $0x14] sm:$0x1] %v5824
      %v5826 = vld [vmem:[%s2153 + $0x18] sm:$0xf]
      %v5827 = vsel %vm2156, %v5532, %v5826
      %5828 = vst [vmem:[%s2153 + $0x18] sm:$0xf] %v5827
      %5829 = vst.msk [vmem:[%s2153 + $0x1c] sm:$0xf] %vm437, %v5541
      %v5830 = vld [vmem:[%s2153 + $0x20] sm:$0x1]
      %v5831 = vsel %vm2162, %v5542, %v5830
      %5832 = vst [vmem:[%s2153 + $0x20] sm:$0x1] %v5831
      %v5833 = vld [vmem:[%s2153 + $0x24] sm:$0xf]
      %v5834 = vsel %vm2156, %v5549, %v5833
      %5835 = vst [vmem:[%s2153 + $0x24] sm:$0xf] %v5834
      %5836 = vst.msk [vmem:[%s2153 + $0x28] sm:$0xf] %vm437, %v5558
      %v5837 = vld [vmem:[%s2153 + $0x2c] sm:$0x1]
      %v5838 = vsel %vm2162, %v5559, %v5837
      %5839 = vst [vmem:[%s2153 + $0x2c] sm:$0x1] %v5838
      %v5840 = vld [vmem:[%s2153 + $0x30] sm:$0xf]
      %v5841 = vsel %vm2156, %v5566, %v5840
      %5842 = vst [vmem:[%s2153 + $0x30] sm:$0xf] %v5841
      %5843 = vst.msk [vmem:[%s2153 + $0x34] sm:$0xf] %vm437, %v5575
      %v5844 = vld [vmem:[%s2153 + $0x38] sm:$0x1]
      %v5845 = vsel %vm2162, %v5576, %v5844
      %5846 = vst [vmem:[%s2153 + $0x38] sm:$0x1] %v5845
      %v5847 = vld [vmem:[%s2153 + $0x3c] sm:$0xf]
      %v5848 = vsel %vm2156, %v5583, %v5847
      %5849 = vst [vmem:[%s2153 + $0x3c] sm:$0xf] %v5848
      %5850 = vst.msk [vmem:[%s2153 + $0x40] sm:$0xf] %vm437, %v5592
      %v5851 = vld [vmem:[%s2153 + $0x44] sm:$0x1]
      %v5852 = vsel %vm2162, %v5593, %v5851
      %5853 = vst [vmem:[%s2153 + $0x44] sm:$0x1] %v5852
      %v5854 = vld [vmem:[%s2153 + $0x48] sm:$0xf]
      %v5855 = vsel %vm2156, %v5600, %v5854
      %5856 = vst [vmem:[%s2153 + $0x48] sm:$0xf] %v5855
      %5857 = vst.msk [vmem:[%s2153 + $0x4c] sm:$0xf] %vm437, %v5609
      %v5858 = vld [vmem:[%s2153 + $0x50] sm:$0x1]
      %v5859 = vsel %vm2162, %v5610, %v5858
      %5860 = vst [vmem:[%s2153 + $0x50] sm:$0x1] %v5859
      %v5861 = vld [vmem:[%s2153 + $0x54] sm:$0xf]
      %v5862 = vsel %vm2156, %v5617, %v5861
      %5863 = vst [vmem:[%s2153 + $0x54] sm:$0xf] %v5862
      %5864 = vst.msk [vmem:[%s2153 + $0x58] sm:$0xf] %vm437, %v5626
      %v5865 = vld [vmem:[%s2153 + $0x5c] sm:$0x1]
      %v5866 = vsel %vm2162, %v5627, %v5865
      %5867 = vst [vmem:[%s2153 + $0x5c] sm:$0x1] %v5866
      %v5868 = vld [vmem:[%s2153 + $0x60] sm:$0xf]
      %v5869 = vsel %vm2156, %v5634, %v5868
      %5870 = vst [vmem:[%s2153 + $0x60] sm:$0xf] %v5869
      %5871 = vst.msk [vmem:[%s2153 + $0x64] sm:$0xf] %vm437, %v5643
      %v5872 = vld [vmem:[%s2153 + $0x68] sm:$0x1]
      %v5873 = vsel %vm2162, %v5644, %v5872
      %5874 = vst [vmem:[%s2153 + $0x68] sm:$0x1] %v5873
      %v5875 = vld [vmem:[%s2153 + $0x6c] sm:$0xf]
      %v5876 = vsel %vm2156, %v5651, %v5875
      %5877 = vst [vmem:[%s2153 + $0x6c] sm:$0xf] %v5876
      %5878 = vst.msk [vmem:[%s2153 + $0x70] sm:$0xf] %vm437, %v5660
      %v5879 = vld [vmem:[%s2153 + $0x74] sm:$0x1]
      %v5880 = vsel %vm2162, %v5661, %v5879
      %5881 = vst [vmem:[%s2153 + $0x74] sm:$0x1] %v5880
      %v5882 = vld [vmem:[%s2153 + $0x78] sm:$0xf]
      %v5883 = vsel %vm2156, %v5668, %v5882
      %5884 = vst [vmem:[%s2153 + $0x78] sm:$0xf] %v5883
      %5885 = vst.msk [vmem:[%s2153 + $0x7c] sm:$0xf] %vm437, %v5677
      %v5886 = vld [vmem:[%s2153 + $0x80] sm:$0x1]
      %v5887 = vsel %vm2162, %v5678, %v5886
      %5888 = vst [vmem:[%s2153 + $0x80] sm:$0x1] %v5887
      %v5889 = vld [vmem:[%s2153 + $0x84] sm:$0xf]
      %v5890 = vsel %vm2156, %v5685, %v5889
      %5891 = vst [vmem:[%s2153 + $0x84] sm:$0xf] %v5890
      %5892 = vst.msk [vmem:[%s2153 + $0x88] sm:$0xf] %vm437, %v5694
      %v5893 = vld [vmem:[%s2153 + $0x8c] sm:$0x1]
      %v5894 = vsel %vm2162, %v5695, %v5893
      %5895 = vst [vmem:[%s2153 + $0x8c] sm:$0x1] %v5894
      %v5896 = vld [vmem:[%s2153 + $0x90] sm:$0xf]
      %v5897 = vsel %vm2156, %v5702, %v5896
      %5898 = vst [vmem:[%s2153 + $0x90] sm:$0xf] %v5897
      %5899 = vst.msk [vmem:[%s2153 + $0x94] sm:$0xf] %vm437, %v5711
      %v5900 = vld [vmem:[%s2153 + $0x98] sm:$0x1]
      %v5901 = vsel %vm2162, %v5712, %v5900
      %5902 = vst [vmem:[%s2153 + $0x98] sm:$0x1] %v5901
      %v5903 = vld [vmem:[%s2153 + $0x9c] sm:$0xf]
      %v5904 = vsel %vm2156, %v5719, %v5903
      %5905 = vst [vmem:[%s2153 + $0x9c] sm:$0xf] %v5904
      %5906 = vst.msk [vmem:[%s2153 + $0xa0] sm:$0xf] %vm437, %v5728
      %v5907 = vld [vmem:[%s2153 + $0xa4] sm:$0x1]
      %v5908 = vsel %vm2162, %v5729, %v5907
      %5909 = vst [vmem:[%s2153 + $0xa4] sm:$0x1] %v5908
      %v5910 = vld [vmem:[%s2153 + $0xa8] sm:$0xf]
      %v5911 = vsel %vm2156, %v5736, %v5910
      %5912 = vst [vmem:[%s2153 + $0xa8] sm:$0xf] %v5911
      %5913 = vst.msk [vmem:[%s2153 + $0xac] sm:$0xf] %vm437, %v5745
      %v5914 = vld [vmem:[%s2153 + $0xb0] sm:$0x1]
      %v5915 = vsel %vm2162, %v5746, %v5914
      %5916 = vst [vmem:[%s2153 + $0xb0] sm:$0x1] %v5915
      %v5917 = vld [vmem:[%s2153 + $0xb4] sm:$0xf]
      %v5918 = vsel %vm2156, %v5753, %v5917
      %5919 = vst [vmem:[%s2153 + $0xb4] sm:$0xf] %v5918
      %5920 = vst.msk [vmem:[%s2153 + $0xb8] sm:$0xf] %vm437, %v5762
      %v5921 = vld [vmem:[%s2153 + $0xbc] sm:$0x1]
      %v5922 = vsel %vm2162, %v5763, %v5921
      %5923 = vst [vmem:[%s2153 + $0xbc] sm:$0x1] %v5922
      %v5924 = vld [vmem:[#allocation2] sm:$0xf]
      %v5925 = vld [vmem:[#allocation2 + $0x4] sm:$0xf]
      %v5926 = vld [vmem:[#allocation2 + $0x8] sm:$0x1]
      %v5927 = vld [vmem:[#allocation2 + $0xc] sm:$0xf]
      %v5928 = vld [vmem:[#allocation2 + $0x10] sm:$0xf]
      %v5929 = vld [vmem:[#allocation2 + $0x14] sm:$0x1]
      %v5930 = vld [vmem:[#allocation2 + $0x18] sm:$0xf]
      %v5931 = vld [vmem:[#allocation2 + $0x1c] sm:$0xf]
      %v5932 = vld [vmem:[#allocation2 + $0x20] sm:$0x1]
      %v5933 = vld [vmem:[#allocation2 + $0x24] sm:$0xf]
      %v5934 = vld [vmem:[#allocation2 + $0x28] sm:$0xf]
      %v5935 = vld [vmem:[#allocation2 + $0x2c] sm:$0x1]
      %v5936 = vld [vmem:[#allocation2 + $0x30] sm:$0xf]
      %v5937 = vld [vmem:[#allocation2 + $0x34] sm:$0xf]
      %v5938 = vld [vmem:[#allocation2 + $0x38] sm:$0x1]
      %v5939 = vld [vmem:[#allocation2 + $0x3c] sm:$0xf]
      %v5940 = vld [vmem:[#allocation2 + $0x40] sm:$0xf]
      %v5941 = vld [vmem:[#allocation2 + $0x44] sm:$0x1]
      %v5942 = vld [vmem:[#allocation2 + $0x48] sm:$0xf]
      %v5943 = vld [vmem:[#allocation2 + $0x4c] sm:$0xf]
      %v5944 = vld [vmem:[#allocation2 + $0x50] sm:$0x1]
      %v5945 = vld [vmem:[#allocation2 + $0x54] sm:$0xf]
      %v5946 = vld [vmem:[#allocation2 + $0x58] sm:$0xf]
      %v5947 = vld [vmem:[#allocation2 + $0x5c] sm:$0x1]
      %v5948 = vld [vmem:[#allocation2 + $0x60] sm:$0xf]
      %v5949 = vld [vmem:[#allocation2 + $0x64] sm:$0xf]
      %v5950 = vld [vmem:[#allocation2 + $0x68] sm:$0x1]
      %v5951 = vld [vmem:[#allocation2 + $0x6c] sm:$0xf]
      %v5952 = vld [vmem:[#allocation2 + $0x70] sm:$0xf]
      %v5953 = vld [vmem:[#allocation2 + $0x74] sm:$0x1]
      %v5954 = vld [vmem:[#allocation2 + $0x78] sm:$0xf]
      %v5955 = vld [vmem:[#allocation2 + $0x7c] sm:$0xf]
      %v5956 = vld [vmem:[#allocation2 + $0x80] sm:$0x1]
      %v5957 = vld [vmem:[#allocation2 + $0x84] sm:$0xf]
      %v5958 = vld [vmem:[#allocation2 + $0x88] sm:$0xf]
      %v5959 = vld [vmem:[#allocation2 + $0x8c] sm:$0x1]
      %v5960 = vld [vmem:[#allocation2 + $0x90] sm:$0xf]
      %v5961 = vld [vmem:[#allocation2 + $0x94] sm:$0xf]
      %v5962 = vld [vmem:[#allocation2 + $0x98] sm:$0x1]
      %v5963 = vld [vmem:[#allocation2 + $0x9c] sm:$0xf]
      %v5964 = vld [vmem:[#allocation2 + $0xa0] sm:$0xf]
      %v5965 = vld [vmem:[#allocation2 + $0xa4] sm:$0x1]
      %v5966 = vld [vmem:[#allocation2 + $0xa8] sm:$0xf]
      %v5967 = vld [vmem:[#allocation2 + $0xac] sm:$0xf]
      %v5968 = vld [vmem:[#allocation2 + $0xb0] sm:$0x1]
      %v5969 = vld [vmem:[#allocation2 + $0xb4] sm:$0xf]
      %v5970 = vld [vmem:[#allocation2 + $0xb8] sm:$0xf]
      %v5971 = vld [vmem:[#allocation2 + $0xbc] sm:$0x1]
      %v5972 = vld [vmem:[#allocation2 + $0xc0] sm:$0xf]
      %v5973 = vld [vmem:[#allocation2 + $0xc4] sm:$0xf]
      %v5974 = vld [vmem:[#allocation2 + $0xc8] sm:$0x1]
      %v5975 = vld [vmem:[#allocation2 + $0xcc] sm:$0xf]
      %v5976 = vld [vmem:[#allocation2 + $0xd0] sm:$0xf]
      %v5977 = vld [vmem:[#allocation2 + $0xd4] sm:$0x1]
      %v6010 = vunpack.c.l.b16 %v5924
      %v6011 = vunpack.c.l.b16 %v5925
      %v6012 = vunpack.c.l.b16 %v5927
      %v6013 = vunpack.c.l.b16 %v5928
      %v6014 = vunpack.c.l.b16 %v5930
      %v6015 = vunpack.c.l.b16 %v5931
      %v6016 = vunpack.c.l.b16 %v5933
      %v6017 = vunpack.c.l.b16 %v5934
      %v6018 = vunpack.c.l.b16 %v5936
      %v6019 = vunpack.c.l.b16 %v5937
      %v6020 = vunpack.c.l.b16 %v5939
      %v6021 = vunpack.c.l.b16 %v5940
      %v6022 = vunpack.c.l.b16 %v5942
      %v6023 = vunpack.c.l.b16 %v5943
      %v6024 = vunpack.c.l.b16 %v5945
      %v6025 = vunpack.c.l.b16 %v5946
      %v6026 = vunpack.c.l.b16 %v5948
      %v6027 = vunpack.c.l.b16 %v5949
      %v6028 = vunpack.c.l.b16 %v5951
      %v6029 = vunpack.c.l.b16 %v5952
      %v6030 = vunpack.c.l.b16 %v5954
      %v6031 = vunpack.c.l.b16 %v5955
      %v6032 = vunpack.c.l.b16 %v5957
      %v6033 = vunpack.c.l.b16 %v5958
      %v6034 = vunpack.c.l.b16 %v5960
      %v6035 = vunpack.c.l.b16 %v5961
      %v6036 = vunpack.c.l.b16 %v5963
      %v6037 = vunpack.c.l.b16 %v5964
      %v6038 = vunpack.c.l.b16 %v5966
      %v6039 = vunpack.c.l.b16 %v5967
      %v6040 = vunpack.c.l.b16 %v5969
      %v6041 = vunpack.c.l.b16 %v5970
      %v6042 = vpack.c.b16 %v6011, %v6010
      %v6043 = vpack.c.b16 %v6013, %v6012
      %v6044 = vpack.c.b16 %v6015, %v6014
      %v6045 = vpack.c.b16 %v6017, %v6016
      %v6046 = vpack.c.b16 %v6019, %v6018
      %v6047 = vpack.c.b16 %v6021, %v6020
      %v6048 = vpack.c.b16 %v6023, %v6022
      %v6049 = vpack.c.b16 %v6025, %v6024
      %v6050 = vpack.c.b16 %v6027, %v6026
      %v6051 = vpack.c.b16 %v6029, %v6028
      %v6052 = vpack.c.b16 %v6031, %v6030
      %v6053 = vpack.c.b16 %v6033, %v6032
      %v6054 = vpack.c.b16 %v6035, %v6034
      %v6055 = vpack.c.b16 %v6037, %v6036
      %v6056 = vpack.c.b16 %v6039, %v6038
      %v6057 = vpack.c.b16 %v6041, %v6040
      %v6074 = vunpack.c.l.b16 %v5926
      %v6075 = vunpack.c.l.b16 %v5929
      %v6076 = vunpack.c.l.b16 %v5932
      %v6077 = vunpack.c.l.b16 %v5935
      %v6078 = vunpack.c.l.b16 %v5938
      %v6079 = vunpack.c.l.b16 %v5941
      %v6080 = vunpack.c.l.b16 %v5944
      %v6081 = vunpack.c.l.b16 %v5947
      %v6082 = vunpack.c.l.b16 %v5950
      %v6083 = vunpack.c.l.b16 %v5953
      %v6084 = vunpack.c.l.b16 %v5956
      %v6085 = vunpack.c.l.b16 %v5959
      %v6086 = vunpack.c.l.b16 %v5962
      %v6087 = vunpack.c.l.b16 %v5965
      %v6088 = vunpack.c.l.b16 %v5968
      %v6089 = vunpack.c.l.b16 %v5971
      %v6090 = vpack.c.b16 %v6074, %v6074
      %v6091 = vpack.c.b16 %v6075, %v6075
      %v6092 = vpack.c.b16 %v6076, %v6076
      %v6093 = vpack.c.b16 %v6077, %v6077
      %v6094 = vpack.c.b16 %v6078, %v6078
      %v6095 = vpack.c.b16 %v6079, %v6079
      %v6096 = vpack.c.b16 %v6080, %v6080
      %v6097 = vpack.c.b16 %v6081, %v6081
      %v6098 = vpack.c.b16 %v6082, %v6082
      %v6099 = vpack.c.b16 %v6083, %v6083
      %v6100 = vpack.c.b16 %v6084, %v6084
      %v6101 = vpack.c.b16 %v6085, %v6085
      %v6102 = vpack.c.b16 %v6086, %v6086
      %v6103 = vpack.c.b16 %v6087, %v6087
      %v6104 = vpack.c.b16 %v6088, %v6088
      %v6105 = vpack.c.b16 %v6089, %v6089
      %v6107 = vshrl.u32 %v6042, 16
      %v6109 = vshll.u32 %v6042, 16
      %v6111 = vrot.slane %v6109, 1
      %v6112 = vor.u32 %v6107, %v6111
      %v6114 = vshll.u32 %v6090, 16
      %v6116 = vrot.slane %v6114, 1
      %v6117 = vsel %vm2453, %v6112, %v6116
      %v6119 = vshrl.u32 %v6043, 16
      %v6121 = vshll.u32 %v6043, 16
      %v6123 = vrot.slane %v6121, 1
      %v6124 = vor.u32 %v6119, %v6123
      %v6126 = vshll.u32 %v6091, 16
      %v6128 = vrot.slane %v6126, 1
      %v6129 = vsel %vm2453, %v6124, %v6128
      %v6131 = vshrl.u32 %v6044, 16
      %v6133 = vshll.u32 %v6044, 16
      %v6135 = vrot.slane %v6133, 1
      %v6136 = vor.u32 %v6131, %v6135
      %v6138 = vshll.u32 %v6092, 16
      %v6140 = vrot.slane %v6138, 1
      %v6141 = vsel %vm2453, %v6136, %v6140
      %v6143 = vshrl.u32 %v6045, 16
      %v6145 = vshll.u32 %v6045, 16
      %v6147 = vrot.slane %v6145, 1
      %v6148 = vor.u32 %v6143, %v6147
      %v6150 = vshll.u32 %v6093, 16
      %v6152 = vrot.slane %v6150, 1
      %v6153 = vsel %vm2453, %v6148, %v6152
      %v6155 = vshrl.u32 %v6046, 16
      %v6157 = vshll.u32 %v6046, 16
      %v6159 = vrot.slane %v6157, 1
      %v6160 = vor.u32 %v6155, %v6159
      %v6162 = vshll.u32 %v6094, 16
      %v6164 = vrot.slane %v6162, 1
      %v6165 = vsel %vm2453, %v6160, %v6164
      %v6167 = vshrl.u32 %v6047, 16
      %v6169 = vshll.u32 %v6047, 16
      %v6171 = vrot.slane %v6169, 1
      %v6172 = vor.u32 %v6167, %v6171
      %v6174 = vshll.u32 %v6095, 16
      %v6176 = vrot.slane %v6174, 1
      %v6177 = vsel %vm2453, %v6172, %v6176
      %v6179 = vshrl.u32 %v6048, 16
      %v6181 = vshll.u32 %v6048, 16
      %v6183 = vrot.slane %v6181, 1
      %v6184 = vor.u32 %v6179, %v6183
      %v6186 = vshll.u32 %v6096, 16
      %v6188 = vrot.slane %v6186, 1
      %v6189 = vsel %vm2453, %v6184, %v6188
      %v6191 = vshrl.u32 %v6049, 16
      %v6193 = vshll.u32 %v6049, 16
      %v6195 = vrot.slane %v6193, 1
      %v6196 = vor.u32 %v6191, %v6195
      %v6198 = vshll.u32 %v6097, 16
      %v6200 = vrot.slane %v6198, 1
      %v6201 = vsel %vm2453, %v6196, %v6200
      %v6203 = vshrl.u32 %v6050, 16
      %v6205 = vshll.u32 %v6050, 16
      %v6207 = vrot.slane %v6205, 1
      %v6208 = vor.u32 %v6203, %v6207
      %v6210 = vshll.u32 %v6098, 16
      %v6212 = vrot.slane %v6210, 1
      %v6213 = vsel %vm2453, %v6208, %v6212
      %v6215 = vshrl.u32 %v6051, 16
      %v6217 = vshll.u32 %v6051, 16
      %v6219 = vrot.slane %v6217, 1
      %v6220 = vor.u32 %v6215, %v6219
      %v6222 = vshll.u32 %v6099, 16
      %v6224 = vrot.slane %v6222, 1
      %v6225 = vsel %vm2453, %v6220, %v6224
      %v6227 = vshrl.u32 %v6052, 16
      %v6229 = vshll.u32 %v6052, 16
      %v6231 = vrot.slane %v6229, 1
      %v6232 = vor.u32 %v6227, %v6231
      %v6234 = vshll.u32 %v6100, 16
      %v6236 = vrot.slane %v6234, 1
      %v6237 = vsel %vm2453, %v6232, %v6236
      %v6239 = vshrl.u32 %v6053, 16
      %v6241 = vshll.u32 %v6053, 16
      %v6243 = vrot.slane %v6241, 1
      %v6244 = vor.u32 %v6239, %v6243
      %v6246 = vshll.u32 %v6101, 16
      %v6248 = vrot.slane %v6246, 1
      %v6249 = vsel %vm2453, %v6244, %v6248
      %v6251 = vshrl.u32 %v6054, 16
      %v6253 = vshll.u32 %v6054, 16
      %v6255 = vrot.slane %v6253, 1
      %v6256 = vor.u32 %v6251, %v6255
      %v6258 = vshll.u32 %v6102, 16
      %v6260 = vrot.slane %v6258, 1
      %v6261 = vsel %vm2453, %v6256, %v6260
      %v6263 = vshrl.u32 %v6055, 16
      %v6265 = vshll.u32 %v6055, 16
      %v6267 = vrot.slane %v6265, 1
      %v6268 = vor.u32 %v6263, %v6267
      %v6270 = vshll.u32 %v6103, 16
      %v6272 = vrot.slane %v6270, 1
      %v6273 = vsel %vm2453, %v6268, %v6272
      %v6275 = vshrl.u32 %v6056, 16
      %v6277 = vshll.u32 %v6056, 16
      %v6279 = vrot.slane %v6277, 1
      %v6280 = vor.u32 %v6275, %v6279
      %v6282 = vshll.u32 %v6104, 16
      %v6284 = vrot.slane %v6282, 1
      %v6285 = vsel %vm2453, %v6280, %v6284
      %v6287 = vshrl.u32 %v6057, 16
      %v6289 = vshll.u32 %v6057, 16
      %v6291 = vrot.slane %v6289, 1
      %v6292 = vor.u32 %v6287, %v6291
      %v6294 = vshll.u32 %v6105, 16
      %v6296 = vrot.slane %v6294, 1
      %v6297 = vsel %vm2453, %v6292, %v6296
      %6298 = vrot.lane.b32.xlu0 %v6117, 16
      %v6299 = vpop.permute.xlu0 %6298
      %6300 = vrot.lane.b32.xlu0 %v6129, 16
      %v6301 = vpop.permute.xlu0 %6300
      %6302 = vrot.lane.b32.xlu0 %v6141, 16
      %v6303 = vpop.permute.xlu0 %6302
      %6304 = vrot.lane.b32.xlu0 %v6153, 16
      %v6305 = vpop.permute.xlu0 %6304
      %6306 = vrot.lane.b32.xlu0 %v6165, 16
      %v6307 = vpop.permute.xlu0 %6306
      %6308 = vrot.lane.b32.xlu0 %v6177, 16
      %v6309 = vpop.permute.xlu0 %6308
      %6310 = vrot.lane.b32.xlu0 %v6189, 16
      %v6311 = vpop.permute.xlu0 %6310
      %6312 = vrot.lane.b32.xlu0 %v6201, 16
      %v6313 = vpop.permute.xlu0 %6312
      %6314 = vrot.lane.b32.xlu0 %v6213, 16
      %v6315 = vpop.permute.xlu0 %6314
      %6316 = vrot.lane.b32.xlu0 %v6225, 16
      %v6317 = vpop.permute.xlu0 %6316
      %6318 = vrot.lane.b32.xlu0 %v6237, 16
      %v6319 = vpop.permute.xlu0 %6318
      %6320 = vrot.lane.b32.xlu0 %v6249, 16
      %v6321 = vpop.permute.xlu0 %6320
      %6322 = vrot.lane.b32.xlu0 %v6261, 16
      %v6323 = vpop.permute.xlu0 %6322
      %6324 = vrot.lane.b32.xlu0 %v6273, 16
      %v6325 = vpop.permute.xlu0 %6324
      %6326 = vrot.lane.b32.xlu0 %v6285, 16
      %v6327 = vpop.permute.xlu0 %6326
      %6328 = vrot.lane.b32.xlu0 %v6297, 16
      %v6329 = vpop.permute.xlu0 %6328
      %v6330 = vrot.slane %v6042, 1
      %v6331 = vrot.slane %v6090, 1
      %v6332 = vsel %vm2678, %v6330, %v6331
      %v6333 = vrot.slane %v6043, 1
      %v6334 = vrot.slane %v6091, 1
      %v6335 = vsel %vm2678, %v6333, %v6334
      %v6336 = vrot.slane %v6044, 1
      %v6337 = vrot.slane %v6092, 1
      %v6338 = vsel %vm2678, %v6336, %v6337
      %v6339 = vrot.slane %v6045, 1
      %v6340 = vrot.slane %v6093, 1
      %v6341 = vsel %vm2678, %v6339, %v6340
      %v6342 = vrot.slane %v6046, 1
      %v6343 = vrot.slane %v6094, 1
      %v6344 = vsel %vm2678, %v6342, %v6343
      %v6345 = vrot.slane %v6047, 1
      %v6346 = vrot.slane %v6095, 1
      %v6347 = vsel %vm2678, %v6345, %v6346
      %v6348 = vrot.slane %v6048, 1
      %v6349 = vrot.slane %v6096, 1
      %v6350 = vsel %vm2678, %v6348, %v6349
      %v6351 = vrot.slane %v6049, 1
      %v6352 = vrot.slane %v6097, 1
      %v6353 = vsel %vm2678, %v6351, %v6352
      %v6354 = vrot.slane %v6050, 1
      %v6355 = vrot.slane %v6098, 1
      %v6356 = vsel %vm2678, %v6354, %v6355
      %v6357 = vrot.slane %v6051, 1
      %v6358 = vrot.slane %v6099, 1
      %v6359 = vsel %vm2678, %v6357, %v6358
      %v6360 = vrot.slane %v6052, 1
      %v6361 = vrot.slane %v6100, 1
      %v6362 = vsel %vm2678, %v6360, %v6361
      %v6363 = vrot.slane %v6053, 1
      %v6364 = vrot.slane %v6101, 1
      %v6365 = vsel %vm2678, %v6363, %v6364
      %v6366 = vrot.slane %v6054, 1
      %v6367 = vrot.slane %v6102, 1
      %v6368 = vsel %vm2678, %v6366, %v6367
      %v6369 = vrot.slane %v6055, 1
      %v6370 = vrot.slane %v6103, 1
      %v6371 = vsel %vm2678, %v6369, %v6370
      %v6372 = vrot.slane %v6056, 1
      %v6373 = vrot.slane %v6104, 1
      %v6374 = vsel %vm2678, %v6372, %v6373
      %v6375 = vrot.slane %v6057, 1
      %v6376 = vrot.slane %v6105, 1
      %v6377 = vsel %vm2678, %v6375, %v6376
      %6378 = vrot.lane.b32.xlu0 %v6332, 32
      %v6379 = vpop.permute.xlu0 %6378
      %6380 = vrot.lane.b32.xlu0 %v6335, 32
      %v6381 = vpop.permute.xlu0 %6380
      %6382 = vrot.lane.b32.xlu0 %v6338, 32
      %v6383 = vpop.permute.xlu0 %6382
      %6384 = vrot.lane.b32.xlu0 %v6341, 32
      %v6385 = vpop.permute.xlu0 %6384
      %6386 = vrot.lane.b32.xlu0 %v6344, 32
      %v6387 = vpop.permute.xlu0 %6386
      %6388 = vrot.lane.b32.xlu0 %v6347, 32
      %v6389 = vpop.permute.xlu0 %6388
      %6390 = vrot.lane.b32.xlu0 %v6350, 32
      %v6391 = vpop.permute.xlu0 %6390
      %6392 = vrot.lane.b32.xlu0 %v6353, 32
      %v6393 = vpop.permute.xlu0 %6392
      %6394 = vrot.lane.b32.xlu0 %v6356, 32
      %v6395 = vpop.permute.xlu0 %6394
      %6396 = vrot.lane.b32.xlu0 %v6359, 32
      %v6397 = vpop.permute.xlu0 %6396
      %6398 = vrot.lane.b32.xlu0 %v6362, 32
      %v6399 = vpop.permute.xlu0 %6398
      %6400 = vrot.lane.b32.xlu0 %v6365, 32
      %v6401 = vpop.permute.xlu0 %6400
      %6402 = vrot.lane.b32.xlu0 %v6368, 32
      %v6403 = vpop.permute.xlu0 %6402
      %6404 = vrot.lane.b32.xlu0 %v6371, 32
      %v6405 = vpop.permute.xlu0 %6404
      %6406 = vrot.lane.b32.xlu0 %v6374, 32
      %v6407 = vpop.permute.xlu0 %6406
      %6408 = vrot.lane.b32.xlu0 %v6377, 32
      %v6409 = vpop.permute.xlu0 %6408
      %v6411 = vsel %vm647, %v6042, %v6299
      %v6413 = vsel %vm647, %v6043, %v6301
      %v6415 = vsel %vm647, %v6044, %v6303
      %v6417 = vsel %vm647, %v6045, %v6305
      %v6419 = vsel %vm647, %v6046, %v6307
      %v6421 = vsel %vm647, %v6047, %v6309
      %v6423 = vsel %vm647, %v6048, %v6311
      %v6425 = vsel %vm647, %v6049, %v6313
      %v6427 = vsel %vm647, %v6050, %v6315
      %v6429 = vsel %vm647, %v6051, %v6317
      %v6431 = vsel %vm647, %v6052, %v6319
      %v6433 = vsel %vm647, %v6053, %v6321
      %v6435 = vsel %vm647, %v6054, %v6323
      %v6437 = vsel %vm647, %v6055, %v6325
      %v6439 = vsel %vm647, %v6056, %v6327
      %v6441 = vsel %vm647, %v6057, %v6329
      %v6443 = vsel %vm2791, %v6411, %v6379
      %v6445 = vsel %vm2791, %v6413, %v6381
      %v6447 = vsel %vm2791, %v6415, %v6383
      %v6449 = vsel %vm2791, %v6417, %v6385
      %v6451 = vsel %vm2791, %v6419, %v6387
      %v6453 = vsel %vm2791, %v6421, %v6389
      %v6455 = vsel %vm2791, %v6423, %v6391
      %v6457 = vsel %vm2791, %v6425, %v6393
      %v6459 = vsel %vm2791, %v6427, %v6395
      %v6461 = vsel %vm2791, %v6429, %v6397
      %v6463 = vsel %vm2791, %v6431, %v6399
      %v6465 = vsel %vm2791, %v6433, %v6401
      %v6467 = vsel %vm2791, %v6435, %v6403
      %v6469 = vsel %vm2791, %v6437, %v6405
      %v6471 = vsel %vm2791, %v6439, %v6407
      %v6473 = vsel %vm2791, %v6441, %v6409
      %v6474 = vld [vmem:[%s10] sm:$0xf]
      %v6475 = vld [vmem:[%s10 + $0x4] sm:$0xf]
      %v6476 = vld [vmem:[%s10 + $0x8] sm:$0xf]
      %v6477 = vld [vmem:[%s10 + $0xc] sm:$0xf]
      %v6478 = vld [vmem:[%s10 + $0x10] sm:$0xf]
      %v6479 = vld [vmem:[%s10 + $0x14] sm:$0xf]
      %v6482 = vunpack.c.l.b16 %v5972
      %v6483 = vunpack.c.l.b16 %v5973
      %v6484 = vpack.c.b16 %v6483, %v6482
      %v6486 = vunpack.c.l.b16 %v5974
      %v6487 = vpack.c.b16 %v6486, %v6486
      %v6489 = vshrl.u32 %v6484, 16
      %v6491 = vshll.u32 %v6484, 16
      %v6493 = vrot.slane %v6491, 1
      %v6494 = vor.u32 %v6489, %v6493
      %v6496 = vshll.u32 %v6487, 16
      %v6498 = vrot.slane %v6496, 1
      %v6499 = vsel %vm2453, %v6494, %v6498
      %6500 = vrot.lane.b32.xlu0 %v6499, 16
      %v6501 = vpop.permute.xlu0 %6500
      %v6502 = vrot.slane %v6484, 1
      %v6503 = vrot.slane %v6487, 1
      %v6504 = vsel %vm2678, %v6502, %v6503
      %6505 = vrot.lane.b32.xlu0 %v6504, 32
      %v6506 = vpop.permute.xlu0 %6505
      %v6508 = vsel %vm647, %v6484, %v6501
      %v6510 = vsel %vm2791, %v6508, %v6506
      %s6511 = scalar_lea.vmem %s10, 24
      %v6512 = vld [vmem:[%s6511] sm:$0xf]
      %v6513 = vld [vmem:[%s6511 + $0x4] sm:$0xf]
      %v6514 = vld [vmem:[%s6511 + $0x8] sm:$0xf]
      %v6515 = vld [vmem:[%s6511 + $0xc] sm:$0xf]
      %v6516 = vld [vmem:[%s6511 + $0x10] sm:$0xf]
      %v6517 = vld [vmem:[%s6511 + $0x14] sm:$0xf]
      %v6524 = vunpack.c.l.b16 %v6512
      %v6525 = vunpack.c.l.b16 %v6513
      %v6526 = vunpack.c.l.b16 %v6514
      %v6527 = vunpack.c.l.b16 %v6515
      %v6528 = vunpack.c.l.b16 %v6516
      %v6529 = vunpack.c.l.b16 %v6517
      %v6530 = vpack.c.b16 %v6525, %v6524
      %v6531 = vpack.c.b16 %v6527, %v6526
      %v6532 = vpack.c.b16 %v6529, %v6528
      %v6536 = vsel %vm2886, %v6445, 0
      %v6538 = vsel %vm2886, %v6447, 0
      %v6540 = vsel %vm2886, %v6449, 0
      %v6542 = vsel %vm2886, %v6451, 0
      %v6544 = vsel %vm2886, %v6453, 0
      %v6546 = vsel %vm2886, %v6455, 0
      %v6548 = vsel %vm2886, %v6457, 0
      %v6550 = vsel %vm2886, %v6459, 0
      %v6552 = vsel %vm2886, %v6461, 0
      %v6554 = vsel %vm2886, %v6463, 0
      %v6556 = vsel %vm2886, %v6465, 0
      %v6558 = vsel %vm2886, %v6467, 0
      %v6560 = vsel %vm2886, %v6469, 0
      %v6562 = vsel %vm2886, %v6471, 0
      %v6564 = vsel %vm2886, %v6473, 0
      %v6566 = vsel %vm2886, %v6510, 0
      %6568 = vmatprep.subr.bf16.mxu0 0
      %6569 = vmatpush1.bf16.msra.mxu0 %v6530
      %6570 = vmatprep.subr.bf16.mxu0 0
      %6571 = vmatpush1.bf16.msra.mxu0 %v6531
      %6572 = vmatprep.subr.bf16.mxu0 0
      %6573 = vmatpush1.bf16.msra.mxu0 %v6532
      %6574 = vmatprep.subr.bf16.mxu0 0
      %6575 = vmatpush1.bf16.msra.mxu0 0
      %6576 = vmatprep.subr.bf16.mxu0 0
      %6577 = vmatpush1.bf16.msra.mxu0 0
      %6578 = vmatprep.subr.bf16.mxu0 0
      %6579 = vmatpush1.bf16.msra.mxu0 0
      %6580 = vmatprep.subr.bf16.mxu0 0
      %6581 = vmatpush1.bf16.msra.mxu0 0
      %6582 = vmatprep.subr.bf16.mxu0 0
      %6583 = vmatpush1.bf16.msra.mxu0 0
      %6584 = vmatprep.subr.bf16.mxu0 0
      %6585 = vmatpush1.bf16.msra.mxu0 0
      %6586 = vmatprep.subr.bf16.mxu0 0
      %6587 = vmatpush1.bf16.msra.mxu0 0
      %6588 = vmatprep.subr.bf16.mxu0 0
      %6589 = vmatpush1.bf16.msra.mxu0 0
      %6590 = vmatprep.subr.bf16.mxu0 0
      %6591 = vmatpush1.bf16.msra.mxu0 0
      %6592 = vmatprep.subr.bf16.mxu0 0
      %6593 = vmatpush1.bf16.msra.mxu0 0
      %6594 = vmatprep.subr.bf16.mxu0 0
      %6595 = vmatpush1.bf16.msra.mxu0 0
      %6596 = vmatprep.subr.bf16.mxu0 0
      %6597 = vmatpush1.bf16.msra.mxu0 0
      %6598 = vmatprep.subr.bf16.mxu0 0
      %6599 = vmatpush1.bf16.msra.mxu0 0
      %6600 = vmatprep.mubr.bf16.mxu0 0
      %6601 = vmatmul.mubr.bf16.gmra.mrb[0].mxu0 %v6536
      %v6602 = vpop.f32.mrb[0].mxu0
      %v6603 = vadd.f32 0.0, %v6602
      %v6604 = vpop.f32.mrb[0].mxu0
      %v6605 = vpop.f32.mrb[0].mxu0
      %v6606 = vadd.f32 0.0, %v6605
      %v6607 = vpop.f32.mrb[0].mxu0
      %6608 = vmatprep.mubr.bf16.mxu0 0
      %6609 = vmatmul.mubr.bf16.gmra.mrb[0].mxu0 %v6538
      %v6610 = vpop.f32.mrb[0].mxu0
      %v6611 = vadd.f32 0.0, %v6610
      %v6612 = vpop.f32.mrb[0].mxu0
      %v6613 = vpop.f32.mrb[0].mxu0
      %v6614 = vadd.f32 0.0, %v6613
      %v6615 = vpop.f32.mrb[0].mxu0
      %6616 = vmatprep.mubr.bf16.mxu0 0
      %6617 = vmatmul.mubr.bf16.gmra.mrb[0].mxu0 %v6540
      %v6618 = vpop.f32.mrb[0].mxu0
      %v6619 = vadd.f32 0.0, %v6618
      %v6620 = vpop.f32.mrb[0].mxu0
      %v6621 = vpop.f32.mrb[0].mxu0
      %v6622 = vadd.f32 0.0, %v6621
      %v6623 = vpop.f32.mrb[0].mxu0
      %6624 = vmatprep.mubr.bf16.mxu0 0
      %6625 = vmatmul.mubr.bf16.gmra.mrb[0].mxu0 %v6542
      %v6626 = vpop.f32.mrb[0].mxu0
      %v6627 = vadd.f32 0.0, %v6626
      %v6628 = vpop.f32.mrb[0].mxu0
      %v6629 = vpop.f32.mrb[0].mxu0
      %v6630 = vadd.f32 0.0, %v6629
      %v6631 = vpop.f32.mrb[0].mxu0
      %6632 = vmatprep.mubr.bf16.mxu0 0
      %6633 = vmatmul.mubr.bf16.gmra.mrb[0].mxu0 %v6544
      %v6634 = vpop.f32.mrb[0].mxu0
      %v6635 = vadd.f32 0.0, %v6634
      %v6636 = vpop.f32.mrb[0].mxu0
      %v6637 = vpop.f32.mrb[0].mxu0
      %v6638 = vadd.f32 0.0, %v6637
      %v6639 = vpop.f32.mrb[0].mxu0
      %6640 = vmatprep.mubr.bf16.mxu0 0
      %6641 = vmatmul.mubr.bf16.gmra.mrb[0].mxu0 %v6546
      %v6642 = vpop.f32.mrb[0].mxu0
      %v6643 = vadd.f32 0.0, %v6642
      %v6644 = vpop.f32.mrb[0].mxu0
      %v6645 = vpop.f32.mrb[0].mxu0
      %v6646 = vadd.f32 0.0, %v6645
      %v6647 = vpop.f32.mrb[0].mxu0
      %6648 = vmatprep.mubr.bf16.mxu0 0
      %6649 = vmatmul.mubr.bf16.gmra.mrb[0].mxu0 %v6548
      %v6650 = vpop.f32.mrb[0].mxu0
      %v6651 = vadd.f32 0.0, %v6650
      %v6652 = vpop.f32.mrb[0].mxu0
      %v6653 = vpop.f32.mrb[0].mxu0
      %v6654 = vadd.f32 0.0, %v6653
      %v6655 = vpop.f32.mrb[0].mxu0
      %6656 = vmatprep.mubr.bf16.mxu0 0
      %6657 = vmatmul.mubr.bf16.gmra.mrb[0].mxu0 %v6550
      %v6658 = vpop.f32.mrb[0].mxu0
      %v6659 = vadd.f32 0.0, %v6658
      %v6660 = vpop.f32.mrb[0].mxu0
      %v6661 = vpop.f32.mrb[0].mxu0
      %v6662 = vadd.f32 0.0, %v6661
      %v6663 = vpop.f32.mrb[0].mxu0
      %6664 = vmatprep.mubr.bf16.mxu0 0
      %6665 = vmatmul.mubr.bf16.gmra.mrb[0].mxu0 %v6552
      %v6666 = vpop.f32.mrb[0].mxu0
      %v6667 = vadd.f32 0.0, %v6666
      %v6668 = vpop.f32.mrb[0].mxu0
      %v6669 = vpop.f32.mrb[0].mxu0
      %v6670 = vadd.f32 0.0, %v6669
      %v6671 = vpop.f32.mrb[0].mxu0
      %6672 = vmatprep.mubr.bf16.mxu0 0
      %6673 = vmatmul.mubr.bf16.gmra.mrb[0].mxu0 %v6554
      %v6674 = vpop.f32.mrb[0].mxu0
      %v6675 = vadd.f32 0.0, %v6674
      %v6676 = vpop.f32.mrb[0].mxu0
      %v6677 = vpop.f32.mrb[0].mxu0
      %v6678 = vadd.f32 0.0, %v6677
      %v6679 = vpop.f32.mrb[0].mxu0
      %6680 = vmatprep.mubr.bf16.mxu0 0
      %6681 = vmatmul.mubr.bf16.gmra.mrb[0].mxu0 %v6556
      %v6682 = vpop.f32.mrb[0].mxu0
      %v6683 = vadd.f32 0.0, %v6682
      %v6684 = vpop.f32.mrb[0].mxu0
      %v6685 = vpop.f32.mrb[0].mxu0
      %v6686 = vadd.f32 0.0, %v6685
      %v6687 = vpop.f32.mrb[0].mxu0
      %6688 = vmatprep.mubr.bf16.mxu0 0
      %6689 = vmatmul.mubr.bf16.gmra.mrb[0].mxu0 %v6558
      %v6690 = vpop.f32.mrb[0].mxu0
      %v6691 = vadd.f32 0.0, %v6690
      %v6692 = vpop.f32.mrb[0].mxu0
      %v6693 = vpop.f32.mrb[0].mxu0
      %v6694 = vadd.f32 0.0, %v6693
      %v6695 = vpop.f32.mrb[0].mxu0
      %6696 = vmatprep.mubr.bf16.mxu0 0
      %6697 = vmatmul.mubr.bf16.gmra.mrb[0].mxu0 %v6560
      %v6698 = vpop.f32.mrb[0].mxu0
      %v6699 = vadd.f32 0.0, %v6698
      %v6700 = vpop.f32.mrb[0].mxu0
      %v6701 = vpop.f32.mrb[0].mxu0
      %v6702 = vadd.f32 0.0, %v6701
      %v6703 = vpop.f32.mrb[0].mxu0
      %6704 = vmatprep.mubr.bf16.mxu0 0
      %6705 = vmatmul.mubr.bf16.gmra.mrb[0].mxu0 %v6562
      %v6706 = vpop.f32.mrb[0].mxu0
      %v6707 = vadd.f32 0.0, %v6706
      %v6708 = vpop.f32.mrb[0].mxu0
      %v6709 = vpop.f32.mrb[0].mxu0
      %v6710 = vadd.f32 0.0, %v6709
      %v6711 = vpop.f32.mrb[0].mxu0
      %6712 = vmatprep.mubr.bf16.mxu0 0
      %6713 = vmatmul.mubr.bf16.gmra.mrb[0].mxu0 %v6564
      %v6714 = vpop.f32.mrb[0].mxu0
      %v6715 = vadd.f32 0.0, %v6714
      %v6716 = vpop.f32.mrb[0].mxu0
      %v6717 = vpop.f32.mrb[0].mxu0
      %v6718 = vadd.f32 0.0, %v6717
      %v6719 = vpop.f32.mrb[0].mxu0
      %6720 = vmatprep.mubr.bf16.mxu0 0
      %6721 = vmatmul.mubr.bf16.gmra.mrb[0].mxu0 %v6566
      %v6722 = vpop.f32.mrb[0].mxu0
      %v6723 = vadd.f32 0.0, %v6722
      %v6724 = vpop.f32.mrb[0].mxu0
      %v6725 = vpop.f32.mrb[0].mxu0
      %v6726 = vadd.f32 0.0, %v6725
      %v6727 = vpop.f32.mrb[0].mxu0
      %6728 = vdwg.mxu0
      %v6735 = vunpack.c.l.b16 %v6474
      %v6736 = vunpack.c.l.b16 %v6475
      %v6737 = vunpack.c.l.b16 %v6476
      %v6738 = vunpack.c.l.b16 %v6477
      %v6739 = vunpack.c.l.b16 %v6478
      %v6740 = vunpack.c.l.b16 %v6479
      %v6741 = vpack.c.b16 %v6736, %v6735
      %v6742 = vpack.c.b16 %v6738, %v6737
      %v6743 = vpack.c.b16 %v6740, %v6739
      %v6747 = vsel %vm2886, %v6443, 0
      %6749 = vmatprep.subr.bf16.mxu0 0
      %6750 = vmatpush1.bf16.msra.mxu0 %v6741
      %6751 = vmatprep.subr.bf16.mxu0 0
      %6752 = vmatpush1.bf16.msra.mxu0 %v6742
      %6753 = vmatprep.subr.bf16.mxu0 0
      %6754 = vmatpush1.bf16.msra.mxu0 %v6743
      %6755 = vmatprep.subr.bf16.mxu0 0
      %6756 = vmatpush1.bf16.msra.mxu0 0
      %6757 = vmatprep.subr.bf16.mxu0 0
      %6758 = vmatpush1.bf16.msra.mxu0 0
      %6759 = vmatprep.subr.bf16.mxu0 0
      %6760 = vmatpush1.bf16.msra.mxu0 0
      %6761 = vmatprep.subr.bf16.mxu0 0
      %6762 = vmatpush1.bf16.msra.mxu0 0
      %6763 = vmatprep.subr.bf16.mxu0 0
      %6764 = vmatpush1.bf16.msra.mxu0 0
      %6765 = vmatprep.subr.bf16.mxu0 0
      %6766 = vmatpush1.bf16.msra.mxu0 0
      %6767 = vmatprep.subr.bf16.mxu0 0
      %6768 = vmatpush1.bf16.msra.mxu0 0
      %6769 = vmatprep.subr.bf16.mxu0 0
      %6770 = vmatpush1.bf16.msra.mxu0 0
      %6771 = vmatprep.subr.bf16.mxu0 0
      %6772 = vmatpush1.bf16.msra.mxu0 0
      %6773 = vmatprep.subr.bf16.mxu0 0
      %6774 = vmatpush1.bf16.msra.mxu0 0
      %6775 = vmatprep.subr.bf16.mxu0 0
      %6776 = vmatpush1.bf16.msra.mxu0 0
      %6777 = vmatprep.subr.bf16.mxu0 0
      %6778 = vmatpush1.bf16.msra.mxu0 0
      %6779 = vmatprep.subr.bf16.mxu0 0
      %6780 = vmatpush1.bf16.msra.mxu0 0
      %6781 = vmatprep.mubr.bf16.mxu0 0
      %6782 = vmatmul.mubr.bf16.gmra.mrb[0].mxu0 %v6747
      %v6783 = vpop.f32.mrb[0].mxu0
      %v6784 = vadd.f32 %v6603, %v6783
      %v6785 = vpop.f32.mrb[0].mxu0
      %v6786 = vpop.f32.mrb[0].mxu0
      %v6787 = vadd.f32 %v6606, %v6786
      %v6788 = vpop.f32.mrb[0].mxu0
      %6789 = vmatprep.mubr.bf16.mxu0 0
      %6790 = vmatmul.mubr.bf16.gmra.mrb[0].mxu0 %v6536
      %v6791 = vpop.f32.mrb[0].mxu0
      %v6792 = vadd.f32 %v6611, %v6791
      %v6793 = vpop.f32.mrb[0].mxu0
      %v6794 = vpop.f32.mrb[0].mxu0
      %v6795 = vadd.f32 %v6614, %v6794
      %v6796 = vpop.f32.mrb[0].mxu0
      %6797 = vmatprep.mubr.bf16.mxu0 0
      %6798 = vmatmul.mubr.bf16.gmra.mrb[0].mxu0 %v6538
      %v6799 = vpop.f32.mrb[0].mxu0
      %v6800 = vadd.f32 %v6619, %v6799
      %v6801 = vpop.f32.mrb[0].mxu0
      %v6802 = vpop.f32.mrb[0].mxu0
      %v6803 = vadd.f32 %v6622, %v6802
      %v6804 = vpop.f32.mrb[0].mxu0
      %6805 = vmatprep.mubr.bf16.mxu0 0
      %6806 = vmatmul.mubr.bf16.gmra.mrb[0].mxu0 %v6540
      %v6807 = vpop.f32.mrb[0].mxu0
      %v6808 = vadd.f32 %v6627, %v6807
      %v6809 = vpop.f32.mrb[0].mxu0
      %v6810 = vpop.f32.mrb[0].mxu0
      %v6811 = vadd.f32 %v6630, %v6810
      %v6812 = vpop.f32.mrb[0].mxu0
      %6813 = vmatprep.mubr.bf16.mxu0 0
      %6814 = vmatmul.mubr.bf16.gmra.mrb[0].mxu0 %v6542
      %v6815 = vpop.f32.mrb[0].mxu0
      %v6816 = vadd.f32 %v6635, %v6815
      %v6817 = vpop.f32.mrb[0].mxu0
      %v6818 = vpop.f32.mrb[0].mxu0
      %v6819 = vadd.f32 %v6638, %v6818
      %v6820 = vpop.f32.mrb[0].mxu0
      %6821 = vmatprep.mubr.bf16.mxu0 0
      %6822 = vmatmul.mubr.bf16.gmra.mrb[0].mxu0 %v6544
      %v6823 = vpop.f32.mrb[0].mxu0
      %v6824 = vadd.f32 %v6643, %v6823
      %v6825 = vpop.f32.mrb[0].mxu0
      %v6826 = vpop.f32.mrb[0].mxu0
      %v6827 = vadd.f32 %v6646, %v6826
      %v6828 = vpop.f32.mrb[0].mxu0
      %6829 = vmatprep.mubr.bf16.mxu0 0
      %6830 = vmatmul.mubr.bf16.gmra.mrb[0].mxu0 %v6546
      %v6831 = vpop.f32.mrb[0].mxu0
      %v6832 = vadd.f32 %v6651, %v6831
      %v6833 = vpop.f32.mrb[0].mxu0
      %v6834 = vpop.f32.mrb[0].mxu0
      %v6835 = vadd.f32 %v6654, %v6834
      %v6836 = vpop.f32.mrb[0].mxu0
      %6837 = vmatprep.mubr.bf16.mxu0 0
      %6838 = vmatmul.mubr.bf16.gmra.mrb[0].mxu0 %v6548
      %v6839 = vpop.f32.mrb[0].mxu0
      %v6840 = vadd.f32 %v6659, %v6839
      %v6841 = vpop.f32.mrb[0].mxu0
      %v6842 = vpop.f32.mrb[0].mxu0
      %v6843 = vadd.f32 %v6662, %v6842
      %v6844 = vpop.f32.mrb[0].mxu0
      %6845 = vmatprep.mubr.bf16.mxu0 0
      %6846 = vmatmul.mubr.bf16.gmra.mrb[0].mxu0 %v6550
      %v6847 = vpop.f32.mrb[0].mxu0
      %v6848 = vadd.f32 %v6667, %v6847
      %v6849 = vpop.f32.mrb[0].mxu0
      %v6850 = vpop.f32.mrb[0].mxu0
      %v6851 = vadd.f32 %v6670, %v6850
      %v6852 = vpop.f32.mrb[0].mxu0
      %6853 = vmatprep.mubr.bf16.mxu0 0
      %6854 = vmatmul.mubr.bf16.gmra.mrb[0].mxu0 %v6552
      %v6855 = vpop.f32.mrb[0].mxu0
      %v6856 = vadd.f32 %v6675, %v6855
      %v6857 = vpop.f32.mrb[0].mxu0
      %v6858 = vpop.f32.mrb[0].mxu0
      %v6859 = vadd.f32 %v6678, %v6858
      %v6860 = vpop.f32.mrb[0].mxu0
      %6861 = vmatprep.mubr.bf16.mxu0 0
      %6862 = vmatmul.mubr.bf16.gmra.mrb[0].mxu0 %v6554
      %v6863 = vpop.f32.mrb[0].mxu0
      %v6864 = vadd.f32 %v6683, %v6863
      %v6865 = vpop.f32.mrb[0].mxu0
      %v6866 = vpop.f32.mrb[0].mxu0
      %v6867 = vadd.f32 %v6686, %v6866
      %v6868 = vpop.f32.mrb[0].mxu0
      %6869 = vmatprep.mubr.bf16.mxu0 0
      %6870 = vmatmul.mubr.bf16.gmra.mrb[0].mxu0 %v6556
      %v6871 = vpop.f32.mrb[0].mxu0
      %v6872 = vadd.f32 %v6691, %v6871
      %v6873 = vpop.f32.mrb[0].mxu0
      %v6874 = vpop.f32.mrb[0].mxu0
      %v6875 = vadd.f32 %v6694, %v6874
      %v6876 = vpop.f32.mrb[0].mxu0
      %6877 = vmatprep.mubr.bf16.mxu0 0
      %6878 = vmatmul.mubr.bf16.gmra.mrb[0].mxu0 %v6558
      %v6879 = vpop.f32.mrb[0].mxu0
      %v6880 = vadd.f32 %v6699, %v6879
      %v6881 = vpop.f32.mrb[0].mxu0
      %v6882 = vpop.f32.mrb[0].mxu0
      %v6883 = vadd.f32 %v6702, %v6882
      %v6884 = vpop.f32.mrb[0].mxu0
      %6885 = vmatprep.mubr.bf16.mxu0 0
      %6886 = vmatmul.mubr.bf16.gmra.mrb[0].mxu0 %v6560
      %v6887 = vpop.f32.mrb[0].mxu0
      %v6888 = vadd.f32 %v6707, %v6887
      %v6889 = vpop.f32.mrb[0].mxu0
      %v6890 = vpop.f32.mrb[0].mxu0
      %v6891 = vadd.f32 %v6710, %v6890
      %v6892 = vpop.f32.mrb[0].mxu0
      %6893 = vmatprep.mubr.bf16.mxu0 0
      %6894 = vmatmul.mubr.bf16.gmra.mrb[0].mxu0 %v6562
      %v6895 = vpop.f32.mrb[0].mxu0
      %v6896 = vadd.f32 %v6715, %v6895
      %v6897 = vpop.f32.mrb[0].mxu0
      %v6898 = vpop.f32.mrb[0].mxu0
      %v6899 = vadd.f32 %v6718, %v6898
      %v6900 = vpop.f32.mrb[0].mxu0
      %6901 = vmatprep.mubr.bf16.mxu0 0
      %6902 = vmatmul.mubr.bf16.gmra.mrb[0].mxu0 %v6564
      %v6903 = vpop.f32.mrb[0].mxu0
      %v6904 = vadd.f32 %v6723, %v6903
      %v6905 = vpop.f32.mrb[0].mxu0
      %v6906 = vpop.f32.mrb[0].mxu0
      %v6907 = vadd.f32 %v6726, %v6906
      %v6908 = vpop.f32.mrb[0].mxu0
      %6909 = vdwg.mxu0
      %v6912 = vunpack.c.l.b16 %v5975
      %v6913 = vunpack.c.l.b16 %v5976
      %v6914 = vpack.c.b16 %v6913, %v6912
      %v6916 = vunpack.c.l.b16 %v5977
      %v6917 = vpack.c.b16 %v6916, %v6916
      %v6919 = vshrl.u32 %v6914, 16
      %v6921 = vshll.u32 %v6914, 16
      %v6923 = vrot.slane %v6921, 1
      %v6924 = vor.u32 %v6919, %v6923
      %v6926 = vshll.u32 %v6917, 16
      %v6928 = vrot.slane %v6926, 1
      %v6929 = vsel %vm2453, %v6924, %v6928
      %6930 = vrot.lane.b32.xlu0 %v6929, 16
      %v6931 = vpop.permute.xlu0 %6930
      %v6932 = vrot.slane %v6914, 1
      %v6933 = vrot.slane %v6917, 1
      %v6934 = vsel %vm2678, %v6932, %v6933
      %6935 = vrot.lane.b32.xlu0 %v6934, 32
      %v6936 = vpop.permute.xlu0 %6935
      %v6938 = vsel %vm647, %v6914, %v6931
      %v6940 = vsel %vm2791, %v6938, %v6936
      %s6941 = scalar_lea.vmem %s10, 48
      %v6942 = vld [vmem:[%s6941] sm:$0xf]
      %v6943 = vld [vmem:[%s6941 + $0x4] sm:$0xf]
      %v6944 = vld [vmem:[%s6941 + $0x8] sm:$0xf]
      %v6945 = vld [vmem:[%s6941 + $0xc] sm:$0xf]
      %v6946 = vld [vmem:[%s6941 + $0x10] sm:$0xf]
      %v6947 = vld [vmem:[%s6941 + $0x14] sm:$0xf]
      %v6954 = vunpack.c.l.b16 %v6942
      %v6955 = vunpack.c.l.b16 %v6943
      %v6956 = vunpack.c.l.b16 %v6944
      %v6957 = vunpack.c.l.b16 %v6945
      %v6958 = vunpack.c.l.b16 %v6946
      %v6959 = vunpack.c.l.b16 %v6947
      %v6960 = vpack.c.b16 %v6955, %v6954
      %v6961 = vpack.c.b16 %v6957, %v6956
      %v6962 = vpack.c.b16 %v6959, %v6958
      %v6966 = vsel %vm2886, %v6940, 0
      %6968 = vmatprep.subr.bf16.mxu0 0
      %6969 = vmatpush1.bf16.msra.mxu0 %v6960
      %6970 = vmatprep.subr.bf16.mxu0 0
      %6971 = vmatpush1.bf16.msra.mxu0 %v6961
      %6972 = vmatprep.subr.bf16.mxu0 0
      %6973 = vmatpush1.bf16.msra.mxu0 %v6962
      %6974 = vmatprep.subr.bf16.mxu0 0
      %6975 = vmatpush1.bf16.msra.mxu0 0
      %6976 = vmatprep.subr.bf16.mxu0 0
      %6977 = vmatpush1.bf16.msra.mxu0 0
      %6978 = vmatprep.subr.bf16.mxu0 0
      %6979 = vmatpush1.bf16.msra.mxu0 0
      %6980 = vmatprep.subr.bf16.mxu0 0
      %6981 = vmatpush1.bf16.msra.mxu0 0
      %6982 = vmatprep.subr.bf16.mxu0 0
      %6983 = vmatpush1.bf16.msra.mxu0 0
      %6984 = vmatprep.subr.bf16.mxu0 0
      %6985 = vmatpush1.bf16.msra.mxu0 0
      %6986 = vmatprep.subr.bf16.mxu0 0
      %6987 = vmatpush1.bf16.msra.mxu0 0
      %6988 = vmatprep.subr.bf16.mxu0 0
      %6989 = vmatpush1.bf16.msra.mxu0 0
      %6990 = vmatprep.subr.bf16.mxu0 0
      %6991 = vmatpush1.bf16.msra.mxu0 0
      %6992 = vmatprep.subr.bf16.mxu0 0
      %6993 = vmatpush1.bf16.msra.mxu0 0
      %6994 = vmatprep.subr.bf16.mxu0 0
      %6995 = vmatpush1.bf16.msra.mxu0 0
      %6996 = vmatprep.subr.bf16.mxu0 0
      %6997 = vmatpush1.bf16.msra.mxu0 0
      %6998 = vmatprep.subr.bf16.mxu0 0
      %6999 = vmatpush1.bf16.msra.mxu0 0
      %7000 = vmatprep.mubr.bf16.mxu0 0
      %7001 = vmatmul.mubr.bf16.gmra.mrb[0].mxu0 %v6538
      %v7002 = vpop.f32.mrb[0].mxu0
      %v7003 = vadd.f32 0.0, %v7002
      %v7004 = vpop.f32.mrb[0].mxu0
      %v7005 = vpop.f32.mrb[0].mxu0
      %v7006 = vadd.f32 0.0, %v7005
      %v7007 = vpop.f32.mrb[0].mxu0
      %7008 = vmatprep.mubr.bf16.mxu0 0
      %7009 = vmatmul.mubr.bf16.gmra.mrb[0].mxu0 %v6540
      %v7010 = vpop.f32.mrb[0].mxu0
      %v7011 = vadd.f32 0.0, %v7010
      %v7012 = vpop.f32.mrb[0].mxu0
      %v7013 = vpop.f32.mrb[0].mxu0
      %v7014 = vadd.f32 0.0, %v7013
      %v7015 = vpop.f32.mrb[0].mxu0
      %7016 = vmatprep.mubr.bf16.mxu0 0
      %7017 = vmatmul.mubr.bf16.gmra.mrb[0].mxu0 %v6542
      %v7018 = vpop.f32.mrb[0].mxu0
      %v7019 = vadd.f32 0.0, %v7018
      %v7020 = vpop.f32.mrb[0].mxu0
      %v7021 = vpop.f32.mrb[0].mxu0
      %v7022 = vadd.f32 0.0, %v7021
      %v7023 = vpop.f32.mrb[0].mxu0
      %7024 = vmatprep.mubr.bf16.mxu0 0
      %7025 = vmatmul.mubr.bf16.gmra.mrb[0].mxu0 %v6544
      %v7026 = vpop.f32.mrb[0].mxu0
      %v7027 = vadd.f32 0.0, %v7026
      %v7028 = vpop.f32.mrb[0].mxu0
      %v7029 = vpop.f32.mrb[0].mxu0
      %v7030 = vadd.f32 0.0, %v7029
      %v7031 = vpop.f32.mrb[0].mxu0
      %7032 = vmatprep.mubr.bf16.mxu0 0
      %7033 = vmatmul.mubr.bf16.gmra.mrb[0].mxu0 %v6546
      %v7034 = vpop.f32.mrb[0].mxu0
      %v7035 = vadd.f32 0.0, %v7034
      %v7036 = vpop.f32.mrb[0].mxu0
      %v7037 = vpop.f32.mrb[0].mxu0
      %v7038 = vadd.f32 0.0, %v7037
      %v7039 = vpop.f32.mrb[0].mxu0
      %7040 = vmatprep.mubr.bf16.mxu0 0
      %7041 = vmatmul.mubr.bf16.gmra.mrb[0].mxu0 %v6548
      %v7042 = vpop.f32.mrb[0].mxu0
      %v7043 = vadd.f32 0.0, %v7042
      %v7044 = vpop.f32.mrb[0].mxu0
      %v7045 = vpop.f32.mrb[0].mxu0
      %v7046 = vadd.f32 0.0, %v7045
      %v7047 = vpop.f32.mrb[0].mxu0
      %7048 = vmatprep.mubr.bf16.mxu0 0
      %7049 = vmatmul.mubr.bf16.gmra.mrb[0].mxu0 %v6550
      %v7050 = vpop.f32.mrb[0].mxu0
      %v7051 = vadd.f32 0.0, %v7050
      %v7052 = vpop.f32.mrb[0].mxu0
      %v7053 = vpop.f32.mrb[0].mxu0
      %v7054 = vadd.f32 0.0, %v7053
      %v7055 = vpop.f32.mrb[0].mxu0
      %7056 = vmatprep.mubr.bf16.mxu0 0
      %7057 = vmatmul.mubr.bf16.gmra.mrb[0].mxu0 %v6552
      %v7058 = vpop.f32.mrb[0].mxu0
      %v7059 = vadd.f32 0.0, %v7058
      %v7060 = vpop.f32.mrb[0].mxu0
      %v7061 = vpop.f32.mrb[0].mxu0
      %v7062 = vadd.f32 0.0, %v7061
      %v7063 = vpop.f32.mrb[0].mxu0
      %7064 = vmatprep.mubr.bf16.mxu0 0
      %7065 = vmatmul.mubr.bf16.gmra.mrb[0].mxu0 %v6554
      %v7066 = vpop.f32.mrb[0].mxu0
      %v7067 = vadd.f32 0.0, %v7066
      %v7068 = vpop.f32.mrb[0].mxu0
      %v7069 = vpop.f32.mrb[0].mxu0
      %v7070 = vadd.f32 0.0, %v7069
      %v7071 = vpop.f32.mrb[0].mxu0
      %7072 = vmatprep.mubr.bf16.mxu0 0
      %7073 = vmatmul.mubr.bf16.gmra.mrb[0].mxu0 %v6556
      %v7074 = vpop.f32.mrb[0].mxu0
      %v7075 = vadd.f32 0.0, %v7074
      %v7076 = vpop.f32.mrb[0].mxu0
      %v7077 = vpop.f32.mrb[0].mxu0
      %v7078 = vadd.f32 0.0, %v7077
      %v7079 = vpop.f32.mrb[0].mxu0
      %7080 = vmatprep.mubr.bf16.mxu0 0
      %7081 = vmatmul.mubr.bf16.gmra.mrb[0].mxu0 %v6558
      %v7082 = vpop.f32.mrb[0].mxu0
      %v7083 = vadd.f32 0.0, %v7082
      %v7084 = vpop.f32.mrb[0].mxu0
      %v7085 = vpop.f32.mrb[0].mxu0
      %v7086 = vadd.f32 0.0, %v7085
      %v7087 = vpop.f32.mrb[0].mxu0
      %7088 = vmatprep.mubr.bf16.mxu0 0
      %7089 = vmatmul.mubr.bf16.gmra.mrb[0].mxu0 %v6560
      %v7090 = vpop.f32.mrb[0].mxu0
      %v7091 = vadd.f32 0.0, %v7090
      %v7092 = vpop.f32.mrb[0].mxu0
      %v7093 = vpop.f32.mrb[0].mxu0
      %v7094 = vadd.f32 0.0, %v7093
      %v7095 = vpop.f32.mrb[0].mxu0
      %7096 = vmatprep.mubr.bf16.mxu0 0
      %7097 = vmatmul.mubr.bf16.gmra.mrb[0].mxu0 %v6562
      %v7098 = vpop.f32.mrb[0].mxu0
      %v7099 = vadd.f32 0.0, %v7098
      %v7100 = vpop.f32.mrb[0].mxu0
      %v7101 = vpop.f32.mrb[0].mxu0
      %v7102 = vadd.f32 0.0, %v7101
      %v7103 = vpop.f32.mrb[0].mxu0
      %7104 = vmatprep.mubr.bf16.mxu0 0
      %7105 = vmatmul.mubr.bf16.gmra.mrb[0].mxu0 %v6564
      %v7106 = vpop.f32.mrb[0].mxu0
      %v7107 = vadd.f32 0.0, %v7106
      %v7108 = vpop.f32.mrb[0].mxu0
      %v7109 = vpop.f32.mrb[0].mxu0
      %v7110 = vadd.f32 0.0, %v7109
      %v7111 = vpop.f32.mrb[0].mxu0
      %7112 = vmatprep.mubr.bf16.mxu0 0
      %7113 = vmatmul.mubr.bf16.gmra.mrb[0].mxu0 %v6566
      %v7114 = vpop.f32.mrb[0].mxu0
      %v7115 = vadd.f32 0.0, %v7114
      %v7116 = vpop.f32.mrb[0].mxu0
      %v7117 = vpop.f32.mrb[0].mxu0
      %v7118 = vadd.f32 0.0, %v7117
      %v7119 = vpop.f32.mrb[0].mxu0
      %7120 = vmatprep.mubr.bf16.mxu0 0
      %7121 = vmatmul.mubr.bf16.gmra.mrb[0].mxu0 %v6966
      %v7122 = vpop.f32.mrb[0].mxu0
      %v7123 = vadd.f32 0.0, %v7122
      %v7124 = vpop.f32.mrb[0].mxu0
      %v7125 = vpop.f32.mrb[0].mxu0
      %v7126 = vadd.f32 0.0, %v7125
      %v7127 = vpop.f32.mrb[0].mxu0
      %7128 = vdwg.mxu0
      %v7129 = vadd.f32 %v6784, %v7003
      %v7130 = vadd.f32 %v6787, %v7006
      %v7131 = vadd.f32 %v6792, %v7011
      %v7132 = vadd.f32 %v6795, %v7014
      %v7133 = vadd.f32 %v6800, %v7019
      %v7134 = vadd.f32 %v6803, %v7022
      %v7135 = vadd.f32 %v6808, %v7027
      %v7136 = vadd.f32 %v6811, %v7030
      %v7137 = vadd.f32 %v6816, %v7035
      %v7138 = vadd.f32 %v6819, %v7038
      %v7139 = vadd.f32 %v6824, %v7043
      %v7140 = vadd.f32 %v6827, %v7046
      %v7141 = vadd.f32 %v6832, %v7051
      %v7142 = vadd.f32 %v6835, %v7054
      %v7143 = vadd.f32 %v6840, %v7059
      %v7144 = vadd.f32 %v6843, %v7062
      %v7145 = vadd.f32 %v6848, %v7067
      %v7146 = vadd.f32 %v6851, %v7070
      %v7147 = vadd.f32 %v6856, %v7075
      %v7148 = vadd.f32 %v6859, %v7078
      %v7149 = vadd.f32 %v6864, %v7083
      %v7150 = vadd.f32 %v6867, %v7086
      %v7151 = vadd.f32 %v6872, %v7091
      %v7152 = vadd.f32 %v6875, %v7094
      %v7153 = vadd.f32 %v6880, %v7099
      %v7154 = vadd.f32 %v6883, %v7102
      %v7155 = vadd.f32 %v6888, %v7107
      %v7156 = vadd.f32 %v6891, %v7110
      %v7157 = vadd.f32 %v6896, %v7115
      %v7158 = vadd.f32 %v6899, %v7118
      %v7159 = vadd.f32 %v6904, %v7123
      %v7160 = vadd.f32 %v6907, %v7126
      %v7161 = vld [vmem:[%s11] sm:$0x1]
      %v7163 = vlaneseq
      %v7164 = vshrl.u32 %v7163, 7
      %v7165 = vsub.s32 0, %v7164
      %v7166 = vrot.slane %v7161, %v7165
      %v7168 = vadd.f32 %v7129, %v7166
      %v7169 = vadd.f32 %v7130, %v7166
      %v7170 = vadd.f32 %v7131, %v7166
      %v7171 = vadd.f32 %v7132, %v7166
      %v7172 = vadd.f32 %v7133, %v7166
      %v7173 = vadd.f32 %v7134, %v7166
      %v7174 = vadd.f32 %v7135, %v7166
      %v7175 = vadd.f32 %v7136, %v7166
      %v7176 = vadd.f32 %v7137, %v7166
      %v7177 = vadd.f32 %v7138, %v7166
      %v7178 = vadd.f32 %v7139, %v7166
      %v7179 = vadd.f32 %v7140, %v7166
      %v7180 = vadd.f32 %v7141, %v7166
      %v7181 = vadd.f32 %v7142, %v7166
      %v7182 = vadd.f32 %v7143, %v7166
      %v7183 = vadd.f32 %v7144, %v7166
      %v7184 = vadd.f32 %v7145, %v7166
      %v7185 = vadd.f32 %v7146, %v7166
      %v7186 = vadd.f32 %v7147, %v7166
      %v7187 = vadd.f32 %v7148, %v7166
      %v7188 = vadd.f32 %v7149, %v7166
      %v7189 = vadd.f32 %v7150, %v7166
      %v7190 = vadd.f32 %v7151, %v7166
      %v7191 = vadd.f32 %v7152, %v7166
      %v7192 = vadd.f32 %v7153, %v7166
      %v7193 = vadd.f32 %v7154, %v7166
      %v7194 = vadd.f32 %v7155, %v7166
      %v7195 = vadd.f32 %v7156, %v7166
      %v7196 = vadd.f32 %v7157, %v7166
      %v7197 = vadd.f32 %v7158, %v7166
      %v7198 = vadd.f32 %v7159, %v7166
      %v7199 = vadd.f32 %v7160, %v7166
      %v7200 = vmax.f32 %v7168, 0.0
      %v7201 = vmax.f32 %v7169, 0.0
      %v7202 = vmax.f32 %v7170, 0.0
      %v7203 = vmax.f32 %v7171, 0.0
      %v7204 = vmax.f32 %v7172, 0.0
      %v7205 = vmax.f32 %v7173, 0.0
      %v7206 = vmax.f32 %v7174, 0.0
      %v7207 = vmax.f32 %v7175, 0.0
      %v7208 = vmax.f32 %v7176, 0.0
      %v7209 = vmax.f32 %v7177, 0.0
      %v7210 = vmax.f32 %v7178, 0.0
      %v7211 = vmax.f32 %v7179, 0.0
      %v7212 = vmax.f32 %v7180, 0.0
      %v7213 = vmax.f32 %v7181, 0.0
      %v7214 = vmax.f32 %v7182, 0.0
      %v7215 = vmax.f32 %v7183, 0.0
      %v7216 = vmax.f32 %v7184, 0.0
      %v7217 = vmax.f32 %v7185, 0.0
      %v7218 = vmax.f32 %v7186, 0.0
      %v7219 = vmax.f32 %v7187, 0.0
      %v7220 = vmax.f32 %v7188, 0.0
      %v7221 = vmax.f32 %v7189, 0.0
      %v7222 = vmax.f32 %v7190, 0.0
      %v7223 = vmax.f32 %v7191, 0.0
      %v7224 = vmax.f32 %v7192, 0.0
      %v7225 = vmax.f32 %v7193, 0.0
      %v7226 = vmax.f32 %v7194, 0.0
      %v7227 = vmax.f32 %v7195, 0.0
      %v7228 = vmax.f32 %v7196, 0.0
      %v7229 = vmax.f32 %v7197, 0.0
      %v7230 = vmax.f32 %v7198, 0.0
      %v7231 = vmax.f32 %v7199, 0.0
      %7232 = vst.msk [vmem:[%s435] sm:$0xff] %vm647, %v7200
      %7233 = vst.msk [vmem:[%s435 + $0x8] sm:$0xff] %vm647, %v7201
      %7234 = vst.msk [vmem:[%s435 + $0x10] sm:$0xff] %vm647, %v7202
      %7235 = vst.msk [vmem:[%s435 + $0x18] sm:$0xff] %vm647, %v7203
      %7236 = vst.msk [vmem:[%s435 + $0x20] sm:$0xff] %vm647, %v7204
      %7237 = vst.msk [vmem:[%s435 + $0x28] sm:$0xff] %vm647, %v7205
      %7238 = vst.msk [vmem:[%s435 + $0x30] sm:$0xff] %vm647, %v7206
      %7239 = vst.msk [vmem:[%s435 + $0x38] sm:$0xff] %vm647, %v7207
      %7240 = vst.msk [vmem:[%s435 + $0x40] sm:$0xff] %vm647, %v7208
      %7241 = vst.msk [vmem:[%s435 + $0x48] sm:$0xff] %vm647, %v7209
      %7242 = vst.msk [vmem:[%s435 + $0x50] sm:$0xff] %vm647, %v7210
      %7243 = vst.msk [vmem:[%s435 + $0x58] sm:$0xff] %vm647, %v7211
      %7244 = vst.msk [vmem:[%s435 + $0x60] sm:$0xff] %vm647, %v7212
      %7245 = vst.msk [vmem:[%s435 + $0x68] sm:$0xff] %vm647, %v7213
      %7246 = vst.msk [vmem:[%s435 + $0x70] sm:$0xff] %vm647, %v7214
      %7247 = vst.msk [vmem:[%s435 + $0x78] sm:$0xff] %vm647, %v7215
      %7248 = vst.msk [vmem:[%s435 + $0x80] sm:$0xff] %vm647, %v7216
      %7249 = vst.msk [vmem:[%s435 + $0x88] sm:$0xff] %vm647, %v7217
      %7250 = vst.msk [vmem:[%s435 + $0x90] sm:$0xff] %vm647, %v7218
      %7251 = vst.msk [vmem:[%s435 + $0x98] sm:$0xff] %vm647, %v7219
      %7252 = vst.msk [vmem:[%s435 + $0xa0] sm:$0xff] %vm647, %v7220
      %7253 = vst.msk [vmem:[%s435 + $0xa8] sm:$0xff] %vm647, %v7221
      %7254 = vst.msk [vmem:[%s435 + $0xb0] sm:$0xff] %vm647, %v7222
      %7255 = vst.msk [vmem:[%s435 + $0xb8] sm:$0xff] %vm647, %v7223
      %7256 = vst.msk [vmem:[%s435 + $0xc0] sm:$0xff] %vm647, %v7224
      %7257 = vst.msk [vmem:[%s435 + $0xc8] sm:$0xff] %vm647, %v7225
      %7258 = vst.msk [vmem:[%s435 + $0xd0] sm:$0xff] %vm647, %v7226
      %7259 = vst.msk [vmem:[%s435 + $0xd8] sm:$0xff] %vm647, %v7227
      %7260 = vst.msk [vmem:[%s435 + $0xe0] sm:$0xff] %vm647, %v7228
      %7261 = vst.msk [vmem:[%s435 + $0xe8] sm:$0xff] %vm647, %v7229
      %7262 = vst.msk [vmem:[%s435 + $0xf0] sm:$0xff] %vm647, %v7230
      %7263 = vst.msk [vmem:[%s435 + $0xf8] sm:$0xff] %vm647, %v7231
      %p7264 = scmp.lt.s32.totalorder %s25, 1
      %s7265 = scalar_select %p7264, %s25, 1
      %s7266 = smul.addr %s7265, 32
      %s7267 = smul.addr %s7266, 8
      %s7268 = scalar_lea.vmem %s12, %s7267
      // Predicated region
      $region69: #{attention_unet_right_forward.3} parent=67 // pred_check
        %p7269 = pneg %p305
      $region70: #{attention_unet_right_forward.3} parent=67 // pred_check_branch
        %7271 = sbr.rel (%p7269) target = $region72
      $region71: #{attention_unet_right_forward.3} parent=67 // pred_region
        _
      $region72: #{attention_unet_right_forward.3} parent=67 // pred_fallthru
        _
    $region68: #{attention_unet_right_forward.3} parent=5 // pred_fallthru
      _
    %p7272 = scmp.le.s32.totalorder 2, %s20
    // Predicated region
    $region73: #{attention_unet_right_forward.3} parent=5 // pred_check
      %p7273 = pneg %p7272
    $region74: #{attention_unet_right_forward.3} parent=5 // pred_check_branch
      %7275 = sbr.rel (%p7273) target = $region76
    $region75: #{attention_unet_right_forward.3} parent=5 // pred_region
      %s7276 = ssub.s32 %s20, 2
      // Predicated region
      $region77: #{attention_unet_right_forward.3} parent=75 // pred_check
        %p7277 = pneg %p311
      $region78: #{attention_unet_right_forward.3} parent=75 // pred_check_branch
        %7279 = sbr.rel (%p7277) target = $region80
      $region79: #{attention_unet_right_forward.3} parent=75 // pred_region
        %p7280 = scmp.lt.s32.totalorder %s26, 1
        %s7281 = scalar_select %p7280, %s26, 1
        %s7282 = smul.addr %s7281, 32
        %s7283 = smul.addr %s7282, 8
        %s7284 = scalar_lea.vmem %s12, %s7283
      $region80: #{attention_unet_right_forward.3} parent=75 // pred_fallthru
        _
    $region76: #{attention_unet_right_forward.3} parent=5 // pred_fallthru
      _
  $region6: #{attention_unet_right_forward.3} parent=0 // loop_footer
    %s24 = sadd.s32 1, %s20
  $region7: #{attention_unet_right_forward.3} parent=0 // loop_footer_branch
    %19 = sbr.rel target = $region3
  $region8: #{attention_unet_right_forward.3} parent=0 // loop_exit
    _

</llo_original>
